<compile_context>
chip_gen: v7x
topology: tpu7x:2x2x1
jax: 0.10.0
libtpu: 0.0.40
codegen_flags: <defaults>
</compile_context>

<pallas_src>
import jax
import jax.numpy as jnp
from jax.experimental import pallas as pl
from jax.experimental.pallas import tpu as pltpu

# ----------------------------- config ---------------------------------------
END_FILTS = 32          # cf.end_filts
HEAD_CLASSES = 3        # cf.head_classes
POOL_SIZE = 8           # cf.mask_pool_size
PYRAMID_LEVELS = [0, 1, 2]
NUM_GROUPS = 8          # GroupNorm groups (cf.norm == 'group_norm')
GN_EPS = 1e-5
LANE_PACK = 4           # ROIs packed into the lane dim (4 * 32 channels = 128 lanes)
OUT_LANES = 128         # lane-dense kernel output width (48 real cols + zero pad)
RG_PER_BLOCK = 2        # roi-groups per grid step (=> 8 ROIs, matmul M = 128)
MATMUL_DTYPE = jnp.bfloat16


# ----------------------------- fused Pallas kernel ----------------------------
def _mask_head_kernel(x_ref, cw_ref, cb_ref, cg_ref, cbt_ref, gm_ref,
                      dw_ref, db_ref, w5_ref, b5_ref, o_ref):
    """Fused mask head for a block of RG roi-groups (RG * 4 ROIs).

    x_ref  : (RG, P, P, QC)     pooled features, QC = 4*C = 128 lanes (roi, chan)
    cw_ref : (4, 9, QC, QC)     block-diag 3x3 conv weights per layer/tap, bf16
    cb_ref : (4, 1, QC) conv bias | cg_ref/cbt_ref: GN gamma/beta (lane-tiled), f32
    gm_ref : (QC, QC)           GN lane-mixing matrix (block-diag 1/(HW*cpg)), f32
    dw_ref : (QC, 4*QC)         block-diag deconv weight, cols (roi,a,b,cout), bf16
    db_ref : (1, 4*QC)          deconv bias (tiled), f32
    w5_ref : (4*QC, 128)        block-diag 1x1-conv weight, zero-padded cols, bf16
    b5_ref : (1, 128)           1x1-conv bias (tiled, zero-padded), f32
    o_ref  : (RG, HW, 128)      sigmoid masks, lane layout (roi, a, b, cls, pad)
    """
    RG, P = x_ref.shape[0], x_ref.shape[1]
    QC = x_ref.shape[3]
    HW = P * P
    rows = RG * HW
    f32 = jnp.float32

    zrow = jnp.zeros((RG, 1, P, QC), f32)
    zcol = jnp.zeros((RG, P, 1, QC), f32)

    def shift_x(v, dx):
        # column (x) shift with zero fill; 1-sublane register shift, no VMEM traffic
        if dx == 0:
            return jnp.concatenate([zcol, v[:, :, :P - 1, :]], axis=2)
        if dx == 2:
            return jnp.concatenate([v[:, :, 1:, :], zcol], axis=2)
        return v

    x = x_ref[...]                                             # (RG, P, P, QC) f32

    for l in range(4):                                         # conv + GN + ReLU x4
        acc = jnp.zeros((rows, QC), f32)
        for dy in range(3):
            # row (y) shift: slicing / concat along an untiled leading axis (free)
            if dy == 0:
                base = jnp.concatenate([zrow, x[:, :P - 1]], axis=1)
            elif dy == 2:
                base = jnp.concatenate([x[:, 1:], zrow], axis=1)
            else:
                base = x
            for dx in range(3):
                tap = shift_x(base, dx).reshape(rows, QC)
                acc = acc + jnp.dot(tap.astype(cw_ref.dtype),
                                    cw_ref[l, dy * 3 + dx],
                                    preferred_element_type=f32)
        acc = acc + cb_ref[l]                                  # conv bias, f32

        # GroupNorm per (roi, group): stats over (HW, cpg). Lane-mixing matmul keeps
        # everything in (row, lane) layout; affine fused into one scale/shift.
        acc3 = acc.reshape(RG, HW, QC)
        ch_sum = jnp.sum(acc3, axis=1)                         # (RG, QC)
        ch_sq = jnp.sum(acc3 * acc3, axis=1)                   # (RG, QC)
        mean = jnp.dot(ch_sum, gm_ref[...], preferred_element_type=f32)
        ex2 = jnp.dot(ch_sq, gm_ref[...], preferred_element_type=f32)
        var = jnp.maximum(ex2 - mean * mean, 0.0)              # clamp >= 0
        rstd = jax.lax.rsqrt(var + GN_EPS)                     # (RG, QC)
        scale = rstd * cg_ref[l]                               # fused GN affine
        shift = cbt_ref[l] - mean * scale
        x = jnp.maximum(acc3 * scale[:, None, :] + shift[:, None, :], 0.0)
        x = x.reshape(RG, P, P, QC)

    # ConvTranspose2d(k=2, s=2) + ReLU, then 1x1 conv + sigmoid.
    # Chunked over deconv output columns to bound live vregs.
    xb = x.reshape(rows, QC).astype(dw_ref.dtype)
    out_lanes = b5_ref.shape[-1]
    logits = jnp.zeros((rows, out_lanes), f32)
    n_chunks = 4
    ck = dw_ref.shape[1] // n_chunks
    for c in range(n_chunks):
        d = jnp.dot(xb, dw_ref[:, c * ck:(c + 1) * ck], preferred_element_type=f32)
        d = jnp.maximum(d + db_ref[:, c * ck:(c + 1) * ck], 0.0)
        logits = logits + jnp.dot(d.astype(w5_ref.dtype),
                                  w5_ref[c * ck:(c + 1) * ck, :],
                                  preferred_element_type=f32)
    probs = jax.nn.sigmoid(logits + b5_ref[...])               # (rows, 128)
    o_ref[...] = probs.reshape(RG, HW, out_lanes).astype(o_ref.dtype)


# ----------------------------- pallas_call wrapper ----------------------------
def _full_spec(shape):
    nd = len(shape)
    return pl.BlockSpec(shape, lambda i, _n=nd: (0,) * _n)


def mask_head_fused(pooled_nhwc, params):
    """pooled_nhwc: (n, P, P, C) -> masks (n, ncls, 2P, 2P) NCHW."""
    n, P, _, C = pooled_nhwc.shape
    Q = LANE_PACK
    QC = Q * C
    HW = P * P
    ncls = HEAD_CLASSES
    assert QC == OUT_LANES, "lane packing assumes Q*C == 128"

    # Grid sizing: RG_PER_BLOCK roi-groups (= Q*RG ROIs) per step. Gives grid >= 2
    # for the test sizes (keeps both v7x TensorCores busy); per-step overhead on
    # v5e/v6e is negligible at this step count.
    groups = -(-n // Q)
    rg = min(RG_PER_BLOCK, groups)
    num_blocks = -(-groups // rg)
    n_pad = num_blocks * rg * Q
    if n_pad != n:
        # Padded ROIs are all-zero; GroupNorm on them gives rstd ~ 1/sqrt(eps),
        # finite and harmless because those rows are sliced off below.
        pooled_nhwc = jnp.pad(pooled_nhwc,
                              ((0, n_pad - n), (0, 0), (0, 0), (0, 0)))

    # Pack Q consecutive ROIs into lanes: (n_pad, P, P, C) -> (n_pad/Q, P, P, Q*C).
    xp = pooled_nhwc.reshape(n_pad // Q, Q, P, P, C).transpose(0, 2, 3, 1, 4)
    xp = xp.reshape(n_pad // Q, P, P, QC)

    out = pl.pallas_call(
        _mask_head_kernel,
        out_shape=jax.ShapeDtypeStruct((n_pad // Q, HW, OUT_LANES), jnp.float32),
        grid=(num_blocks,),
        in_specs=[
            pl.BlockSpec((rg, P, P, QC), lambda i: (i, 0, 0, 0)),
            _full_spec(params["conv_w"].shape),
            _full_spec(params["conv_b"].shape),
            _full_spec(params["conv_gamma"].shape),
            _full_spec(params["conv_beta"].shape),
            _full_spec(params["gn_mix"].shape),
            _full_spec(params["deconv_w"].shape),
            _full_spec(params["deconv_b"].shape),
            _full_spec(params["conv5_w"].shape),
            _full_spec(params["conv5_b"].shape),
        ],
        out_specs=pl.BlockSpec((rg, HW, OUT_LANES), lambda i: (i, 0, 0)),
        compiler_params=pltpu.CompilerParams(
            dimension_semantics=("parallel",)),
    )(xp, params["conv_w"], params["conv_b"], params["conv_gamma"],
      params["conv_beta"], params["gn_mix"], params["deconv_w"],
      params["deconv_b"], params["conv5_w"], params["conv5_b"])

    # Layout plumbing only (tiny ncls tensor): unpack (q, a, b, cls) lanes -> NCHW.
    out = out[..., :Q * 4 * ncls].reshape(n_pad // Q, P, P, Q, 2, 2, ncls)
    out = out.transpose(0, 3, 6, 1, 4, 2, 5).reshape(n_pad, ncls, 2 * P, 2 * P)
    return out[:n]


# ----------------------------- RoI align (plain JAX glue) ---------------------
# TODO(synk): pyramid RoI-align is a data-dependent bilinear gather over
# variable-resolution feature maps; kept in plain JAX rather than Pallas.
def pyramid_roi_align(feature_maps, rois, pool_size, pyramid_levels):
    """feature_maps: list of (B, C, Hl, Wl); rois: (n, 5) = (y1,x1,y2,x2,b_ix)."""
    y1, x1, y2, x2 = rois[:, 0], rois[:, 1], rois[:, 2], rois[:, 3]
    bix = rois[:, 4].astype(jnp.int32)
    h, w = y2 - y1, x2 - x1
    roi_level = jnp.floor(2.0 + jnp.log2(jnp.sqrt(jnp.maximum(h * w, 1e-8))))
    roi_level = jnp.clip(roi_level, min(pyramid_levels), max(pyramid_levels))
    roi_level = roi_level.astype(jnp.int32)

    def sample_level(fmap, box):
        C, Hl, Wl = fmap.shape
        by1, bx1, by2, bx2 = box
        t = jnp.linspace(0.0, 1.0, pool_size)
        yf = (by1 + (by2 - by1) * t) * (Hl - 1)
        xf = (bx1 + (bx2 - bx1) * t) * (Wl - 1)
        y0 = jnp.clip(jnp.floor(yf), 0, Hl - 1).astype(jnp.int32)
        x0 = jnp.clip(jnp.floor(xf), 0, Wl - 1).astype(jnp.int32)
        y1i = jnp.clip(y0 + 1, 0, Hl - 1)
        x1i = jnp.clip(x0 + 1, 0, Wl - 1)
        wy = (yf - y0)[None, :, None]
        wx = (xf - x0)[None, None, :]
        gather = lambda yi, xi: fmap[:, yi][:, :, xi]          # (C, P, P)
        v00, v01 = gather(y0, x0), gather(y0, x1i)
        v10, v11 = gather(y1i, x0), gather(y1i, x1i)
        return (v00 * (1 - wy) * (1 - wx) + v01 * (1 - wy) * wx
                + v10 * wy * (1 - wx) + v11 * wy * wx)

    levels_arr = jnp.array(pyramid_levels, dtype=jnp.int32)

    def per_roi(roi, level, b):
        box = roi[:4]
        outs = []
        for li in range(len(pyramid_levels)):
            fm = jnp.take(feature_maps[li], b, axis=0)          # (C, Hl, Wl)
            outs.append(sample_level(fm, box))
        stacked = jnp.stack(outs)                               # (L, C, P, P)
        onehot = (level == levels_arr).astype(stacked.dtype)
        return jnp.einsum('l,lcpq->cpq', onehot, stacked)

    return jax.vmap(per_roi)(rois, roi_level, bix)              # (n, C, P, P)


# ----------------------------- parameters ------------------------------------
def init_params(key, c=END_FILTS, ncls=HEAD_CLASSES):
    """Natural-layout parameters (conv weights HWIO, torch-style deconv)."""
    keys = jax.random.split(key, 8)
    p = {}
    for i in range(4):
        p[f"conv{i+1}_w"] = 0.05 * jax.random.normal(keys[i], (3, 3, c, c), jnp.float32)
        p[f"conv{i+1}_b"] = jnp.zeros((c,), jnp.float32)
        p[f"conv{i+1}_gamma"] = jnp.ones((c,), jnp.float32)
        p[f"conv{i+1}_beta"] = jnp.zeros((c,), jnp.float32)
    # ConvTranspose2d weight (Cin, Cout, 2, 2) — torch layout.
    p["deconv_w"] = 0.05 * jax.random.normal(keys[4], (c, c, 2, 2), jnp.float32)
    p["deconv_b"] = 0.01 * jax.random.normal(keys[5], (c,), jnp.float32)
    p["conv5_w"] = 0.05 * jax.random.normal(keys[6], (c, ncls), jnp.float32)
    p["conv5_b"] = 0.01 * jax.random.normal(keys[7], (ncls,), jnp.float32)
    return p


def pack_params(p, c=END_FILTS, ncls=HEAD_CLASSES, q=LANE_PACK,
                pool=POOL_SIZE, matmul_dtype=MATMUL_DTYPE):
    """Pack natural params into the lane-packed, block-diagonal kernel layout."""
    qc = q * c
    eye_q = jnp.eye(q, dtype=jnp.float32)

    def pack_conv(w):                                            # (3,3,c,c) HWIO
        w9 = w.reshape(9, c, c)
        return jnp.stack([jnp.kron(eye_q, w9[t]) for t in range(9)])   # (9, qc, qc)

    tile_lane = lambda v: jnp.tile(v.reshape(1, c), (1, q))      # (1, qc)

    cw = jnp.stack([pack_conv(p[f"conv{i+1}_w"]) for i in range(4)])   # (4,9,qc,qc)
    cb = jnp.stack([tile_lane(p[f"conv{i+1}_b"]) for i in range(4)])   # (4,1,qc)
    cg = jnp.stack([tile_lane(p[f"conv{i+1}_gamma"]) for i in range(4)])
    cbt = jnp.stack([tile_lane(p[f"conv{i+1}_beta"]) for i in range(4)])

    # GroupNorm lane-mixing matrix: block-diag mean over (HW x channels-per-group).
    cpg = c // NUM_GROUPS
    lg = jnp.arange(qc) // cpg
    gn_mix = (lg[:, None] == lg[None, :]).astype(jnp.float32) / float(pool * pool * cpg)

    # ConvTranspose2d weight (Cin,Cout,2,2) -> per-roi (c, 4c) with cols (a,b,cout);
    # block-diagonal over the 4 lane-packed ROIs.
    dw1 = jnp.transpose(p["deconv_w"], (0, 2, 3, 1)).reshape(c, 4 * c)
    dw = jnp.kron(eye_q, dw1)                                    # (qc, 4*qc)
    db = jnp.tile(p["deconv_b"].reshape(1, c), (1, 4 * q))       # (1, 4*qc)

    # 1x1 conv: block-diagonal over (roi, a, b); pad columns to lane-dense 128.
    w5 = jnp.kron(jnp.eye(4 * q, dtype=jnp.float32), p["conv5_w"])   # (4qc, 4q*ncls)
    b5 = jnp.tile(p["conv5_b"].reshape(1, ncls), (1, 4 * q))         # (1, 4q*ncls)
    pad_cols = OUT_LANES - 4 * q * ncls
    w5 = jnp.pad(w5, ((0, 0), (0, pad_cols)))
    b5 = jnp.pad(b5, ((0, 0), (0, pad_cols)))

    return dict(conv_w=cw.astype(matmul_dtype), conv_b=cb,
                conv_gamma=cg, conv_beta=cbt, gn_mix=gn_mix,
                deconv_w=dw.astype(matmul_dtype), deconv_b=db,
                conv5_w=w5.astype(matmul_dtype), conv5_b=b5)


# ----------------------------- Mask head forward ------------------------------
@jax.jit
def mask_forward(params, feature_maps, rois):
    pooled = pyramid_roi_align(feature_maps, rois, POOL_SIZE, PYRAMID_LEVELS)
    x = pooled.transpose(0, 2, 3, 1)                 # (n, P, P, C) NHWC
    return mask_head_fused(x, params)                # (n, ncls, 2P, 2P) NCHW


# ----------------------------- main -------------------------------------------
if __name__ == "__main__":
    key = jax.random.PRNGKey(0)
    kp, kf0, kf1, kf2, kr1, kr2, kr3 = jax.random.split(key, 7)

    params = pack_params(init_params(kp))

    B, C = 2, END_FILTS
    # Pyramid feature maps, NCHW like the PyTorch module's inputs.
    feature_maps = [
        jax.random.normal(kf0, (B, C, 32, 32), jnp.float32),
        jax.random.normal(kf1, (B, C, 16, 16), jnp.float32),
        jax.random.normal(kf2, (B, C, 8, 8), jnp.float32),
    ]

    n_rois = 16
    yx1 = jax.random.uniform(kr1, (n_rois, 2), minval=0.05, maxval=0.45)
    hw = jax.random.uniform(kr2, (n_rois, 2), minval=0.1, maxval=0.5)
    yx2 = jnp.clip(yx1 + hw, 0.0, 1.0)
    bix = jax.random.randint(kr3, (n_rois, 1), 0, B).astype(jnp.float32)
    rois = jnp.concatenate(
        [yx1[:, 0:1], yx1[:, 1:2], yx2[:, 0:1], yx2[:, 1:2], bix], axis=1)

    out = mask_forward(params, feature_maps, rois)
    out = jax.block_until_ready(out)

    expected = (n_rois, HEAD_CLASSES, 2 * POOL_SIZE, 2 * POOL_SIZE)
    assert out.shape == expected, (out.shape, expected)
    assert bool(jnp.all(jnp.isfinite(out)))
    assert bool(jnp.all((out >= 0.0) & (out <= 1.0)))
    print("KERNEL_OK")
</pallas_src>

<mosaic_0001>
module attributes {stable_mosaic.version = 11 : i64} {
  func.func @_mask_head_kernel(%arg0: i32, %arg1: memref<2x8x8x128xf32, #tpu.memory_space<vmem>>, %arg2: memref<4x9x128x128xbf16, #tpu.memory_space<vmem>>, %arg3: memref<4x1x128xf32, #tpu.memory_space<vmem>>, %arg4: memref<4x1x128xf32, #tpu.memory_space<vmem>>, %arg5: memref<4x1x128xf32, #tpu.memory_space<vmem>>, %arg6: memref<128x128xf32, #tpu.memory_space<vmem>>, %arg7: memref<128x512xbf16, #tpu.memory_space<vmem>>, %arg8: memref<1x512xf32, #tpu.memory_space<vmem>>, %arg9: memref<512x128xbf16, #tpu.memory_space<vmem>>, %arg10: memref<1x128xf32, #tpu.memory_space<vmem>>, %arg11: memref<2x64x128xf32, #tpu.memory_space<vmem>>) attributes {dimension_semantics = [#tpu.dimension_semantics<parallel>], iteration_bounds = array<i64: 2>, scalar_prefetch = 0 : i64, scratch_operands = 0 : i64, tpu.core_type = #tpu.core_type<tc>, window_params = [{transform_indices = @transform_0, window_bounds = array<i64: 2, 8, 8, 128>}, {pipeline_mode = #tpu.pipeline_mode<synchronous>, transform_indices = @transform_1, window_bounds = array<i64: 4, 9, 128, 128>}, {pipeline_mode = #tpu.pipeline_mode<synchronous>, transform_indices = @transform_2, window_bounds = array<i64: 4, 1, 128>}, {pipeline_mode = #tpu.pipeline_mode<synchronous>, transform_indices = @transform_3, window_bounds = array<i64: 4, 1, 128>}, {pipeline_mode = #tpu.pipeline_mode<synchronous>, transform_indices = @transform_4, window_bounds = array<i64: 4, 1, 128>}, {pipeline_mode = #tpu.pipeline_mode<synchronous>, transform_indices = @transform_5, window_bounds = array<i64: 128, 128>}, {pipeline_mode = #tpu.pipeline_mode<synchronous>, transform_indices = @transform_6, window_bounds = array<i64: 128, 512>}, {pipeline_mode = #tpu.pipeline_mode<synchronous>, transform_indices = @transform_7, window_bounds = array<i64: 1, 512>}, {pipeline_mode = #tpu.pipeline_mode<synchronous>, transform_indices = @transform_8, window_bounds = array<i64: 512, 128>}, {pipeline_mode = #tpu.pipeline_mode<synchronous>, transform_indices = @transform_9, window_bounds = array<i64: 1, 128>}, {transform_indices = @transform_10, window_bounds = array<i64: 2, 64, 128>}]} {
    %cst = arith.constant 0.000000e+00 : f32
    %0 = vector.broadcast %cst : f32 to vector<2x1x8x128xf32>
    %cst_0 = arith.constant 0.000000e+00 : f32
    %1 = vector.broadcast %cst_0 : f32 to vector<2x8x1x128xf32>
    %c0 = arith.constant 0 : index
    %c0_1 = arith.constant 0 : index
    %c0_2 = arith.constant 0 : index
    %c0_3 = arith.constant 0 : index
    %2 = vector.load %arg1[%c0, %c0_1, %c0_2, %c0_3] : memref<2x8x8x128xf32, #tpu.memory_space<vmem>>, vector<2x8x8x128xf32>
    %cst_4 = arith.constant 0.000000e+00 : f32
    %3 = vector.broadcast %cst_4 : f32 to vector<128x128xf32>
    %4 = vector.extract_strided_slice %2 {offsets = [0, 0, 0, 0], sizes = [2, 7, 8, 128], strides = [1, 1, 1, 1]} : vector<2x8x8x128xf32> to vector<2x7x8x128xf32>
    %5 = tpu.concatenate %0, %4 in 1 : vector<2x1x8x128xf32>, vector<2x7x8x128xf32> -> vector<2x8x8x128xf32>
    %6 = vector.extract_strided_slice %5 {offsets = [0, 0, 0, 0], sizes = [2, 8, 7, 128], strides = [1, 1, 1, 1]} : vector<2x8x8x128xf32> to vector<2x8x7x128xf32>
    %7 = tpu.concatenate %1, %6 in 2 : vector<2x8x1x128xf32>, vector<2x8x7x128xf32> -> vector<2x8x8x128xf32>
    %8 = vector.shape_cast %7 : vector<2x8x8x128xf32> to vector<128x128xf32>
    %9 = arith.truncf %8 : vector<128x128xf32> to vector<128x128xbf16>
    %c0_5 = arith.constant 0 : index
    %c0_6 = arith.constant 0 : index
    %c0_7 = arith.constant 0 : index
    %c0_8 = arith.constant 0 : index
    %10 = vector.load %arg2[%c0_5, %c0_6, %c0_7, %c0_8] : memref<4x9x128x128xbf16, #tpu.memory_space<vmem>>, vector<1x1x128x128xbf16>
    %11 = vector.shape_cast %10 : vector<1x1x128x128xbf16> to vector<128x128xbf16>
    %cst_9 = arith.constant dense<0.000000e+00> : vector<128x128xf32>
    %12 = tpu.matmul %9, %11, %cst_9 {dimension_numbers = #tpu.dot_dimension_numbers<[1], [0], [0], [1], [0, 0, 1, 1], [], []>} : vector<128x128xbf16>, vector<128x128xbf16>, vector<128x128xf32> -> vector<128x128xf32>
    %13 = arith.addf %3, %12 : vector<128x128xf32>
    %14 = vector.shape_cast %5 : vector<2x8x8x128xf32> to vector<128x128xf32>
    %15 = arith.truncf %14 : vector<128x128xf32> to vector<128x128xbf16>
    %c0_10 = arith.constant 0 : index
    %c1 = arith.constant 1 : index
    %c0_11 = arith.constant 0 : index
    %c0_12 = arith.constant 0 : index
    %16 = vector.load %arg2[%c0_10, %c1, %c0_11, %c0_12] : memref<4x9x128x128xbf16, #tpu.memory_space<vmem>>, vector<1x1x128x128xbf16>
    %17 = vector.shape_cast %16 : vector<1x1x128x128xbf16> to vector<128x128xbf16>
    %cst_13 = arith.constant dense<0.000000e+00> : vector<128x128xf32>
    %18 = tpu.matmul %15, %17, %cst_13 {dimension_numbers = #tpu.dot_dimension_numbers<[1], [0], [0], [1], [0, 0, 1, 1], [], []>} : vector<128x128xbf16>, vector<128x128xbf16>, vector<128x128xf32> -> vector<128x128xf32>
    %19 = arith.addf %13, %18 : vector<128x128xf32>
    %20 = vector.extract_strided_slice %5 {offsets = [0, 0, 1, 0], sizes = [2, 8, 7, 128], strides = [1, 1, 1, 1]} : vector<2x8x8x128xf32> to vector<2x8x7x128xf32>
    %21 = tpu.concatenate %20, %1 in 2 : vector<2x8x7x128xf32>, vector<2x8x1x128xf32> -> vector<2x8x8x128xf32>
    %22 = vector.shape_cast %21 : vector<2x8x8x128xf32> to vector<128x128xf32>
    %23 = arith.truncf %22 : vector<128x128xf32> to vector<128x128xbf16>
    %c0_14 = arith.constant 0 : index
    %c2 = arith.constant 2 : index
    %c0_15 = arith.constant 0 : index
    %c0_16 = arith.constant 0 : index
    %24 = vector.load %arg2[%c0_14, %c2, %c0_15, %c0_16] : memref<4x9x128x128xbf16, #tpu.memory_space<vmem>>, vector<1x1x128x128xbf16>
    %25 = vector.shape_cast %24 : vector<1x1x128x128xbf16> to vector<128x128xbf16>
    %cst_17 = arith.constant dense<0.000000e+00> : vector<128x128xf32>
    %26 = tpu.matmul %23, %25, %cst_17 {dimension_numbers = #tpu.dot_dimension_numbers<[1], [0], [0], [1], [0, 0, 1, 1], [], []>} : vector<128x128xbf16>, vector<128x128xbf16>, vector<128x128xf32> -> vector<128x128xf32>
    %27 = arith.addf %19, %26 : vector<128x128xf32>
    %28 = vector.extract_strided_slice %2 {offsets = [0, 0, 0, 0], sizes = [2, 8, 7, 128], strides = [1, 1, 1, 1]} : vector<2x8x8x128xf32> to vector<2x8x7x128xf32>
    %29 = tpu.concatenate %1, %28 in 2 : vector<2x8x1x128xf32>, vector<2x8x7x128xf32> -> vector<2x8x8x128xf32>
    %30 = vector.shape_cast %29 : vector<2x8x8x128xf32> to vector<128x128xf32>
    %31 = arith.truncf %30 : vector<128x128xf32> to vector<128x128xbf16>
    %c0_18 = arith.constant 0 : index
    %c3 = arith.constant 3 : index
    %c0_19 = arith.constant 0 : index
    %c0_20 = arith.constant 0 : index
    %32 = vector.load %arg2[%c0_18, %c3, %c0_19, %c0_20] : memref<4x9x128x128xbf16, #tpu.memory_space<vmem>>, vector<1x1x128x128xbf16>
    %33 = vector.shape_cast %32 : vector<1x1x128x128xbf16> to vector<128x128xbf16>
    %cst_21 = arith.constant dense<0.000000e+00> : vector<128x128xf32>
    %34 = tpu.matmul %31, %33, %cst_21 {dimension_numbers = #tpu.dot_dimension_numbers<[1], [0], [0], [1], [0, 0, 1, 1], [], []>} : vector<128x128xbf16>, vector<128x128xbf16>, vector<128x128xf32> -> vector<128x128xf32>
    %35 = arith.addf %27, %34 : vector<128x128xf32>
    %36 = vector.shape_cast %2 : vector<2x8x8x128xf32> to vector<128x128xf32>
    %37 = arith.truncf %36 : vector<128x128xf32> to vector<128x128xbf16>
    %c0_22 = arith.constant 0 : index
    %c4 = arith.constant 4 : index
    %c0_23 = arith.constant 0 : index
    %c0_24 = arith.constant 0 : index
    %38 = vector.load %arg2[%c0_22, %c4, %c0_23, %c0_24] : memref<4x9x128x128xbf16, #tpu.memory_space<vmem>>, vector<1x1x128x128xbf16>
    %39 = vector.shape_cast %38 : vector<1x1x128x128xbf16> to vector<128x128xbf16>
    %cst_25 = arith.constant dense<0.000000e+00> : vector<128x128xf32>
    %40 = tpu.matmul %37, %39, %cst_25 {dimension_numbers = #tpu.dot_dimension_numbers<[1], [0], [0], [1], [0, 0, 1, 1], [], []>} : vector<128x128xbf16>, vector<128x128xbf16>, vector<128x128xf32> -> vector<128x128xf32>
    %41 = arith.addf %35, %40 : vector<128x128xf32>
    %42 = vector.extract_strided_slice %2 {offsets = [0, 0, 1, 0], sizes = [2, 8, 7, 128], strides = [1, 1, 1, 1]} : vector<2x8x8x128xf32> to vector<2x8x7x128xf32>
    %43 = tpu.concatenate %42, %1 in 2 : vector<2x8x7x128xf32>, vector<2x8x1x128xf32> -> vector<2x8x8x128xf32>
    %44 = vector.shape_cast %43 : vector<2x8x8x128xf32> to vector<128x128xf32>
    %45 = arith.truncf %44 : vector<128x128xf32> to vector<128x128xbf16>
    %c0_26 = arith.constant 0 : index
    %c5 = arith.constant 5 : index
    %c0_27 = arith.constant 0 : index
    %c0_28 = arith.constant 0 : index
    %46 = vector.load %arg2[%c0_26, %c5, %c0_27, %c0_28] : memref<4x9x128x128xbf16, #tpu.memory_space<vmem>>, vector<1x1x128x128xbf16>
    %47 = vector.shape_cast %46 : vector<1x1x128x128xbf16> to vector<128x128xbf16>
    %cst_29 = arith.constant dense<0.000000e+00> : vector<128x128xf32>
    %48 = tpu.matmul %45, %47, %cst_29 {dimension_numbers = #tpu.dot_dimension_numbers<[1], [0], [0], [1], [0, 0, 1, 1], [], []>} : vector<128x128xbf16>, vector<128x128xbf16>, vector<128x128xf32> -> vector<128x128xf32>
    %49 = arith.addf %41, %48 : vector<128x128xf32>
    %50 = vector.extract_strided_slice %2 {offsets = [0, 1, 0, 0], sizes = [2, 7, 8, 128], strides = [1, 1, 1, 1]} : vector<2x8x8x128xf32> to vector<2x7x8x128xf32>
    %51 = tpu.concatenate %50, %0 in 1 : vector<2x7x8x128xf32>, vector<2x1x8x128xf32> -> vector<2x8x8x128xf32>
    %52 = vector.extract_strided_slice %51 {offsets = [0, 0, 0, 0], sizes = [2, 8, 7, 128], strides = [1, 1, 1, 1]} : vector<2x8x8x128xf32> to vector<2x8x7x128xf32>
    %53 = tpu.concatenate %1, %52 in 2 : vector<2x8x1x128xf32>, vector<2x8x7x128xf32> -> vector<2x8x8x128xf32>
    %54 = vector.shape_cast %53 : vector<2x8x8x128xf32> to vector<128x128xf32>
    %55 = arith.truncf %54 : vector<128x128xf32> to vector<128x128xbf16>
    %c0_30 = arith.constant 0 : index
    %c6 = arith.constant 6 : index
    %c0_31 = arith.constant 0 : index
    %c0_32 = arith.constant 0 : index
    %56 = vector.load %arg2[%c0_30, %c6, %c0_31, %c0_32] : memref<4x9x128x128xbf16, #tpu.memory_space<vmem>>, vector<1x1x128x128xbf16>
    %57 = vector.shape_cast %56 : vector<1x1x128x128xbf16> to vector<128x128xbf16>
    %cst_33 = arith.constant dense<0.000000e+00> : vector<128x128xf32>
    %58 = tpu.matmul %55, %57, %cst_33 {dimension_numbers = #tpu.dot_dimension_numbers<[1], [0], [0], [1], [0, 0, 1, 1], [], []>} : vector<128x128xbf16>, vector<128x128xbf16>, vector<128x128xf32> -> vector<128x128xf32>
    %59 = arith.addf %49, %58 : vector<128x128xf32>
    %60 = vector.shape_cast %51 : vector<2x8x8x128xf32> to vector<128x128xf32>
    %61 = arith.truncf %60 : vector<128x128xf32> to vector<128x128xbf16>
    %c0_34 = arith.constant 0 : index
    %c7 = arith.constant 7 : index
    %c0_35 = arith.constant 0 : index
    %c0_36 = arith.constant 0 : index
    %62 = vector.load %arg2[%c0_34, %c7, %c0_35, %c0_36] : memref<4x9x128x128xbf16, #tpu.memory_space<vmem>>, vector<1x1x128x128xbf16>
    %63 = vector.shape_cast %62 : vector<1x1x128x128xbf16> to vector<128x128xbf16>
    %cst_37 = arith.constant dense<0.000000e+00> : vector<128x128xf32>
    %64 = tpu.matmul %61, %63, %cst_37 {dimension_numbers = #tpu.dot_dimension_numbers<[1], [0], [0], [1], [0, 0, 1, 1], [], []>} : vector<128x128xbf16>, vector<128x128xbf16>, vector<128x128xf32> -> vector<128x128xf32>
    %65 = arith.addf %59, %64 : vector<128x128xf32>
    %66 = vector.extract_strided_slice %51 {offsets = [0, 0, 1, 0], sizes = [2, 8, 7, 128], strides = [1, 1, 1, 1]} : vector<2x8x8x128xf32> to vector<2x8x7x128xf32>
    %67 = tpu.concatenate %66, %1 in 2 : vector<2x8x7x128xf32>, vector<2x8x1x128xf32> -> vector<2x8x8x128xf32>
    %68 = vector.shape_cast %67 : vector<2x8x8x128xf32> to vector<128x128xf32>
    %69 = arith.truncf %68 : vector<128x128xf32> to vector<128x128xbf16>
    %c0_38 = arith.constant 0 : index
    %c8 = arith.constant 8 : index
    %c0_39 = arith.constant 0 : index
    %c0_40 = arith.constant 0 : index
    %70 = vector.load %arg2[%c0_38, %c8, %c0_39, %c0_40] : memref<4x9x128x128xbf16, #tpu.memory_space<vmem>>, vector<1x1x128x128xbf16>
    %71 = vector.shape_cast %70 : vector<1x1x128x128xbf16> to vector<128x128xbf16>
    %cst_41 = arith.constant dense<0.000000e+00> : vector<128x128xf32>
    %72 = tpu.matmul %69, %71, %cst_41 {dimension_numbers = #tpu.dot_dimension_numbers<[1], [0], [0], [1], [0, 0, 1, 1], [], []>} : vector<128x128xbf16>, vector<128x128xbf16>, vector<128x128xf32> -> vector<128x128xf32>
    %73 = arith.addf %65, %72 : vector<128x128xf32>
    %c0_42 = arith.constant 0 : index
    %c0_43 = arith.constant 0 : index
    %c0_44 = arith.constant 0 : index
    %74 = vector.load %arg3[%c0_42, %c0_43, %c0_44] : memref<4x1x128xf32, #tpu.memory_space<vmem>>, vector<1x1x128xf32>
    %75 = vector.shape_cast %74 : vector<1x1x128xf32> to vector<1x128xf32>
    %76 = vector.broadcast %75 : vector<1x128xf32> to vector<128x128xf32>
    %77 = arith.addf %73, %76 : vector<128x128xf32>
    %78 = vector.shape_cast %77 : vector<128x128xf32> to vector<2x64x128xf32>
    %cst_45 = arith.constant dense<0.000000e+00> : vector<2x128xf32>
    %79 = vector.multi_reduction <add>, %78, %cst_45 [1] : vector<2x64x128xf32> to vector<2x128xf32>
    %80 = arith.mulf %78, %78 : vector<2x64x128xf32>
    %cst_46 = arith.constant dense<0.000000e+00> : vector<2x128xf32>
    %81 = vector.multi_reduction <add>, %80, %cst_46 [1] : vector<2x64x128xf32> to vector<2x128xf32>
    %c0_47 = arith.constant 0 : index
    %c0_48 = arith.constant 0 : index
    %82 = vector.load %arg6[%c0_47, %c0_48] : memref<128x128xf32, #tpu.memory_space<vmem>>, vector<128x128xf32>
    %cst_49 = arith.constant dense<0.000000e+00> : vector<2x128xf32>
    %83 = tpu.matmul %79, %82, %cst_49 {dimension_numbers = #tpu.dot_dimension_numbers<[1], [0], [0], [1], [0, 0, 1, 1], [], []>} : vector<2x128xf32>, vector<128x128xf32>, vector<2x128xf32> -> vector<2x128xf32>
    %c0_50 = arith.constant 0 : index
    %c0_51 = arith.constant 0 : index
    %84 = vector.load %arg6[%c0_50, %c0_51] : memref<128x128xf32, #tpu.memory_space<vmem>>, vector<128x128xf32>
    %cst_52 = arith.constant dense<0.000000e+00> : vector<2x128xf32>
    %85 = tpu.matmul %81, %84, %cst_52 {dimension_numbers = #tpu.dot_dimension_numbers<[1], [0], [0], [1], [0, 0, 1, 1], [], []>} : vector<2x128xf32>, vector<128x128xf32>, vector<2x128xf32> -> vector<2x128xf32>
    %86 = arith.mulf %83, %83 : vector<2x128xf32>
    %87 = arith.subf %85, %86 : vector<2x128xf32>
    %cst_53 = arith.constant 0.000000e+00 : f32
    %88 = vector.broadcast %cst_53 : f32 to vector<2x128xf32>
    %89 = arith.maximumf %87, %88 : vector<2x128xf32>
    %cst_54 = arith.constant 9.99999974E-6 : f32
    %90 = vector.broadcast %cst_54 : f32 to vector<2x128xf32>
    %91 = arith.addf %89, %90 : vector<2x128xf32>
    %92 = math.rsqrt %91 : vector<2x128xf32>
    %c0_55 = arith.constant 0 : index
    %c0_56 = arith.constant 0 : index
    %c0_57 = arith.constant 0 : index
    %93 = vector.load %arg4[%c0_55, %c0_56, %c0_57] : memref<4x1x128xf32, #tpu.memory_space<vmem>>, vector<1x1x128xf32>
    %94 = vector.shape_cast %93 : vector<1x1x128xf32> to vector<1x128xf32>
    %95 = vector.broadcast %94 : vector<1x128xf32> to vector<2x128xf32>
    %96 = arith.mulf %92, %95 : vector<2x128xf32>
    %c0_58 = arith.constant 0 : index
    %c0_59 = arith.constant 0 : index
    %c0_60 = arith.constant 0 : index
    %97 = vector.load %arg5[%c0_58, %c0_59, %c0_60] : memref<4x1x128xf32, #tpu.memory_space<vmem>>, vector<1x1x128xf32>
    %98 = vector.shape_cast %97 : vector<1x1x128xf32> to vector<1x128xf32>
    %99 = arith.mulf %83, %96 : vector<2x128xf32>
    %100 = vector.broadcast %98 : vector<1x128xf32> to vector<2x128xf32>
    %101 = arith.subf %100, %99 : vector<2x128xf32>
    %102 = vector.shape_cast %96 : vector<2x128xf32> to vector<2x1x128xf32>
    %103 = vector.broadcast %102 : vector<2x1x128xf32> to vector<2x64x128xf32>
    %104 = arith.mulf %78, %103 : vector<2x64x128xf32>
    %105 = vector.shape_cast %101 : vector<2x128xf32> to vector<2x1x128xf32>
    %106 = vector.broadcast %105 : vector<2x1x128xf32> to vector<2x64x128xf32>
    %107 = arith.addf %104, %106 : vector<2x64x128xf32>
    %cst_61 = arith.constant 0.000000e+00 : f32
    %108 = vector.broadcast %cst_61 : f32 to vector<2x64x128xf32>
    %109 = arith.maximumf %107, %108 : vector<2x64x128xf32>
    %110 = vector.shape_cast %109 : vector<2x64x128xf32> to vector<2x8x8x128xf32>
    %cst_62 = arith.constant 0.000000e+00 : f32
    %111 = vector.broadcast %cst_62 : f32 to vector<128x128xf32>
    %112 = vector.extract_strided_slice %110 {offsets = [0, 0, 0, 0], sizes = [2, 7, 8, 128], strides = [1, 1, 1, 1]} : vector<2x8x8x128xf32> to vector<2x7x8x128xf32>
    %113 = tpu.concatenate %0, %112 in 1 : vector<2x1x8x128xf32>, vector<2x7x8x128xf32> -> vector<2x8x8x128xf32>
    %114 = vector.extract_strided_slice %113 {offsets = [0, 0, 0, 0], sizes = [2, 8, 7, 128], strides = [1, 1, 1, 1]} : vector<2x8x8x128xf32> to vector<2x8x7x128xf32>
    %115 = tpu.concatenate %1, %114 in 2 : vector<2x8x1x128xf32>, vector<2x8x7x128xf32> -> vector<2x8x8x128xf32>
    %116 = vector.shape_cast %115 : vector<2x8x8x128xf32> to vector<128x128xf32>
    %117 = arith.truncf %116 : vector<128x128xf32> to vector<128x128xbf16>
    %c1_63 = arith.constant 1 : index
    %c0_64 = arith.constant 0 : index
    %c0_65 = arith.constant 0 : index
    %c0_66 = arith.constant 0 : index
    %118 = vector.load %arg2[%c1_63, %c0_64, %c0_65, %c0_66] : memref<4x9x128x128xbf16, #tpu.memory_space<vmem>>, vector<1x1x128x128xbf16>
    %119 = vector.shape_cast %118 : vector<1x1x128x128xbf16> to vector<128x128xbf16>
    %cst_67 = arith.constant dense<0.000000e+00> : vector<128x128xf32>
    %120 = tpu.matmul %117, %119, %cst_67 {dimension_numbers = #tpu.dot_dimension_numbers<[1], [0], [0], [1], [0, 0, 1, 1], [], []>} : vector<128x128xbf16>, vector<128x128xbf16>, vector<128x128xf32> -> vector<128x128xf32>
    %121 = arith.addf %111, %120 : vector<128x128xf32>
    %122 = vector.shape_cast %113 : vector<2x8x8x128xf32> to vector<128x128xf32>
    %123 = arith.truncf %122 : vector<128x128xf32> to vector<128x128xbf16>
    %c1_68 = arith.constant 1 : index
    %c1_69 = arith.constant 1 : index
    %c0_70 = arith.constant 0 : index
    %c0_71 = arith.constant 0 : index
    %124 = vector.load %arg2[%c1_68, %c1_69, %c0_70, %c0_71] : memref<4x9x128x128xbf16, #tpu.memory_space<vmem>>, vector<1x1x128x128xbf16>
    %125 = vector.shape_cast %124 : vector<1x1x128x128xbf16> to vector<128x128xbf16>
    %cst_72 = arith.constant dense<0.000000e+00> : vector<128x128xf32>
    %126 = tpu.matmul %123, %125, %cst_72 {dimension_numbers = #tpu.dot_dimension_numbers<[1], [0], [0], [1], [0, 0, 1, 1], [], []>} : vector<128x128xbf16>, vector<128x128xbf16>, vector<128x128xf32> -> vector<128x128xf32>
    %127 = arith.addf %121, %126 : vector<128x128xf32>
    %128 = vector.extract_strided_slice %113 {offsets = [0, 0, 1, 0], sizes = [2, 8, 7, 128], strides = [1, 1, 1, 1]} : vector<2x8x8x128xf32> to vector<2x8x7x128xf32>
    %129 = tpu.concatenate %128, %1 in 2 : vector<2x8x7x128xf32>, vector<2x8x1x128xf32> -> vector<2x8x8x128xf32>
    %130 = vector.shape_cast %129 : vector<2x8x8x128xf32> to vector<128x128xf32>
    %131 = arith.truncf %130 : vector<128x128xf32> to vector<128x128xbf16>
    %c1_73 = arith.constant 1 : index
    %c2_74 = arith.constant 2 : index
    %c0_75 = arith.constant 0 : index
    %c0_76 = arith.constant 0 : index
    %132 = vector.load %arg2[%c1_73, %c2_74, %c0_75, %c0_76] : memref<4x9x128x128xbf16, #tpu.memory_space<vmem>>, vector<1x1x128x128xbf16>
    %133 = vector.shape_cast %132 : vector<1x1x128x128xbf16> to vector<128x128xbf16>
    %cst_77 = arith.constant dense<0.000000e+00> : vector<128x128xf32>
    %134 = tpu.matmul %131, %133, %cst_77 {dimension_numbers = #tpu.dot_dimension_numbers<[1], [0], [0], [1], [0, 0, 1, 1], [], []>} : vector<128x128xbf16>, vector<128x128xbf16>, vector<128x128xf32> -> vector<128x128xf32>
    %135 = arith.addf %127, %134 : vector<128x128xf32>
    %136 = vector.extract_strided_slice %110 {offsets = [0, 0, 0, 0], sizes = [2, 8, 7, 128], strides = [1, 1, 1, 1]} : vector<2x8x8x128xf32> to vector<2x8x7x128xf32>
    %137 = tpu.concatenate %1, %136 in 2 : vector<2x8x1x128xf32>, vector<2x8x7x128xf32> -> vector<2x8x8x128xf32>
    %138 = vector.shape_cast %137 : vector<2x8x8x128xf32> to vector<128x128xf32>
    %139 = arith.truncf %138 : vector<128x128xf32> to vector<128x128xbf16>
    %c1_78 = arith.constant 1 : index
    %c3_79 = arith.constant 3 : index
    %c0_80 = arith.constant 0 : index
    %c0_81 = arith.constant 0 : index
    %140 = vector.load %arg2[%c1_78, %c3_79, %c0_80, %c0_81] : memref<4x9x128x128xbf16, #tpu.memory_space<vmem>>, vector<1x1x128x128xbf16>
    %141 = vector.shape_cast %140 : vector<1x1x128x128xbf16> to vector<128x128xbf16>
    %cst_82 = arith.constant dense<0.000000e+00> : vector<128x128xf32>
    %142 = tpu.matmul %139, %141, %cst_82 {dimension_numbers = #tpu.dot_dimension_numbers<[1], [0], [0], [1], [0, 0, 1, 1], [], []>} : vector<128x128xbf16>, vector<128x128xbf16>, vector<128x128xf32> -> vector<128x128xf32>
    %143 = arith.addf %135, %142 : vector<128x128xf32>
    %144 = vector.shape_cast %110 : vector<2x8x8x128xf32> to vector<128x128xf32>
    %145 = arith.truncf %144 : vector<128x128xf32> to vector<128x128xbf16>
    %c1_83 = arith.constant 1 : index
    %c4_84 = arith.constant 4 : index
    %c0_85 = arith.constant 0 : index
    %c0_86 = arith.constant 0 : index
    %146 = vector.load %arg2[%c1_83, %c4_84, %c0_85, %c0_86] : memref<4x9x128x128xbf16, #tpu.memory_space<vmem>>, vector<1x1x128x128xbf16>
    %147 = vector.shape_cast %146 : vector<1x1x128x128xbf16> to vector<128x128xbf16>
    %cst_87 = arith.constant dense<0.000000e+00> : vector<128x128xf32>
    %148 = tpu.matmul %145, %147, %cst_87 {dimension_numbers = #tpu.dot_dimension_numbers<[1], [0], [0], [1], [0, 0, 1, 1], [], []>} : vector<128x128xbf16>, vector<128x128xbf16>, vector<128x128xf32> -> vector<128x128xf32>
    %149 = arith.addf %143, %148 : vector<128x128xf32>
    %150 = vector.extract_strided_slice %110 {offsets = [0, 0, 1, 0], sizes = [2, 8, 7, 128], strides = [1, 1, 1, 1]} : vector<2x8x8x128xf32> to vector<2x8x7x128xf32>
    %151 = tpu.concatenate %150, %1 in 2 : vector<2x8x7x128xf32>, vector<2x8x1x128xf32> -> vector<2x8x8x128xf32>
    %152 = vector.shape_cast %151 : vector<2x8x8x128xf32> to vector<128x128xf32>
    %153 = arith.truncf %152 : vector<128x128xf32> to vector<128x128xbf16>
    %c1_88 = arith.constant 1 : index
    %c5_89 = arith.constant 5 : index
    %c0_90 = arith.constant 0 : index
    %c0_91 = arith.constant 0 : index
    %154 = vector.load %arg2[%c1_88, %c5_89, %c0_90, %c0_91] : memref<4x9x128x128xbf16, #tpu.memory_space<vmem>>, vector<1x1x128x128xbf16>
    %155 = vector.shape_cast %154 : vector<1x1x128x128xbf16> to vector<128x128xbf16>
    %cst_92 = arith.constant dense<0.000000e+00> : vector<128x128xf32>
    %156 = tpu.matmul %153, %155, %cst_92 {dimension_numbers = #tpu.dot_dimension_numbers<[1], [0], [0], [1], [0, 0, 1, 1], [], []>} : vector<128x128xbf16>, vector<128x128xbf16>, vector<128x128xf32> -> vector<128x128xf32>
    %157 = arith.addf %149, %156 : vector<128x128xf32>
    %158 = vector.extract_strided_slice %110 {offsets = [0, 1, 0, 0], sizes = [2, 7, 8, 128], strides = [1, 1, 1, 1]} : vector<2x8x8x128xf32> to vector<2x7x8x128xf32>
    %159 = tpu.concatenate %158, %0 in 1 : vector<2x7x8x128xf32>, vector<2x1x8x128xf32> -> vector<2x8x8x128xf32>
    %160 = vector.extract_strided_slice %159 {offsets = [0, 0, 0, 0], sizes = [2, 8, 7, 128], strides = [1, 1, 1, 1]} : vector<2x8x8x128xf32> to vector<2x8x7x128xf32>
    %161 = tpu.concatenate %1, %160 in 2 : vector<2x8x1x128xf32>, vector<2x8x7x128xf32> -> vector<2x8x8x128xf32>
    %162 = vector.shape_cast %161 : vector<2x8x8x128xf32> to vector<128x128xf32>
    %163 = arith.truncf %162 : vector<128x128xf32> to vector<128x128xbf16>
    %c1_93 = arith.constant 1 : index
    %c6_94 = arith.constant 6 : index
    %c0_95 = arith.constant 0 : index
    %c0_96 = arith.constant 0 : index
    %164 = vector.load %arg2[%c1_93, %c6_94, %c0_95, %c0_96] : memref<4x9x128x128xbf16, #tpu.memory_space<vmem>>, vector<1x1x128x128xbf16>
    %165 = vector.shape_cast %164 : vector<1x1x128x128xbf16> to vector<128x128xbf16>
    %cst_97 = arith.constant dense<0.000000e+00> : vector<128x128xf32>
    %166 = tpu.matmul %163, %165, %cst_97 {dimension_numbers = #tpu.dot_dimension_numbers<[1], [0], [0], [1], [0, 0, 1, 1], [], []>} : vector<128x128xbf16>, vector<128x128xbf16>, vector<128x128xf32> -> vector<128x128xf32>
    %167 = arith.addf %157, %166 : vector<128x128xf32>
    %168 = vector.shape_cast %159 : vector<2x8x8x128xf32> to vector<128x128xf32>
    %169 = arith.truncf %168 : vector<128x128xf32> to vector<128x128xbf16>
    %c1_98 = arith.constant 1 : index
    %c7_99 = arith.constant 7 : index
    %c0_100 = arith.constant 0 : index
    %c0_101 = arith.constant 0 : index
    %170 = vector.load %arg2[%c1_98, %c7_99, %c0_100, %c0_101] : memref<4x9x128x128xbf16, #tpu.memory_space<vmem>>, vector<1x1x128x128xbf16>
    %171 = vector.shape_cast %170 : vector<1x1x128x128xbf16> to vector<128x128xbf16>
    %cst_102 = arith.constant dense<0.000000e+00> : vector<128x128xf32>
    %172 = tpu.matmul %169, %171, %cst_102 {dimension_numbers = #tpu.dot_dimension_numbers<[1], [0], [0], [1], [0, 0, 1, 1], [], []>} : vector<128x128xbf16>, vector<128x128xbf16>, vector<128x128xf32> -> vector<128x128xf32>
    %173 = arith.addf %167, %172 : vector<128x128xf32>
    %174 = vector.extract_strided_slice %159 {offsets = [0, 0, 1, 0], sizes = [2, 8, 7, 128], strides = [1, 1, 1, 1]} : vector<2x8x8x128xf32> to vector<2x8x7x128xf32>
    %175 = tpu.concatenate %174, %1 in 2 : vector<2x8x7x128xf32>, vector<2x8x1x128xf32> -> vector<2x8x8x128xf32>
    %176 = vector.shape_cast %175 : vector<2x8x8x128xf32> to vector<128x128xf32>
    %177 = arith.truncf %176 : vector<128x128xf32> to vector<128x128xbf16>
    %c1_103 = arith.constant 1 : index
    %c8_104 = arith.constant 8 : index
    %c0_105 = arith.constant 0 : index
    %c0_106 = arith.constant 0 : index
    %178 = vector.load %arg2[%c1_103, %c8_104, %c0_105, %c0_106] : memref<4x9x128x128xbf16, #tpu.memory_space<vmem>>, vector<1x1x128x128xbf16>
    %179 = vector.shape_cast %178 : vector<1x1x128x128xbf16> to vector<128x128xbf16>
    %cst_107 = arith.constant dense<0.000000e+00> : vector<128x128xf32>
    %180 = tpu.matmul %177, %179, %cst_107 {dimension_numbers = #tpu.dot_dimension_numbers<[1], [0], [0], [1], [0, 0, 1, 1], [], []>} : vector<128x128xbf16>, vector<128x128xbf16>, vector<128x128xf32> -> vector<128x128xf32>
    %181 = arith.addf %173, %180 : vector<128x128xf32>
    %c1_108 = arith.constant 1 : index
    %c0_109 = arith.constant 0 : index
    %c0_110 = arith.constant 0 : index
    %182 = vector.load %arg3[%c1_108, %c0_109, %c0_110] : memref<4x1x128xf32, #tpu.memory_space<vmem>>, vector<1x1x128xf32>
    %183 = vector.shape_cast %182 : vector<1x1x128xf32> to vector<1x128xf32>
    %184 = vector.broadcast %183 : vector<1x128xf32> to vector<128x128xf32>
    %185 = arith.addf %181, %184 : vector<128x128xf32>
    %186 = vector.shape_cast %185 : vector<128x128xf32> to vector<2x64x128xf32>
    %cst_111 = arith.constant dense<0.000000e+00> : vector<2x128xf32>
    %187 = vector.multi_reduction <add>, %186, %cst_111 [1] : vector<2x64x128xf32> to vector<2x128xf32>
    %188 = arith.mulf %186, %186 : vector<2x64x128xf32>
    %cst_112 = arith.constant dense<0.000000e+00> : vector<2x128xf32>
    %189 = vector.multi_reduction <add>, %188, %cst_112 [1] : vector<2x64x128xf32> to vector<2x128xf32>
    %c0_113 = arith.constant 0 : index
    %c0_114 = arith.constant 0 : index
    %190 = vector.load %arg6[%c0_113, %c0_114] : memref<128x128xf32, #tpu.memory_space<vmem>>, vector<128x128xf32>
    %cst_115 = arith.constant dense<0.000000e+00> : vector<2x128xf32>
    %191 = tpu.matmul %187, %190, %cst_115 {dimension_numbers = #tpu.dot_dimension_numbers<[1], [0], [0], [1], [0, 0, 1, 1], [], []>} : vector<2x128xf32>, vector<128x128xf32>, vector<2x128xf32> -> vector<2x128xf32>
    %c0_116 = arith.constant 0 : index
    %c0_117 = arith.constant 0 : index
    %192 = vector.load %arg6[%c0_116, %c0_117] : memref<128x128xf32, #tpu.memory_space<vmem>>, vector<128x128xf32>
    %cst_118 = arith.constant dense<0.000000e+00> : vector<2x128xf32>
    %193 = tpu.matmul %189, %192, %cst_118 {dimension_numbers = #tpu.dot_dimension_numbers<[1], [0], [0], [1], [0, 0, 1, 1], [], []>} : vector<2x128xf32>, vector<128x128xf32>, vector<2x128xf32> -> vector<2x128xf32>
    %194 = arith.mulf %191, %191 : vector<2x128xf32>
    %195 = arith.subf %193, %194 : vector<2x128xf32>
    %cst_119 = arith.constant 0.000000e+00 : f32
    %196 = vector.broadcast %cst_119 : f32 to vector<2x128xf32>
    %197 = arith.maximumf %195, %196 : vector<2x128xf32>
    %cst_120 = arith.constant 9.99999974E-6 : f32
    %198 = vector.broadcast %cst_120 : f32 to vector<2x128xf32>
    %199 = arith.addf %197, %198 : vector<2x128xf32>
    %200 = math.rsqrt %199 : vector<2x128xf32>
    %c1_121 = arith.constant 1 : index
    %c0_122 = arith.constant 0 : index
    %c0_123 = arith.constant 0 : index
    %201 = vector.load %arg4[%c1_121, %c0_122, %c0_123] : memref<4x1x128xf32, #tpu.memory_space<vmem>>, vector<1x1x128xf32>
    %202 = vector.shape_cast %201 : vector<1x1x128xf32> to vector<1x128xf32>
    %203 = vector.broadcast %202 : vector<1x128xf32> to vector<2x128xf32>
    %204 = arith.mulf %200, %203 : vector<2x128xf32>
    %c1_124 = arith.constant 1 : index
    %c0_125 = arith.constant 0 : index
    %c0_126 = arith.constant 0 : index
    %205 = vector.load %arg5[%c1_124, %c0_125, %c0_126] : memref<4x1x128xf32, #tpu.memory_space<vmem>>, vector<1x1x128xf32>
    %206 = vector.shape_cast %205 : vector<1x1x128xf32> to vector<1x128xf32>
    %207 = arith.mulf %191, %204 : vector<2x128xf32>
    %208 = vector.broadcast %206 : vector<1x128xf32> to vector<2x128xf32>
    %209 = arith.subf %208, %207 : vector<2x128xf32>
    %210 = vector.shape_cast %204 : vector<2x128xf32> to vector<2x1x128xf32>
    %211 = vector.broadcast %210 : vector<2x1x128xf32> to vector<2x64x128xf32>
    %212 = arith.mulf %186, %211 : vector<2x64x128xf32>
    %213 = vector.shape_cast %209 : vector<2x128xf32> to vector<2x1x128xf32>
    %214 = vector.broadcast %213 : vector<2x1x128xf32> to vector<2x64x128xf32>
    %215 = arith.addf %212, %214 : vector<2x64x128xf32>
    %cst_127 = arith.constant 0.000000e+00 : f32
    %216 = vector.broadcast %cst_127 : f32 to vector<2x64x128xf32>
    %217 = arith.maximumf %215, %216 : vector<2x64x128xf32>
    %218 = vector.shape_cast %217 : vector<2x64x128xf32> to vector<2x8x8x128xf32>
    %cst_128 = arith.constant 0.000000e+00 : f32
    %219 = vector.broadcast %cst_128 : f32 to vector<128x128xf32>
    %220 = vector.extract_strided_slice %218 {offsets = [0, 0, 0, 0], sizes = [2, 7, 8, 128], strides = [1, 1, 1, 1]} : vector<2x8x8x128xf32> to vector<2x7x8x128xf32>
    %221 = tpu.concatenate %0, %220 in 1 : vector<2x1x8x128xf32>, vector<2x7x8x128xf32> -> vector<2x8x8x128xf32>
    %222 = vector.extract_strided_slice %221 {offsets = [0, 0, 0, 0], sizes = [2, 8, 7, 128], strides = [1, 1, 1, 1]} : vector<2x8x8x128xf32> to vector<2x8x7x128xf32>
    %223 = tpu.concatenate %1, %222 in 2 : vector<2x8x1x128xf32>, vector<2x8x7x128xf32> -> vector<2x8x8x128xf32>
    %224 = vector.shape_cast %223 : vector<2x8x8x128xf32> to vector<128x128xf32>
    %225 = arith.truncf %224 : vector<128x128xf32> to vector<128x128xbf16>
    %c2_129 = arith.constant 2 : index
    %c0_130 = arith.constant 0 : index
    %c0_131 = arith.constant 0 : index
    %c0_132 = arith.constant 0 : index
    %226 = vector.load %arg2[%c2_129, %c0_130, %c0_131, %c0_132] : memref<4x9x128x128xbf16, #tpu.memory_space<vmem>>, vector<1x1x128x128xbf16>
    %227 = vector.shape_cast %226 : vector<1x1x128x128xbf16> to vector<128x128xbf16>
    %cst_133 = arith.constant dense<0.000000e+00> : vector<128x128xf32>
    %228 = tpu.matmul %225, %227, %cst_133 {dimension_numbers = #tpu.dot_dimension_numbers<[1], [0], [0], [1], [0, 0, 1, 1], [], []>} : vector<128x128xbf16>, vector<128x128xbf16>, vector<128x128xf32> -> vector<128x128xf32>
    %229 = arith.addf %219, %228 : vector<128x128xf32>
    %230 = vector.shape_cast %221 : vector<2x8x8x128xf32> to vector<128x128xf32>
    %231 = arith.truncf %230 : vector<128x128xf32> to vector<128x128xbf16>
    %c2_134 = arith.constant 2 : index
    %c1_135 = arith.constant 1 : index
    %c0_136 = arith.constant 0 : index
    %c0_137 = arith.constant 0 : index
    %232 = vector.load %arg2[%c2_134, %c1_135, %c0_136, %c0_137] : memref<4x9x128x128xbf16, #tpu.memory_space<vmem>>, vector<1x1x128x128xbf16>
    %233 = vector.shape_cast %232 : vector<1x1x128x128xbf16> to vector<128x128xbf16>
    %cst_138 = arith.constant dense<0.000000e+00> : vector<128x128xf32>
    %234 = tpu.matmul %231, %233, %cst_138 {dimension_numbers = #tpu.dot_dimension_numbers<[1], [0], [0], [1], [0, 0, 1, 1], [], []>} : vector<128x128xbf16>, vector<128x128xbf16>, vector<128x128xf32> -> vector<128x128xf32>
    %235 = arith.addf %229, %234 : vector<128x128xf32>
    %236 = vector.extract_strided_slice %221 {offsets = [0, 0, 1, 0], sizes = [2, 8, 7, 128], strides = [1, 1, 1, 1]} : vector<2x8x8x128xf32> to vector<2x8x7x128xf32>
    %237 = tpu.concatenate %236, %1 in 2 : vector<2x8x7x128xf32>, vector<2x8x1x128xf32> -> vector<2x8x8x128xf32>
    %238 = vector.shape_cast %237 : vector<2x8x8x128xf32> to vector<128x128xf32>
    %239 = arith.truncf %238 : vector<128x128xf32> to vector<128x128xbf16>
    %c2_139 = arith.constant 2 : index
    %c2_140 = arith.constant 2 : index
    %c0_141 = arith.constant 0 : index
    %c0_142 = arith.constant 0 : index
    %240 = vector.load %arg2[%c2_139, %c2_140, %c0_141, %c0_142] : memref<4x9x128x128xbf16, #tpu.memory_space<vmem>>, vector<1x1x128x128xbf16>
    %241 = vector.shape_cast %240 : vector<1x1x128x128xbf16> to vector<128x128xbf16>
    %cst_143 = arith.constant dense<0.000000e+00> : vector<128x128xf32>
    %242 = tpu.matmul %239, %241, %cst_143 {dimension_numbers = #tpu.dot_dimension_numbers<[1], [0], [0], [1], [0, 0, 1, 1], [], []>} : vector<128x128xbf16>, vector<128x128xbf16>, vector<128x128xf32> -> vector<128x128xf32>
    %243 = arith.addf %235, %242 : vector<128x128xf32>
    %244 = vector.extract_strided_slice %218 {offsets = [0, 0, 0, 0], sizes = [2, 8, 7, 128], strides = [1, 1, 1, 1]} : vector<2x8x8x128xf32> to vector<2x8x7x128xf32>
    %245 = tpu.concatenate %1, %244 in 2 : vector<2x8x1x128xf32>, vector<2x8x7x128xf32> -> vector<2x8x8x128xf32>
    %246 = vector.shape_cast %245 : vector<2x8x8x128xf32> to vector<128x128xf32>
    %247 = arith.truncf %246 : vector<128x128xf32> to vector<128x128xbf16>
    %c2_144 = arith.constant 2 : index
    %c3_145 = arith.constant 3 : index
    %c0_146 = arith.constant 0 : index
    %c0_147 = arith.constant 0 : index
    %248 = vector.load %arg2[%c2_144, %c3_145, %c0_146, %c0_147] : memref<4x9x128x128xbf16, #tpu.memory_space<vmem>>, vector<1x1x128x128xbf16>
    %249 = vector.shape_cast %248 : vector<1x1x128x128xbf16> to vector<128x128xbf16>
    %cst_148 = arith.constant dense<0.000000e+00> : vector<128x128xf32>
    %250 = tpu.matmul %247, %249, %cst_148 {dimension_numbers = #tpu.dot_dimension_numbers<[1], [0], [0], [1], [0, 0, 1, 1], [], []>} : vector<128x128xbf16>, vector<128x128xbf16>, vector<128x128xf32> -> vector<128x128xf32>
    %251 = arith.addf %243, %250 : vector<128x128xf32>
    %252 = vector.shape_cast %218 : vector<2x8x8x128xf32> to vector<128x128xf32>
    %253 = arith.truncf %252 : vector<128x128xf32> to vector<128x128xbf16>
    %c2_149 = arith.constant 2 : index
    %c4_150 = arith.constant 4 : index
    %c0_151 = arith.constant 0 : index
    %c0_152 = arith.constant 0 : index
    %254 = vector.load %arg2[%c2_149, %c4_150, %c0_151, %c0_152] : memref<4x9x128x128xbf16, #tpu.memory_space<vmem>>, vector<1x1x128x128xbf16>
    %255 = vector.shape_cast %254 : vector<1x1x128x128xbf16> to vector<128x128xbf16>
    %cst_153 = arith.constant dense<0.000000e+00> : vector<128x128xf32>
    %256 = tpu.matmul %253, %255, %cst_153 {dimension_numbers = #tpu.dot_dimension_numbers<[1], [0], [0], [1], [0, 0, 1, 1], [], []>} : vector<128x128xbf16>, vector<128x128xbf16>, vector<128x128xf32> -> vector<128x128xf32>
    %257 = arith.addf %251, %256 : vector<128x128xf32>
    %258 = vector.extract_strided_slice %218 {offsets = [0, 0, 1, 0], sizes = [2, 8, 7, 128], strides = [1, 1, 1, 1]} : vector<2x8x8x128xf32> to vector<2x8x7x128xf32>
    %259 = tpu.concatenate %258, %1 in 2 : vector<2x8x7x128xf32>, vector<2x8x1x128xf32> -> vector<2x8x8x128xf32>
    %260 = vector.shape_cast %259 : vector<2x8x8x128xf32> to vector<128x128xf32>
    %261 = arith.truncf %260 : vector<128x128xf32> to vector<128x128xbf16>
    %c2_154 = arith.constant 2 : index
    %c5_155 = arith.constant 5 : index
    %c0_156 = arith.constant 0 : index
    %c0_157 = arith.constant 0 : index
    %262 = vector.load %arg2[%c2_154, %c5_155, %c0_156, %c0_157] : memref<4x9x128x128xbf16, #tpu.memory_space<vmem>>, vector<1x1x128x128xbf16>
    %263 = vector.shape_cast %262 : vector<1x1x128x128xbf16> to vector<128x128xbf16>
    %cst_158 = arith.constant dense<0.000000e+00> : vector<128x128xf32>
    %264 = tpu.matmul %261, %263, %cst_158 {dimension_numbers = #tpu.dot_dimension_numbers<[1], [0], [0], [1], [0, 0, 1, 1], [], []>} : vector<128x128xbf16>, vector<128x128xbf16>, vector<128x128xf32> -> vector<128x128xf32>
    %265 = arith.addf %257, %264 : vector<128x128xf32>
    %266 = vector.extract_strided_slice %218 {offsets = [0, 1, 0, 0], sizes = [2, 7, 8, 128], strides = [1, 1, 1, 1]} : vector<2x8x8x128xf32> to vector<2x7x8x128xf32>
    %267 = tpu.concatenate %266, %0 in 1 : vector<2x7x8x128xf32>, vector<2x1x8x128xf32> -> vector<2x8x8x128xf32>
    %268 = vector.extract_strided_slice %267 {offsets = [0, 0, 0, 0], sizes = [2, 8, 7, 128], strides = [1, 1, 1, 1]} : vector<2x8x8x128xf32> to vector<2x8x7x128xf32>
    %269 = tpu.concatenate %1, %268 in 2 : vector<2x8x1x128xf32>, vector<2x8x7x128xf32> -> vector<2x8x8x128xf32>
    %270 = vector.shape_cast %269 : vector<2x8x8x128xf32> to vector<128x128xf32>
    %271 = arith.truncf %270 : vector<128x128xf32> to vector<128x128xbf16>
    %c2_159 = arith.constant 2 : index
    %c6_160 = arith.constant 6 : index
    %c0_161 = arith.constant 0 : index
    %c0_162 = arith.constant 0 : index
    %272 = vector.load %arg2[%c2_159, %c6_160, %c0_161, %c0_162] : memref<4x9x128x128xbf16, #tpu.memory_space<vmem>>, vector<1x1x128x128xbf16>
    %273 = vector.shape_cast %272 : vector<1x1x128x128xbf16> to vector<128x128xbf16>
    %cst_163 = arith.constant dense<0.000000e+00> : vector<128x128xf32>
    %274 = tpu.matmul %271, %273, %cst_163 {dimension_numbers = #tpu.dot_dimension_numbers<[1], [0], [0], [1], [0, 0, 1, 1], [], []>} : vector<128x128xbf16>, vector<128x128xbf16>, vector<128x128xf32> -> vector<128x128xf32>
    %275 = arith.addf %265, %274 : vector<128x128xf32>
    %276 = vector.shape_cast %267 : vector<2x8x8x128xf32> to vector<128x128xf32>
    %277 = arith.truncf %276 : vector<128x128xf32> to vector<128x128xbf16>
    %c2_164 = arith.constant 2 : index
    %c7_165 = arith.constant 7 : index
    %c0_166 = arith.constant 0 : index
    %c0_167 = arith.constant 0 : index
    %278 = vector.load %arg2[%c2_164, %c7_165, %c0_166, %c0_167] : memref<4x9x128x128xbf16, #tpu.memory_space<vmem>>, vector<1x1x128x128xbf16>
    %279 = vector.shape_cast %278 : vector<1x1x128x128xbf16> to vector<128x128xbf16>
    %cst_168 = arith.constant dense<0.000000e+00> : vector<128x128xf32>
    %280 = tpu.matmul %277, %279, %cst_168 {dimension_numbers = #tpu.dot_dimension_numbers<[1], [0], [0], [1], [0, 0, 1, 1], [], []>} : vector<128x128xbf16>, vector<128x128xbf16>, vector<128x128xf32> -> vector<128x128xf32>
    %281 = arith.addf %275, %280 : vector<128x128xf32>
    %282 = vector.extract_strided_slice %267 {offsets = [0, 0, 1, 0], sizes = [2, 8, 7, 128], strides = [1, 1, 1, 1]} : vector<2x8x8x128xf32> to vector<2x8x7x128xf32>
    %283 = tpu.concatenate %282, %1 in 2 : vector<2x8x7x128xf32>, vector<2x8x1x128xf32> -> vector<2x8x8x128xf32>
    %284 = vector.shape_cast %283 : vector<2x8x8x128xf32> to vector<128x128xf32>
    %285 = arith.truncf %284 : vector<128x128xf32> to vector<128x128xbf16>
    %c2_169 = arith.constant 2 : index
    %c8_170 = arith.constant 8 : index
    %c0_171 = arith.constant 0 : index
    %c0_172 = arith.constant 0 : index
    %286 = vector.load %arg2[%c2_169, %c8_170, %c0_171, %c0_172] : memref<4x9x128x128xbf16, #tpu.memory_space<vmem>>, vector<1x1x128x128xbf16>
    %287 = vector.shape_cast %286 : vector<1x1x128x128xbf16> to vector<128x128xbf16>
    %cst_173 = arith.constant dense<0.000000e+00> : vector<128x128xf32>
    %288 = tpu.matmul %285, %287, %cst_173 {dimension_numbers = #tpu.dot_dimension_numbers<[1], [0], [0], [1], [0, 0, 1, 1], [], []>} : vector<128x128xbf16>, vector<128x128xbf16>, vector<128x128xf32> -> vector<128x128xf32>
    %289 = arith.addf %281, %288 : vector<128x128xf32>
    %c2_174 = arith.constant 2 : index
    %c0_175 = arith.constant 0 : index
    %c0_176 = arith.constant 0 : index
    %290 = vector.load %arg3[%c2_174, %c0_175, %c0_176] : memref<4x1x128xf32, #tpu.memory_space<vmem>>, vector<1x1x128xf32>
    %291 = vector.shape_cast %290 : vector<1x1x128xf32> to vector<1x128xf32>
    %292 = vector.broadcast %291 : vector<1x128xf32> to vector<128x128xf32>
    %293 = arith.addf %289, %292 : vector<128x128xf32>
    %294 = vector.shape_cast %293 : vector<128x128xf32> to vector<2x64x128xf32>
    %cst_177 = arith.constant dense<0.000000e+00> : vector<2x128xf32>
    %295 = vector.multi_reduction <add>, %294, %cst_177 [1] : vector<2x64x128xf32> to vector<2x128xf32>
    %296 = arith.mulf %294, %294 : vector<2x64x128xf32>
    %cst_178 = arith.constant dense<0.000000e+00> : vector<2x128xf32>
    %297 = vector.multi_reduction <add>, %296, %cst_178 [1] : vector<2x64x128xf32> to vector<2x128xf32>
    %c0_179 = arith.constant 0 : index
    %c0_180 = arith.constant 0 : index
    %298 = vector.load %arg6[%c0_179, %c0_180] : memref<128x128xf32, #tpu.memory_space<vmem>>, vector<128x128xf32>
    %cst_181 = arith.constant dense<0.000000e+00> : vector<2x128xf32>
    %299 = tpu.matmul %295, %298, %cst_181 {dimension_numbers = #tpu.dot_dimension_numbers<[1], [0], [0], [1], [0, 0, 1, 1], [], []>} : vector<2x128xf32>, vector<128x128xf32>, vector<2x128xf32> -> vector<2x128xf32>
    %c0_182 = arith.constant 0 : index
    %c0_183 = arith.constant 0 : index
    %300 = vector.load %arg6[%c0_182, %c0_183] : memref<128x128xf32, #tpu.memory_space<vmem>>, vector<128x128xf32>
    %cst_184 = arith.constant dense<0.000000e+00> : vector<2x128xf32>
    %301 = tpu.matmul %297, %300, %cst_184 {dimension_numbers = #tpu.dot_dimension_numbers<[1], [0], [0], [1], [0, 0, 1, 1], [], []>} : vector<2x128xf32>, vector<128x128xf32>, vector<2x128xf32> -> vector<2x128xf32>
    %302 = arith.mulf %299, %299 : vector<2x128xf32>
    %303 = arith.subf %301, %302 : vector<2x128xf32>
    %cst_185 = arith.constant 0.000000e+00 : f32
    %304 = vector.broadcast %cst_185 : f32 to vector<2x128xf32>
    %305 = arith.maximumf %303, %304 : vector<2x128xf32>
    %cst_186 = arith.constant 9.99999974E-6 : f32
    %306 = vector.broadcast %cst_186 : f32 to vector<2x128xf32>
    %307 = arith.addf %305, %306 : vector<2x128xf32>
    %308 = math.rsqrt %307 : vector<2x128xf32>
    %c2_187 = arith.constant 2 : index
    %c0_188 = arith.constant 0 : index
    %c0_189 = arith.constant 0 : index
    %309 = vector.load %arg4[%c2_187, %c0_188, %c0_189] : memref<4x1x128xf32, #tpu.memory_space<vmem>>, vector<1x1x128xf32>
    %310 = vector.shape_cast %309 : vector<1x1x128xf32> to vector<1x128xf32>
    %311 = vector.broadcast %310 : vector<1x128xf32> to vector<2x128xf32>
    %312 = arith.mulf %308, %311 : vector<2x128xf32>
    %c2_190 = arith.constant 2 : index
    %c0_191 = arith.constant 0 : index
    %c0_192 = arith.constant 0 : index
    %313 = vector.load %arg5[%c2_190, %c0_191, %c0_192] : memref<4x1x128xf32, #tpu.memory_space<vmem>>, vector<1x1x128xf32>
    %314 = vector.shape_cast %313 : vector<1x1x128xf32> to vector<1x128xf32>
    %315 = arith.mulf %299, %312 : vector<2x128xf32>
    %316 = vector.broadcast %314 : vector<1x128xf32> to vector<2x128xf32>
    %317 = arith.subf %316, %315 : vector<2x128xf32>
    %318 = vector.shape_cast %312 : vector<2x128xf32> to vector<2x1x128xf32>
    %319 = vector.broadcast %318 : vector<2x1x128xf32> to vector<2x64x128xf32>
    %320 = arith.mulf %294, %319 : vector<2x64x128xf32>
    %321 = vector.shape_cast %317 : vector<2x128xf32> to vector<2x1x128xf32>
    %322 = vector.broadcast %321 : vector<2x1x128xf32> to vector<2x64x128xf32>
    %323 = arith.addf %320, %322 : vector<2x64x128xf32>
    %cst_193 = arith.constant 0.000000e+00 : f32
    %324 = vector.broadcast %cst_193 : f32 to vector<2x64x128xf32>
    %325 = arith.maximumf %323, %324 : vector<2x64x128xf32>
    %326 = vector.shape_cast %325 : vector<2x64x128xf32> to vector<2x8x8x128xf32>
    %cst_194 = arith.constant 0.000000e+00 : f32
    %327 = vector.broadcast %cst_194 : f32 to vector<128x128xf32>
    %328 = vector.extract_strided_slice %326 {offsets = [0, 0, 0, 0], sizes = [2, 7, 8, 128], strides = [1, 1, 1, 1]} : vector<2x8x8x128xf32> to vector<2x7x8x128xf32>
    %329 = tpu.concatenate %0, %328 in 1 : vector<2x1x8x128xf32>, vector<2x7x8x128xf32> -> vector<2x8x8x128xf32>
    %330 = vector.extract_strided_slice %329 {offsets = [0, 0, 0, 0], sizes = [2, 8, 7, 128], strides = [1, 1, 1, 1]} : vector<2x8x8x128xf32> to vector<2x8x7x128xf32>
    %331 = tpu.concatenate %1, %330 in 2 : vector<2x8x1x128xf32>, vector<2x8x7x128xf32> -> vector<2x8x8x128xf32>
    %332 = vector.shape_cast %331 : vector<2x8x8x128xf32> to vector<128x128xf32>
    %333 = arith.truncf %332 : vector<128x128xf32> to vector<128x128xbf16>
    %c3_195 = arith.constant 3 : index
    %c0_196 = arith.constant 0 : index
    %c0_197 = arith.constant 0 : index
    %c0_198 = arith.constant 0 : index
    %334 = vector.load %arg2[%c3_195, %c0_196, %c0_197, %c0_198] : memref<4x9x128x128xbf16, #tpu.memory_space<vmem>>, vector<1x1x128x128xbf16>
    %335 = vector.shape_cast %334 : vector<1x1x128x128xbf16> to vector<128x128xbf16>
    %cst_199 = arith.constant dense<0.000000e+00> : vector<128x128xf32>
    %336 = tpu.matmul %333, %335, %cst_199 {dimension_numbers = #tpu.dot_dimension_numbers<[1], [0], [0], [1], [0, 0, 1, 1], [], []>} : vector<128x128xbf16>, vector<128x128xbf16>, vector<128x128xf32> -> vector<128x128xf32>
    %337 = arith.addf %327, %336 : vector<128x128xf32>
    %338 = vector.shape_cast %329 : vector<2x8x8x128xf32> to vector<128x128xf32>
    %339 = arith.truncf %338 : vector<128x128xf32> to vector<128x128xbf16>
    %c3_200 = arith.constant 3 : index
    %c1_201 = arith.constant 1 : index
    %c0_202 = arith.constant 0 : index
    %c0_203 = arith.constant 0 : index
    %340 = vector.load %arg2[%c3_200, %c1_201, %c0_202, %c0_203] : memref<4x9x128x128xbf16, #tpu.memory_space<vmem>>, vector<1x1x128x128xbf16>
    %341 = vector.shape_cast %340 : vector<1x1x128x128xbf16> to vector<128x128xbf16>
    %cst_204 = arith.constant dense<0.000000e+00> : vector<128x128xf32>
    %342 = tpu.matmul %339, %341, %cst_204 {dimension_numbers = #tpu.dot_dimension_numbers<[1], [0], [0], [1], [0, 0, 1, 1], [], []>} : vector<128x128xbf16>, vector<128x128xbf16>, vector<128x128xf32> -> vector<128x128xf32>
    %343 = arith.addf %337, %342 : vector<128x128xf32>
    %344 = vector.extract_strided_slice %329 {offsets = [0, 0, 1, 0], sizes = [2, 8, 7, 128], strides = [1, 1, 1, 1]} : vector<2x8x8x128xf32> to vector<2x8x7x128xf32>
    %345 = tpu.concatenate %344, %1 in 2 : vector<2x8x7x128xf32>, vector<2x8x1x128xf32> -> vector<2x8x8x128xf32>
    %346 = vector.shape_cast %345 : vector<2x8x8x128xf32> to vector<128x128xf32>
    %347 = arith.truncf %346 : vector<128x128xf32> to vector<128x128xbf16>
    %c3_205 = arith.constant 3 : index
    %c2_206 = arith.constant 2 : index
    %c0_207 = arith.constant 0 : index
    %c0_208 = arith.constant 0 : index
    %348 = vector.load %arg2[%c3_205, %c2_206, %c0_207, %c0_208] : memref<4x9x128x128xbf16, #tpu.memory_space<vmem>>, vector<1x1x128x128xbf16>
    %349 = vector.shape_cast %348 : vector<1x1x128x128xbf16> to vector<128x128xbf16>
    %cst_209 = arith.constant dense<0.000000e+00> : vector<128x128xf32>
    %350 = tpu.matmul %347, %349, %cst_209 {dimension_numbers = #tpu.dot_dimension_numbers<[1], [0], [0], [1], [0, 0, 1, 1], [], []>} : vector<128x128xbf16>, vector<128x128xbf16>, vector<128x128xf32> -> vector<128x128xf32>
    %351 = arith.addf %343, %350 : vector<128x128xf32>
    %352 = vector.extract_strided_slice %326 {offsets = [0, 0, 0, 0], sizes = [2, 8, 7, 128], strides = [1, 1, 1, 1]} : vector<2x8x8x128xf32> to vector<2x8x7x128xf32>
    %353 = tpu.concatenate %1, %352 in 2 : vector<2x8x1x128xf32>, vector<2x8x7x128xf32> -> vector<2x8x8x128xf32>
    %354 = vector.shape_cast %353 : vector<2x8x8x128xf32> to vector<128x128xf32>
    %355 = arith.truncf %354 : vector<128x128xf32> to vector<128x128xbf16>
    %c3_210 = arith.constant 3 : index
    %c3_211 = arith.constant 3 : index
    %c0_212 = arith.constant 0 : index
    %c0_213 = arith.constant 0 : index
    %356 = vector.load %arg2[%c3_210, %c3_211, %c0_212, %c0_213] : memref<4x9x128x128xbf16, #tpu.memory_space<vmem>>, vector<1x1x128x128xbf16>
    %357 = vector.shape_cast %356 : vector<1x1x128x128xbf16> to vector<128x128xbf16>
    %cst_214 = arith.constant dense<0.000000e+00> : vector<128x128xf32>
    %358 = tpu.matmul %355, %357, %cst_214 {dimension_numbers = #tpu.dot_dimension_numbers<[1], [0], [0], [1], [0, 0, 1, 1], [], []>} : vector<128x128xbf16>, vector<128x128xbf16>, vector<128x128xf32> -> vector<128x128xf32>
    %359 = arith.addf %351, %358 : vector<128x128xf32>
    %360 = vector.shape_cast %326 : vector<2x8x8x128xf32> to vector<128x128xf32>
    %361 = arith.truncf %360 : vector<128x128xf32> to vector<128x128xbf16>
    %c3_215 = arith.constant 3 : index
    %c4_216 = arith.constant 4 : index
    %c0_217 = arith.constant 0 : index
    %c0_218 = arith.constant 0 : index
    %362 = vector.load %arg2[%c3_215, %c4_216, %c0_217, %c0_218] : memref<4x9x128x128xbf16, #tpu.memory_space<vmem>>, vector<1x1x128x128xbf16>
    %363 = vector.shape_cast %362 : vector<1x1x128x128xbf16> to vector<128x128xbf16>
    %cst_219 = arith.constant dense<0.000000e+00> : vector<128x128xf32>
    %364 = tpu.matmul %361, %363, %cst_219 {dimension_numbers = #tpu.dot_dimension_numbers<[1], [0], [0], [1], [0, 0, 1, 1], [], []>} : vector<128x128xbf16>, vector<128x128xbf16>, vector<128x128xf32> -> vector<128x128xf32>
    %365 = arith.addf %359, %364 : vector<128x128xf32>
    %366 = vector.extract_strided_slice %326 {offsets = [0, 0, 1, 0], sizes = [2, 8, 7, 128], strides = [1, 1, 1, 1]} : vector<2x8x8x128xf32> to vector<2x8x7x128xf32>
    %367 = tpu.concatenate %366, %1 in 2 : vector<2x8x7x128xf32>, vector<2x8x1x128xf32> -> vector<2x8x8x128xf32>
    %368 = vector.shape_cast %367 : vector<2x8x8x128xf32> to vector<128x128xf32>
    %369 = arith.truncf %368 : vector<128x128xf32> to vector<128x128xbf16>
    %c3_220 = arith.constant 3 : index
    %c5_221 = arith.constant 5 : index
    %c0_222 = arith.constant 0 : index
    %c0_223 = arith.constant 0 : index
    %370 = vector.load %arg2[%c3_220, %c5_221, %c0_222, %c0_223] : memref<4x9x128x128xbf16, #tpu.memory_space<vmem>>, vector<1x1x128x128xbf16>
    %371 = vector.shape_cast %370 : vector<1x1x128x128xbf16> to vector<128x128xbf16>
    %cst_224 = arith.constant dense<0.000000e+00> : vector<128x128xf32>
    %372 = tpu.matmul %369, %371, %cst_224 {dimension_numbers = #tpu.dot_dimension_numbers<[1], [0], [0], [1], [0, 0, 1, 1], [], []>} : vector<128x128xbf16>, vector<128x128xbf16>, vector<128x128xf32> -> vector<128x128xf32>
    %373 = arith.addf %365, %372 : vector<128x128xf32>
    %374 = vector.extract_strided_slice %326 {offsets = [0, 1, 0, 0], sizes = [2, 7, 8, 128], strides = [1, 1, 1, 1]} : vector<2x8x8x128xf32> to vector<2x7x8x128xf32>
    %375 = tpu.concatenate %374, %0 in 1 : vector<2x7x8x128xf32>, vector<2x1x8x128xf32> -> vector<2x8x8x128xf32>
    %376 = vector.extract_strided_slice %375 {offsets = [0, 0, 0, 0], sizes = [2, 8, 7, 128], strides = [1, 1, 1, 1]} : vector<2x8x8x128xf32> to vector<2x8x7x128xf32>
    %377 = tpu.concatenate %1, %376 in 2 : vector<2x8x1x128xf32>, vector<2x8x7x128xf32> -> vector<2x8x8x128xf32>
    %378 = vector.shape_cast %377 : vector<2x8x8x128xf32> to vector<128x128xf32>
    %379 = arith.truncf %378 : vector<128x128xf32> to vector<128x128xbf16>
    %c3_225 = arith.constant 3 : index
    %c6_226 = arith.constant 6 : index
    %c0_227 = arith.constant 0 : index
    %c0_228 = arith.constant 0 : index
    %380 = vector.load %arg2[%c3_225, %c6_226, %c0_227, %c0_228] : memref<4x9x128x128xbf16, #tpu.memory_space<vmem>>, vector<1x1x128x128xbf16>
    %381 = vector.shape_cast %380 : vector<1x1x128x128xbf16> to vector<128x128xbf16>
    %cst_229 = arith.constant dense<0.000000e+00> : vector<128x128xf32>
    %382 = tpu.matmul %379, %381, %cst_229 {dimension_numbers = #tpu.dot_dimension_numbers<[1], [0], [0], [1], [0, 0, 1, 1], [], []>} : vector<128x128xbf16>, vector<128x128xbf16>, vector<128x128xf32> -> vector<128x128xf32>
    %383 = arith.addf %373, %382 : vector<128x128xf32>
    %384 = vector.shape_cast %375 : vector<2x8x8x128xf32> to vector<128x128xf32>
    %385 = arith.truncf %384 : vector<128x128xf32> to vector<128x128xbf16>
    %c3_230 = arith.constant 3 : index
    %c7_231 = arith.constant 7 : index
    %c0_232 = arith.constant 0 : index
    %c0_233 = arith.constant 0 : index
    %386 = vector.load %arg2[%c3_230, %c7_231, %c0_232, %c0_233] : memref<4x9x128x128xbf16, #tpu.memory_space<vmem>>, vector<1x1x128x128xbf16>
    %387 = vector.shape_cast %386 : vector<1x1x128x128xbf16> to vector<128x128xbf16>
    %cst_234 = arith.constant dense<0.000000e+00> : vector<128x128xf32>
    %388 = tpu.matmul %385, %387, %cst_234 {dimension_numbers = #tpu.dot_dimension_numbers<[1], [0], [0], [1], [0, 0, 1, 1], [], []>} : vector<128x128xbf16>, vector<128x128xbf16>, vector<128x128xf32> -> vector<128x128xf32>
    %389 = arith.addf %383, %388 : vector<128x128xf32>
    %390 = vector.extract_strided_slice %375 {offsets = [0, 0, 1, 0], sizes = [2, 8, 7, 128], strides = [1, 1, 1, 1]} : vector<2x8x8x128xf32> to vector<2x8x7x128xf32>
    %391 = tpu.concatenate %390, %1 in 2 : vector<2x8x7x128xf32>, vector<2x8x1x128xf32> -> vector<2x8x8x128xf32>
    %392 = vector.shape_cast %391 : vector<2x8x8x128xf32> to vector<128x128xf32>
    %393 = arith.truncf %392 : vector<128x128xf32> to vector<128x128xbf16>
    %c3_235 = arith.constant 3 : index
    %c8_236 = arith.constant 8 : index
    %c0_237 = arith.constant 0 : index
    %c0_238 = arith.constant 0 : index
    %394 = vector.load %arg2[%c3_235, %c8_236, %c0_237, %c0_238] : memref<4x9x128x128xbf16, #tpu.memory_space<vmem>>, vector<1x1x128x128xbf16>
    %395 = vector.shape_cast %394 : vector<1x1x128x128xbf16> to vector<128x128xbf16>
    %cst_239 = arith.constant dense<0.000000e+00> : vector<128x128xf32>
    %396 = tpu.matmul %393, %395, %cst_239 {dimension_numbers = #tpu.dot_dimension_numbers<[1], [0], [0], [1], [0, 0, 1, 1], [], []>} : vector<128x128xbf16>, vector<128x128xbf16>, vector<128x128xf32> -> vector<128x128xf32>
    %397 = arith.addf %389, %396 : vector<128x128xf32>
    %c3_240 = arith.constant 3 : index
    %c0_241 = arith.constant 0 : index
    %c0_242 = arith.constant 0 : index
    %398 = vector.load %arg3[%c3_240, %c0_241, %c0_242] : memref<4x1x128xf32, #tpu.memory_space<vmem>>, vector<1x1x128xf32>
    %399 = vector.shape_cast %398 : vector<1x1x128xf32> to vector<1x128xf32>
    %400 = vector.broadcast %399 : vector<1x128xf32> to vector<128x128xf32>
    %401 = arith.addf %397, %400 : vector<128x128xf32>
    %402 = vector.shape_cast %401 : vector<128x128xf32> to vector<2x64x128xf32>
    %cst_243 = arith.constant dense<0.000000e+00> : vector<2x128xf32>
    %403 = vector.multi_reduction <add>, %402, %cst_243 [1] : vector<2x64x128xf32> to vector<2x128xf32>
    %404 = arith.mulf %402, %402 : vector<2x64x128xf32>
    %cst_244 = arith.constant dense<0.000000e+00> : vector<2x128xf32>
    %405 = vector.multi_reduction <add>, %404, %cst_244 [1] : vector<2x64x128xf32> to vector<2x128xf32>
    %c0_245 = arith.constant 0 : index
    %c0_246 = arith.constant 0 : index
    %406 = vector.load %arg6[%c0_245, %c0_246] : memref<128x128xf32, #tpu.memory_space<vmem>>, vector<128x128xf32>
    %cst_247 = arith.constant dense<0.000000e+00> : vector<2x128xf32>
    %407 = tpu.matmul %403, %406, %cst_247 {dimension_numbers = #tpu.dot_dimension_numbers<[1], [0], [0], [1], [0, 0, 1, 1], [], []>} : vector<2x128xf32>, vector<128x128xf32>, vector<2x128xf32> -> vector<2x128xf32>
    %c0_248 = arith.constant 0 : index
    %c0_249 = arith.constant 0 : index
    %408 = vector.load %arg6[%c0_248, %c0_249] : memref<128x128xf32, #tpu.memory_space<vmem>>, vector<128x128xf32>
    %cst_250 = arith.constant dense<0.000000e+00> : vector<2x128xf32>
    %409 = tpu.matmul %405, %408, %cst_250 {dimension_numbers = #tpu.dot_dimension_numbers<[1], [0], [0], [1], [0, 0, 1, 1], [], []>} : vector<2x128xf32>, vector<128x128xf32>, vector<2x128xf32> -> vector<2x128xf32>
    %410 = arith.mulf %407, %407 : vector<2x128xf32>
    %411 = arith.subf %409, %410 : vector<2x128xf32>
    %cst_251 = arith.constant 0.000000e+00 : f32
    %412 = vector.broadcast %cst_251 : f32 to vector<2x128xf32>
    %413 = arith.maximumf %411, %412 : vector<2x128xf32>
    %cst_252 = arith.constant 9.99999974E-6 : f32
    %414 = vector.broadcast %cst_252 : f32 to vector<2x128xf32>
    %415 = arith.addf %413, %414 : vector<2x128xf32>
    %416 = math.rsqrt %415 : vector<2x128xf32>
    %c3_253 = arith.constant 3 : index
    %c0_254 = arith.constant 0 : index
    %c0_255 = arith.constant 0 : index
    %417 = vector.load %arg4[%c3_253, %c0_254, %c0_255] : memref<4x1x128xf32, #tpu.memory_space<vmem>>, vector<1x1x128xf32>
    %418 = vector.shape_cast %417 : vector<1x1x128xf32> to vector<1x128xf32>
    %419 = vector.broadcast %418 : vector<1x128xf32> to vector<2x128xf32>
    %420 = arith.mulf %416, %419 : vector<2x128xf32>
    %c3_256 = arith.constant 3 : index
    %c0_257 = arith.constant 0 : index
    %c0_258 = arith.constant 0 : index
    %421 = vector.load %arg5[%c3_256, %c0_257, %c0_258] : memref<4x1x128xf32, #tpu.memory_space<vmem>>, vector<1x1x128xf32>
    %422 = vector.shape_cast %421 : vector<1x1x128xf32> to vector<1x128xf32>
    %423 = arith.mulf %407, %420 : vector<2x128xf32>
    %424 = vector.broadcast %422 : vector<1x128xf32> to vector<2x128xf32>
    %425 = arith.subf %424, %423 : vector<2x128xf32>
    %426 = vector.shape_cast %420 : vector<2x128xf32> to vector<2x1x128xf32>
    %427 = vector.broadcast %426 : vector<2x1x128xf32> to vector<2x64x128xf32>
    %428 = arith.mulf %402, %427 : vector<2x64x128xf32>
    %429 = vector.shape_cast %425 : vector<2x128xf32> to vector<2x1x128xf32>
    %430 = vector.broadcast %429 : vector<2x1x128xf32> to vector<2x64x128xf32>
    %431 = arith.addf %428, %430 : vector<2x64x128xf32>
    %cst_259 = arith.constant 0.000000e+00 : f32
    %432 = vector.broadcast %cst_259 : f32 to vector<2x64x128xf32>
    %433 = arith.maximumf %431, %432 : vector<2x64x128xf32>
    %434 = vector.shape_cast %433 : vector<2x64x128xf32> to vector<2x8x8x128xf32>
    %435 = vector.shape_cast %434 : vector<2x8x8x128xf32> to vector<128x128xf32>
    %436 = arith.truncf %435 : vector<128x128xf32> to vector<128x128xbf16>
    %cst_260 = arith.constant 0.000000e+00 : f32
    %437 = vector.broadcast %cst_260 : f32 to vector<128x128xf32>
    %c0_261 = arith.constant 0 : index
    %c0_262 = arith.constant 0 : index
    %438 = vector.load %arg7[%c0_261, %c0_262] : memref<128x512xbf16, #tpu.memory_space<vmem>>, vector<128x128xbf16>
    %cst_263 = arith.constant dense<0.000000e+00> : vector<128x128xf32>
    %439 = tpu.matmul %436, %438, %cst_263 {dimension_numbers = #tpu.dot_dimension_numbers<[1], [0], [0], [1], [0, 0, 1, 1], [], []>} : vector<128x128xbf16>, vector<128x128xbf16>, vector<128x128xf32> -> vector<128x128xf32>
    %c0_264 = arith.constant 0 : index
    %c0_265 = arith.constant 0 : index
    %440 = vector.load %arg8[%c0_264, %c0_265] : memref<1x512xf32, #tpu.memory_space<vmem>>, vector<1x128xf32>
    %441 = vector.broadcast %440 : vector<1x128xf32> to vector<128x128xf32>
    %442 = arith.addf %439, %441 : vector<128x128xf32>
    %cst_266 = arith.constant 0.000000e+00 : f32
    %443 = vector.broadcast %cst_266 : f32 to vector<128x128xf32>
    %444 = arith.maximumf %442, %443 : vector<128x128xf32>
    %445 = arith.truncf %444 : vector<128x128xf32> to vector<128x128xbf16>
    %c0_267 = arith.constant 0 : index
    %c0_268 = arith.constant 0 : index
    %446 = vector.load %arg9[%c0_267, %c0_268] : memref<512x128xbf16, #tpu.memory_space<vmem>>, vector<128x128xbf16>
    %cst_269 = arith.constant dense<0.000000e+00> : vector<128x128xf32>
    %447 = tpu.matmul %445, %446, %cst_269 {dimension_numbers = #tpu.dot_dimension_numbers<[1], [0], [0], [1], [0, 0, 1, 1], [], []>} : vector<128x128xbf16>, vector<128x128xbf16>, vector<128x128xf32> -> vector<128x128xf32>
    %448 = arith.addf %437, %447 : vector<128x128xf32>
    %c0_270 = arith.constant 0 : index
    %c128 = arith.constant 128 : index
    %449 = vector.load %arg7[%c0_270, %c128] : memref<128x512xbf16, #tpu.memory_space<vmem>>, vector<128x128xbf16>
    %cst_271 = arith.constant dense<0.000000e+00> : vector<128x128xf32>
    %450 = tpu.matmul %436, %449, %cst_271 {dimension_numbers = #tpu.dot_dimension_numbers<[1], [0], [0], [1], [0, 0, 1, 1], [], []>} : vector<128x128xbf16>, vector<128x128xbf16>, vector<128x128xf32> -> vector<128x128xf32>
    %c0_272 = arith.constant 0 : index
    %c128_273 = arith.constant 128 : index
    %451 = vector.load %arg8[%c0_272, %c128_273] : memref<1x512xf32, #tpu.memory_space<vmem>>, vector<1x128xf32>
    %452 = vector.broadcast %451 : vector<1x128xf32> to vector<128x128xf32>
    %453 = arith.addf %450, %452 : vector<128x128xf32>
    %cst_274 = arith.constant 0.000000e+00 : f32
    %454 = vector.broadcast %cst_274 : f32 to vector<128x128xf32>
    %455 = arith.maximumf %453, %454 : vector<128x128xf32>
    %456 = arith.truncf %455 : vector<128x128xf32> to vector<128x128xbf16>
    %c128_275 = arith.constant 128 : index
    %c0_276 = arith.constant 0 : index
    %457 = vector.load %arg9[%c128_275, %c0_276] : memref<512x128xbf16, #tpu.memory_space<vmem>>, vector<128x128xbf16>
    %cst_277 = arith.constant dense<0.000000e+00> : vector<128x128xf32>
    %458 = tpu.matmul %456, %457, %cst_277 {dimension_numbers = #tpu.dot_dimension_numbers<[1], [0], [0], [1], [0, 0, 1, 1], [], []>} : vector<128x128xbf16>, vector<128x128xbf16>, vector<128x128xf32> -> vector<128x128xf32>
    %459 = arith.addf %448, %458 : vector<128x128xf32>
    %c0_278 = arith.constant 0 : index
    %c256 = arith.constant 256 : index
    %460 = vector.load %arg7[%c0_278, %c256] : memref<128x512xbf16, #tpu.memory_space<vmem>>, vector<128x128xbf16>
    %cst_279 = arith.constant dense<0.000000e+00> : vector<128x128xf32>
    %461 = tpu.matmul %436, %460, %cst_279 {dimension_numbers = #tpu.dot_dimension_numbers<[1], [0], [0], [1], [0, 0, 1, 1], [], []>} : vector<128x128xbf16>, vector<128x128xbf16>, vector<128x128xf32> -> vector<128x128xf32>
    %c0_280 = arith.constant 0 : index
    %c256_281 = arith.constant 256 : index
    %462 = vector.load %arg8[%c0_280, %c256_281] : memref<1x512xf32, #tpu.memory_space<vmem>>, vector<1x128xf32>
    %463 = vector.broadcast %462 : vector<1x128xf32> to vector<128x128xf32>
    %464 = arith.addf %461, %463 : vector<128x128xf32>
    %cst_282 = arith.constant 0.000000e+00 : f32
    %465 = vector.broadcast %cst_282 : f32 to vector<128x128xf32>
    %466 = arith.maximumf %464, %465 : vector<128x128xf32>
    %467 = arith.truncf %466 : vector<128x128xf32> to vector<128x128xbf16>
    %c256_283 = arith.constant 256 : index
    %c0_284 = arith.constant 0 : index
    %468 = vector.load %arg9[%c256_283, %c0_284] : memref<512x128xbf16, #tpu.memory_space<vmem>>, vector<128x128xbf16>
    %cst_285 = arith.constant dense<0.000000e+00> : vector<128x128xf32>
    %469 = tpu.matmul %467, %468, %cst_285 {dimension_numbers = #tpu.dot_dimension_numbers<[1], [0], [0], [1], [0, 0, 1, 1], [], []>} : vector<128x128xbf16>, vector<128x128xbf16>, vector<128x128xf32> -> vector<128x128xf32>
    %470 = arith.addf %459, %469 : vector<128x128xf32>
    %c0_286 = arith.constant 0 : index
    %c384 = arith.constant 384 : index
    %471 = vector.load %arg7[%c0_286, %c384] : memref<128x512xbf16, #tpu.memory_space<vmem>>, vector<128x128xbf16>
    %cst_287 = arith.constant dense<0.000000e+00> : vector<128x128xf32>
    %472 = tpu.matmul %436, %471, %cst_287 {dimension_numbers = #tpu.dot_dimension_numbers<[1], [0], [0], [1], [0, 0, 1, 1], [], []>} : vector<128x128xbf16>, vector<128x128xbf16>, vector<128x128xf32> -> vector<128x128xf32>
    %c0_288 = arith.constant 0 : index
    %c384_289 = arith.constant 384 : index
    %473 = vector.load %arg8[%c0_288, %c384_289] : memref<1x512xf32, #tpu.memory_space<vmem>>, vector<1x128xf32>
    %474 = vector.broadcast %473 : vector<1x128xf32> to vector<128x128xf32>
    %475 = arith.addf %472, %474 : vector<128x128xf32>
    %cst_290 = arith.constant 0.000000e+00 : f32
    %476 = vector.broadcast %cst_290 : f32 to vector<128x128xf32>
    %477 = arith.maximumf %475, %476 : vector<128x128xf32>
    %478 = arith.truncf %477 : vector<128x128xf32> to vector<128x128xbf16>
    %c384_291 = arith.constant 384 : index
    %c0_292 = arith.constant 0 : index
    %479 = vector.load %arg9[%c384_291, %c0_292] : memref<512x128xbf16, #tpu.memory_space<vmem>>, vector<128x128xbf16>
    %cst_293 = arith.constant dense<0.000000e+00> : vector<128x128xf32>
    %480 = tpu.matmul %478, %479, %cst_293 {dimension_numbers = #tpu.dot_dimension_numbers<[1], [0], [0], [1], [0, 0, 1, 1], [], []>} : vector<128x128xbf16>, vector<128x128xbf16>, vector<128x128xf32> -> vector<128x128xf32>
    %481 = arith.addf %470, %480 : vector<128x128xf32>
    %c0_294 = arith.constant 0 : index
    %c0_295 = arith.constant 0 : index
    %482 = vector.load %arg10[%c0_294, %c0_295] : memref<1x128xf32, #tpu.memory_space<vmem>>, vector<1x128xf32>
    %483 = vector.broadcast %482 : vector<1x128xf32> to vector<128x128xf32>
    %484 = arith.addf %481, %483 : vector<128x128xf32>
    %485 = arith.negf %484 : vector<128x128xf32>
    %486 = math.exp %485 : vector<128x128xf32>
    %cst_296 = arith.constant 1.000000e+00 : f32
    %487 = vector.broadcast %cst_296 : f32 to vector<128x128xf32>
    %488 = arith.addf %487, %486 : vector<128x128xf32>
    %489 = arith.divf %487, %488 : vector<128x128xf32>
    %490 = vector.shape_cast %489 : vector<128x128xf32> to vector<2x64x128xf32>
    %c0_297 = arith.constant 0 : index
    %c0_298 = arith.constant 0 : index
    %c0_299 = arith.constant 0 : index
    %491 = vector.load %arg11[%c0_297, %c0_298, %c0_299] : memref<2x64x128xf32, #tpu.memory_space<vmem>>, vector<2x64x128xf32>
    tpu.vector_store %arg11[%c0_297, %c0_298, %c0_299], %490 {strides = array<i32>} : memref<2x64x128xf32, #tpu.memory_space<vmem>>, vector<2x64x128xf32>,
    return
  }
  func.func @transform_0(%arg0: i32) -> (i32, i32, i32, i32) {
    %c0_i32 = arith.constant 0 : i32
    %c0_i32_0 = arith.constant 0 : i32
    %c0_i32_1 = arith.constant 0 : i32
    %c0_i32_2 = arith.constant 0 : i32
    return %arg0, %c0_i32, %c0_i32_0, %c0_i32_1 : i32, i32, i32, i32
  }
  func.func @transform_1(%arg0: i32) -> (i32, i32, i32, i32) {
    %c0_i32 = arith.constant 0 : i32
    %c0_i32_0 = arith.constant 0 : i32
    %c0_i32_1 = arith.constant 0 : i32
    %c0_i32_2 = arith.constant 0 : i32
    %c0_i32_3 = arith.constant 0 : i32
    return %c0_i32, %c0_i32_0, %c0_i32_1, %c0_i32_2 : i32, i32, i32, i32
  }
  func.func @transform_2(%arg0: i32) -> (i32, i32, i32) {
    %c0_i32 = arith.constant 0 : i32
    %c0_i32_0 = arith.constant 0 : i32
    %c0_i32_1 = arith.constant 0 : i32
    %c0_i32_2 = arith.constant 0 : i32
    return %c0_i32, %c0_i32_0, %c0_i32_1 : i32, i32, i32
  }
  func.func @transform_3(%arg0: i32) -> (i32, i32, i32) {
    %c0_i32 = arith.constant 0 : i32
    %c0_i32_0 = arith.constant 0 : i32
    %c0_i32_1 = arith.constant 0 : i32
    %c0_i32_2 = arith.constant 0 : i32
    return %c0_i32, %c0_i32_0, %c0_i32_1 : i32, i32, i32
  }
  func.func @transform_4(%arg0: i32) -> (i32, i32, i32) {
    %c0_i32 = arith.constant 0 : i32
    %c0_i32_0 = arith.constant 0 : i32
    %c0_i32_1 = arith.constant 0 : i32
    %c0_i32_2 = arith.constant 0 : i32
    return %c0_i32, %c0_i32_0, %c0_i32_1 : i32, i32, i32
  }
  func.func @transform_5(%arg0: i32) -> (i32, i32) {
    %c0_i32 = arith.constant 0 : i32
    %c0_i32_0 = arith.constant 0 : i32
    %c0_i32_1 = arith.constant 0 : i32
    return %c0_i32, %c0_i32_0 : i32, i32
  }
  func.func @transform_6(%arg0: i32) -> (i32, i32) {
    %c0_i32 = arith.constant 0 : i32
    %c0_i32_0 = arith.constant 0 : i32
    %c0_i32_1 = arith.constant 0 : i32
    return %c0_i32, %c0_i32_0 : i32, i32
  }
  func.func @transform_7(%arg0: i32) -> (i32, i32) {
    %c0_i32 = arith.constant 0 : i32
    %c0_i32_0 = arith.constant 0 : i32
    %c0_i32_1 = arith.constant 0 : i32
    return %c0_i32, %c0_i32_0 : i32, i32
  }
  func.func @transform_8(%arg0: i32) -> (i32, i32) {
    %c0_i32 = arith.constant 0 : i32
    %c0_i32_0 = arith.constant 0 : i32
    %c0_i32_1 = arith.constant 0 : i32
    return %c0_i32, %c0_i32_0 : i32, i32
  }
  func.func @transform_9(%arg0: i32) -> (i32, i32) {
    %c0_i32 = arith.constant 0 : i32
    %c0_i32_0 = arith.constant 0 : i32
    %c0_i32_1 = arith.constant 0 : i32
    return %c0_i32, %c0_i32_0 : i32, i32
  }
  func.func @transform_10(%arg0: i32) -> (i32, i32, i32) {
    %c0_i32 = arith.constant 0 : i32
    %c0_i32_0 = arith.constant 0 : i32
    %c0_i32_1 = arith.constant 0 : i32
    return %arg0, %c0_i32, %c0_i32_0 : i32, i32, i32
  }
}

</mosaic_0001>

<llo_original>
// kernel: mask_forward.1
$region0: #{mask_forward.1}
  #allocation0 [shape = 'u32[]', space=smem, size = 0x4, offset = 0x4, fixed_abs, tag = 'smem constant byte address 0x4 - core index']
  #allocation1 [shape = 'u32[144,128]{1,0:T(1,128)}', space=vmem, size = 0x12000, scoped, tag = 'internal scratch']
  %s0 = inlined_call_operand.vmem [shape: f32[4,8,8,128], index: 0, kind: input, shape index: {}]
  %s1 = inlined_call_operand.vmem [shape: bf16[4,9,128,128], index: 1, kind: input, shape index: {}]
  %s2 = inlined_call_operand.vmem [shape: f32[4,1,128], index: 2, kind: input, shape index: {}]
  %s3 = inlined_call_operand.vmem [shape: f32[4,1,128], index: 3, kind: input, shape index: {}]
  %s4 = inlined_call_operand.vmem [shape: f32[4,1,128], index: 4, kind: input, shape index: {}]
  %s5 = inlined_call_operand.vmem [shape: f32[128,128], index: 5, kind: input, shape index: {}]
  %s6 = inlined_call_operand.vmem [shape: bf16[128,512], index: 6, kind: input, shape index: {}]
  %s7 = inlined_call_operand.vmem [shape: f32[1,512], index: 7, kind: input, shape index: {}]
  %s8 = inlined_call_operand.vmem [shape: bf16[512,128], index: 8, kind: input, shape index: {}]
  %s9 = inlined_call_operand.vmem [shape: f32[1,128], index: 9, kind: input, shape index: {}]
  %s10 = inlined_call_operand.vmem [shape: f32[4,64,128], index: 10, kind: output, shape index: {}]
  %s11 = sld [smem:[#allocation0]]
  $region73: #{mask_forward.1} parent=0
    _
  %s13 = ssub.s32 1, %s11
  %s14 = scalar_select 0, %s13, %s11
  loop: start=0, step=1, limit=4
  $region2: #{mask_forward.1} parent=0 // loop_pre_header
    _
  $region3: #{mask_forward.1} parent=0 // loop_header
    %s16 = sphi 0, %s20
    %p17 = scmp.ge.s32.totalorder %s16, 4
    %s26 = sphi 0, %s28
    %s29 = sphi 0, %s26
    %s30 = sphi 0, %s29
    %s46 = sphi 0, %s30
    %s50 = sphi 0, %s50
    %s52 = sphi 0, %s50
    %s53 = sphi 0, %s52
    %s67 = sphi 0, %s53
    %s71 = sphi 0, %s71
    %s73 = sphi 0, %s71
    %s74 = sphi 0, %s73
    %s88 = sphi 0, %s74
    %s92 = sphi 0, %s92
    %s94 = sphi 0, %s92
    %s95 = sphi 0, %s94
    %s109 = sphi 0, %s95
    %s113 = sphi 0, %s113
    %s115 = sphi 0, %s113
    %s116 = sphi 0, %s115
    %s130 = sphi 0, %s116
    %s134 = sphi 0, %s134
    %s136 = sphi 0, %s134
    %s137 = sphi 0, %s136
    %s151 = sphi 0, %s137
    %s155 = sphi 0, %s155
    %s157 = sphi 0, %s155
    %s158 = sphi 0, %s157
    %s172 = sphi 0, %s158
    %s176 = sphi 0, %s176
    %s178 = sphi 0, %s176
    %s179 = sphi 0, %s178
    %s193 = sphi 0, %s179
    %s197 = sphi 0, %s197
    %s199 = sphi 0, %s197
    %s200 = sphi 0, %s199
    %s214 = sphi 0, %s200
    %s218 = sphi 0, %s218
    %s220 = sphi 0, %s218
    %s221 = sphi 0, %s220
    %s235 = sphi 0, %s221
    %s241 = sphi 0, %s243
    %s244 = sphi 0, %s241
    %s245 = sphi 0, %s244
    %s261 = sphi 0, %s245
  $region4: #{mask_forward.1} parent=0 // loop_header_branch
    %19 = sbr.rel (%p17) target = $region8
  $region5: #{mask_forward.1} parent=0 // loop_body
    %s21 = ssub.s32 %s16, 1
    %s22 = ssub.s32 %s16, 2
    %s23 = sadd.s32 %s16, 1
    %s24 = ssub.s32 %s16, %s23
    %p25 = scmp.eq.s32.totalorder %s24, 0
    %s27 = sadd.s32 %s26, 1
    %s28 = scalar_select %p25, %s26, %s27
    %p31 = pneg %p25
    %p32 = scmp.eq.s32.totalorder %s16, 1
    %p33 = por %p31, %p32
    %p34 = scmp.ne.s32.totalorder %s26, %s29
    %p35 = scmp.eq.s32.totalorder %s16, 0
    %p36 = por %p34, %p35
    %p37 = scmp.ne.s32.totalorder %s26, %s29
    %p38 = scmp.eq.s32.totalorder %s21, 1
    %p39 = por %p37, %p38
    %p40 = scmp.ne.s32.totalorder %s29, %s30
    %p41 = scmp.eq.s32.totalorder %s21, 0
    %p42 = por %p40, %p41
    %p43 = scmp.ne.s32.totalorder %s29, %s30
    %p44 = scmp.eq.s32.totalorder %s22, 1
    %p45 = por %p43, %p44
    %p47 = scmp.ne.s32.totalorder %s30, %s46
    %p48 = scmp.eq.s32.totalorder %s22, 0
    %p49 = por %p47, %p48
    %s51 = sadd.s32 %s50, 1
    %p54 = scmp.eq.s32.totalorder %s16, 1
    %p55 = scmp.ne.s32.totalorder %s50, %s52
    %p56 = scmp.eq.s32.totalorder %s16, 0
    %p57 = por %p55, %p56
    %p58 = scmp.ne.s32.totalorder %s50, %s52
    %p59 = scmp.eq.s32.totalorder %s21, 1
    %p60 = por %p58, %p59
    %p61 = scmp.ne.s32.totalorder %s52, %s53
    %p62 = scmp.eq.s32.totalorder %s21, 0
    %p63 = por %p61, %p62
    %p64 = scmp.ne.s32.totalorder %s52, %s53
    %p65 = scmp.eq.s32.totalorder %s22, 1
    %p66 = por %p64, %p65
    %p68 = scmp.ne.s32.totalorder %s53, %s67
    %p69 = scmp.eq.s32.totalorder %s22, 0
    %p70 = por %p68, %p69
    %s72 = sadd.s32 %s71, 1
    %p75 = scmp.eq.s32.totalorder %s16, 1
    %p76 = scmp.ne.s32.totalorder %s71, %s73
    %p77 = scmp.eq.s32.totalorder %s16, 0
    %p78 = por %p76, %p77
    %p79 = scmp.ne.s32.totalorder %s71, %s73
    %p80 = scmp.eq.s32.totalorder %s21, 1
    %p81 = por %p79, %p80
    %p82 = scmp.ne.s32.totalorder %s73, %s74
    %p83 = scmp.eq.s32.totalorder %s21, 0
    %p84 = por %p82, %p83
    %p85 = scmp.ne.s32.totalorder %s73, %s74
    %p86 = scmp.eq.s32.totalorder %s22, 1
    %p87 = por %p85, %p86
    %p89 = scmp.ne.s32.totalorder %s74, %s88
    %p90 = scmp.eq.s32.totalorder %s22, 0
    %p91 = por %p89, %p90
    %s93 = sadd.s32 %s92, 1
    %p96 = scmp.eq.s32.totalorder %s16, 1
    %p97 = scmp.ne.s32.totalorder %s92, %s94
    %p98 = scmp.eq.s32.totalorder %s16, 0
    %p99 = por %p97, %p98
    %p100 = scmp.ne.s32.totalorder %s92, %s94
    %p101 = scmp.eq.s32.totalorder %s21, 1
    %p102 = por %p100, %p101
    %p103 = scmp.ne.s32.totalorder %s94, %s95
    %p104 = scmp.eq.s32.totalorder %s21, 0
    %p105 = por %p103, %p104
    %p106 = scmp.ne.s32.totalorder %s94, %s95
    %p107 = scmp.eq.s32.totalorder %s22, 1
    %p108 = por %p106, %p107
    %p110 = scmp.ne.s32.totalorder %s95, %s109
    %p111 = scmp.eq.s32.totalorder %s22, 0
    %p112 = por %p110, %p111
    %s114 = sadd.s32 %s113, 1
    %p117 = scmp.eq.s32.totalorder %s16, 1
    %p118 = scmp.ne.s32.totalorder %s113, %s115
    %p119 = scmp.eq.s32.totalorder %s16, 0
    %p120 = por %p118, %p119
    %p121 = scmp.ne.s32.totalorder %s113, %s115
    %p122 = scmp.eq.s32.totalorder %s21, 1
    %p123 = por %p121, %p122
    %p124 = scmp.ne.s32.totalorder %s115, %s116
    %p125 = scmp.eq.s32.totalorder %s21, 0
    %p126 = por %p124, %p125
    %p127 = scmp.ne.s32.totalorder %s115, %s116
    %p128 = scmp.eq.s32.totalorder %s22, 1
    %p129 = por %p127, %p128
    %p131 = scmp.ne.s32.totalorder %s116, %s130
    %p132 = scmp.eq.s32.totalorder %s22, 0
    %p133 = por %p131, %p132
    %s135 = sadd.s32 %s134, 1
    %p138 = scmp.eq.s32.totalorder %s16, 1
    %p139 = scmp.ne.s32.totalorder %s134, %s136
    %p140 = scmp.eq.s32.totalorder %s16, 0
    %p141 = por %p139, %p140
    %p142 = scmp.ne.s32.totalorder %s134, %s136
    %p143 = scmp.eq.s32.totalorder %s21, 1
    %p144 = por %p142, %p143
    %p145 = scmp.ne.s32.totalorder %s136, %s137
    %p146 = scmp.eq.s32.totalorder %s21, 0
    %p147 = por %p145, %p146
    %p148 = scmp.ne.s32.totalorder %s136, %s137
    %p149 = scmp.eq.s32.totalorder %s22, 1
    %p150 = por %p148, %p149
    %p152 = scmp.ne.s32.totalorder %s137, %s151
    %p153 = scmp.eq.s32.totalorder %s22, 0
    %p154 = por %p152, %p153
    %s156 = sadd.s32 %s155, 1
    %p159 = scmp.eq.s32.totalorder %s16, 1
    %p160 = scmp.ne.s32.totalorder %s155, %s157
    %p161 = scmp.eq.s32.totalorder %s16, 0
    %p162 = por %p160, %p161
    %p163 = scmp.ne.s32.totalorder %s155, %s157
    %p164 = scmp.eq.s32.totalorder %s21, 1
    %p165 = por %p163, %p164
    %p166 = scmp.ne.s32.totalorder %s157, %s158
    %p167 = scmp.eq.s32.totalorder %s21, 0
    %p168 = por %p166, %p167
    %p169 = scmp.ne.s32.totalorder %s157, %s158
    %p170 = scmp.eq.s32.totalorder %s22, 1
    %p171 = por %p169, %p170
    %p173 = scmp.ne.s32.totalorder %s158, %s172
    %p174 = scmp.eq.s32.totalorder %s22, 0
    %p175 = por %p173, %p174
    %s177 = sadd.s32 %s176, 1
    %p180 = scmp.eq.s32.totalorder %s16, 1
    %p181 = scmp.ne.s32.totalorder %s176, %s178
    %p182 = scmp.eq.s32.totalorder %s16, 0
    %p183 = por %p181, %p182
    %p184 = scmp.ne.s32.totalorder %s176, %s178
    %p185 = scmp.eq.s32.totalorder %s21, 1
    %p186 = por %p184, %p185
    %p187 = scmp.ne.s32.totalorder %s178, %s179
    %p188 = scmp.eq.s32.totalorder %s21, 0
    %p189 = por %p187, %p188
    %p190 = scmp.ne.s32.totalorder %s178, %s179
    %p191 = scmp.eq.s32.totalorder %s22, 1
    %p192 = por %p190, %p191
    %p194 = scmp.ne.s32.totalorder %s179, %s193
    %p195 = scmp.eq.s32.totalorder %s22, 0
    %p196 = por %p194, %p195
    %s198 = sadd.s32 %s197, 1
    %p201 = scmp.eq.s32.totalorder %s16, 1
    %p202 = scmp.ne.s32.totalorder %s197, %s199
    %p203 = scmp.eq.s32.totalorder %s16, 0
    %p204 = por %p202, %p203
    %p205 = scmp.ne.s32.totalorder %s197, %s199
    %p206 = scmp.eq.s32.totalorder %s21, 1
    %p207 = por %p205, %p206
    %p208 = scmp.ne.s32.totalorder %s199, %s200
    %p209 = scmp.eq.s32.totalorder %s21, 0
    %p210 = por %p208, %p209
    %p211 = scmp.ne.s32.totalorder %s199, %s200
    %p212 = scmp.eq.s32.totalorder %s22, 1
    %p213 = por %p211, %p212
    %p215 = scmp.ne.s32.totalorder %s200, %s214
    %p216 = scmp.eq.s32.totalorder %s22, 0
    %p217 = por %p215, %p216
    %s219 = sadd.s32 %s218, 1
    %p222 = scmp.eq.s32.totalorder %s16, 1
    %p223 = scmp.ne.s32.totalorder %s218, %s220
    %p224 = scmp.eq.s32.totalorder %s16, 0
    %p225 = por %p223, %p224
    %p226 = scmp.ne.s32.totalorder %s218, %s220
    %p227 = scmp.eq.s32.totalorder %s21, 1
    %p228 = por %p226, %p227
    %p229 = scmp.ne.s32.totalorder %s220, %s221
    %p230 = scmp.eq.s32.totalorder %s21, 0
    %p231 = por %p229, %p230
    %p232 = scmp.ne.s32.totalorder %s220, %s221
    %p233 = scmp.eq.s32.totalorder %s22, 1
    %p234 = por %p232, %p233
    %p236 = scmp.ne.s32.totalorder %s221, %s235
    %p237 = scmp.eq.s32.totalorder %s22, 0
    %p238 = por %p236, %p237
    %s239 = ssub.s32 %s16, %s23
    %p240 = scmp.eq.s32.totalorder %s239, 0
    %s242 = sadd.s32 %s241, 1
    %s243 = scalar_select %p240, %s241, %s242
    %p246 = pneg %p240
    %p247 = scmp.eq.s32.totalorder %s16, 1
    %p248 = por %p246, %p247
    %p249 = scmp.ne.s32.totalorder %s241, %s244
    %p250 = scmp.eq.s32.totalorder %s16, 0
    %p251 = por %p249, %p250
    %p252 = scmp.ne.s32.totalorder %s241, %s244
    %p253 = scmp.eq.s32.totalorder %s21, 1
    %p254 = por %p252, %p253
    %p255 = scmp.ne.s32.totalorder %s244, %s245
    %p256 = scmp.eq.s32.totalorder %s21, 0
    %p257 = por %p255, %p256
    %p258 = scmp.ne.s32.totalorder %s244, %s245
    %p259 = scmp.eq.s32.totalorder %s22, 1
    %p260 = por %p258, %p259
    %p262 = scmp.ne.s32.totalorder %s245, %s261
    %p263 = scmp.eq.s32.totalorder %s22, 0
    %p264 = por %p262, %p263
    %p265 = scmp.le.s32.totalorder 1, %s16
    %p266 = scmp.lt.s32.totalorder %s16, 3
    %p267 = pnand %p265, %p266
    %p268 = pneg %p267
    // Predicated region
    $region9: #{mask_forward.1} parent=5 // pred_check
      _
    $region10: #{mask_forward.1} parent=5 // pred_check_branch
      %270 = sbr.rel (%p267) target = $region12
    $region11: #{mask_forward.1} parent=5 // pred_region
      %s271 = ssub.s32 %s16, 1
      // Predicated region
      $region13: #{mask_forward.1} parent=11 // pred_check
        %p272 = pneg %p63
      $region14: #{mask_forward.1} parent=11 // pred_check_branch
        %274 = sbr.rel (%p272) target = $region16
      $region15: #{mask_forward.1} parent=11 // pred_region
        _
      $region16: #{mask_forward.1} parent=11 // pred_fallthru
        _
      // Predicated region
      $region17: #{mask_forward.1} parent=11 // pred_check
        %p275 = pneg %p84
      $region18: #{mask_forward.1} parent=11 // pred_check_branch
        %277 = sbr.rel (%p275) target = $region20
      $region19: #{mask_forward.1} parent=11 // pred_region
        _
      $region20: #{mask_forward.1} parent=11 // pred_fallthru
        _
      // Predicated region
      $region21: #{mask_forward.1} parent=11 // pred_check
        %p278 = pneg %p105
      $region22: #{mask_forward.1} parent=11 // pred_check_branch
        %280 = sbr.rel (%p278) target = $region24
      $region23: #{mask_forward.1} parent=11 // pred_region
        _
      $region24: #{mask_forward.1} parent=11 // pred_fallthru
        _
      // Predicated region
      $region25: #{mask_forward.1} parent=11 // pred_check
        %p281 = pneg %p126
      $region26: #{mask_forward.1} parent=11 // pred_check_branch
        %283 = sbr.rel (%p281) target = $region28
      $region27: #{mask_forward.1} parent=11 // pred_region
        _
      $region28: #{mask_forward.1} parent=11 // pred_fallthru
        _
      // Predicated region
      $region29: #{mask_forward.1} parent=11 // pred_check
        %p284 = pneg %p147
      $region30: #{mask_forward.1} parent=11 // pred_check_branch
        %286 = sbr.rel (%p284) target = $region32
      $region31: #{mask_forward.1} parent=11 // pred_region
        _
      $region32: #{mask_forward.1} parent=11 // pred_fallthru
        _
      // Predicated region
      $region33: #{mask_forward.1} parent=11 // pred_check
        %p287 = pneg %p168
      $region34: #{mask_forward.1} parent=11 // pred_check_branch
        %289 = sbr.rel (%p287) target = $region36
      $region35: #{mask_forward.1} parent=11 // pred_region
        _
      $region36: #{mask_forward.1} parent=11 // pred_fallthru
        _
      // Predicated region
      $region37: #{mask_forward.1} parent=11 // pred_check
        %p290 = pneg %p189
      $region38: #{mask_forward.1} parent=11 // pred_check_branch
        %292 = sbr.rel (%p290) target = $region40
      $region39: #{mask_forward.1} parent=11 // pred_region
        _
      $region40: #{mask_forward.1} parent=11 // pred_fallthru
        _
      // Predicated region
      $region41: #{mask_forward.1} parent=11 // pred_check
        %p293 = pneg %p210
      $region42: #{mask_forward.1} parent=11 // pred_check_branch
        %295 = sbr.rel (%p293) target = $region44
      $region43: #{mask_forward.1} parent=11 // pred_region
        _
      $region44: #{mask_forward.1} parent=11 // pred_fallthru
        _
      // Predicated region
      $region45: #{mask_forward.1} parent=11 // pred_check
        %p296 = pneg %p231
      $region46: #{mask_forward.1} parent=11 // pred_check_branch
        %298 = sbr.rel (%p296) target = $region48
      $region47: #{mask_forward.1} parent=11 // pred_region
        _
      $region48: #{mask_forward.1} parent=11 // pred_fallthru
        _
    $region12: #{mask_forward.1} parent=5 // pred_fallthru
      _
    %p299 = scmp.lt.s32.totalorder %s16, 2
    // Predicated region
    $region49: #{mask_forward.1} parent=5 // pred_check
      %p300 = pneg %p299
    $region50: #{mask_forward.1} parent=5 // pred_check_branch
      %302 = sbr.rel (%p300) target = $region52
    $region51: #{mask_forward.1} parent=5 // pred_region
      // Predicated region
      $region53: #{mask_forward.1} parent=51 // pred_check
        %p303 = pneg %p36
      $region54: #{mask_forward.1} parent=51 // pred_check_branch
        %305 = sbr.rel (%p303) target = $region56
      $region55: #{mask_forward.1} parent=51 // pred_region
        %s306 = smul.u32 2, %s16
        %p307 = scmp.lt.s32.totalorder %s306, 3
        %s308 = scalar_select %p307, %s306, 3
        %s309 = smul.addr %s308, 8
        %s310 = smul.addr %s309, 8
        %s311 = scalar_lea.vmem %s0, %s310
        %s312 = smul.u32 2, %s16
      $region56: #{mask_forward.1} parent=51 // pred_fallthru
        _
    $region52: #{mask_forward.1} parent=5 // pred_fallthru
      _
    %p313 = scmp.le.s32.totalorder 1, %s16
    %p314 = scmp.lt.s32.totalorder %s16, 3
    %p315 = pnand %p313, %p314
    %p316 = pneg %p315
    // Predicated region
    $region57: #{mask_forward.1} parent=5 // pred_check
      _
    $region58: #{mask_forward.1} parent=5 // pred_check_branch
      %318 = sbr.rel (%p315) target = $region60
    $region59: #{mask_forward.1} parent=5 // pred_region
      %s319 = ssub.s32 %s16, 1
      %s320 = smul.u32 2, %s21
      %p321 = scmp.lt.s32.totalorder %s320, 3
      %s322 = scalar_select %p321, %s320, 3
      %s323 = smul.addr %s322, 8
      %s324 = smul.addr %s323, 8
      %s325 = scalar_lea.vmem %s0, %s324
      %p326 = pneg %p42
      %p327 = pneg %p39
      %p328 = pneg %p63
      %p329 = pneg %p60
      %p330 = pneg %p84
      %p331 = pneg %p81
      %p332 = pneg %p105
      %p333 = pneg %p102
      %p334 = pneg %p126
      %p335 = pneg %p123
      %p336 = pneg %p147
      %p337 = pneg %p144
      %p338 = pneg %p168
      %p339 = pneg %p165
      %p340 = pneg %p189
      %p341 = pneg %p186
      %p342 = pneg %p210
      %p343 = pneg %p207
      %p344 = pneg %p231
      %p345 = pneg %p228
      %p346 = pneg %p257
      %p347 = pneg %p254
      %s348 = smul.u32 2, %s21
      %p349 = scmp.lt.s32.totalorder %s348, 3
      %s350 = scalar_select %p349, %s348, 3
      %s351 = smul.addr %s350, 8
      %s352 = smul.addr %s351, 8
      %s353 = scalar_lea.vmem %s10, %s352
      %s354 = smul.u32 2, %s21
      %p355 = scmp.lt.s32.totalorder %s354, 3
      %s356 = scalar_select %p355, %s354, 3
      %s357 = smul.addr %s356, 8
      %s358 = smul.addr %s357, 8
      %s359 = scalar_lea.vmem %s0, %s358
      %s360 = smul.u32 2, %s21
      %s361 = smul.u32 2, %s21
      %p362 = scmp.lt.s32.totalorder %s361, 3
      %s363 = scalar_select %p362, %s361, 3
      %s364 = smul.addr %s363, 8
      %s365 = smul.addr %s364, 8
      %s366 = scalar_lea.vmem %s10, %s365
      %s367 = smul.u32 2, %s21
      %v369 = vld [vmem:[%s359] sm:$0xff]
      %v370 = vld [vmem:[%s359 + $0x8] sm:$0xff]
      %v371 = vld [vmem:[%s359 + $0x10] sm:$0xff]
      %v372 = vld [vmem:[%s359 + $0x18] sm:$0xff]
      %v373 = vld [vmem:[%s359 + $0x20] sm:$0xff]
      %v374 = vld [vmem:[%s359 + $0x28] sm:$0xff]
      %v375 = vld [vmem:[%s359 + $0x30] sm:$0xff]
      %v376 = vld [vmem:[%s359 + $0x38] sm:$0xff]
      %v377 = vld [vmem:[%s359 + $0x40] sm:$0xff]
      %v378 = vld [vmem:[%s359 + $0x48] sm:$0xff]
      %v379 = vld [vmem:[%s359 + $0x50] sm:$0xff]
      %v380 = vld [vmem:[%s359 + $0x58] sm:$0xff]
      %v381 = vld [vmem:[%s359 + $0x60] sm:$0xff]
      %v382 = vld [vmem:[%s359 + $0x68] sm:$0xff]
      %v383 = vld [vmem:[%s359 + $0x70] sm:$0xff]
      %v384 = vld [vmem:[%s359 + $0x78] sm:$0xff]
      %v400 = vrot.slane 0.0, 7
      %v401 = vrot.slane %v369, 7
      %v402 = vrot.slane %v370, 7
      %v403 = vrot.slane %v371, 7
      %v404 = vrot.slane %v372, 7
      %v405 = vrot.slane %v373, 7
      %v406 = vrot.slane %v374, 7
      %v407 = vrot.slane %v375, 7
      %v408 = vrot.slane %v377, 7
      %v409 = vrot.slane %v378, 7
      %v410 = vrot.slane %v379, 7
      %v411 = vrot.slane %v380, 7
      %v412 = vrot.slane %v381, 7
      %v413 = vrot.slane %v382, 7
      %v414 = vrot.slane %v383, 7
      %vm430 = vcmask 1040384
      %v431 = vsel %vm430, 0.0, %v400
      %v432 = vsel %vm430, 0.0, %v401
      %v433 = vsel %vm430, 0.0, %v402
      %v434 = vsel %vm430, 0.0, %v403
      %v435 = vsel %vm430, 0.0, %v404
      %v436 = vsel %vm430, 0.0, %v405
      %v437 = vsel %vm430, 0.0, %v406
      %v438 = vsel %vm430, 0.0, %v407
      %v439 = vsel %vm430, 0.0, %v408
      %v440 = vsel %vm430, 0.0, %v409
      %v441 = vsel %vm430, 0.0, %v410
      %v442 = vsel %vm430, 0.0, %v411
      %v443 = vsel %vm430, 0.0, %v412
      %v444 = vsel %vm430, 0.0, %v413
      %v445 = vsel %vm430, 0.0, %v414
      %v446 = vpack.c.bf16 %v432, %v431
      %v447 = vpack.c.bf16 %v434, %v433
      %v448 = vpack.c.bf16 %v436, %v435
      %v449 = vpack.c.bf16 %v438, %v437
      %v450 = vpack.c.bf16 %v439, %v431
      %v451 = vpack.c.bf16 %v441, %v440
      %v452 = vpack.c.bf16 %v443, %v442
      %v453 = vpack.c.bf16 %v445, %v444
      %v454 = vld [vmem:[%s1] sm:$0xf]
      %v455 = vld [vmem:[%s1 + $0x4] sm:$0xf]
      %v456 = vld [vmem:[%s1 + $0x8] sm:$0xf]
      %v457 = vld [vmem:[%s1 + $0xc] sm:$0xf]
      %v458 = vld [vmem:[%s1 + $0x10] sm:$0xf]
      %v459 = vld [vmem:[%s1 + $0x14] sm:$0xf]
      %v460 = vld [vmem:[%s1 + $0x18] sm:$0xf]
      %v461 = vld [vmem:[%s1 + $0x1c] sm:$0xf]
      %v462 = vld [vmem:[%s1 + $0x20] sm:$0xf]
      %v463 = vld [vmem:[%s1 + $0x24] sm:$0xf]
      %v464 = vld [vmem:[%s1 + $0x28] sm:$0xf]
      %v465 = vld [vmem:[%s1 + $0x2c] sm:$0xf]
      %v466 = vld [vmem:[%s1 + $0x30] sm:$0xf]
      %v467 = vld [vmem:[%s1 + $0x34] sm:$0xf]
      %v468 = vld [vmem:[%s1 + $0x38] sm:$0xf]
      %v469 = vld [vmem:[%s1 + $0x3c] sm:$0xf]
      %v470 = vpack.c.bf16 %v369, 0.0
      %v471 = vpack.c.bf16 %v371, %v370
      %v472 = vpack.c.bf16 %v373, %v372
      %v473 = vpack.c.bf16 %v375, %v374
      %v474 = vpack.c.bf16 %v377, 0.0
      %v475 = vpack.c.bf16 %v379, %v378
      %v476 = vpack.c.bf16 %v381, %v380
      %v477 = vpack.c.bf16 %v383, %v382
      %s478 = scalar_lea.vmem %s1, 64
      %v479 = vld [vmem:[%s478] sm:$0xf]
      %v480 = vld [vmem:[%s478 + $0x4] sm:$0xf]
      %v481 = vld [vmem:[%s478 + $0x8] sm:$0xf]
      %v482 = vld [vmem:[%s478 + $0xc] sm:$0xf]
      %v483 = vld [vmem:[%s478 + $0x10] sm:$0xf]
      %v484 = vld [vmem:[%s478 + $0x14] sm:$0xf]
      %v485 = vld [vmem:[%s478 + $0x18] sm:$0xf]
      %v486 = vld [vmem:[%s478 + $0x1c] sm:$0xf]
      %v487 = vld [vmem:[%s478 + $0x20] sm:$0xf]
      %v488 = vld [vmem:[%s478 + $0x24] sm:$0xf]
      %v489 = vld [vmem:[%s478 + $0x28] sm:$0xf]
      %v490 = vld [vmem:[%s478 + $0x2c] sm:$0xf]
      %v491 = vld [vmem:[%s478 + $0x30] sm:$0xf]
      %v492 = vld [vmem:[%s478 + $0x34] sm:$0xf]
      %v493 = vld [vmem:[%s478 + $0x38] sm:$0xf]
      %v494 = vld [vmem:[%s478 + $0x3c] sm:$0xf]
      %v511 = vunpack.c.l.b16 %v479
      %v512 = vunpack.c.l.b16 %v480
      %v513 = vunpack.c.l.b16 %v481
      %v514 = vunpack.c.l.b16 %v482
      %v515 = vunpack.c.l.b16 %v483
      %v516 = vunpack.c.l.b16 %v484
      %v517 = vunpack.c.l.b16 %v485
      %v518 = vunpack.c.l.b16 %v486
      %v519 = vunpack.c.l.b16 %v487
      %v520 = vunpack.c.l.b16 %v488
      %v521 = vunpack.c.l.b16 %v489
      %v522 = vunpack.c.l.b16 %v490
      %v523 = vunpack.c.l.b16 %v491
      %v524 = vunpack.c.l.b16 %v492
      %v525 = vunpack.c.l.b16 %v493
      %v526 = vunpack.c.l.b16 %v494
      %v527 = vpack.c.b16 %v512, %v511
      %v528 = vpack.c.b16 %v514, %v513
      %v529 = vpack.c.b16 %v516, %v515
      %v530 = vpack.c.b16 %v518, %v517
      %v531 = vpack.c.b16 %v520, %v519
      %v532 = vpack.c.b16 %v522, %v521
      %v533 = vpack.c.b16 %v524, %v523
      %v534 = vpack.c.b16 %v526, %v525
      %543 = vmatprep.subr.bf16.mxu0 0
      %544 = vmatpush1.bf16.msra.mxu0 %v527
      %545 = vmatprep.subr.bf16.mxu0 0
      %546 = vmatpush1.bf16.msra.mxu0 %v528
      %547 = vmatprep.subr.bf16.mxu0 0
      %548 = vmatpush1.bf16.msra.mxu0 %v529
      %549 = vmatprep.subr.bf16.mxu0 0
      %550 = vmatpush1.bf16.msra.mxu0 %v530
      %551 = vmatprep.subr.bf16.mxu0 0
      %552 = vmatpush1.bf16.msra.mxu0 %v531
      %553 = vmatprep.subr.bf16.mxu0 0
      %554 = vmatpush1.bf16.msra.mxu0 %v532
      %555 = vmatprep.subr.bf16.mxu0 0
      %556 = vmatpush1.bf16.msra.mxu0 %v533
      %557 = vmatprep.subr.bf16.mxu0 0
      %558 = vmatpush1.bf16.msra.mxu0 %v534
      %559 = vmatprep.subr.bf16.mxu0 0
      %560 = vmatpush1.bf16.msra.mxu0 0
      %561 = vmatprep.subr.bf16.mxu0 0
      %562 = vmatpush1.bf16.msra.mxu0 0
      %563 = vmatprep.subr.bf16.mxu0 0
      %564 = vmatpush1.bf16.msra.mxu0 0
      %565 = vmatprep.subr.bf16.mxu0 0
      %566 = vmatpush1.bf16.msra.mxu0 0
      %567 = vmatprep.subr.bf16.mxu0 0
      %568 = vmatpush1.bf16.msra.mxu0 0
      %569 = vmatprep.subr.bf16.mxu0 0
      %570 = vmatpush1.bf16.msra.mxu0 0
      %571 = vmatprep.subr.bf16.mxu0 0
      %572 = vmatpush1.bf16.msra.mxu0 0
      %573 = vmatprep.subr.bf16.mxu0 0
      %574 = vmatpush1.bf16.msra.mxu0 0
      %575 = vmatprep.mubr.bf16.mxu0 0
      %576 = vmatmul.mubr.bf16.gmra.mrb[0].mxu0 %v470
      %v577 = vpop.f32.mrb[0].mxu0
      %v578 = vadd.f32 0.0, %v577
      %v579 = vpop.f32.mrb[0].mxu0
      %v580 = vpop.f32.mrb[0].mxu0
      %v581 = vadd.f32 0.0, %v580
      %v582 = vpop.f32.mrb[0].mxu0
      %583 = vmatprep.mubr.bf16.mxu0 0
      %584 = vmatmul.mubr.bf16.gmra.mrb[0].mxu0 %v471
      %v585 = vpop.f32.mrb[0].mxu0
      %v586 = vadd.f32 0.0, %v585
      %v587 = vpop.f32.mrb[0].mxu0
      %v588 = vpop.f32.mrb[0].mxu0
      %v589 = vadd.f32 0.0, %v588
      %v590 = vpop.f32.mrb[0].mxu0
      %591 = vmatprep.mubr.bf16.mxu0 0
      %592 = vmatmul.mubr.bf16.gmra.mrb[0].mxu0 %v472
      %v593 = vpop.f32.mrb[0].mxu0
      %v594 = vadd.f32 0.0, %v593
      %v595 = vpop.f32.mrb[0].mxu0
      %v596 = vpop.f32.mrb[0].mxu0
      %v597 = vadd.f32 0.0, %v596
      %v598 = vpop.f32.mrb[0].mxu0
      %599 = vmatprep.mubr.bf16.mxu0 0
      %600 = vmatmul.mubr.bf16.gmra.mrb[0].mxu0 %v473
      %v601 = vpop.f32.mrb[0].mxu0
      %v602 = vadd.f32 0.0, %v601
      %v603 = vpop.f32.mrb[0].mxu0
      %v604 = vpop.f32.mrb[0].mxu0
      %v605 = vadd.f32 0.0, %v604
      %v606 = vpop.f32.mrb[0].mxu0
      %607 = vmatprep.mubr.bf16.mxu0 0
      %608 = vmatmul.mubr.bf16.gmra.mrb[0].mxu0 %v474
      %v609 = vpop.f32.mrb[0].mxu0
      %v610 = vadd.f32 0.0, %v609
      %v611 = vpop.f32.mrb[0].mxu0
      %v612 = vpop.f32.mrb[0].mxu0
      %v613 = vadd.f32 0.0, %v612
      %v614 = vpop.f32.mrb[0].mxu0
      %615 = vmatprep.mubr.bf16.mxu0 0
      %616 = vmatmul.mubr.bf16.gmra.mrb[0].mxu0 %v475
      %v617 = vpop.f32.mrb[0].mxu0
      %v618 = vadd.f32 0.0, %v617
      %v619 = vpop.f32.mrb[0].mxu0
      %v620 = vpop.f32.mrb[0].mxu0
      %v621 = vadd.f32 0.0, %v620
      %v622 = vpop.f32.mrb[0].mxu0
      %623 = vmatprep.mubr.bf16.mxu0 0
      %624 = vmatmul.mubr.bf16.gmra.mrb[0].mxu0 %v476
      %v625 = vpop.f32.mrb[0].mxu0
      %v626 = vadd.f32 0.0, %v625
      %v627 = vpop.f32.mrb[0].mxu0
      %v628 = vpop.f32.mrb[0].mxu0
      %v629 = vadd.f32 0.0, %v628
      %v630 = vpop.f32.mrb[0].mxu0
      %631 = vmatprep.mubr.bf16.mxu0 0
      %632 = vmatmul.mubr.bf16.gmra.mrb[0].mxu0 %v477
      %v633 = vpop.f32.mrb[0].mxu0
      %v634 = vadd.f32 0.0, %v633
      %v635 = vpop.f32.mrb[0].mxu0
      %v636 = vpop.f32.mrb[0].mxu0
      %v637 = vadd.f32 0.0, %v636
      %v638 = vpop.f32.mrb[0].mxu0
      %639 = vdwg.mxu0
      %v656 = vunpack.c.l.b16 %v454
      %v657 = vunpack.c.l.b16 %v455
      %v658 = vunpack.c.l.b16 %v456
      %v659 = vunpack.c.l.b16 %v457
      %v660 = vunpack.c.l.b16 %v458
      %v661 = vunpack.c.l.b16 %v459
      %v662 = vunpack.c.l.b16 %v460
      %v663 = vunpack.c.l.b16 %v461
      %v664 = vunpack.c.l.b16 %v462
      %v665 = vunpack.c.l.b16 %v463
      %v666 = vunpack.c.l.b16 %v464
      %v667 = vunpack.c.l.b16 %v465
      %v668 = vunpack.c.l.b16 %v466
      %v669 = vunpack.c.l.b16 %v467
      %v670 = vunpack.c.l.b16 %v468
      %v671 = vunpack.c.l.b16 %v469
      %v672 = vpack.c.b16 %v657, %v656
      %v673 = vpack.c.b16 %v659, %v658
      %v674 = vpack.c.b16 %v661, %v660
      %v675 = vpack.c.b16 %v663, %v662
      %v676 = vpack.c.b16 %v665, %v664
      %v677 = vpack.c.b16 %v667, %v666
      %v678 = vpack.c.b16 %v669, %v668
      %v679 = vpack.c.b16 %v671, %v670
      %688 = vmatprep.subr.bf16.mxu0 0
      %689 = vmatpush1.bf16.msra.mxu0 %v672
      %690 = vmatprep.subr.bf16.mxu0 0
      %691 = vmatpush1.bf16.msra.mxu0 %v673
      %692 = vmatprep.subr.bf16.mxu0 0
      %693 = vmatpush1.bf16.msra.mxu0 %v674
      %694 = vmatprep.subr.bf16.mxu0 0
      %695 = vmatpush1.bf16.msra.mxu0 %v675
      %696 = vmatprep.subr.bf16.mxu0 0
      %697 = vmatpush1.bf16.msra.mxu0 %v676
      %698 = vmatprep.subr.bf16.mxu0 0
      %699 = vmatpush1.bf16.msra.mxu0 %v677
      %700 = vmatprep.subr.bf16.mxu0 0
      %701 = vmatpush1.bf16.msra.mxu0 %v678
      %702 = vmatprep.subr.bf16.mxu0 0
      %703 = vmatpush1.bf16.msra.mxu0 %v679
      %704 = vmatprep.subr.bf16.mxu0 0
      %705 = vmatpush1.bf16.msra.mxu0 0
      %706 = vmatprep.subr.bf16.mxu0 0
      %707 = vmatpush1.bf16.msra.mxu0 0
      %708 = vmatprep.subr.bf16.mxu0 0
      %709 = vmatpush1.bf16.msra.mxu0 0
      %710 = vmatprep.subr.bf16.mxu0 0
      %711 = vmatpush1.bf16.msra.mxu0 0
      %712 = vmatprep.subr.bf16.mxu0 0
      %713 = vmatpush1.bf16.msra.mxu0 0
      %714 = vmatprep.subr.bf16.mxu0 0
      %715 = vmatpush1.bf16.msra.mxu0 0
      %716 = vmatprep.subr.bf16.mxu0 0
      %717 = vmatpush1.bf16.msra.mxu0 0
      %718 = vmatprep.subr.bf16.mxu0 0
      %719 = vmatpush1.bf16.msra.mxu0 0
      %720 = vmatprep.mubr.bf16.mxu0 0
      %721 = vmatmul.mubr.bf16.gmra.mrb[0].mxu0 %v446
      %v722 = vpop.f32.mrb[0].mxu0
      %v723 = vadd.f32 %v578, %v722
      %v724 = vpop.f32.mrb[0].mxu0
      %v725 = vpop.f32.mrb[0].mxu0
      %v726 = vadd.f32 %v581, %v725
      %v727 = vpop.f32.mrb[0].mxu0
      %728 = vmatprep.mubr.bf16.mxu0 0
      %729 = vmatmul.mubr.bf16.gmra.mrb[0].mxu0 %v447
      %v730 = vpop.f32.mrb[0].mxu0
      %v731 = vadd.f32 %v586, %v730
      %v732 = vpop.f32.mrb[0].mxu0
      %v733 = vpop.f32.mrb[0].mxu0
      %v734 = vadd.f32 %v589, %v733
      %v735 = vpop.f32.mrb[0].mxu0
      %736 = vmatprep.mubr.bf16.mxu0 0
      %737 = vmatmul.mubr.bf16.gmra.mrb[0].mxu0 %v448
      %v738 = vpop.f32.mrb[0].mxu0
      %v739 = vadd.f32 %v594, %v738
      %v740 = vpop.f32.mrb[0].mxu0
      %v741 = vpop.f32.mrb[0].mxu0
      %v742 = vadd.f32 %v597, %v741
      %v743 = vpop.f32.mrb[0].mxu0
      %744 = vmatprep.mubr.bf16.mxu0 0
      %745 = vmatmul.mubr.bf16.gmra.mrb[0].mxu0 %v449
      %v746 = vpop.f32.mrb[0].mxu0
      %v747 = vadd.f32 %v602, %v746
      %v748 = vpop.f32.mrb[0].mxu0
      %v749 = vpop.f32.mrb[0].mxu0
      %v750 = vadd.f32 %v605, %v749
      %v751 = vpop.f32.mrb[0].mxu0
      %752 = vmatprep.mubr.bf16.mxu0 0
      %753 = vmatmul.mubr.bf16.gmra.mrb[0].mxu0 %v450
      %v754 = vpop.f32.mrb[0].mxu0
      %v755 = vadd.f32 %v610, %v754
      %v756 = vpop.f32.mrb[0].mxu0
      %v757 = vpop.f32.mrb[0].mxu0
      %v758 = vadd.f32 %v613, %v757
      %v759 = vpop.f32.mrb[0].mxu0
      %760 = vmatprep.mubr.bf16.mxu0 0
      %761 = vmatmul.mubr.bf16.gmra.mrb[0].mxu0 %v451
      %v762 = vpop.f32.mrb[0].mxu0
      %v763 = vadd.f32 %v618, %v762
      %v764 = vpop.f32.mrb[0].mxu0
      %v765 = vpop.f32.mrb[0].mxu0
      %v766 = vadd.f32 %v621, %v765
      %v767 = vpop.f32.mrb[0].mxu0
      %768 = vmatprep.mubr.bf16.mxu0 0
      %769 = vmatmul.mubr.bf16.gmra.mrb[0].mxu0 %v452
      %v770 = vpop.f32.mrb[0].mxu0
      %v771 = vadd.f32 %v626, %v770
      %v772 = vpop.f32.mrb[0].mxu0
      %v773 = vpop.f32.mrb[0].mxu0
      %v774 = vadd.f32 %v629, %v773
      %v775 = vpop.f32.mrb[0].mxu0
      %776 = vmatprep.mubr.bf16.mxu0 0
      %777 = vmatmul.mubr.bf16.gmra.mrb[0].mxu0 %v453
      %v778 = vpop.f32.mrb[0].mxu0
      %v779 = vadd.f32 %v634, %v778
      %v780 = vpop.f32.mrb[0].mxu0
      %v781 = vpop.f32.mrb[0].mxu0
      %v782 = vadd.f32 %v637, %v781
      %v783 = vpop.f32.mrb[0].mxu0
      %784 = vdwg.mxu0
      %v785 = vrot.slane 0.0, 1
      %v786 = vrot.slane %v369, 1
      %v787 = vrot.slane %v370, 1
      %v788 = vrot.slane %v371, 1
      %v789 = vrot.slane %v372, 1
      %v790 = vrot.slane %v373, 1
      %v791 = vrot.slane %v374, 1
      %v792 = vrot.slane %v375, 1
      %v793 = vrot.slane %v377, 1
      %v794 = vrot.slane %v378, 1
      %v795 = vrot.slane %v379, 1
      %v796 = vrot.slane %v380, 1
      %v797 = vrot.slane %v381, 1
      %v798 = vrot.slane %v382, 1
      %v799 = vrot.slane %v383, 1
      %vm815 = vcmask 1046528
      %v816 = vsel %vm815, %v785, 0.0
      %v817 = vsel %vm815, %v786, 0.0
      %v818 = vsel %vm815, %v787, 0.0
      %v819 = vsel %vm815, %v788, 0.0
      %v820 = vsel %vm815, %v789, 0.0
      %v821 = vsel %vm815, %v790, 0.0
      %v822 = vsel %vm815, %v791, 0.0
      %v823 = vsel %vm815, %v792, 0.0
      %v824 = vsel %vm815, %v793, 0.0
      %v825 = vsel %vm815, %v794, 0.0
      %v826 = vsel %vm815, %v795, 0.0
      %v827 = vsel %vm815, %v796, 0.0
      %v828 = vsel %vm815, %v797, 0.0
      %v829 = vsel %vm815, %v798, 0.0
      %v830 = vsel %vm815, %v799, 0.0
      %v831 = vpack.c.bf16 %v817, %v816
      %v832 = vpack.c.bf16 %v819, %v818
      %v833 = vpack.c.bf16 %v821, %v820
      %v834 = vpack.c.bf16 %v823, %v822
      %v835 = vpack.c.bf16 %v824, %v816
      %v836 = vpack.c.bf16 %v826, %v825
      %v837 = vpack.c.bf16 %v828, %v827
      %v838 = vpack.c.bf16 %v830, %v829
      %s839 = scalar_lea.vmem %s1, 128
      %v840 = vld [vmem:[%s839] sm:$0xf]
      %v841 = vld [vmem:[%s839 + $0x4] sm:$0xf]
      %v842 = vld [vmem:[%s839 + $0x8] sm:$0xf]
      %v843 = vld [vmem:[%s839 + $0xc] sm:$0xf]
      %v844 = vld [vmem:[%s839 + $0x10] sm:$0xf]
      %v845 = vld [vmem:[%s839 + $0x14] sm:$0xf]
      %v846 = vld [vmem:[%s839 + $0x18] sm:$0xf]
      %v847 = vld [vmem:[%s839 + $0x1c] sm:$0xf]
      %v848 = vld [vmem:[%s839 + $0x20] sm:$0xf]
      %v849 = vld [vmem:[%s839 + $0x24] sm:$0xf]
      %v850 = vld [vmem:[%s839 + $0x28] sm:$0xf]
      %v851 = vld [vmem:[%s839 + $0x2c] sm:$0xf]
      %v852 = vld [vmem:[%s839 + $0x30] sm:$0xf]
      %v853 = vld [vmem:[%s839 + $0x34] sm:$0xf]
      %v854 = vld [vmem:[%s839 + $0x38] sm:$0xf]
      %v855 = vld [vmem:[%s839 + $0x3c] sm:$0xf]
      %v872 = vunpack.c.l.b16 %v840
      %v873 = vunpack.c.l.b16 %v841
      %v874 = vunpack.c.l.b16 %v842
      %v875 = vunpack.c.l.b16 %v843
      %v876 = vunpack.c.l.b16 %v844
      %v877 = vunpack.c.l.b16 %v845
      %v878 = vunpack.c.l.b16 %v846
      %v879 = vunpack.c.l.b16 %v847
      %v880 = vunpack.c.l.b16 %v848
      %v881 = vunpack.c.l.b16 %v849
      %v882 = vunpack.c.l.b16 %v850
      %v883 = vunpack.c.l.b16 %v851
      %v884 = vunpack.c.l.b16 %v852
      %v885 = vunpack.c.l.b16 %v853
      %v886 = vunpack.c.l.b16 %v854
      %v887 = vunpack.c.l.b16 %v855
      %v888 = vpack.c.b16 %v873, %v872
      %v889 = vpack.c.b16 %v875, %v874
      %v890 = vpack.c.b16 %v877, %v876
      %v891 = vpack.c.b16 %v879, %v878
      %v892 = vpack.c.b16 %v881, %v880
      %v893 = vpack.c.b16 %v883, %v882
      %v894 = vpack.c.b16 %v885, %v884
      %v895 = vpack.c.b16 %v887, %v886
      %904 = vmatprep.subr.bf16.mxu0 0
      %905 = vmatpush1.bf16.msra.mxu0 %v888
      %906 = vmatprep.subr.bf16.mxu0 0
      %907 = vmatpush1.bf16.msra.mxu0 %v889
      %908 = vmatprep.subr.bf16.mxu0 0
      %909 = vmatpush1.bf16.msra.mxu0 %v890
      %910 = vmatprep.subr.bf16.mxu0 0
      %911 = vmatpush1.bf16.msra.mxu0 %v891
      %912 = vmatprep.subr.bf16.mxu0 0
      %913 = vmatpush1.bf16.msra.mxu0 %v892
      %914 = vmatprep.subr.bf16.mxu0 0
      %915 = vmatpush1.bf16.msra.mxu0 %v893
      %916 = vmatprep.subr.bf16.mxu0 0
      %917 = vmatpush1.bf16.msra.mxu0 %v894
      %918 = vmatprep.subr.bf16.mxu0 0
      %919 = vmatpush1.bf16.msra.mxu0 %v895
      %920 = vmatprep.subr.bf16.mxu0 0
      %921 = vmatpush1.bf16.msra.mxu0 0
      %922 = vmatprep.subr.bf16.mxu0 0
      %923 = vmatpush1.bf16.msra.mxu0 0
      %924 = vmatprep.subr.bf16.mxu0 0
      %925 = vmatpush1.bf16.msra.mxu0 0
      %926 = vmatprep.subr.bf16.mxu0 0
      %927 = vmatpush1.bf16.msra.mxu0 0
      %928 = vmatprep.subr.bf16.mxu0 0
      %929 = vmatpush1.bf16.msra.mxu0 0
      %930 = vmatprep.subr.bf16.mxu0 0
      %931 = vmatpush1.bf16.msra.mxu0 0
      %932 = vmatprep.subr.bf16.mxu0 0
      %933 = vmatpush1.bf16.msra.mxu0 0
      %934 = vmatprep.subr.bf16.mxu0 0
      %935 = vmatpush1.bf16.msra.mxu0 0
      %936 = vmatprep.mubr.bf16.mxu0 0
      %937 = vmatmul.mubr.bf16.gmra.mrb[0].mxu0 %v831
      %v938 = vpop.f32.mrb[0].mxu0
      %v939 = vadd.f32 0.0, %v938
      %v940 = vpop.f32.mrb[0].mxu0
      %v941 = vpop.f32.mrb[0].mxu0
      %v942 = vadd.f32 0.0, %v941
      %v943 = vpop.f32.mrb[0].mxu0
      %944 = vmatprep.mubr.bf16.mxu0 0
      %945 = vmatmul.mubr.bf16.gmra.mrb[0].mxu0 %v832
      %v946 = vpop.f32.mrb[0].mxu0
      %v947 = vadd.f32 0.0, %v946
      %v948 = vpop.f32.mrb[0].mxu0
      %v949 = vpop.f32.mrb[0].mxu0
      %v950 = vadd.f32 0.0, %v949
      %v951 = vpop.f32.mrb[0].mxu0
      %952 = vmatprep.mubr.bf16.mxu0 0
      %953 = vmatmul.mubr.bf16.gmra.mrb[0].mxu0 %v833
      %v954 = vpop.f32.mrb[0].mxu0
      %v955 = vadd.f32 0.0, %v954
      %v956 = vpop.f32.mrb[0].mxu0
      %v957 = vpop.f32.mrb[0].mxu0
      %v958 = vadd.f32 0.0, %v957
      %v959 = vpop.f32.mrb[0].mxu0
      %960 = vmatprep.mubr.bf16.mxu0 0
      %961 = vmatmul.mubr.bf16.gmra.mrb[0].mxu0 %v834
      %v962 = vpop.f32.mrb[0].mxu0
      %v963 = vadd.f32 0.0, %v962
      %v964 = vpop.f32.mrb[0].mxu0
      %v965 = vpop.f32.mrb[0].mxu0
      %v966 = vadd.f32 0.0, %v965
      %v967 = vpop.f32.mrb[0].mxu0
      %968 = vmatprep.mubr.bf16.mxu0 0
      %969 = vmatmul.mubr.bf16.gmra.mrb[0].mxu0 %v835
      %v970 = vpop.f32.mrb[0].mxu0
      %v971 = vadd.f32 0.0, %v970
      %v972 = vpop.f32.mrb[0].mxu0
      %v973 = vpop.f32.mrb[0].mxu0
      %v974 = vadd.f32 0.0, %v973
      %v975 = vpop.f32.mrb[0].mxu0
      %976 = vmatprep.mubr.bf16.mxu0 0
      %977 = vmatmul.mubr.bf16.gmra.mrb[0].mxu0 %v836
      %v978 = vpop.f32.mrb[0].mxu0
      %v979 = vadd.f32 0.0, %v978
      %v980 = vpop.f32.mrb[0].mxu0
      %v981 = vpop.f32.mrb[0].mxu0
      %v982 = vadd.f32 0.0, %v981
      %v983 = vpop.f32.mrb[0].mxu0
      %984 = vmatprep.mubr.bf16.mxu0 0
      %985 = vmatmul.mubr.bf16.gmra.mrb[0].mxu0 %v837
      %v986 = vpop.f32.mrb[0].mxu0
      %v987 = vadd.f32 0.0, %v986
      %v988 = vpop.f32.mrb[0].mxu0
      %v989 = vpop.f32.mrb[0].mxu0
      %v990 = vadd.f32 0.0, %v989
      %v991 = vpop.f32.mrb[0].mxu0
      %992 = vmatprep.mubr.bf16.mxu0 0
      %993 = vmatmul.mubr.bf16.gmra.mrb[0].mxu0 %v838
      %v994 = vpop.f32.mrb[0].mxu0
      %v995 = vadd.f32 0.0, %v994
      %v996 = vpop.f32.mrb[0].mxu0
      %v997 = vpop.f32.mrb[0].mxu0
      %v998 = vadd.f32 0.0, %v997
      %v999 = vpop.f32.mrb[0].mxu0
      %1000 = vdwg.mxu0
      %v1001 = vadd.f32 %v723, %v939
      %v1002 = vadd.f32 %v726, %v942
      %v1003 = vadd.f32 %v731, %v947
      %v1004 = vadd.f32 %v734, %v950
      %v1005 = vadd.f32 %v739, %v955
      %v1006 = vadd.f32 %v742, %v958
      %v1007 = vadd.f32 %v747, %v963
      %v1008 = vadd.f32 %v750, %v966
      %v1009 = vadd.f32 %v755, %v971
      %v1010 = vadd.f32 %v758, %v974
      %v1011 = vadd.f32 %v763, %v979
      %v1012 = vadd.f32 %v766, %v982
      %v1013 = vadd.f32 %v771, %v987
      %v1014 = vadd.f32 %v774, %v990
      %v1015 = vadd.f32 %v779, %v995
      %v1016 = vadd.f32 %v782, %v998
      %v1019 = vrot.slane %v376, 7
      %v1020 = vrot.slane %v384, 7
      %v1023 = vsel %vm430, 0.0, %v1019
      %v1024 = vsel %vm430, 0.0, %v1020
      %v1025 = vpack.c.bf16 %v433, %v432
      %v1026 = vpack.c.bf16 %v435, %v434
      %v1027 = vpack.c.bf16 %v437, %v436
      %v1028 = vpack.c.bf16 %v1023, %v438
      %v1029 = vpack.c.bf16 %v440, %v439
      %v1030 = vpack.c.bf16 %v442, %v441
      %v1031 = vpack.c.bf16 %v444, %v443
      %v1032 = vpack.c.bf16 %v1024, %v445
      %s1033 = scalar_lea.vmem %s1, 192
      %v1034 = vld [vmem:[%s1033] sm:$0xf]
      %v1035 = vld [vmem:[%s1033 + $0x4] sm:$0xf]
      %v1036 = vld [vmem:[%s1033 + $0x8] sm:$0xf]
      %v1037 = vld [vmem:[%s1033 + $0xc] sm:$0xf]
      %v1038 = vld [vmem:[%s1033 + $0x10] sm:$0xf]
      %v1039 = vld [vmem:[%s1033 + $0x14] sm:$0xf]
      %v1040 = vld [vmem:[%s1033 + $0x18] sm:$0xf]
      %v1041 = vld [vmem:[%s1033 + $0x1c] sm:$0xf]
      %v1042 = vld [vmem:[%s1033 + $0x20] sm:$0xf]
      %v1043 = vld [vmem:[%s1033 + $0x24] sm:$0xf]
      %v1044 = vld [vmem:[%s1033 + $0x28] sm:$0xf]
      %v1045 = vld [vmem:[%s1033 + $0x2c] sm:$0xf]
      %v1046 = vld [vmem:[%s1033 + $0x30] sm:$0xf]
      %v1047 = vld [vmem:[%s1033 + $0x34] sm:$0xf]
      %v1048 = vld [vmem:[%s1033 + $0x38] sm:$0xf]
      %v1049 = vld [vmem:[%s1033 + $0x3c] sm:$0xf]
      %v1066 = vunpack.c.l.b16 %v1034
      %v1067 = vunpack.c.l.b16 %v1035
      %v1068 = vunpack.c.l.b16 %v1036
      %v1069 = vunpack.c.l.b16 %v1037
      %v1070 = vunpack.c.l.b16 %v1038
      %v1071 = vunpack.c.l.b16 %v1039
      %v1072 = vunpack.c.l.b16 %v1040
      %v1073 = vunpack.c.l.b16 %v1041
      %v1074 = vunpack.c.l.b16 %v1042
      %v1075 = vunpack.c.l.b16 %v1043
      %v1076 = vunpack.c.l.b16 %v1044
      %v1077 = vunpack.c.l.b16 %v1045
      %v1078 = vunpack.c.l.b16 %v1046
      %v1079 = vunpack.c.l.b16 %v1047
      %v1080 = vunpack.c.l.b16 %v1048
      %v1081 = vunpack.c.l.b16 %v1049
      %v1082 = vpack.c.b16 %v1067, %v1066
      %v1083 = vpack.c.b16 %v1069, %v1068
      %v1084 = vpack.c.b16 %v1071, %v1070
      %v1085 = vpack.c.b16 %v1073, %v1072
      %v1086 = vpack.c.b16 %v1075, %v1074
      %v1087 = vpack.c.b16 %v1077, %v1076
      %v1088 = vpack.c.b16 %v1079, %v1078
      %v1089 = vpack.c.b16 %v1081, %v1080
      %1098 = vmatprep.subr.bf16.mxu0 0
      %1099 = vmatpush1.bf16.msra.mxu0 %v1082
      %1100 = vmatprep.subr.bf16.mxu0 0
      %1101 = vmatpush1.bf16.msra.mxu0 %v1083
      %1102 = vmatprep.subr.bf16.mxu0 0
      %1103 = vmatpush1.bf16.msra.mxu0 %v1084
      %1104 = vmatprep.subr.bf16.mxu0 0
      %1105 = vmatpush1.bf16.msra.mxu0 %v1085
      %1106 = vmatprep.subr.bf16.mxu0 0
      %1107 = vmatpush1.bf16.msra.mxu0 %v1086
      %1108 = vmatprep.subr.bf16.mxu0 0
      %1109 = vmatpush1.bf16.msra.mxu0 %v1087
      %1110 = vmatprep.subr.bf16.mxu0 0
      %1111 = vmatpush1.bf16.msra.mxu0 %v1088
      %1112 = vmatprep.subr.bf16.mxu0 0
      %1113 = vmatpush1.bf16.msra.mxu0 %v1089
      %1114 = vmatprep.subr.bf16.mxu0 0
      %1115 = vmatpush1.bf16.msra.mxu0 0
      %1116 = vmatprep.subr.bf16.mxu0 0
      %1117 = vmatpush1.bf16.msra.mxu0 0
      %1118 = vmatprep.subr.bf16.mxu0 0
      %1119 = vmatpush1.bf16.msra.mxu0 0
      %1120 = vmatprep.subr.bf16.mxu0 0
      %1121 = vmatpush1.bf16.msra.mxu0 0
      %1122 = vmatprep.subr.bf16.mxu0 0
      %1123 = vmatpush1.bf16.msra.mxu0 0
      %1124 = vmatprep.subr.bf16.mxu0 0
      %1125 = vmatpush1.bf16.msra.mxu0 0
      %1126 = vmatprep.subr.bf16.mxu0 0
      %1127 = vmatpush1.bf16.msra.mxu0 0
      %1128 = vmatprep.subr.bf16.mxu0 0
      %1129 = vmatpush1.bf16.msra.mxu0 0
      %1130 = vmatprep.mubr.bf16.mxu0 0
      %1131 = vmatmul.mubr.bf16.gmra.mrb[0].mxu0 %v1025
      %v1132 = vpop.f32.mrb[0].mxu0
      %v1133 = vadd.f32 0.0, %v1132
      %v1134 = vpop.f32.mrb[0].mxu0
      %v1135 = vpop.f32.mrb[0].mxu0
      %v1136 = vadd.f32 0.0, %v1135
      %v1137 = vpop.f32.mrb[0].mxu0
      %1138 = vmatprep.mubr.bf16.mxu0 0
      %1139 = vmatmul.mubr.bf16.gmra.mrb[0].mxu0 %v1026
      %v1140 = vpop.f32.mrb[0].mxu0
      %v1141 = vadd.f32 0.0, %v1140
      %v1142 = vpop.f32.mrb[0].mxu0
      %v1143 = vpop.f32.mrb[0].mxu0
      %v1144 = vadd.f32 0.0, %v1143
      %v1145 = vpop.f32.mrb[0].mxu0
      %1146 = vmatprep.mubr.bf16.mxu0 0
      %1147 = vmatmul.mubr.bf16.gmra.mrb[0].mxu0 %v1027
      %v1148 = vpop.f32.mrb[0].mxu0
      %v1149 = vadd.f32 0.0, %v1148
      %v1150 = vpop.f32.mrb[0].mxu0
      %v1151 = vpop.f32.mrb[0].mxu0
      %v1152 = vadd.f32 0.0, %v1151
      %v1153 = vpop.f32.mrb[0].mxu0
      %1154 = vmatprep.mubr.bf16.mxu0 0
      %1155 = vmatmul.mubr.bf16.gmra.mrb[0].mxu0 %v1028
      %v1156 = vpop.f32.mrb[0].mxu0
      %v1157 = vadd.f32 0.0, %v1156
      %v1158 = vpop.f32.mrb[0].mxu0
      %v1159 = vpop.f32.mrb[0].mxu0
      %v1160 = vadd.f32 0.0, %v1159
      %v1161 = vpop.f32.mrb[0].mxu0
      %1162 = vmatprep.mubr.bf16.mxu0 0
      %1163 = vmatmul.mubr.bf16.gmra.mrb[0].mxu0 %v1029
      %v1164 = vpop.f32.mrb[0].mxu0
      %v1165 = vadd.f32 0.0, %v1164
      %v1166 = vpop.f32.mrb[0].mxu0
      %v1167 = vpop.f32.mrb[0].mxu0
      %v1168 = vadd.f32 0.0, %v1167
      %v1169 = vpop.f32.mrb[0].mxu0
      %1170 = vmatprep.mubr.bf16.mxu0 0
      %1171 = vmatmul.mubr.bf16.gmra.mrb[0].mxu0 %v1030
      %v1172 = vpop.f32.mrb[0].mxu0
      %v1173 = vadd.f32 0.0, %v1172
      %v1174 = vpop.f32.mrb[0].mxu0
      %v1175 = vpop.f32.mrb[0].mxu0
      %v1176 = vadd.f32 0.0, %v1175
      %v1177 = vpop.f32.mrb[0].mxu0
      %1178 = vmatprep.mubr.bf16.mxu0 0
      %1179 = vmatmul.mubr.bf16.gmra.mrb[0].mxu0 %v1031
      %v1180 = vpop.f32.mrb[0].mxu0
      %v1181 = vadd.f32 0.0, %v1180
      %v1182 = vpop.f32.mrb[0].mxu0
      %v1183 = vpop.f32.mrb[0].mxu0
      %v1184 = vadd.f32 0.0, %v1183
      %v1185 = vpop.f32.mrb[0].mxu0
      %1186 = vmatprep.mubr.bf16.mxu0 0
      %1187 = vmatmul.mubr.bf16.gmra.mrb[0].mxu0 %v1032
      %v1188 = vpop.f32.mrb[0].mxu0
      %v1189 = vadd.f32 0.0, %v1188
      %v1190 = vpop.f32.mrb[0].mxu0
      %v1191 = vpop.f32.mrb[0].mxu0
      %v1192 = vadd.f32 0.0, %v1191
      %v1193 = vpop.f32.mrb[0].mxu0
      %1194 = vdwg.mxu0
      %v1195 = vadd.f32 %v1001, %v1133
      %v1196 = vadd.f32 %v1002, %v1136
      %v1197 = vadd.f32 %v1003, %v1141
      %v1198 = vadd.f32 %v1004, %v1144
      %v1199 = vadd.f32 %v1005, %v1149
      %v1200 = vadd.f32 %v1006, %v1152
      %v1201 = vadd.f32 %v1007, %v1157
      %v1202 = vadd.f32 %v1008, %v1160
      %v1203 = vadd.f32 %v1009, %v1165
      %v1204 = vadd.f32 %v1010, %v1168
      %v1205 = vadd.f32 %v1011, %v1173
      %v1206 = vadd.f32 %v1012, %v1176
      %v1207 = vadd.f32 %v1013, %v1181
      %v1208 = vadd.f32 %v1014, %v1184
      %v1209 = vadd.f32 %v1015, %v1189
      %v1210 = vadd.f32 %v1016, %v1192
      %v1211 = vpack.c.bf16 %v370, %v369
      %v1212 = vpack.c.bf16 %v372, %v371
      %v1213 = vpack.c.bf16 %v374, %v373
      %v1214 = vpack.c.bf16 %v376, %v375
      %v1215 = vpack.c.bf16 %v378, %v377
      %v1216 = vpack.c.bf16 %v380, %v379
      %v1217 = vpack.c.bf16 %v382, %v381
      %v1218 = vpack.c.bf16 %v384, %v383
      %s1219 = scalar_lea.vmem %s1, 256
      %v1220 = vld [vmem:[%s1219] sm:$0xf]
      %v1221 = vld [vmem:[%s1219 + $0x4] sm:$0xf]
      %v1222 = vld [vmem:[%s1219 + $0x8] sm:$0xf]
      %v1223 = vld [vmem:[%s1219 + $0xc] sm:$0xf]
      %v1224 = vld [vmem:[%s1219 + $0x10] sm:$0xf]
      %v1225 = vld [vmem:[%s1219 + $0x14] sm:$0xf]
      %v1226 = vld [vmem:[%s1219 + $0x18] sm:$0xf]
      %v1227 = vld [vmem:[%s1219 + $0x1c] sm:$0xf]
      %v1228 = vld [vmem:[%s1219 + $0x20] sm:$0xf]
      %v1229 = vld [vmem:[%s1219 + $0x24] sm:$0xf]
      %v1230 = vld [vmem:[%s1219 + $0x28] sm:$0xf]
      %v1231 = vld [vmem:[%s1219 + $0x2c] sm:$0xf]
      %v1232 = vld [vmem:[%s1219 + $0x30] sm:$0xf]
      %v1233 = vld [vmem:[%s1219 + $0x34] sm:$0xf]
      %v1234 = vld [vmem:[%s1219 + $0x38] sm:$0xf]
      %v1235 = vld [vmem:[%s1219 + $0x3c] sm:$0xf]
      %v1252 = vunpack.c.l.b16 %v1220
      %v1253 = vunpack.c.l.b16 %v1221
      %v1254 = vunpack.c.l.b16 %v1222
      %v1255 = vunpack.c.l.b16 %v1223
      %v1256 = vunpack.c.l.b16 %v1224
      %v1257 = vunpack.c.l.b16 %v1225
      %v1258 = vunpack.c.l.b16 %v1226
      %v1259 = vunpack.c.l.b16 %v1227
      %v1260 = vunpack.c.l.b16 %v1228
      %v1261 = vunpack.c.l.b16 %v1229
      %v1262 = vunpack.c.l.b16 %v1230
      %v1263 = vunpack.c.l.b16 %v1231
      %v1264 = vunpack.c.l.b16 %v1232
      %v1265 = vunpack.c.l.b16 %v1233
      %v1266 = vunpack.c.l.b16 %v1234
      %v1267 = vunpack.c.l.b16 %v1235
      %v1268 = vpack.c.b16 %v1253, %v1252
      %v1269 = vpack.c.b16 %v1255, %v1254
      %v1270 = vpack.c.b16 %v1257, %v1256
      %v1271 = vpack.c.b16 %v1259, %v1258
      %v1272 = vpack.c.b16 %v1261, %v1260
      %v1273 = vpack.c.b16 %v1263, %v1262
      %v1274 = vpack.c.b16 %v1265, %v1264
      %v1275 = vpack.c.b16 %v1267, %v1266
      %1284 = vmatprep.subr.bf16.mxu0 0
      %1285 = vmatpush1.bf16.msra.mxu0 %v1268
      %1286 = vmatprep.subr.bf16.mxu0 0
      %1287 = vmatpush1.bf16.msra.mxu0 %v1269
      %1288 = vmatprep.subr.bf16.mxu0 0
      %1289 = vmatpush1.bf16.msra.mxu0 %v1270
      %1290 = vmatprep.subr.bf16.mxu0 0
      %1291 = vmatpush1.bf16.msra.mxu0 %v1271
      %1292 = vmatprep.subr.bf16.mxu0 0
      %1293 = vmatpush1.bf16.msra.mxu0 %v1272
      %1294 = vmatprep.subr.bf16.mxu0 0
      %1295 = vmatpush1.bf16.msra.mxu0 %v1273
      %1296 = vmatprep.subr.bf16.mxu0 0
      %1297 = vmatpush1.bf16.msra.mxu0 %v1274
      %1298 = vmatprep.subr.bf16.mxu0 0
      %1299 = vmatpush1.bf16.msra.mxu0 %v1275
      %1300 = vmatprep.subr.bf16.mxu0 0
      %1301 = vmatpush1.bf16.msra.mxu0 0
      %1302 = vmatprep.subr.bf16.mxu0 0
      %1303 = vmatpush1.bf16.msra.mxu0 0
      %1304 = vmatprep.subr.bf16.mxu0 0
      %1305 = vmatpush1.bf16.msra.mxu0 0
      %1306 = vmatprep.subr.bf16.mxu0 0
      %1307 = vmatpush1.bf16.msra.mxu0 0
      %1308 = vmatprep.subr.bf16.mxu0 0
      %1309 = vmatpush1.bf16.msra.mxu0 0
      %1310 = vmatprep.subr.bf16.mxu0 0
      %1311 = vmatpush1.bf16.msra.mxu0 0
      %1312 = vmatprep.subr.bf16.mxu0 0
      %1313 = vmatpush1.bf16.msra.mxu0 0
      %1314 = vmatprep.subr.bf16.mxu0 0
      %1315 = vmatpush1.bf16.msra.mxu0 0
      %1316 = vmatprep.mubr.bf16.mxu0 0
      %1317 = vmatmul.mubr.bf16.gmra.mrb[0].mxu0 %v1211
      %v1318 = vpop.f32.mrb[0].mxu0
      %v1319 = vadd.f32 0.0, %v1318
      %v1320 = vpop.f32.mrb[0].mxu0
      %v1321 = vpop.f32.mrb[0].mxu0
      %v1322 = vadd.f32 0.0, %v1321
      %v1323 = vpop.f32.mrb[0].mxu0
      %1324 = vmatprep.mubr.bf16.mxu0 0
      %1325 = vmatmul.mubr.bf16.gmra.mrb[0].mxu0 %v1212
      %v1326 = vpop.f32.mrb[0].mxu0
      %v1327 = vadd.f32 0.0, %v1326
      %v1328 = vpop.f32.mrb[0].mxu0
      %v1329 = vpop.f32.mrb[0].mxu0
      %v1330 = vadd.f32 0.0, %v1329
      %v1331 = vpop.f32.mrb[0].mxu0
      %1332 = vmatprep.mubr.bf16.mxu0 0
      %1333 = vmatmul.mubr.bf16.gmra.mrb[0].mxu0 %v1213
      %v1334 = vpop.f32.mrb[0].mxu0
      %v1335 = vadd.f32 0.0, %v1334
      %v1336 = vpop.f32.mrb[0].mxu0
      %v1337 = vpop.f32.mrb[0].mxu0
      %v1338 = vadd.f32 0.0, %v1337
      %v1339 = vpop.f32.mrb[0].mxu0
      %1340 = vmatprep.mubr.bf16.mxu0 0
      %1341 = vmatmul.mubr.bf16.gmra.mrb[0].mxu0 %v1214
      %v1342 = vpop.f32.mrb[0].mxu0
      %v1343 = vadd.f32 0.0, %v1342
      %v1344 = vpop.f32.mrb[0].mxu0
      %v1345 = vpop.f32.mrb[0].mxu0
      %v1346 = vadd.f32 0.0, %v1345
      %v1347 = vpop.f32.mrb[0].mxu0
      %1348 = vmatprep.mubr.bf16.mxu0 0
      %1349 = vmatmul.mubr.bf16.gmra.mrb[0].mxu0 %v1215
      %v1350 = vpop.f32.mrb[0].mxu0
      %v1351 = vadd.f32 0.0, %v1350
      %v1352 = vpop.f32.mrb[0].mxu0
      %v1353 = vpop.f32.mrb[0].mxu0
      %v1354 = vadd.f32 0.0, %v1353
      %v1355 = vpop.f32.mrb[0].mxu0
      %1356 = vmatprep.mubr.bf16.mxu0 0
      %1357 = vmatmul.mubr.bf16.gmra.mrb[0].mxu0 %v1216
      %v1358 = vpop.f32.mrb[0].mxu0
      %v1359 = vadd.f32 0.0, %v1358
      %v1360 = vpop.f32.mrb[0].mxu0
      %v1361 = vpop.f32.mrb[0].mxu0
      %v1362 = vadd.f32 0.0, %v1361
      %v1363 = vpop.f32.mrb[0].mxu0
      %1364 = vmatprep.mubr.bf16.mxu0 0
      %1365 = vmatmul.mubr.bf16.gmra.mrb[0].mxu0 %v1217
      %v1366 = vpop.f32.mrb[0].mxu0
      %v1367 = vadd.f32 0.0, %v1366
      %v1368 = vpop.f32.mrb[0].mxu0
      %v1369 = vpop.f32.mrb[0].mxu0
      %v1370 = vadd.f32 0.0, %v1369
      %v1371 = vpop.f32.mrb[0].mxu0
      %1372 = vmatprep.mubr.bf16.mxu0 0
      %1373 = vmatmul.mubr.bf16.gmra.mrb[0].mxu0 %v1218
      %v1374 = vpop.f32.mrb[0].mxu0
      %v1375 = vadd.f32 0.0, %v1374
      %v1376 = vpop.f32.mrb[0].mxu0
      %v1377 = vpop.f32.mrb[0].mxu0
      %v1378 = vadd.f32 0.0, %v1377
      %v1379 = vpop.f32.mrb[0].mxu0
      %1380 = vdwg.mxu0
      %v1381 = vadd.f32 %v1195, %v1319
      %v1382 = vadd.f32 %v1196, %v1322
      %v1383 = vadd.f32 %v1197, %v1327
      %v1384 = vadd.f32 %v1198, %v1330
      %v1385 = vadd.f32 %v1199, %v1335
      %v1386 = vadd.f32 %v1200, %v1338
      %v1387 = vadd.f32 %v1201, %v1343
      %v1388 = vadd.f32 %v1202, %v1346
      %v1389 = vadd.f32 %v1203, %v1351
      %v1390 = vadd.f32 %v1204, %v1354
      %v1391 = vadd.f32 %v1205, %v1359
      %v1392 = vadd.f32 %v1206, %v1362
      %v1393 = vadd.f32 %v1207, %v1367
      %v1394 = vadd.f32 %v1208, %v1370
      %v1395 = vadd.f32 %v1209, %v1375
      %v1396 = vadd.f32 %v1210, %v1378
      %v1397 = vrot.slane %v376, 1
      %v1398 = vrot.slane %v384, 1
      %v1401 = vsel %vm815, %v1397, 0.0
      %v1402 = vsel %vm815, %v1398, 0.0
      %v1403 = vpack.c.bf16 %v818, %v817
      %v1404 = vpack.c.bf16 %v820, %v819
      %v1405 = vpack.c.bf16 %v822, %v821
      %v1406 = vpack.c.bf16 %v1401, %v823
      %v1407 = vpack.c.bf16 %v825, %v824
      %v1408 = vpack.c.bf16 %v827, %v826
      %v1409 = vpack.c.bf16 %v829, %v828
      %v1410 = vpack.c.bf16 %v1402, %v830
      %s1411 = scalar_lea.vmem %s1, 320
      %v1412 = vld [vmem:[%s1411] sm:$0xf]
      %v1413 = vld [vmem:[%s1411 + $0x4] sm:$0xf]
      %v1414 = vld [vmem:[%s1411 + $0x8] sm:$0xf]
      %v1415 = vld [vmem:[%s1411 + $0xc] sm:$0xf]
      %v1416 = vld [vmem:[%s1411 + $0x10] sm:$0xf]
      %v1417 = vld [vmem:[%s1411 + $0x14] sm:$0xf]
      %v1418 = vld [vmem:[%s1411 + $0x18] sm:$0xf]
      %v1419 = vld [vmem:[%s1411 + $0x1c] sm:$0xf]
      %v1420 = vld [vmem:[%s1411 + $0x20] sm:$0xf]
      %v1421 = vld [vmem:[%s1411 + $0x24] sm:$0xf]
      %v1422 = vld [vmem:[%s1411 + $0x28] sm:$0xf]
      %v1423 = vld [vmem:[%s1411 + $0x2c] sm:$0xf]
      %v1424 = vld [vmem:[%s1411 + $0x30] sm:$0xf]
      %v1425 = vld [vmem:[%s1411 + $0x34] sm:$0xf]
      %v1426 = vld [vmem:[%s1411 + $0x38] sm:$0xf]
      %v1427 = vld [vmem:[%s1411 + $0x3c] sm:$0xf]
      %v1444 = vunpack.c.l.b16 %v1412
      %v1445 = vunpack.c.l.b16 %v1413
      %v1446 = vunpack.c.l.b16 %v1414
      %v1447 = vunpack.c.l.b16 %v1415
      %v1448 = vunpack.c.l.b16 %v1416
      %v1449 = vunpack.c.l.b16 %v1417
      %v1450 = vunpack.c.l.b16 %v1418
      %v1451 = vunpack.c.l.b16 %v1419
      %v1452 = vunpack.c.l.b16 %v1420
      %v1453 = vunpack.c.l.b16 %v1421
      %v1454 = vunpack.c.l.b16 %v1422
      %v1455 = vunpack.c.l.b16 %v1423
      %v1456 = vunpack.c.l.b16 %v1424
      %v1457 = vunpack.c.l.b16 %v1425
      %v1458 = vunpack.c.l.b16 %v1426
      %v1459 = vunpack.c.l.b16 %v1427
      %v1460 = vpack.c.b16 %v1445, %v1444
      %v1461 = vpack.c.b16 %v1447, %v1446
      %v1462 = vpack.c.b16 %v1449, %v1448
      %v1463 = vpack.c.b16 %v1451, %v1450
      %v1464 = vpack.c.b16 %v1453, %v1452
      %v1465 = vpack.c.b16 %v1455, %v1454
      %v1466 = vpack.c.b16 %v1457, %v1456
      %v1467 = vpack.c.b16 %v1459, %v1458
      %1476 = vmatprep.subr.bf16.mxu0 0
      %1477 = vmatpush1.bf16.msra.mxu0 %v1460
      %1478 = vmatprep.subr.bf16.mxu0 0
      %1479 = vmatpush1.bf16.msra.mxu0 %v1461
      %1480 = vmatprep.subr.bf16.mxu0 0
      %1481 = vmatpush1.bf16.msra.mxu0 %v1462
      %1482 = vmatprep.subr.bf16.mxu0 0
      %1483 = vmatpush1.bf16.msra.mxu0 %v1463
      %1484 = vmatprep.subr.bf16.mxu0 0
      %1485 = vmatpush1.bf16.msra.mxu0 %v1464
      %1486 = vmatprep.subr.bf16.mxu0 0
      %1487 = vmatpush1.bf16.msra.mxu0 %v1465
      %1488 = vmatprep.subr.bf16.mxu0 0
      %1489 = vmatpush1.bf16.msra.mxu0 %v1466
      %1490 = vmatprep.subr.bf16.mxu0 0
      %1491 = vmatpush1.bf16.msra.mxu0 %v1467
      %1492 = vmatprep.subr.bf16.mxu0 0
      %1493 = vmatpush1.bf16.msra.mxu0 0
      %1494 = vmatprep.subr.bf16.mxu0 0
      %1495 = vmatpush1.bf16.msra.mxu0 0
      %1496 = vmatprep.subr.bf16.mxu0 0
      %1497 = vmatpush1.bf16.msra.mxu0 0
      %1498 = vmatprep.subr.bf16.mxu0 0
      %1499 = vmatpush1.bf16.msra.mxu0 0
      %1500 = vmatprep.subr.bf16.mxu0 0
      %1501 = vmatpush1.bf16.msra.mxu0 0
      %1502 = vmatprep.subr.bf16.mxu0 0
      %1503 = vmatpush1.bf16.msra.mxu0 0
      %1504 = vmatprep.subr.bf16.mxu0 0
      %1505 = vmatpush1.bf16.msra.mxu0 0
      %1506 = vmatprep.subr.bf16.mxu0 0
      %1507 = vmatpush1.bf16.msra.mxu0 0
      %1508 = vmatprep.mubr.bf16.mxu0 0
      %1509 = vmatmul.mubr.bf16.gmra.mrb[0].mxu0 %v1403
      %v1510 = vpop.f32.mrb[0].mxu0
      %v1511 = vadd.f32 0.0, %v1510
      %v1512 = vpop.f32.mrb[0].mxu0
      %v1513 = vpop.f32.mrb[0].mxu0
      %v1514 = vadd.f32 0.0, %v1513
      %v1515 = vpop.f32.mrb[0].mxu0
      %1516 = vmatprep.mubr.bf16.mxu0 0
      %1517 = vmatmul.mubr.bf16.gmra.mrb[0].mxu0 %v1404
      %v1518 = vpop.f32.mrb[0].mxu0
      %v1519 = vadd.f32 0.0, %v1518
      %v1520 = vpop.f32.mrb[0].mxu0
      %v1521 = vpop.f32.mrb[0].mxu0
      %v1522 = vadd.f32 0.0, %v1521
      %v1523 = vpop.f32.mrb[0].mxu0
      %1524 = vmatprep.mubr.bf16.mxu0 0
      %1525 = vmatmul.mubr.bf16.gmra.mrb[0].mxu0 %v1405
      %v1526 = vpop.f32.mrb[0].mxu0
      %v1527 = vadd.f32 0.0, %v1526
      %v1528 = vpop.f32.mrb[0].mxu0
      %v1529 = vpop.f32.mrb[0].mxu0
      %v1530 = vadd.f32 0.0, %v1529
      %v1531 = vpop.f32.mrb[0].mxu0
      %1532 = vmatprep.mubr.bf16.mxu0 0
      %1533 = vmatmul.mubr.bf16.gmra.mrb[0].mxu0 %v1406
      %v1534 = vpop.f32.mrb[0].mxu0
      %v1535 = vadd.f32 0.0, %v1534
      %v1536 = vpop.f32.mrb[0].mxu0
      %v1537 = vpop.f32.mrb[0].mxu0
      %v1538 = vadd.f32 0.0, %v1537
      %v1539 = vpop.f32.mrb[0].mxu0
      %1540 = vmatprep.mubr.bf16.mxu0 0
      %1541 = vmatmul.mubr.bf16.gmra.mrb[0].mxu0 %v1407
      %v1542 = vpop.f32.mrb[0].mxu0
      %v1543 = vadd.f32 0.0, %v1542
      %v1544 = vpop.f32.mrb[0].mxu0
      %v1545 = vpop.f32.mrb[0].mxu0
      %v1546 = vadd.f32 0.0, %v1545
      %v1547 = vpop.f32.mrb[0].mxu0
      %1548 = vmatprep.mubr.bf16.mxu0 0
      %1549 = vmatmul.mubr.bf16.gmra.mrb[0].mxu0 %v1408
      %v1550 = vpop.f32.mrb[0].mxu0
      %v1551 = vadd.f32 0.0, %v1550
      %v1552 = vpop.f32.mrb[0].mxu0
      %v1553 = vpop.f32.mrb[0].mxu0
      %v1554 = vadd.f32 0.0, %v1553
      %v1555 = vpop.f32.mrb[0].mxu0
      %1556 = vmatprep.mubr.bf16.mxu0 0
      %1557 = vmatmul.mubr.bf16.gmra.mrb[0].mxu0 %v1409
      %v1558 = vpop.f32.mrb[0].mxu0
      %v1559 = vadd.f32 0.0, %v1558
      %v1560 = vpop.f32.mrb[0].mxu0
      %v1561 = vpop.f32.mrb[0].mxu0
      %v1562 = vadd.f32 0.0, %v1561
      %v1563 = vpop.f32.mrb[0].mxu0
      %1564 = vmatprep.mubr.bf16.mxu0 0
      %1565 = vmatmul.mubr.bf16.gmra.mrb[0].mxu0 %v1410
      %v1566 = vpop.f32.mrb[0].mxu0
      %v1567 = vadd.f32 0.0, %v1566
      %v1568 = vpop.f32.mrb[0].mxu0
      %v1569 = vpop.f32.mrb[0].mxu0
      %v1570 = vadd.f32 0.0, %v1569
      %v1571 = vpop.f32.mrb[0].mxu0
      %1572 = vdwg.mxu0
      %v1573 = vadd.f32 %v1381, %v1511
      %v1574 = vadd.f32 %v1382, %v1514
      %v1575 = vadd.f32 %v1383, %v1519
      %v1576 = vadd.f32 %v1384, %v1522
      %v1577 = vadd.f32 %v1385, %v1527
      %v1578 = vadd.f32 %v1386, %v1530
      %v1579 = vadd.f32 %v1387, %v1535
      %v1580 = vadd.f32 %v1388, %v1538
      %v1581 = vadd.f32 %v1389, %v1543
      %v1582 = vadd.f32 %v1390, %v1546
      %v1583 = vadd.f32 %v1391, %v1551
      %v1584 = vadd.f32 %v1392, %v1554
      %v1585 = vadd.f32 %v1393, %v1559
      %v1586 = vadd.f32 %v1394, %v1562
      %v1587 = vadd.f32 %v1395, %v1567
      %v1588 = vadd.f32 %v1396, %v1570
      %v1589 = vpack.c.bf16 %v431, %v1023
      %v1590 = vpack.c.bf16 %v431, %v1024
      %s1591 = scalar_lea.vmem %s1, 384
      %v1592 = vld [vmem:[%s1591] sm:$0xf]
      %v1593 = vld [vmem:[%s1591 + $0x4] sm:$0xf]
      %v1594 = vld [vmem:[%s1591 + $0x8] sm:$0xf]
      %v1595 = vld [vmem:[%s1591 + $0xc] sm:$0xf]
      %v1596 = vld [vmem:[%s1591 + $0x10] sm:$0xf]
      %v1597 = vld [vmem:[%s1591 + $0x14] sm:$0xf]
      %v1598 = vld [vmem:[%s1591 + $0x18] sm:$0xf]
      %v1599 = vld [vmem:[%s1591 + $0x1c] sm:$0xf]
      %v1600 = vld [vmem:[%s1591 + $0x20] sm:$0xf]
      %v1601 = vld [vmem:[%s1591 + $0x24] sm:$0xf]
      %v1602 = vld [vmem:[%s1591 + $0x28] sm:$0xf]
      %v1603 = vld [vmem:[%s1591 + $0x2c] sm:$0xf]
      %v1604 = vld [vmem:[%s1591 + $0x30] sm:$0xf]
      %v1605 = vld [vmem:[%s1591 + $0x34] sm:$0xf]
      %v1606 = vld [vmem:[%s1591 + $0x38] sm:$0xf]
      %v1607 = vld [vmem:[%s1591 + $0x3c] sm:$0xf]
      %v1624 = vunpack.c.l.b16 %v1592
      %v1625 = vunpack.c.l.b16 %v1593
      %v1626 = vunpack.c.l.b16 %v1594
      %v1627 = vunpack.c.l.b16 %v1595
      %v1628 = vunpack.c.l.b16 %v1596
      %v1629 = vunpack.c.l.b16 %v1597
      %v1630 = vunpack.c.l.b16 %v1598
      %v1631 = vunpack.c.l.b16 %v1599
      %v1632 = vunpack.c.l.b16 %v1600
      %v1633 = vunpack.c.l.b16 %v1601
      %v1634 = vunpack.c.l.b16 %v1602
      %v1635 = vunpack.c.l.b16 %v1603
      %v1636 = vunpack.c.l.b16 %v1604
      %v1637 = vunpack.c.l.b16 %v1605
      %v1638 = vunpack.c.l.b16 %v1606
      %v1639 = vunpack.c.l.b16 %v1607
      %v1640 = vpack.c.b16 %v1625, %v1624
      %v1641 = vpack.c.b16 %v1627, %v1626
      %v1642 = vpack.c.b16 %v1629, %v1628
      %v1643 = vpack.c.b16 %v1631, %v1630
      %v1644 = vpack.c.b16 %v1633, %v1632
      %v1645 = vpack.c.b16 %v1635, %v1634
      %v1646 = vpack.c.b16 %v1637, %v1636
      %v1647 = vpack.c.b16 %v1639, %v1638
      %1656 = vmatprep.subr.bf16.mxu0 0
      %1657 = vmatpush1.bf16.msra.mxu0 %v1640
      %1658 = vmatprep.subr.bf16.mxu0 0
      %1659 = vmatpush1.bf16.msra.mxu0 %v1641
      %1660 = vmatprep.subr.bf16.mxu0 0
      %1661 = vmatpush1.bf16.msra.mxu0 %v1642
      %1662 = vmatprep.subr.bf16.mxu0 0
      %1663 = vmatpush1.bf16.msra.mxu0 %v1643
      %1664 = vmatprep.subr.bf16.mxu0 0
      %1665 = vmatpush1.bf16.msra.mxu0 %v1644
      %1666 = vmatprep.subr.bf16.mxu0 0
      %1667 = vmatpush1.bf16.msra.mxu0 %v1645
      %1668 = vmatprep.subr.bf16.mxu0 0
      %1669 = vmatpush1.bf16.msra.mxu0 %v1646
      %1670 = vmatprep.subr.bf16.mxu0 0
      %1671 = vmatpush1.bf16.msra.mxu0 %v1647
      %1672 = vmatprep.subr.bf16.mxu0 0
      %1673 = vmatpush1.bf16.msra.mxu0 0
      %1674 = vmatprep.subr.bf16.mxu0 0
      %1675 = vmatpush1.bf16.msra.mxu0 0
      %1676 = vmatprep.subr.bf16.mxu0 0
      %1677 = vmatpush1.bf16.msra.mxu0 0
      %1678 = vmatprep.subr.bf16.mxu0 0
      %1679 = vmatpush1.bf16.msra.mxu0 0
      %1680 = vmatprep.subr.bf16.mxu0 0
      %1681 = vmatpush1.bf16.msra.mxu0 0
      %1682 = vmatprep.subr.bf16.mxu0 0
      %1683 = vmatpush1.bf16.msra.mxu0 0
      %1684 = vmatprep.subr.bf16.mxu0 0
      %1685 = vmatpush1.bf16.msra.mxu0 0
      %1686 = vmatprep.subr.bf16.mxu0 0
      %1687 = vmatpush1.bf16.msra.mxu0 0
      %1688 = vmatprep.mubr.bf16.mxu0 0
      %1689 = vmatmul.mubr.bf16.gmra.mrb[0].mxu0 %v447
      %v1690 = vpop.f32.mrb[0].mxu0
      %v1691 = vadd.f32 0.0, %v1690
      %v1692 = vpop.f32.mrb[0].mxu0
      %v1693 = vpop.f32.mrb[0].mxu0
      %v1694 = vadd.f32 0.0, %v1693
      %v1695 = vpop.f32.mrb[0].mxu0
      %1696 = vmatprep.mubr.bf16.mxu0 0
      %1697 = vmatmul.mubr.bf16.gmra.mrb[0].mxu0 %v448
      %v1698 = vpop.f32.mrb[0].mxu0
      %v1699 = vadd.f32 0.0, %v1698
      %v1700 = vpop.f32.mrb[0].mxu0
      %v1701 = vpop.f32.mrb[0].mxu0
      %v1702 = vadd.f32 0.0, %v1701
      %v1703 = vpop.f32.mrb[0].mxu0
      %1704 = vmatprep.mubr.bf16.mxu0 0
      %1705 = vmatmul.mubr.bf16.gmra.mrb[0].mxu0 %v449
      %v1706 = vpop.f32.mrb[0].mxu0
      %v1707 = vadd.f32 0.0, %v1706
      %v1708 = vpop.f32.mrb[0].mxu0
      %v1709 = vpop.f32.mrb[0].mxu0
      %v1710 = vadd.f32 0.0, %v1709
      %v1711 = vpop.f32.mrb[0].mxu0
      %1712 = vmatprep.mubr.bf16.mxu0 0
      %1713 = vmatmul.mubr.bf16.gmra.mrb[0].mxu0 %v1589
      %v1714 = vpop.f32.mrb[0].mxu0
      %v1715 = vadd.f32 0.0, %v1714
      %v1716 = vpop.f32.mrb[0].mxu0
      %v1717 = vpop.f32.mrb[0].mxu0
      %v1718 = vadd.f32 0.0, %v1717
      %v1719 = vpop.f32.mrb[0].mxu0
      %1720 = vmatprep.mubr.bf16.mxu0 0
      %1721 = vmatmul.mubr.bf16.gmra.mrb[0].mxu0 %v451
      %v1722 = vpop.f32.mrb[0].mxu0
      %v1723 = vadd.f32 0.0, %v1722
      %v1724 = vpop.f32.mrb[0].mxu0
      %v1725 = vpop.f32.mrb[0].mxu0
      %v1726 = vadd.f32 0.0, %v1725
      %v1727 = vpop.f32.mrb[0].mxu0
      %1728 = vmatprep.mubr.bf16.mxu0 0
      %1729 = vmatmul.mubr.bf16.gmra.mrb[0].mxu0 %v452
      %v1730 = vpop.f32.mrb[0].mxu0
      %v1731 = vadd.f32 0.0, %v1730
      %v1732 = vpop.f32.mrb[0].mxu0
      %v1733 = vpop.f32.mrb[0].mxu0
      %v1734 = vadd.f32 0.0, %v1733
      %v1735 = vpop.f32.mrb[0].mxu0
      %1736 = vmatprep.mubr.bf16.mxu0 0
      %1737 = vmatmul.mubr.bf16.gmra.mrb[0].mxu0 %v453
      %v1738 = vpop.f32.mrb[0].mxu0
      %v1739 = vadd.f32 0.0, %v1738
      %v1740 = vpop.f32.mrb[0].mxu0
      %v1741 = vpop.f32.mrb[0].mxu0
      %v1742 = vadd.f32 0.0, %v1741
      %v1743 = vpop.f32.mrb[0].mxu0
      %1744 = vmatprep.mubr.bf16.mxu0 0
      %1745 = vmatmul.mubr.bf16.gmra.mrb[0].mxu0 %v1590
      %v1746 = vpop.f32.mrb[0].mxu0
      %v1747 = vadd.f32 0.0, %v1746
      %v1748 = vpop.f32.mrb[0].mxu0
      %v1749 = vpop.f32.mrb[0].mxu0
      %v1750 = vadd.f32 0.0, %v1749
      %v1751 = vpop.f32.mrb[0].mxu0
      %1752 = vdwg.mxu0
      %v1753 = vadd.f32 %v1573, %v1691
      %v1754 = vadd.f32 %v1574, %v1694
      %v1755 = vadd.f32 %v1575, %v1699
      %v1756 = vadd.f32 %v1576, %v1702
      %v1757 = vadd.f32 %v1577, %v1707
      %v1758 = vadd.f32 %v1578, %v1710
      %v1759 = vadd.f32 %v1579, %v1715
      %v1760 = vadd.f32 %v1580, %v1718
      %v1761 = vadd.f32 %v1581, %v1723
      %v1762 = vadd.f32 %v1582, %v1726
      %v1763 = vadd.f32 %v1583, %v1731
      %v1764 = vadd.f32 %v1584, %v1734
      %v1765 = vadd.f32 %v1585, %v1739
      %v1766 = vadd.f32 %v1586, %v1742
      %v1767 = vadd.f32 %v1587, %v1747
      %v1768 = vadd.f32 %v1588, %v1750
      %v1769 = vpack.c.bf16 0.0, %v376
      %v1770 = vpack.c.bf16 0.0, %v384
      %s1771 = scalar_lea.vmem %s1, 448
      %v1772 = vld [vmem:[%s1771] sm:$0xf]
      %v1773 = vld [vmem:[%s1771 + $0x4] sm:$0xf]
      %v1774 = vld [vmem:[%s1771 + $0x8] sm:$0xf]
      %v1775 = vld [vmem:[%s1771 + $0xc] sm:$0xf]
      %v1776 = vld [vmem:[%s1771 + $0x10] sm:$0xf]
      %v1777 = vld [vmem:[%s1771 + $0x14] sm:$0xf]
      %v1778 = vld [vmem:[%s1771 + $0x18] sm:$0xf]
      %v1779 = vld [vmem:[%s1771 + $0x1c] sm:$0xf]
      %v1780 = vld [vmem:[%s1771 + $0x20] sm:$0xf]
      %v1781 = vld [vmem:[%s1771 + $0x24] sm:$0xf]
      %v1782 = vld [vmem:[%s1771 + $0x28] sm:$0xf]
      %v1783 = vld [vmem:[%s1771 + $0x2c] sm:$0xf]
      %v1784 = vld [vmem:[%s1771 + $0x30] sm:$0xf]
      %v1785 = vld [vmem:[%s1771 + $0x34] sm:$0xf]
      %v1786 = vld [vmem:[%s1771 + $0x38] sm:$0xf]
      %v1787 = vld [vmem:[%s1771 + $0x3c] sm:$0xf]
      %v1804 = vunpack.c.l.b16 %v1772
      %v1805 = vunpack.c.l.b16 %v1773
      %v1806 = vunpack.c.l.b16 %v1774
      %v1807 = vunpack.c.l.b16 %v1775
      %v1808 = vunpack.c.l.b16 %v1776
      %v1809 = vunpack.c.l.b16 %v1777
      %v1810 = vunpack.c.l.b16 %v1778
      %v1811 = vunpack.c.l.b16 %v1779
      %v1812 = vunpack.c.l.b16 %v1780
      %v1813 = vunpack.c.l.b16 %v1781
      %v1814 = vunpack.c.l.b16 %v1782
      %v1815 = vunpack.c.l.b16 %v1783
      %v1816 = vunpack.c.l.b16 %v1784
      %v1817 = vunpack.c.l.b16 %v1785
      %v1818 = vunpack.c.l.b16 %v1786
      %v1819 = vunpack.c.l.b16 %v1787
      %v1820 = vpack.c.b16 %v1805, %v1804
      %v1821 = vpack.c.b16 %v1807, %v1806
      %v1822 = vpack.c.b16 %v1809, %v1808
      %v1823 = vpack.c.b16 %v1811, %v1810
      %v1824 = vpack.c.b16 %v1813, %v1812
      %v1825 = vpack.c.b16 %v1815, %v1814
      %v1826 = vpack.c.b16 %v1817, %v1816
      %v1827 = vpack.c.b16 %v1819, %v1818
      %1836 = vmatprep.subr.bf16.mxu0 0
      %1837 = vmatpush1.bf16.msra.mxu0 %v1820
      %1838 = vmatprep.subr.bf16.mxu0 0
      %1839 = vmatpush1.bf16.msra.mxu0 %v1821
      %1840 = vmatprep.subr.bf16.mxu0 0
      %1841 = vmatpush1.bf16.msra.mxu0 %v1822
      %1842 = vmatprep.subr.bf16.mxu0 0
      %1843 = vmatpush1.bf16.msra.mxu0 %v1823
      %1844 = vmatprep.subr.bf16.mxu0 0
      %1845 = vmatpush1.bf16.msra.mxu0 %v1824
      %1846 = vmatprep.subr.bf16.mxu0 0
      %1847 = vmatpush1.bf16.msra.mxu0 %v1825
      %1848 = vmatprep.subr.bf16.mxu0 0
      %1849 = vmatpush1.bf16.msra.mxu0 %v1826
      %1850 = vmatprep.subr.bf16.mxu0 0
      %1851 = vmatpush1.bf16.msra.mxu0 %v1827
      %1852 = vmatprep.subr.bf16.mxu0 0
      %1853 = vmatpush1.bf16.msra.mxu0 0
      %1854 = vmatprep.subr.bf16.mxu0 0
      %1855 = vmatpush1.bf16.msra.mxu0 0
      %1856 = vmatprep.subr.bf16.mxu0 0
      %1857 = vmatpush1.bf16.msra.mxu0 0
      %1858 = vmatprep.subr.bf16.mxu0 0
      %1859 = vmatpush1.bf16.msra.mxu0 0
      %1860 = vmatprep.subr.bf16.mxu0 0
      %1861 = vmatpush1.bf16.msra.mxu0 0
      %1862 = vmatprep.subr.bf16.mxu0 0
      %1863 = vmatpush1.bf16.msra.mxu0 0
      %1864 = vmatprep.subr.bf16.mxu0 0
      %1865 = vmatpush1.bf16.msra.mxu0 0
      %1866 = vmatprep.subr.bf16.mxu0 0
      %1867 = vmatpush1.bf16.msra.mxu0 0
      %1868 = vmatprep.mubr.bf16.mxu0 0
      %1869 = vmatmul.mubr.bf16.gmra.mrb[0].mxu0 %v471
      %v1870 = vpop.f32.mrb[0].mxu0
      %v1871 = vadd.f32 0.0, %v1870
      %v1872 = vpop.f32.mrb[0].mxu0
      %v1873 = vpop.f32.mrb[0].mxu0
      %v1874 = vadd.f32 0.0, %v1873
      %v1875 = vpop.f32.mrb[0].mxu0
      %1876 = vmatprep.mubr.bf16.mxu0 0
      %1877 = vmatmul.mubr.bf16.gmra.mrb[0].mxu0 %v472
      %v1878 = vpop.f32.mrb[0].mxu0
      %v1879 = vadd.f32 0.0, %v1878
      %v1880 = vpop.f32.mrb[0].mxu0
      %v1881 = vpop.f32.mrb[0].mxu0
      %v1882 = vadd.f32 0.0, %v1881
      %v1883 = vpop.f32.mrb[0].mxu0
      %1884 = vmatprep.mubr.bf16.mxu0 0
      %1885 = vmatmul.mubr.bf16.gmra.mrb[0].mxu0 %v473
      %v1886 = vpop.f32.mrb[0].mxu0
      %v1887 = vadd.f32 0.0, %v1886
      %v1888 = vpop.f32.mrb[0].mxu0
      %v1889 = vpop.f32.mrb[0].mxu0
      %v1890 = vadd.f32 0.0, %v1889
      %v1891 = vpop.f32.mrb[0].mxu0
      %1892 = vmatprep.mubr.bf16.mxu0 0
      %1893 = vmatmul.mubr.bf16.gmra.mrb[0].mxu0 %v1769
      %v1894 = vpop.f32.mrb[0].mxu0
      %v1895 = vadd.f32 0.0, %v1894
      %v1896 = vpop.f32.mrb[0].mxu0
      %v1897 = vpop.f32.mrb[0].mxu0
      %v1898 = vadd.f32 0.0, %v1897
      %v1899 = vpop.f32.mrb[0].mxu0
      %1900 = vmatprep.mubr.bf16.mxu0 0
      %1901 = vmatmul.mubr.bf16.gmra.mrb[0].mxu0 %v475
      %v1902 = vpop.f32.mrb[0].mxu0
      %v1903 = vadd.f32 0.0, %v1902
      %v1904 = vpop.f32.mrb[0].mxu0
      %v1905 = vpop.f32.mrb[0].mxu0
      %v1906 = vadd.f32 0.0, %v1905
      %v1907 = vpop.f32.mrb[0].mxu0
      %1908 = vmatprep.mubr.bf16.mxu0 0
      %1909 = vmatmul.mubr.bf16.gmra.mrb[0].mxu0 %v476
      %v1910 = vpop.f32.mrb[0].mxu0
      %v1911 = vadd.f32 0.0, %v1910
      %v1912 = vpop.f32.mrb[0].mxu0
      %v1913 = vpop.f32.mrb[0].mxu0
      %v1914 = vadd.f32 0.0, %v1913
      %v1915 = vpop.f32.mrb[0].mxu0
      %1916 = vmatprep.mubr.bf16.mxu0 0
      %1917 = vmatmul.mubr.bf16.gmra.mrb[0].mxu0 %v477
      %v1918 = vpop.f32.mrb[0].mxu0
      %v1919 = vadd.f32 0.0, %v1918
      %v1920 = vpop.f32.mrb[0].mxu0
      %v1921 = vpop.f32.mrb[0].mxu0
      %v1922 = vadd.f32 0.0, %v1921
      %v1923 = vpop.f32.mrb[0].mxu0
      %1924 = vmatprep.mubr.bf16.mxu0 0
      %1925 = vmatmul.mubr.bf16.gmra.mrb[0].mxu0 %v1770
      %v1926 = vpop.f32.mrb[0].mxu0
      %v1927 = vadd.f32 0.0, %v1926
      %v1928 = vpop.f32.mrb[0].mxu0
      %v1929 = vpop.f32.mrb[0].mxu0
      %v1930 = vadd.f32 0.0, %v1929
      %v1931 = vpop.f32.mrb[0].mxu0
      %1932 = vdwg.mxu0
      %v1933 = vadd.f32 %v1753, %v1871
      %v1934 = vadd.f32 %v1754, %v1874
      %v1935 = vadd.f32 %v1755, %v1879
      %v1936 = vadd.f32 %v1756, %v1882
      %v1937 = vadd.f32 %v1757, %v1887
      %v1938 = vadd.f32 %v1758, %v1890
      %v1939 = vadd.f32 %v1759, %v1895
      %v1940 = vadd.f32 %v1760, %v1898
      %v1941 = vadd.f32 %v1761, %v1903
      %v1942 = vadd.f32 %v1762, %v1906
      %v1943 = vadd.f32 %v1763, %v1911
      %v1944 = vadd.f32 %v1764, %v1914
      %v1945 = vadd.f32 %v1765, %v1919
      %v1946 = vadd.f32 %v1766, %v1922
      %v1947 = vadd.f32 %v1767, %v1927
      %v1948 = vadd.f32 %v1768, %v1930
      %v1949 = vpack.c.bf16 %v816, %v1401
      %v1950 = vpack.c.bf16 %v816, %v1402
      %s1951 = scalar_lea.vmem %s1, 512
      %v1952 = vld [vmem:[%s1951] sm:$0xf]
      %v1953 = vld [vmem:[%s1951 + $0x4] sm:$0xf]
      %v1954 = vld [vmem:[%s1951 + $0x8] sm:$0xf]
      %v1955 = vld [vmem:[%s1951 + $0xc] sm:$0xf]
      %v1956 = vld [vmem:[%s1951 + $0x10] sm:$0xf]
      %v1957 = vld [vmem:[%s1951 + $0x14] sm:$0xf]
      %v1958 = vld [vmem:[%s1951 + $0x18] sm:$0xf]
      %v1959 = vld [vmem:[%s1951 + $0x1c] sm:$0xf]
      %v1960 = vld [vmem:[%s1951 + $0x20] sm:$0xf]
      %v1961 = vld [vmem:[%s1951 + $0x24] sm:$0xf]
      %v1962 = vld [vmem:[%s1951 + $0x28] sm:$0xf]
      %v1963 = vld [vmem:[%s1951 + $0x2c] sm:$0xf]
      %v1964 = vld [vmem:[%s1951 + $0x30] sm:$0xf]
      %v1965 = vld [vmem:[%s1951 + $0x34] sm:$0xf]
      %v1966 = vld [vmem:[%s1951 + $0x38] sm:$0xf]
      %v1967 = vld [vmem:[%s1951 + $0x3c] sm:$0xf]
      %v1984 = vunpack.c.l.b16 %v1952
      %v1985 = vunpack.c.l.b16 %v1953
      %v1986 = vunpack.c.l.b16 %v1954
      %v1987 = vunpack.c.l.b16 %v1955
      %v1988 = vunpack.c.l.b16 %v1956
      %v1989 = vunpack.c.l.b16 %v1957
      %v1990 = vunpack.c.l.b16 %v1958
      %v1991 = vunpack.c.l.b16 %v1959
      %v1992 = vunpack.c.l.b16 %v1960
      %v1993 = vunpack.c.l.b16 %v1961
      %v1994 = vunpack.c.l.b16 %v1962
      %v1995 = vunpack.c.l.b16 %v1963
      %v1996 = vunpack.c.l.b16 %v1964
      %v1997 = vunpack.c.l.b16 %v1965
      %v1998 = vunpack.c.l.b16 %v1966
      %v1999 = vunpack.c.l.b16 %v1967
      %v2000 = vpack.c.b16 %v1985, %v1984
      %v2001 = vpack.c.b16 %v1987, %v1986
      %v2002 = vpack.c.b16 %v1989, %v1988
      %v2003 = vpack.c.b16 %v1991, %v1990
      %v2004 = vpack.c.b16 %v1993, %v1992
      %v2005 = vpack.c.b16 %v1995, %v1994
      %v2006 = vpack.c.b16 %v1997, %v1996
      %v2007 = vpack.c.b16 %v1999, %v1998
      %2016 = vmatprep.subr.bf16.mxu0 0
      %2017 = vmatpush1.bf16.msra.mxu0 %v2000
      %2018 = vmatprep.subr.bf16.mxu0 0
      %2019 = vmatpush1.bf16.msra.mxu0 %v2001
      %2020 = vmatprep.subr.bf16.mxu0 0
      %2021 = vmatpush1.bf16.msra.mxu0 %v2002
      %2022 = vmatprep.subr.bf16.mxu0 0
      %2023 = vmatpush1.bf16.msra.mxu0 %v2003
      %2024 = vmatprep.subr.bf16.mxu0 0
      %2025 = vmatpush1.bf16.msra.mxu0 %v2004
      %2026 = vmatprep.subr.bf16.mxu0 0
      %2027 = vmatpush1.bf16.msra.mxu0 %v2005
      %2028 = vmatprep.subr.bf16.mxu0 0
      %2029 = vmatpush1.bf16.msra.mxu0 %v2006
      %2030 = vmatprep.subr.bf16.mxu0 0
      %2031 = vmatpush1.bf16.msra.mxu0 %v2007
      %2032 = vmatprep.subr.bf16.mxu0 0
      %2033 = vmatpush1.bf16.msra.mxu0 0
      %2034 = vmatprep.subr.bf16.mxu0 0
      %2035 = vmatpush1.bf16.msra.mxu0 0
      %2036 = vmatprep.subr.bf16.mxu0 0
      %2037 = vmatpush1.bf16.msra.mxu0 0
      %2038 = vmatprep.subr.bf16.mxu0 0
      %2039 = vmatpush1.bf16.msra.mxu0 0
      %2040 = vmatprep.subr.bf16.mxu0 0
      %2041 = vmatpush1.bf16.msra.mxu0 0
      %2042 = vmatprep.subr.bf16.mxu0 0
      %2043 = vmatpush1.bf16.msra.mxu0 0
      %2044 = vmatprep.subr.bf16.mxu0 0
      %2045 = vmatpush1.bf16.msra.mxu0 0
      %2046 = vmatprep.subr.bf16.mxu0 0
      %2047 = vmatpush1.bf16.msra.mxu0 0
      %2048 = vmatprep.mubr.bf16.mxu0 0
      %2049 = vmatmul.mubr.bf16.gmra.mrb[0].mxu0 %v832
      %v2050 = vpop.f32.mrb[0].mxu0
      %v2051 = vadd.f32 0.0, %v2050
      %v2052 = vpop.f32.mrb[0].mxu0
      %v2053 = vpop.f32.mrb[0].mxu0
      %v2054 = vadd.f32 0.0, %v2053
      %v2055 = vpop.f32.mrb[0].mxu0
      %2056 = vmatprep.mubr.bf16.mxu0 0
      %2057 = vmatmul.mubr.bf16.gmra.mrb[0].mxu0 %v833
      %v2058 = vpop.f32.mrb[0].mxu0
      %v2059 = vadd.f32 0.0, %v2058
      %v2060 = vpop.f32.mrb[0].mxu0
      %v2061 = vpop.f32.mrb[0].mxu0
      %v2062 = vadd.f32 0.0, %v2061
      %v2063 = vpop.f32.mrb[0].mxu0
      %2064 = vmatprep.mubr.bf16.mxu0 0
      %2065 = vmatmul.mubr.bf16.gmra.mrb[0].mxu0 %v834
      %v2066 = vpop.f32.mrb[0].mxu0
      %v2067 = vadd.f32 0.0, %v2066
      %v2068 = vpop.f32.mrb[0].mxu0
      %v2069 = vpop.f32.mrb[0].mxu0
      %v2070 = vadd.f32 0.0, %v2069
      %v2071 = vpop.f32.mrb[0].mxu0
      %2072 = vmatprep.mubr.bf16.mxu0 0
      %2073 = vmatmul.mubr.bf16.gmra.mrb[0].mxu0 %v1949
      %v2074 = vpop.f32.mrb[0].mxu0
      %v2075 = vadd.f32 0.0, %v2074
      %v2076 = vpop.f32.mrb[0].mxu0
      %v2077 = vpop.f32.mrb[0].mxu0
      %v2078 = vadd.f32 0.0, %v2077
      %v2079 = vpop.f32.mrb[0].mxu0
      %2080 = vmatprep.mubr.bf16.mxu0 0
      %2081 = vmatmul.mubr.bf16.gmra.mrb[0].mxu0 %v836
      %v2082 = vpop.f32.mrb[0].mxu0
      %v2083 = vadd.f32 0.0, %v2082
      %v2084 = vpop.f32.mrb[0].mxu0
      %v2085 = vpop.f32.mrb[0].mxu0
      %v2086 = vadd.f32 0.0, %v2085
      %v2087 = vpop.f32.mrb[0].mxu0
      %2088 = vmatprep.mubr.bf16.mxu0 0
      %2089 = vmatmul.mubr.bf16.gmra.mrb[0].mxu0 %v837
      %v2090 = vpop.f32.mrb[0].mxu0
      %v2091 = vadd.f32 0.0, %v2090
      %v2092 = vpop.f32.mrb[0].mxu0
      %v2093 = vpop.f32.mrb[0].mxu0
      %v2094 = vadd.f32 0.0, %v2093
      %v2095 = vpop.f32.mrb[0].mxu0
      %2096 = vmatprep.mubr.bf16.mxu0 0
      %2097 = vmatmul.mubr.bf16.gmra.mrb[0].mxu0 %v838
      %v2098 = vpop.f32.mrb[0].mxu0
      %v2099 = vadd.f32 0.0, %v2098
      %v2100 = vpop.f32.mrb[0].mxu0
      %v2101 = vpop.f32.mrb[0].mxu0
      %v2102 = vadd.f32 0.0, %v2101
      %v2103 = vpop.f32.mrb[0].mxu0
      %2104 = vmatprep.mubr.bf16.mxu0 0
      %2105 = vmatmul.mubr.bf16.gmra.mrb[0].mxu0 %v1950
      %v2106 = vpop.f32.mrb[0].mxu0
      %v2107 = vadd.f32 0.0, %v2106
      %v2108 = vpop.f32.mrb[0].mxu0
      %v2109 = vpop.f32.mrb[0].mxu0
      %v2110 = vadd.f32 0.0, %v2109
      %v2111 = vpop.f32.mrb[0].mxu0
      %2112 = vdwg.mxu0
      %v2113 = vadd.f32 %v1933, %v2051
      %v2114 = vadd.f32 %v1934, %v2054
      %v2115 = vadd.f32 %v1935, %v2059
      %v2116 = vadd.f32 %v1936, %v2062
      %v2117 = vadd.f32 %v1937, %v2067
      %v2118 = vadd.f32 %v1938, %v2070
      %v2119 = vadd.f32 %v1939, %v2075
      %v2120 = vadd.f32 %v1940, %v2078
      %v2121 = vadd.f32 %v1941, %v2083
      %v2122 = vadd.f32 %v1942, %v2086
      %v2123 = vadd.f32 %v1943, %v2091
      %v2124 = vadd.f32 %v1944, %v2094
      %v2125 = vadd.f32 %v1945, %v2099
      %v2126 = vadd.f32 %v1946, %v2102
      %v2127 = vadd.f32 %v1947, %v2107
      %v2128 = vadd.f32 %v1948, %v2110
      %v2129 = vld [vmem:[%s2] sm:$0x1]
      %v2131 = vlaneseq
      %v2132 = vshrl.u32 %v2131, 7
      %v2133 = vsub.s32 0, %v2132
      %v2134 = vrot.slane %v2129, %v2133
      %v2136 = vadd.f32 %v2113, %v2134
      %v2137 = vadd.f32 %v2114, %v2134
      %v2138 = vadd.f32 %v2115, %v2134
      %v2139 = vadd.f32 %v2116, %v2134
      %v2140 = vadd.f32 %v2117, %v2134
      %v2141 = vadd.f32 %v2118, %v2134
      %v2142 = vadd.f32 %v2119, %v2134
      %v2143 = vadd.f32 %v2120, %v2134
      %v2144 = vadd.f32 %v2121, %v2134
      %v2145 = vadd.f32 %v2122, %v2134
      %v2146 = vadd.f32 %v2123, %v2134
      %v2147 = vadd.f32 %v2124, %v2134
      %v2148 = vadd.f32 %v2125, %v2134
      %v2149 = vadd.f32 %v2126, %v2134
      %v2150 = vadd.f32 %v2127, %v2134
      %v2151 = vadd.f32 %v2128, %v2134
      %v2152 = vadd.f32 %v2136, %v2137
      %v2153 = vadd.f32 %v2152, %v2138
      %v2154 = vadd.f32 %v2153, %v2139
      %v2155 = vadd.f32 %v2154, %v2140
      %v2156 = vadd.f32 %v2155, %v2141
      %v2157 = vadd.f32 %v2156, %v2142
      %v2158 = vadd.f32 %v2157, %v2143
      %v2159 = vrot.slane %v2158, 4
      %v2160 = vadd.f32 %v2158, %v2159
      %v2161 = vrot.slane %v2160, 2
      %v2162 = vadd.f32 %v2160, %v2161
      %v2163 = vrot.slane %v2162, 1
      %v2164 = vadd.f32 %v2162, %v2163
      %v2165 = vadd.f32 %v2144, %v2145
      %v2166 = vadd.f32 %v2165, %v2146
      %v2167 = vadd.f32 %v2166, %v2147
      %v2168 = vadd.f32 %v2167, %v2148
      %v2169 = vadd.f32 %v2168, %v2149
      %v2170 = vadd.f32 %v2169, %v2150
      %v2171 = vadd.f32 %v2170, %v2151
      %v2172 = vrot.slane %v2171, 4
      %v2173 = vadd.f32 %v2171, %v2172
      %v2174 = vrot.slane %v2173, 2
      %v2175 = vadd.f32 %v2173, %v2174
      %v2176 = vrot.slane %v2175, 1
      %v2177 = vadd.f32 %v2175, %v2176
      %v2178 = vmul.f32 %v2136, %v2136
      %v2179 = vmul.f32 %v2137, %v2137
      %v2180 = vmul.f32 %v2138, %v2138
      %v2181 = vmul.f32 %v2139, %v2139
      %v2182 = vmul.f32 %v2140, %v2140
      %v2183 = vmul.f32 %v2141, %v2141
      %v2184 = vmul.f32 %v2142, %v2142
      %v2185 = vmul.f32 %v2143, %v2143
      %v2186 = vmul.f32 %v2144, %v2144
      %v2187 = vmul.f32 %v2145, %v2145
      %v2188 = vmul.f32 %v2146, %v2146
      %v2189 = vmul.f32 %v2147, %v2147
      %v2190 = vmul.f32 %v2148, %v2148
      %v2191 = vmul.f32 %v2149, %v2149
      %v2192 = vmul.f32 %v2150, %v2150
      %v2193 = vmul.f32 %v2151, %v2151
      %v2194 = vadd.f32 %v2178, %v2179
      %v2195 = vadd.f32 %v2194, %v2180
      %v2196 = vadd.f32 %v2195, %v2181
      %v2197 = vadd.f32 %v2196, %v2182
      %v2198 = vadd.f32 %v2197, %v2183
      %v2199 = vadd.f32 %v2198, %v2184
      %v2200 = vadd.f32 %v2199, %v2185
      %v2201 = vrot.slane %v2200, 4
      %v2202 = vadd.f32 %v2200, %v2201
      %v2203 = vrot.slane %v2202, 2
      %v2204 = vadd.f32 %v2202, %v2203
      %v2205 = vrot.slane %v2204, 1
      %v2206 = vadd.f32 %v2204, %v2205
      %v2207 = vadd.f32 %v2186, %v2187
      %v2208 = vadd.f32 %v2207, %v2188
      %v2209 = vadd.f32 %v2208, %v2189
      %v2210 = vadd.f32 %v2209, %v2190
      %v2211 = vadd.f32 %v2210, %v2191
      %v2212 = vadd.f32 %v2211, %v2192
      %v2213 = vadd.f32 %v2212, %v2193
      %v2214 = vrot.slane %v2213, 4
      %v2215 = vadd.f32 %v2213, %v2214
      %v2216 = vrot.slane %v2215, 2
      %v2217 = vadd.f32 %v2215, %v2216
      %v2218 = vrot.slane %v2217, 1
      %v2219 = vadd.f32 %v2217, %v2218
      %v2220 = vld [vmem:[%s5] sm:$0xff]
      %v2221 = vld [vmem:[%s5 + $0x8] sm:$0xff]
      %v2222 = vld [vmem:[%s5 + $0x10] sm:$0xff]
      %v2223 = vld [vmem:[%s5 + $0x18] sm:$0xff]
      %v2224 = vld [vmem:[%s5 + $0x20] sm:$0xff]
      %v2225 = vld [vmem:[%s5 + $0x28] sm:$0xff]
      %v2226 = vld [vmem:[%s5 + $0x30] sm:$0xff]
      %v2227 = vld [vmem:[%s5 + $0x38] sm:$0xff]
      %v2228 = vld [vmem:[%s5 + $0x40] sm:$0xff]
      %v2229 = vld [vmem:[%s5 + $0x48] sm:$0xff]
      %v2230 = vld [vmem:[%s5 + $0x50] sm:$0xff]
      %v2231 = vld [vmem:[%s5 + $0x58] sm:$0xff]
      %v2232 = vld [vmem:[%s5 + $0x60] sm:$0xff]
      %v2233 = vld [vmem:[%s5 + $0x68] sm:$0xff]
      %v2234 = vld [vmem:[%s5 + $0x70] sm:$0xff]
      %v2235 = vld [vmem:[%s5 + $0x78] sm:$0xff]
      %vm2238 = vcmask 1041409
      %v2239 = vsel %vm2238, %v2177, %v2164
      %2241 = vmatprep.subr.mxu0 0.0
      %2242 = vmatpush1.msra.mxu0 %v2220
      %2243 = vmatprep.subr.mxu0 0.0
      %2244 = vmatpush1.msra.mxu0 %v2221
      %2245 = vmatprep.subr.mxu0 0.0
      %2246 = vmatpush1.msra.mxu0 %v2222
      %2247 = vmatprep.subr.mxu0 0.0
      %2248 = vmatpush1.msra.mxu0 %v2223
      %2249 = vmatprep.subr.mxu0 0.0
      %2250 = vmatpush1.msra.mxu0 %v2224
      %2251 = vmatprep.subr.mxu0 0.0
      %2252 = vmatpush1.msra.mxu0 %v2225
      %2253 = vmatprep.subr.mxu0 0.0
      %2254 = vmatpush1.msra.mxu0 %v2226
      %2255 = vmatprep.subr.mxu0 0.0
      %2256 = vmatpush1.msra.mxu0 %v2227
      %2257 = vmatprep.subr.mxu0 0.0
      %2258 = vmatpush1.msra.mxu0 %v2228
      %2259 = vmatprep.subr.mxu0 0.0
      %2260 = vmatpush1.msra.mxu0 %v2229
      %2261 = vmatprep.subr.mxu0 0.0
      %2262 = vmatpush1.msra.mxu0 %v2230
      %2263 = vmatprep.subr.mxu0 0.0
      %2264 = vmatpush1.msra.mxu0 %v2231
      %2265 = vmatprep.subr.mxu0 0.0
      %2266 = vmatpush1.msra.mxu0 %v2232
      %2267 = vmatprep.subr.mxu0 0.0
      %2268 = vmatpush1.msra.mxu0 %v2233
      %2269 = vmatprep.subr.mxu0 0.0
      %2270 = vmatpush1.msra.mxu0 %v2234
      %2271 = vmatprep.subr.mxu0 0.0
      %2272 = vmatpush1.msra.mxu0 %v2235
      %2273 = vmatprep.subr.mxu0 0.0
      %2274 = vmatpush1.msra.mxu0 0.0
      %2275 = vmatprep.subr.mxu0 0.0
      %2276 = vmatpush1.msra.mxu0 0.0
      %2277 = vmatprep.subr.mxu0 0.0
      %2278 = vmatpush1.msra.mxu0 0.0
      %2279 = vmatprep.subr.mxu0 0.0
      %2280 = vmatpush1.msra.mxu0 0.0
      %2281 = vmatprep.subr.mxu0 0.0
      %2282 = vmatpush1.msra.mxu0 0.0
      %2283 = vmatprep.subr.mxu0 0.0
      %2284 = vmatpush1.msra.mxu0 0.0
      %2285 = vmatprep.subr.mxu0 0.0
      %2286 = vmatpush1.msra.mxu0 0.0
      %2287 = vmatprep.subr.mxu0 0.0
      %2288 = vmatpush1.msra.mxu0 0.0
      %2289 = vmatprep.subr.mxu0 0.0
      %2290 = vmatpush1.msra.mxu0 0.0
      %2291 = vmatprep.subr.mxu0 0.0
      %2292 = vmatpush1.msra.mxu0 0.0
      %2293 = vmatprep.subr.mxu0 0.0
      %2294 = vmatpush1.msra.mxu0 0.0
      %2295 = vmatprep.subr.mxu0 0.0
      %2296 = vmatpush1.msra.mxu0 0.0
      %2297 = vmatprep.subr.mxu0 0.0
      %2298 = vmatpush1.msra.mxu0 0.0
      %2299 = vmatprep.subr.mxu0 0.0
      %2300 = vmatpush1.msra.mxu0 0.0
      %2301 = vmatprep.subr.mxu0 0.0
      %2302 = vmatpush1.msra.mxu0 0.0
      %2303 = vmatprep.subr.mxu0 0.0
      %2304 = vmatpush1.msra.mxu0 0.0
      %2305 = vmatprep.mubr.f32.mxu0 0.0
      %2306 = vmatmul.mubr.f32.gmra.mrb[0].mxu0 %v2239
      %v2307 = vpop.f32.mrb[0].mxu0
      %v2308 = vadd.f32 0.0, %v2307
      %v2309 = vpop.f32.mrb[0].mxu0
      %2310 = vdwg.mxu0
      %v2313 = vsel %vm2238, %v2219, %v2206
      %2315 = vmatprep.subr.mxu0 0.0
      %2316 = vmatpush1.msra.mxu0 %v2220
      %2317 = vmatprep.subr.mxu0 0.0
      %2318 = vmatpush1.msra.mxu0 %v2221
      %2319 = vmatprep.subr.mxu0 0.0
      %2320 = vmatpush1.msra.mxu0 %v2222
      %2321 = vmatprep.subr.mxu0 0.0
      %2322 = vmatpush1.msra.mxu0 %v2223
      %2323 = vmatprep.subr.mxu0 0.0
      %2324 = vmatpush1.msra.mxu0 %v2224
      %2325 = vmatprep.subr.mxu0 0.0
      %2326 = vmatpush1.msra.mxu0 %v2225
      %2327 = vmatprep.subr.mxu0 0.0
      %2328 = vmatpush1.msra.mxu0 %v2226
      %2329 = vmatprep.subr.mxu0 0.0
      %2330 = vmatpush1.msra.mxu0 %v2227
      %2331 = vmatprep.subr.mxu0 0.0
      %2332 = vmatpush1.msra.mxu0 %v2228
      %2333 = vmatprep.subr.mxu0 0.0
      %2334 = vmatpush1.msra.mxu0 %v2229
      %2335 = vmatprep.subr.mxu0 0.0
      %2336 = vmatpush1.msra.mxu0 %v2230
      %2337 = vmatprep.subr.mxu0 0.0
      %2338 = vmatpush1.msra.mxu0 %v2231
      %2339 = vmatprep.subr.mxu0 0.0
      %2340 = vmatpush1.msra.mxu0 %v2232
      %2341 = vmatprep.subr.mxu0 0.0
      %2342 = vmatpush1.msra.mxu0 %v2233
      %2343 = vmatprep.subr.mxu0 0.0
      %2344 = vmatpush1.msra.mxu0 %v2234
      %2345 = vmatprep.subr.mxu0 0.0
      %2346 = vmatpush1.msra.mxu0 %v2235
      %2347 = vmatprep.subr.mxu0 0.0
      %2348 = vmatpush1.msra.mxu0 0.0
      %2349 = vmatprep.subr.mxu0 0.0
      %2350 = vmatpush1.msra.mxu0 0.0
      %2351 = vmatprep.subr.mxu0 0.0
      %2352 = vmatpush1.msra.mxu0 0.0
      %2353 = vmatprep.subr.mxu0 0.0
      %2354 = vmatpush1.msra.mxu0 0.0
      %2355 = vmatprep.subr.mxu0 0.0
      %2356 = vmatpush1.msra.mxu0 0.0
      %2357 = vmatprep.subr.mxu0 0.0
      %2358 = vmatpush1.msra.mxu0 0.0
      %2359 = vmatprep.subr.mxu0 0.0
      %2360 = vmatpush1.msra.mxu0 0.0
      %2361 = vmatprep.subr.mxu0 0.0
      %2362 = vmatpush1.msra.mxu0 0.0
      %2363 = vmatprep.subr.mxu0 0.0
      %2364 = vmatpush1.msra.mxu0 0.0
      %2365 = vmatprep.subr.mxu0 0.0
      %2366 = vmatpush1.msra.mxu0 0.0
      %2367 = vmatprep.subr.mxu0 0.0
      %2368 = vmatpush1.msra.mxu0 0.0
      %2369 = vmatprep.subr.mxu0 0.0
      %2370 = vmatpush1.msra.mxu0 0.0
      %2371 = vmatprep.subr.mxu0 0.0
      %2372 = vmatpush1.msra.mxu0 0.0
      %2373 = vmatprep.subr.mxu0 0.0
      %2374 = vmatpush1.msra.mxu0 0.0
      %2375 = vmatprep.subr.mxu0 0.0
      %2376 = vmatpush1.msra.mxu0 0.0
      %2377 = vmatprep.subr.mxu0 0.0
      %2378 = vmatpush1.msra.mxu0 0.0
      %2379 = vmatprep.mubr.f32.mxu0 0.0
      %2380 = vmatmul.mubr.f32.gmra.mrb[0].mxu0 %v2313
      %v2381 = vpop.f32.mrb[0].mxu0
      %v2382 = vadd.f32 0.0, %v2381
      %v2383 = vpop.f32.mrb[0].mxu0
      %2384 = vdwg.mxu0
      %v2385 = vmul.f32 %v2308, %v2308
      %v2386 = vsub.f32 %v2382, %v2385
      %v2387 = vmax.f32 %v2386, 0.0
      %v2388 = vadd.f32 %v2387, 1e-05
      %v2389 = vrsqrt.pop %v2388
      %v2390 = vld [vmem:[%s3] sm:$0x1]
      %v2392 = vlaneseq
      %v2393 = vshrl.u32 %v2392, 7
      %v2394 = vsub.s32 0, %v2393
      %v2395 = vrot.slane %v2390, %v2394
      %v2397 = vmul.f32 %v2389, %v2395
      %v2398 = vld [vmem:[%s4] sm:$0x1]
      %v2399 = vmul.f32 %v2308, %v2397
      %v2401 = vlaneseq
      %v2402 = vshrl.u32 %v2401, 7
      %v2403 = vsub.s32 0, %v2402
      %v2404 = vrot.slane %v2398, %v2403
      %v2406 = vsub.f32 %v2404, %v2399
      %v2409 = vunpack.c.l.s4 1966171168
      %v2410 = vunpack.c.0.s8 %v2409
      %v2411 = vlaneseq
      %v2412 = vshrl.u32 %v2411, 7
      %v2413 = vsub.s32 %v2410, %v2412
      %v2414 = vrot.slane %v2397, %v2413
      %v2415 = vcombine.high %v2414, %v2414
      %v2417 = vunpack.c.l.s4 1966171168
      %v2418 = vunpack.c.0.s8 %v2417
      %v2419 = vlaneseq
      %v2420 = vshrl.u32 %v2419, 7
      %v2421 = vsub.s32 %v2418, %v2420
      %v2422 = vrot.slane %v2414, %v2421
      %v2424 = vunpack.c.l.s4 1966171168
      %v2425 = vunpack.c.0.s8 %v2424
      %v2426 = vlaneseq
      %v2427 = vshrl.u32 %v2426, 7
      %v2428 = vsub.s32 %v2425, %v2427
      %v2429 = vrot.slane %v2415, %v2428
      %v2430 = vlaneseq
      %v2431 = vshrl.u32 %v2430, 7
      %v2432 = vsub.s32 0, %v2431
      %v2433 = vrot.slane %v2422, %v2432
      %v2434 = vlaneseq
      %v2435 = vshrl.u32 %v2434, 7
      %v2436 = vsub.s32 0, %v2435
      %v2437 = vrot.slane %v2429, %v2436
      %v2440 = vmul.f32 %v2136, %v2433
      %v2441 = vmul.f32 %v2137, %v2433
      %v2442 = vmul.f32 %v2138, %v2433
      %v2443 = vmul.f32 %v2139, %v2433
      %v2444 = vmul.f32 %v2140, %v2433
      %v2445 = vmul.f32 %v2141, %v2433
      %v2446 = vmul.f32 %v2142, %v2433
      %v2447 = vmul.f32 %v2143, %v2433
      %v2448 = vmul.f32 %v2144, %v2437
      %v2449 = vmul.f32 %v2145, %v2437
      %v2450 = vmul.f32 %v2146, %v2437
      %v2451 = vmul.f32 %v2147, %v2437
      %v2452 = vmul.f32 %v2148, %v2437
      %v2453 = vmul.f32 %v2149, %v2437
      %v2454 = vmul.f32 %v2150, %v2437
      %v2455 = vmul.f32 %v2151, %v2437
      %v2458 = vunpack.c.l.s4 1966171168
      %v2459 = vunpack.c.0.s8 %v2458
      %v2460 = vlaneseq
      %v2461 = vshrl.u32 %v2460, 7
      %v2462 = vsub.s32 %v2459, %v2461
      %v2463 = vrot.slane %v2406, %v2462
      %v2464 = vcombine.high %v2463, %v2463
      %v2466 = vunpack.c.l.s4 1966171168
      %v2467 = vunpack.c.0.s8 %v2466
      %v2468 = vlaneseq
      %v2469 = vshrl.u32 %v2468, 7
      %v2470 = vsub.s32 %v2467, %v2469
      %v2471 = vrot.slane %v2463, %v2470
      %v2473 = vunpack.c.l.s4 1966171168
      %v2474 = vunpack.c.0.s8 %v2473
      %v2475 = vlaneseq
      %v2476 = vshrl.u32 %v2475, 7
      %v2477 = vsub.s32 %v2474, %v2476
      %v2478 = vrot.slane %v2464, %v2477
      %v2479 = vlaneseq
      %v2480 = vshrl.u32 %v2479, 7
      %v2481 = vsub.s32 0, %v2480
      %v2482 = vrot.slane %v2471, %v2481
      %v2483 = vlaneseq
      %v2484 = vshrl.u32 %v2483, 7
      %v2485 = vsub.s32 0, %v2484
      %v2486 = vrot.slane %v2478, %v2485
      %v2489 = vadd.f32 %v2440, %v2482
      %v2490 = vadd.f32 %v2441, %v2482
      %v2491 = vadd.f32 %v2442, %v2482
      %v2492 = vadd.f32 %v2443, %v2482
      %v2493 = vadd.f32 %v2444, %v2482
      %v2494 = vadd.f32 %v2445, %v2482
      %v2495 = vadd.f32 %v2446, %v2482
      %v2496 = vadd.f32 %v2447, %v2482
      %v2497 = vadd.f32 %v2448, %v2486
      %v2498 = vadd.f32 %v2449, %v2486
      %v2499 = vadd.f32 %v2450, %v2486
      %v2500 = vadd.f32 %v2451, %v2486
      %v2501 = vadd.f32 %v2452, %v2486
      %v2502 = vadd.f32 %v2453, %v2486
      %v2503 = vadd.f32 %v2454, %v2486
      %v2504 = vadd.f32 %v2455, %v2486
      %v2505 = vmax.f32 %v2489, 0.0
      %v2506 = vmax.f32 %v2490, 0.0
      %v2507 = vmax.f32 %v2491, 0.0
      %v2508 = vmax.f32 %v2492, 0.0
      %v2509 = vmax.f32 %v2493, 0.0
      %v2510 = vmax.f32 %v2494, 0.0
      %v2511 = vmax.f32 %v2495, 0.0
      %v2512 = vmax.f32 %v2496, 0.0
      %v2513 = vmax.f32 %v2497, 0.0
      %v2514 = vmax.f32 %v2498, 0.0
      %v2515 = vmax.f32 %v2499, 0.0
      %v2516 = vmax.f32 %v2500, 0.0
      %v2517 = vmax.f32 %v2501, 0.0
      %v2518 = vmax.f32 %v2502, 0.0
      %v2519 = vmax.f32 %v2503, 0.0
      %v2520 = vmax.f32 %v2504, 0.0
      %v2535 = vrot.slane %v2505, 7
      %v2536 = vrot.slane %v2506, 7
      %v2537 = vrot.slane %v2507, 7
      %v2538 = vrot.slane %v2508, 7
      %v2539 = vrot.slane %v2509, 7
      %v2540 = vrot.slane %v2510, 7
      %v2541 = vrot.slane %v2511, 7
      %v2542 = vrot.slane %v2513, 7
      %v2543 = vrot.slane %v2514, 7
      %v2544 = vrot.slane %v2515, 7
      %v2545 = vrot.slane %v2516, 7
      %v2546 = vrot.slane %v2517, 7
      %v2547 = vrot.slane %v2518, 7
      %v2548 = vrot.slane %v2519, 7
      %v2563 = vsel %vm430, 0.0, %v2535
      %v2564 = vsel %vm430, 0.0, %v2536
      %v2565 = vsel %vm430, 0.0, %v2537
      %v2566 = vsel %vm430, 0.0, %v2538
      %v2567 = vsel %vm430, 0.0, %v2539
      %v2568 = vsel %vm430, 0.0, %v2540
      %v2569 = vsel %vm430, 0.0, %v2541
      %v2570 = vsel %vm430, 0.0, %v2542
      %v2571 = vsel %vm430, 0.0, %v2543
      %v2572 = vsel %vm430, 0.0, %v2544
      %v2573 = vsel %vm430, 0.0, %v2545
      %v2574 = vsel %vm430, 0.0, %v2546
      %v2575 = vsel %vm430, 0.0, %v2547
      %v2576 = vsel %vm430, 0.0, %v2548
      %v2577 = vpack.c.bf16 %v2563, %v431
      %v2578 = vpack.c.bf16 %v2565, %v2564
      %v2579 = vpack.c.bf16 %v2567, %v2566
      %v2580 = vpack.c.bf16 %v2569, %v2568
      %v2581 = vpack.c.bf16 %v2570, %v431
      %v2582 = vpack.c.bf16 %v2572, %v2571
      %v2583 = vpack.c.bf16 %v2574, %v2573
      %v2584 = vpack.c.bf16 %v2576, %v2575
      %s2585 = scalar_lea.vmem %s1, 576
      %v2586 = vld [vmem:[%s2585] sm:$0xf]
      %v2587 = vld [vmem:[%s2585 + $0x4] sm:$0xf]
      %v2588 = vld [vmem:[%s2585 + $0x8] sm:$0xf]
      %v2589 = vld [vmem:[%s2585 + $0xc] sm:$0xf]
      %v2590 = vld [vmem:[%s2585 + $0x10] sm:$0xf]
      %v2591 = vld [vmem:[%s2585 + $0x14] sm:$0xf]
      %v2592 = vld [vmem:[%s2585 + $0x18] sm:$0xf]
      %v2593 = vld [vmem:[%s2585 + $0x1c] sm:$0xf]
      %v2594 = vld [vmem:[%s2585 + $0x20] sm:$0xf]
      %v2595 = vld [vmem:[%s2585 + $0x24] sm:$0xf]
      %v2596 = vld [vmem:[%s2585 + $0x28] sm:$0xf]
      %v2597 = vld [vmem:[%s2585 + $0x2c] sm:$0xf]
      %v2598 = vld [vmem:[%s2585 + $0x30] sm:$0xf]
      %v2599 = vld [vmem:[%s2585 + $0x34] sm:$0xf]
      %v2600 = vld [vmem:[%s2585 + $0x38] sm:$0xf]
      %v2601 = vld [vmem:[%s2585 + $0x3c] sm:$0xf]
      %v2602 = vpack.c.bf16 %v2505, 0.0
      %v2603 = vpack.c.bf16 %v2507, %v2506
      %v2604 = vpack.c.bf16 %v2509, %v2508
      %v2605 = vpack.c.bf16 %v2511, %v2510
      %v2606 = vpack.c.bf16 %v2513, 0.0
      %v2607 = vpack.c.bf16 %v2515, %v2514
      %v2608 = vpack.c.bf16 %v2517, %v2516
      %v2609 = vpack.c.bf16 %v2519, %v2518
      %s2610 = scalar_lea.vmem %s1, 640
      %v2611 = vld [vmem:[%s2610] sm:$0xf]
      %v2612 = vld [vmem:[%s2610 + $0x4] sm:$0xf]
      %v2613 = vld [vmem:[%s2610 + $0x8] sm:$0xf]
      %v2614 = vld [vmem:[%s2610 + $0xc] sm:$0xf]
      %v2615 = vld [vmem:[%s2610 + $0x10] sm:$0xf]
      %v2616 = vld [vmem:[%s2610 + $0x14] sm:$0xf]
      %v2617 = vld [vmem:[%s2610 + $0x18] sm:$0xf]
      %v2618 = vld [vmem:[%s2610 + $0x1c] sm:$0xf]
      %v2619 = vld [vmem:[%s2610 + $0x20] sm:$0xf]
      %v2620 = vld [vmem:[%s2610 + $0x24] sm:$0xf]
      %v2621 = vld [vmem:[%s2610 + $0x28] sm:$0xf]
      %v2622 = vld [vmem:[%s2610 + $0x2c] sm:$0xf]
      %v2623 = vld [vmem:[%s2610 + $0x30] sm:$0xf]
      %v2624 = vld [vmem:[%s2610 + $0x34] sm:$0xf]
      %v2625 = vld [vmem:[%s2610 + $0x38] sm:$0xf]
      %v2626 = vld [vmem:[%s2610 + $0x3c] sm:$0xf]
      %v2643 = vunpack.c.l.b16 %v2611
      %v2644 = vunpack.c.l.b16 %v2612
      %v2645 = vunpack.c.l.b16 %v2613
      %v2646 = vunpack.c.l.b16 %v2614
      %v2647 = vunpack.c.l.b16 %v2615
      %v2648 = vunpack.c.l.b16 %v2616
      %v2649 = vunpack.c.l.b16 %v2617
      %v2650 = vunpack.c.l.b16 %v2618
      %v2651 = vunpack.c.l.b16 %v2619
      %v2652 = vunpack.c.l.b16 %v2620
      %v2653 = vunpack.c.l.b16 %v2621
      %v2654 = vunpack.c.l.b16 %v2622
      %v2655 = vunpack.c.l.b16 %v2623
      %v2656 = vunpack.c.l.b16 %v2624
      %v2657 = vunpack.c.l.b16 %v2625
      %v2658 = vunpack.c.l.b16 %v2626
      %v2659 = vpack.c.b16 %v2644, %v2643
      %v2660 = vpack.c.b16 %v2646, %v2645
      %v2661 = vpack.c.b16 %v2648, %v2647
      %v2662 = vpack.c.b16 %v2650, %v2649
      %v2663 = vpack.c.b16 %v2652, %v2651
      %v2664 = vpack.c.b16 %v2654, %v2653
      %v2665 = vpack.c.b16 %v2656, %v2655
      %v2666 = vpack.c.b16 %v2658, %v2657
      %2675 = vmatprep.subr.bf16.mxu0 0
      %2676 = vmatpush1.bf16.msra.mxu0 %v2659
      %2677 = vmatprep.subr.bf16.mxu0 0
      %2678 = vmatpush1.bf16.msra.mxu0 %v2660
      %2679 = vmatprep.subr.bf16.mxu0 0
      %2680 = vmatpush1.bf16.msra.mxu0 %v2661
      %2681 = vmatprep.subr.bf16.mxu0 0
      %2682 = vmatpush1.bf16.msra.mxu0 %v2662
      %2683 = vmatprep.subr.bf16.mxu0 0
      %2684 = vmatpush1.bf16.msra.mxu0 %v2663
      %2685 = vmatprep.subr.bf16.mxu0 0
      %2686 = vmatpush1.bf16.msra.mxu0 %v2664
      %2687 = vmatprep.subr.bf16.mxu0 0
      %2688 = vmatpush1.bf16.msra.mxu0 %v2665
      %2689 = vmatprep.subr.bf16.mxu0 0
      %2690 = vmatpush1.bf16.msra.mxu0 %v2666
      %2691 = vmatprep.subr.bf16.mxu0 0
      %2692 = vmatpush1.bf16.msra.mxu0 0
      %2693 = vmatprep.subr.bf16.mxu0 0
      %2694 = vmatpush1.bf16.msra.mxu0 0
      %2695 = vmatprep.subr.bf16.mxu0 0
      %2696 = vmatpush1.bf16.msra.mxu0 0
      %2697 = vmatprep.subr.bf16.mxu0 0
      %2698 = vmatpush1.bf16.msra.mxu0 0
      %2699 = vmatprep.subr.bf16.mxu0 0
      %2700 = vmatpush1.bf16.msra.mxu0 0
      %2701 = vmatprep.subr.bf16.mxu0 0
      %2702 = vmatpush1.bf16.msra.mxu0 0
      %2703 = vmatprep.subr.bf16.mxu0 0
      %2704 = vmatpush1.bf16.msra.mxu0 0
      %2705 = vmatprep.subr.bf16.mxu0 0
      %2706 = vmatpush1.bf16.msra.mxu0 0
      %2707 = vmatprep.mubr.bf16.mxu0 0
      %2708 = vmatmul.mubr.bf16.gmra.mrb[0].mxu0 %v2602
      %v2709 = vpop.f32.mrb[0].mxu0
      %v2710 = vadd.f32 0.0, %v2709
      %v2711 = vpop.f32.mrb[0].mxu0
      %v2712 = vpop.f32.mrb[0].mxu0
      %v2713 = vadd.f32 0.0, %v2712
      %v2714 = vpop.f32.mrb[0].mxu0
      %2715 = vmatprep.mubr.bf16.mxu0 0
      %2716 = vmatmul.mubr.bf16.gmra.mrb[0].mxu0 %v2603
      %v2717 = vpop.f32.mrb[0].mxu0
      %v2718 = vadd.f32 0.0, %v2717
      %v2719 = vpop.f32.mrb[0].mxu0
      %v2720 = vpop.f32.mrb[0].mxu0
      %v2721 = vadd.f32 0.0, %v2720
      %v2722 = vpop.f32.mrb[0].mxu0
      %2723 = vmatprep.mubr.bf16.mxu0 0
      %2724 = vmatmul.mubr.bf16.gmra.mrb[0].mxu0 %v2604
      %v2725 = vpop.f32.mrb[0].mxu0
      %v2726 = vadd.f32 0.0, %v2725
      %v2727 = vpop.f32.mrb[0].mxu0
      %v2728 = vpop.f32.mrb[0].mxu0
      %v2729 = vadd.f32 0.0, %v2728
      %v2730 = vpop.f32.mrb[0].mxu0
      %2731 = vmatprep.mubr.bf16.mxu0 0
      %2732 = vmatmul.mubr.bf16.gmra.mrb[0].mxu0 %v2605
      %v2733 = vpop.f32.mrb[0].mxu0
      %v2734 = vadd.f32 0.0, %v2733
      %v2735 = vpop.f32.mrb[0].mxu0
      %v2736 = vpop.f32.mrb[0].mxu0
      %v2737 = vadd.f32 0.0, %v2736
      %v2738 = vpop.f32.mrb[0].mxu0
      %2739 = vmatprep.mubr.bf16.mxu0 0
      %2740 = vmatmul.mubr.bf16.gmra.mrb[0].mxu0 %v2606
      %v2741 = vpop.f32.mrb[0].mxu0
      %v2742 = vadd.f32 0.0, %v2741
      %v2743 = vpop.f32.mrb[0].mxu0
      %v2744 = vpop.f32.mrb[0].mxu0
      %v2745 = vadd.f32 0.0, %v2744
      %v2746 = vpop.f32.mrb[0].mxu0
      %2747 = vmatprep.mubr.bf16.mxu0 0
      %2748 = vmatmul.mubr.bf16.gmra.mrb[0].mxu0 %v2607
      %v2749 = vpop.f32.mrb[0].mxu0
      %v2750 = vadd.f32 0.0, %v2749
      %v2751 = vpop.f32.mrb[0].mxu0
      %v2752 = vpop.f32.mrb[0].mxu0
      %v2753 = vadd.f32 0.0, %v2752
      %v2754 = vpop.f32.mrb[0].mxu0
      %2755 = vmatprep.mubr.bf16.mxu0 0
      %2756 = vmatmul.mubr.bf16.gmra.mrb[0].mxu0 %v2608
      %v2757 = vpop.f32.mrb[0].mxu0
      %v2758 = vadd.f32 0.0, %v2757
      %v2759 = vpop.f32.mrb[0].mxu0
      %v2760 = vpop.f32.mrb[0].mxu0
      %v2761 = vadd.f32 0.0, %v2760
      %v2762 = vpop.f32.mrb[0].mxu0
      %2763 = vmatprep.mubr.bf16.mxu0 0
      %2764 = vmatmul.mubr.bf16.gmra.mrb[0].mxu0 %v2609
      %v2765 = vpop.f32.mrb[0].mxu0
      %v2766 = vadd.f32 0.0, %v2765
      %v2767 = vpop.f32.mrb[0].mxu0
      %v2768 = vpop.f32.mrb[0].mxu0
      %v2769 = vadd.f32 0.0, %v2768
      %v2770 = vpop.f32.mrb[0].mxu0
      %2771 = vdwg.mxu0
      %v2788 = vunpack.c.l.b16 %v2586
      %v2789 = vunpack.c.l.b16 %v2587
      %v2790 = vunpack.c.l.b16 %v2588
      %v2791 = vunpack.c.l.b16 %v2589
      %v2792 = vunpack.c.l.b16 %v2590
      %v2793 = vunpack.c.l.b16 %v2591
      %v2794 = vunpack.c.l.b16 %v2592
      %v2795 = vunpack.c.l.b16 %v2593
      %v2796 = vunpack.c.l.b16 %v2594
      %v2797 = vunpack.c.l.b16 %v2595
      %v2798 = vunpack.c.l.b16 %v2596
      %v2799 = vunpack.c.l.b16 %v2597
      %v2800 = vunpack.c.l.b16 %v2598
      %v2801 = vunpack.c.l.b16 %v2599
      %v2802 = vunpack.c.l.b16 %v2600
      %v2803 = vunpack.c.l.b16 %v2601
      %v2804 = vpack.c.b16 %v2789, %v2788
      %v2805 = vpack.c.b16 %v2791, %v2790
      %v2806 = vpack.c.b16 %v2793, %v2792
      %v2807 = vpack.c.b16 %v2795, %v2794
      %v2808 = vpack.c.b16 %v2797, %v2796
      %v2809 = vpack.c.b16 %v2799, %v2798
      %v2810 = vpack.c.b16 %v2801, %v2800
      %v2811 = vpack.c.b16 %v2803, %v2802
      %2820 = vmatprep.subr.bf16.mxu0 0
      %2821 = vmatpush1.bf16.msra.mxu0 %v2804
      %2822 = vmatprep.subr.bf16.mxu0 0
      %2823 = vmatpush1.bf16.msra.mxu0 %v2805
      %2824 = vmatprep.subr.bf16.mxu0 0
      %2825 = vmatpush1.bf16.msra.mxu0 %v2806
      %2826 = vmatprep.subr.bf16.mxu0 0
      %2827 = vmatpush1.bf16.msra.mxu0 %v2807
      %2828 = vmatprep.subr.bf16.mxu0 0
      %2829 = vmatpush1.bf16.msra.mxu0 %v2808
      %2830 = vmatprep.subr.bf16.mxu0 0
      %2831 = vmatpush1.bf16.msra.mxu0 %v2809
      %2832 = vmatprep.subr.bf16.mxu0 0
      %2833 = vmatpush1.bf16.msra.mxu0 %v2810
      %2834 = vmatprep.subr.bf16.mxu0 0
      %2835 = vmatpush1.bf16.msra.mxu0 %v2811
      %2836 = vmatprep.subr.bf16.mxu0 0
      %2837 = vmatpush1.bf16.msra.mxu0 0
      %2838 = vmatprep.subr.bf16.mxu0 0
      %2839 = vmatpush1.bf16.msra.mxu0 0
      %2840 = vmatprep.subr.bf16.mxu0 0
      %2841 = vmatpush1.bf16.msra.mxu0 0
      %2842 = vmatprep.subr.bf16.mxu0 0
      %2843 = vmatpush1.bf16.msra.mxu0 0
      %2844 = vmatprep.subr.bf16.mxu0 0
      %2845 = vmatpush1.bf16.msra.mxu0 0
      %2846 = vmatprep.subr.bf16.mxu0 0
      %2847 = vmatpush1.bf16.msra.mxu0 0
      %2848 = vmatprep.subr.bf16.mxu0 0
      %2849 = vmatpush1.bf16.msra.mxu0 0
      %2850 = vmatprep.subr.bf16.mxu0 0
      %2851 = vmatpush1.bf16.msra.mxu0 0
      %2852 = vmatprep.mubr.bf16.mxu0 0
      %2853 = vmatmul.mubr.bf16.gmra.mrb[0].mxu0 %v2577
      %v2854 = vpop.f32.mrb[0].mxu0
      %v2855 = vadd.f32 %v2710, %v2854
      %v2856 = vpop.f32.mrb[0].mxu0
      %v2857 = vpop.f32.mrb[0].mxu0
      %v2858 = vadd.f32 %v2713, %v2857
      %v2859 = vpop.f32.mrb[0].mxu0
      %2860 = vmatprep.mubr.bf16.mxu0 0
      %2861 = vmatmul.mubr.bf16.gmra.mrb[0].mxu0 %v2578
      %v2862 = vpop.f32.mrb[0].mxu0
      %v2863 = vadd.f32 %v2718, %v2862
      %v2864 = vpop.f32.mrb[0].mxu0
      %v2865 = vpop.f32.mrb[0].mxu0
      %v2866 = vadd.f32 %v2721, %v2865
      %v2867 = vpop.f32.mrb[0].mxu0
      %2868 = vmatprep.mubr.bf16.mxu0 0
      %2869 = vmatmul.mubr.bf16.gmra.mrb[0].mxu0 %v2579
      %v2870 = vpop.f32.mrb[0].mxu0
      %v2871 = vadd.f32 %v2726, %v2870
      %v2872 = vpop.f32.mrb[0].mxu0
      %v2873 = vpop.f32.mrb[0].mxu0
      %v2874 = vadd.f32 %v2729, %v2873
      %v2875 = vpop.f32.mrb[0].mxu0
      %2876 = vmatprep.mubr.bf16.mxu0 0
      %2877 = vmatmul.mubr.bf16.gmra.mrb[0].mxu0 %v2580
      %v2878 = vpop.f32.mrb[0].mxu0
      %v2879 = vadd.f32 %v2734, %v2878
      %v2880 = vpop.f32.mrb[0].mxu0
      %v2881 = vpop.f32.mrb[0].mxu0
      %v2882 = vadd.f32 %v2737, %v2881
      %v2883 = vpop.f32.mrb[0].mxu0
      %2884 = vmatprep.mubr.bf16.mxu0 0
      %2885 = vmatmul.mubr.bf16.gmra.mrb[0].mxu0 %v2581
      %v2886 = vpop.f32.mrb[0].mxu0
      %v2887 = vadd.f32 %v2742, %v2886
      %v2888 = vpop.f32.mrb[0].mxu0
      %v2889 = vpop.f32.mrb[0].mxu0
      %v2890 = vadd.f32 %v2745, %v2889
      %v2891 = vpop.f32.mrb[0].mxu0
      %2892 = vmatprep.mubr.bf16.mxu0 0
      %2893 = vmatmul.mubr.bf16.gmra.mrb[0].mxu0 %v2582
      %v2894 = vpop.f32.mrb[0].mxu0
      %v2895 = vadd.f32 %v2750, %v2894
      %v2896 = vpop.f32.mrb[0].mxu0
      %v2897 = vpop.f32.mrb[0].mxu0
      %v2898 = vadd.f32 %v2753, %v2897
      %v2899 = vpop.f32.mrb[0].mxu0
      %2900 = vmatprep.mubr.bf16.mxu0 0
      %2901 = vmatmul.mubr.bf16.gmra.mrb[0].mxu0 %v2583
      %v2902 = vpop.f32.mrb[0].mxu0
      %v2903 = vadd.f32 %v2758, %v2902
      %v2904 = vpop.f32.mrb[0].mxu0
      %v2905 = vpop.f32.mrb[0].mxu0
      %v2906 = vadd.f32 %v2761, %v2905
      %v2907 = vpop.f32.mrb[0].mxu0
      %2908 = vmatprep.mubr.bf16.mxu0 0
      %2909 = vmatmul.mubr.bf16.gmra.mrb[0].mxu0 %v2584
      %v2910 = vpop.f32.mrb[0].mxu0
      %v2911 = vadd.f32 %v2766, %v2910
      %v2912 = vpop.f32.mrb[0].mxu0
      %v2913 = vpop.f32.mrb[0].mxu0
      %v2914 = vadd.f32 %v2769, %v2913
      %v2915 = vpop.f32.mrb[0].mxu0
      %2916 = vdwg.mxu0
      %v2917 = vrot.slane %v2505, 1
      %v2918 = vrot.slane %v2506, 1
      %v2919 = vrot.slane %v2507, 1
      %v2920 = vrot.slane %v2508, 1
      %v2921 = vrot.slane %v2509, 1
      %v2922 = vrot.slane %v2510, 1
      %v2923 = vrot.slane %v2511, 1
      %v2924 = vrot.slane %v2513, 1
      %v2925 = vrot.slane %v2514, 1
      %v2926 = vrot.slane %v2515, 1
      %v2927 = vrot.slane %v2516, 1
      %v2928 = vrot.slane %v2517, 1
      %v2929 = vrot.slane %v2518, 1
      %v2930 = vrot.slane %v2519, 1
      %v2945 = vsel %vm815, %v2917, 0.0
      %v2946 = vsel %vm815, %v2918, 0.0
      %v2947 = vsel %vm815, %v2919, 0.0
      %v2948 = vsel %vm815, %v2920, 0.0
      %v2949 = vsel %vm815, %v2921, 0.0
      %v2950 = vsel %vm815, %v2922, 0.0
      %v2951 = vsel %vm815, %v2923, 0.0
      %v2952 = vsel %vm815, %v2924, 0.0
      %v2953 = vsel %vm815, %v2925, 0.0
      %v2954 = vsel %vm815, %v2926, 0.0
      %v2955 = vsel %vm815, %v2927, 0.0
      %v2956 = vsel %vm815, %v2928, 0.0
      %v2957 = vsel %vm815, %v2929, 0.0
      %v2958 = vsel %vm815, %v2930, 0.0
      %v2959 = vpack.c.bf16 %v2945, %v816
      %v2960 = vpack.c.bf16 %v2947, %v2946
      %v2961 = vpack.c.bf16 %v2949, %v2948
      %v2962 = vpack.c.bf16 %v2951, %v2950
      %v2963 = vpack.c.bf16 %v2952, %v816
      %v2964 = vpack.c.bf16 %v2954, %v2953
      %v2965 = vpack.c.bf16 %v2956, %v2955
      %v2966 = vpack.c.bf16 %v2958, %v2957
      %s2967 = scalar_lea.vmem %s1, 704
      %v2968 = vld [vmem:[%s2967] sm:$0xf]
      %v2969 = vld [vmem:[%s2967 + $0x4] sm:$0xf]
      %v2970 = vld [vmem:[%s2967 + $0x8] sm:$0xf]
      %v2971 = vld [vmem:[%s2967 + $0xc] sm:$0xf]
      %v2972 = vld [vmem:[%s2967 + $0x10] sm:$0xf]
      %v2973 = vld [vmem:[%s2967 + $0x14] sm:$0xf]
      %v2974 = vld [vmem:[%s2967 + $0x18] sm:$0xf]
      %v2975 = vld [vmem:[%s2967 + $0x1c] sm:$0xf]
      %v2976 = vld [vmem:[%s2967 + $0x20] sm:$0xf]
      %v2977 = vld [vmem:[%s2967 + $0x24] sm:$0xf]
      %v2978 = vld [vmem:[%s2967 + $0x28] sm:$0xf]
      %v2979 = vld [vmem:[%s2967 + $0x2c] sm:$0xf]
      %v2980 = vld [vmem:[%s2967 + $0x30] sm:$0xf]
      %v2981 = vld [vmem:[%s2967 + $0x34] sm:$0xf]
      %v2982 = vld [vmem:[%s2967 + $0x38] sm:$0xf]
      %v2983 = vld [vmem:[%s2967 + $0x3c] sm:$0xf]
      %v3000 = vunpack.c.l.b16 %v2968
      %v3001 = vunpack.c.l.b16 %v2969
      %v3002 = vunpack.c.l.b16 %v2970
      %v3003 = vunpack.c.l.b16 %v2971
      %v3004 = vunpack.c.l.b16 %v2972
      %v3005 = vunpack.c.l.b16 %v2973
      %v3006 = vunpack.c.l.b16 %v2974
      %v3007 = vunpack.c.l.b16 %v2975
      %v3008 = vunpack.c.l.b16 %v2976
      %v3009 = vunpack.c.l.b16 %v2977
      %v3010 = vunpack.c.l.b16 %v2978
      %v3011 = vunpack.c.l.b16 %v2979
      %v3012 = vunpack.c.l.b16 %v2980
      %v3013 = vunpack.c.l.b16 %v2981
      %v3014 = vunpack.c.l.b16 %v2982
      %v3015 = vunpack.c.l.b16 %v2983
      %v3016 = vpack.c.b16 %v3001, %v3000
      %v3017 = vpack.c.b16 %v3003, %v3002
      %v3018 = vpack.c.b16 %v3005, %v3004
      %v3019 = vpack.c.b16 %v3007, %v3006
      %v3020 = vpack.c.b16 %v3009, %v3008
      %v3021 = vpack.c.b16 %v3011, %v3010
      %v3022 = vpack.c.b16 %v3013, %v3012
      %v3023 = vpack.c.b16 %v3015, %v3014
      %3032 = vmatprep.subr.bf16.mxu0 0
      %3033 = vmatpush1.bf16.msra.mxu0 %v3016
      %3034 = vmatprep.subr.bf16.mxu0 0
      %3035 = vmatpush1.bf16.msra.mxu0 %v3017
      %3036 = vmatprep.subr.bf16.mxu0 0
      %3037 = vmatpush1.bf16.msra.mxu0 %v3018
      %3038 = vmatprep.subr.bf16.mxu0 0
      %3039 = vmatpush1.bf16.msra.mxu0 %v3019
      %3040 = vmatprep.subr.bf16.mxu0 0
      %3041 = vmatpush1.bf16.msra.mxu0 %v3020
      %3042 = vmatprep.subr.bf16.mxu0 0
      %3043 = vmatpush1.bf16.msra.mxu0 %v3021
      %3044 = vmatprep.subr.bf16.mxu0 0
      %3045 = vmatpush1.bf16.msra.mxu0 %v3022
      %3046 = vmatprep.subr.bf16.mxu0 0
      %3047 = vmatpush1.bf16.msra.mxu0 %v3023
      %3048 = vmatprep.subr.bf16.mxu0 0
      %3049 = vmatpush1.bf16.msra.mxu0 0
      %3050 = vmatprep.subr.bf16.mxu0 0
      %3051 = vmatpush1.bf16.msra.mxu0 0
      %3052 = vmatprep.subr.bf16.mxu0 0
      %3053 = vmatpush1.bf16.msra.mxu0 0
      %3054 = vmatprep.subr.bf16.mxu0 0
      %3055 = vmatpush1.bf16.msra.mxu0 0
      %3056 = vmatprep.subr.bf16.mxu0 0
      %3057 = vmatpush1.bf16.msra.mxu0 0
      %3058 = vmatprep.subr.bf16.mxu0 0
      %3059 = vmatpush1.bf16.msra.mxu0 0
      %3060 = vmatprep.subr.bf16.mxu0 0
      %3061 = vmatpush1.bf16.msra.mxu0 0
      %3062 = vmatprep.subr.bf16.mxu0 0
      %3063 = vmatpush1.bf16.msra.mxu0 0
      %3064 = vmatprep.mubr.bf16.mxu0 0
      %3065 = vmatmul.mubr.bf16.gmra.mrb[0].mxu0 %v2959
      %v3066 = vpop.f32.mrb[0].mxu0
      %v3067 = vadd.f32 0.0, %v3066
      %v3068 = vpop.f32.mrb[0].mxu0
      %v3069 = vpop.f32.mrb[0].mxu0
      %v3070 = vadd.f32 0.0, %v3069
      %v3071 = vpop.f32.mrb[0].mxu0
      %3072 = vmatprep.mubr.bf16.mxu0 0
      %3073 = vmatmul.mubr.bf16.gmra.mrb[0].mxu0 %v2960
      %v3074 = vpop.f32.mrb[0].mxu0
      %v3075 = vadd.f32 0.0, %v3074
      %v3076 = vpop.f32.mrb[0].mxu0
      %v3077 = vpop.f32.mrb[0].mxu0
      %v3078 = vadd.f32 0.0, %v3077
      %v3079 = vpop.f32.mrb[0].mxu0
      %3080 = vmatprep.mubr.bf16.mxu0 0
      %3081 = vmatmul.mubr.bf16.gmra.mrb[0].mxu0 %v2961
      %v3082 = vpop.f32.mrb[0].mxu0
      %v3083 = vadd.f32 0.0, %v3082
      %v3084 = vpop.f32.mrb[0].mxu0
      %v3085 = vpop.f32.mrb[0].mxu0
      %v3086 = vadd.f32 0.0, %v3085
      %v3087 = vpop.f32.mrb[0].mxu0
      %3088 = vmatprep.mubr.bf16.mxu0 0
      %3089 = vmatmul.mubr.bf16.gmra.mrb[0].mxu0 %v2962
      %v3090 = vpop.f32.mrb[0].mxu0
      %v3091 = vadd.f32 0.0, %v3090
      %v3092 = vpop.f32.mrb[0].mxu0
      %v3093 = vpop.f32.mrb[0].mxu0
      %v3094 = vadd.f32 0.0, %v3093
      %v3095 = vpop.f32.mrb[0].mxu0
      %3096 = vmatprep.mubr.bf16.mxu0 0
      %3097 = vmatmul.mubr.bf16.gmra.mrb[0].mxu0 %v2963
      %v3098 = vpop.f32.mrb[0].mxu0
      %v3099 = vadd.f32 0.0, %v3098
      %v3100 = vpop.f32.mrb[0].mxu0
      %v3101 = vpop.f32.mrb[0].mxu0
      %v3102 = vadd.f32 0.0, %v3101
      %v3103 = vpop.f32.mrb[0].mxu0
      %3104 = vmatprep.mubr.bf16.mxu0 0
      %3105 = vmatmul.mubr.bf16.gmra.mrb[0].mxu0 %v2964
      %v3106 = vpop.f32.mrb[0].mxu0
      %v3107 = vadd.f32 0.0, %v3106
      %v3108 = vpop.f32.mrb[0].mxu0
      %v3109 = vpop.f32.mrb[0].mxu0
      %v3110 = vadd.f32 0.0, %v3109
      %v3111 = vpop.f32.mrb[0].mxu0
      %3112 = vmatprep.mubr.bf16.mxu0 0
      %3113 = vmatmul.mubr.bf16.gmra.mrb[0].mxu0 %v2965
      %v3114 = vpop.f32.mrb[0].mxu0
      %v3115 = vadd.f32 0.0, %v3114
      %v3116 = vpop.f32.mrb[0].mxu0
      %v3117 = vpop.f32.mrb[0].mxu0
      %v3118 = vadd.f32 0.0, %v3117
      %v3119 = vpop.f32.mrb[0].mxu0
      %3120 = vmatprep.mubr.bf16.mxu0 0
      %3121 = vmatmul.mubr.bf16.gmra.mrb[0].mxu0 %v2966
      %v3122 = vpop.f32.mrb[0].mxu0
      %v3123 = vadd.f32 0.0, %v3122
      %v3124 = vpop.f32.mrb[0].mxu0
      %v3125 = vpop.f32.mrb[0].mxu0
      %v3126 = vadd.f32 0.0, %v3125
      %v3127 = vpop.f32.mrb[0].mxu0
      %3128 = vdwg.mxu0
      %v3129 = vadd.f32 %v2855, %v3067
      %v3130 = vadd.f32 %v2858, %v3070
      %v3131 = vadd.f32 %v2863, %v3075
      %v3132 = vadd.f32 %v2866, %v3078
      %v3133 = vadd.f32 %v2871, %v3083
      %v3134 = vadd.f32 %v2874, %v3086
      %v3135 = vadd.f32 %v2879, %v3091
      %v3136 = vadd.f32 %v2882, %v3094
      %v3137 = vadd.f32 %v2887, %v3099
      %v3138 = vadd.f32 %v2890, %v3102
      %v3139 = vadd.f32 %v2895, %v3107
      %v3140 = vadd.f32 %v2898, %v3110
      %v3141 = vadd.f32 %v2903, %v3115
      %v3142 = vadd.f32 %v2906, %v3118
      %v3143 = vadd.f32 %v2911, %v3123
      %v3144 = vadd.f32 %v2914, %v3126
      %v3147 = vrot.slane %v2512, 7
      %v3148 = vrot.slane %v2520, 7
      %v3151 = vsel %vm430, 0.0, %v3147
      %v3152 = vsel %vm430, 0.0, %v3148
      %v3153 = vpack.c.bf16 %v2564, %v2563
      %v3154 = vpack.c.bf16 %v2566, %v2565
      %v3155 = vpack.c.bf16 %v2568, %v2567
      %v3156 = vpack.c.bf16 %v3151, %v2569
      %v3157 = vpack.c.bf16 %v2571, %v2570
      %v3158 = vpack.c.bf16 %v2573, %v2572
      %v3159 = vpack.c.bf16 %v2575, %v2574
      %v3160 = vpack.c.bf16 %v3152, %v2576
      %s3161 = scalar_lea.vmem %s1, 768
      %v3162 = vld [vmem:[%s3161] sm:$0xf]
      %v3163 = vld [vmem:[%s3161 + $0x4] sm:$0xf]
      %v3164 = vld [vmem:[%s3161 + $0x8] sm:$0xf]
      %v3165 = vld [vmem:[%s3161 + $0xc] sm:$0xf]
      %v3166 = vld [vmem:[%s3161 + $0x10] sm:$0xf]
      %v3167 = vld [vmem:[%s3161 + $0x14] sm:$0xf]
      %v3168 = vld [vmem:[%s3161 + $0x18] sm:$0xf]
      %v3169 = vld [vmem:[%s3161 + $0x1c] sm:$0xf]
      %v3170 = vld [vmem:[%s3161 + $0x20] sm:$0xf]
      %v3171 = vld [vmem:[%s3161 + $0x24] sm:$0xf]
      %v3172 = vld [vmem:[%s3161 + $0x28] sm:$0xf]
      %v3173 = vld [vmem:[%s3161 + $0x2c] sm:$0xf]
      %v3174 = vld [vmem:[%s3161 + $0x30] sm:$0xf]
      %v3175 = vld [vmem:[%s3161 + $0x34] sm:$0xf]
      %v3176 = vld [vmem:[%s3161 + $0x38] sm:$0xf]
      %v3177 = vld [vmem:[%s3161 + $0x3c] sm:$0xf]
      %v3194 = vunpack.c.l.b16 %v3162
      %v3195 = vunpack.c.l.b16 %v3163
      %v3196 = vunpack.c.l.b16 %v3164
      %v3197 = vunpack.c.l.b16 %v3165
      %v3198 = vunpack.c.l.b16 %v3166
      %v3199 = vunpack.c.l.b16 %v3167
      %v3200 = vunpack.c.l.b16 %v3168
      %v3201 = vunpack.c.l.b16 %v3169
      %v3202 = vunpack.c.l.b16 %v3170
      %v3203 = vunpack.c.l.b16 %v3171
      %v3204 = vunpack.c.l.b16 %v3172
      %v3205 = vunpack.c.l.b16 %v3173
      %v3206 = vunpack.c.l.b16 %v3174
      %v3207 = vunpack.c.l.b16 %v3175
      %v3208 = vunpack.c.l.b16 %v3176
      %v3209 = vunpack.c.l.b16 %v3177
      %v3210 = vpack.c.b16 %v3195, %v3194
      %v3211 = vpack.c.b16 %v3197, %v3196
      %v3212 = vpack.c.b16 %v3199, %v3198
      %v3213 = vpack.c.b16 %v3201, %v3200
      %v3214 = vpack.c.b16 %v3203, %v3202
      %v3215 = vpack.c.b16 %v3205, %v3204
      %v3216 = vpack.c.b16 %v3207, %v3206
      %v3217 = vpack.c.b16 %v3209, %v3208
      %3226 = vmatprep.subr.bf16.mxu0 0
      %3227 = vmatpush1.bf16.msra.mxu0 %v3210
      %3228 = vmatprep.subr.bf16.mxu0 0
      %3229 = vmatpush1.bf16.msra.mxu0 %v3211
      %3230 = vmatprep.subr.bf16.mxu0 0
      %3231 = vmatpush1.bf16.msra.mxu0 %v3212
      %3232 = vmatprep.subr.bf16.mxu0 0
      %3233 = vmatpush1.bf16.msra.mxu0 %v3213
      %3234 = vmatprep.subr.bf16.mxu0 0
      %3235 = vmatpush1.bf16.msra.mxu0 %v3214
      %3236 = vmatprep.subr.bf16.mxu0 0
      %3237 = vmatpush1.bf16.msra.mxu0 %v3215
      %3238 = vmatprep.subr.bf16.mxu0 0
      %3239 = vmatpush1.bf16.msra.mxu0 %v3216
      %3240 = vmatprep.subr.bf16.mxu0 0
      %3241 = vmatpush1.bf16.msra.mxu0 %v3217
      %3242 = vmatprep.subr.bf16.mxu0 0
      %3243 = vmatpush1.bf16.msra.mxu0 0
      %3244 = vmatprep.subr.bf16.mxu0 0
      %3245 = vmatpush1.bf16.msra.mxu0 0
      %3246 = vmatprep.subr.bf16.mxu0 0
      %3247 = vmatpush1.bf16.msra.mxu0 0
      %3248 = vmatprep.subr.bf16.mxu0 0
      %3249 = vmatpush1.bf16.msra.mxu0 0
      %3250 = vmatprep.subr.bf16.mxu0 0
      %3251 = vmatpush1.bf16.msra.mxu0 0
      %3252 = vmatprep.subr.bf16.mxu0 0
      %3253 = vmatpush1.bf16.msra.mxu0 0
      %3254 = vmatprep.subr.bf16.mxu0 0
      %3255 = vmatpush1.bf16.msra.mxu0 0
      %3256 = vmatprep.subr.bf16.mxu0 0
      %3257 = vmatpush1.bf16.msra.mxu0 0
      %3258 = vmatprep.mubr.bf16.mxu0 0
      %3259 = vmatmul.mubr.bf16.gmra.mrb[0].mxu0 %v3153
      %v3260 = vpop.f32.mrb[0].mxu0
      %v3261 = vadd.f32 0.0, %v3260
      %v3262 = vpop.f32.mrb[0].mxu0
      %v3263 = vpop.f32.mrb[0].mxu0
      %v3264 = vadd.f32 0.0, %v3263
      %v3265 = vpop.f32.mrb[0].mxu0
      %3266 = vmatprep.mubr.bf16.mxu0 0
      %3267 = vmatmul.mubr.bf16.gmra.mrb[0].mxu0 %v3154
      %v3268 = vpop.f32.mrb[0].mxu0
      %v3269 = vadd.f32 0.0, %v3268
      %v3270 = vpop.f32.mrb[0].mxu0
      %v3271 = vpop.f32.mrb[0].mxu0
      %v3272 = vadd.f32 0.0, %v3271
      %v3273 = vpop.f32.mrb[0].mxu0
      %3274 = vmatprep.mubr.bf16.mxu0 0
      %3275 = vmatmul.mubr.bf16.gmra.mrb[0].mxu0 %v3155
      %v3276 = vpop.f32.mrb[0].mxu0
      %v3277 = vadd.f32 0.0, %v3276
      %v3278 = vpop.f32.mrb[0].mxu0
      %v3279 = vpop.f32.mrb[0].mxu0
      %v3280 = vadd.f32 0.0, %v3279
      %v3281 = vpop.f32.mrb[0].mxu0
      %3282 = vmatprep.mubr.bf16.mxu0 0
      %3283 = vmatmul.mubr.bf16.gmra.mrb[0].mxu0 %v3156
      %v3284 = vpop.f32.mrb[0].mxu0
      %v3285 = vadd.f32 0.0, %v3284
      %v3286 = vpop.f32.mrb[0].mxu0
      %v3287 = vpop.f32.mrb[0].mxu0
      %v3288 = vadd.f32 0.0, %v3287
      %v3289 = vpop.f32.mrb[0].mxu0
      %3290 = vmatprep.mubr.bf16.mxu0 0
      %3291 = vmatmul.mubr.bf16.gmra.mrb[0].mxu0 %v3157
      %v3292 = vpop.f32.mrb[0].mxu0
      %v3293 = vadd.f32 0.0, %v3292
      %v3294 = vpop.f32.mrb[0].mxu0
      %v3295 = vpop.f32.mrb[0].mxu0
      %v3296 = vadd.f32 0.0, %v3295
      %v3297 = vpop.f32.mrb[0].mxu0
      %3298 = vmatprep.mubr.bf16.mxu0 0
      %3299 = vmatmul.mubr.bf16.gmra.mrb[0].mxu0 %v3158
      %v3300 = vpop.f32.mrb[0].mxu0
      %v3301 = vadd.f32 0.0, %v3300
      %v3302 = vpop.f32.mrb[0].mxu0
      %v3303 = vpop.f32.mrb[0].mxu0
      %v3304 = vadd.f32 0.0, %v3303
      %v3305 = vpop.f32.mrb[0].mxu0
      %3306 = vmatprep.mubr.bf16.mxu0 0
      %3307 = vmatmul.mubr.bf16.gmra.mrb[0].mxu0 %v3159
      %v3308 = vpop.f32.mrb[0].mxu0
      %v3309 = vadd.f32 0.0, %v3308
      %v3310 = vpop.f32.mrb[0].mxu0
      %v3311 = vpop.f32.mrb[0].mxu0
      %v3312 = vadd.f32 0.0, %v3311
      %v3313 = vpop.f32.mrb[0].mxu0
      %3314 = vmatprep.mubr.bf16.mxu0 0
      %3315 = vmatmul.mubr.bf16.gmra.mrb[0].mxu0 %v3160
      %v3316 = vpop.f32.mrb[0].mxu0
      %v3317 = vadd.f32 0.0, %v3316
      %v3318 = vpop.f32.mrb[0].mxu0
      %v3319 = vpop.f32.mrb[0].mxu0
      %v3320 = vadd.f32 0.0, %v3319
      %v3321 = vpop.f32.mrb[0].mxu0
      %3322 = vdwg.mxu0
      %v3323 = vadd.f32 %v3129, %v3261
      %v3324 = vadd.f32 %v3130, %v3264
      %v3325 = vadd.f32 %v3131, %v3269
      %v3326 = vadd.f32 %v3132, %v3272
      %v3327 = vadd.f32 %v3133, %v3277
      %v3328 = vadd.f32 %v3134, %v3280
      %v3329 = vadd.f32 %v3135, %v3285
      %v3330 = vadd.f32 %v3136, %v3288
      %v3331 = vadd.f32 %v3137, %v3293
      %v3332 = vadd.f32 %v3138, %v3296
      %v3333 = vadd.f32 %v3139, %v3301
      %v3334 = vadd.f32 %v3140, %v3304
      %v3335 = vadd.f32 %v3141, %v3309
      %v3336 = vadd.f32 %v3142, %v3312
      %v3337 = vadd.f32 %v3143, %v3317
      %v3338 = vadd.f32 %v3144, %v3320
      %v3339 = vpack.c.bf16 %v2506, %v2505
      %v3340 = vpack.c.bf16 %v2508, %v2507
      %v3341 = vpack.c.bf16 %v2510, %v2509
      %v3342 = vpack.c.bf16 %v2512, %v2511
      %v3343 = vpack.c.bf16 %v2514, %v2513
      %v3344 = vpack.c.bf16 %v2516, %v2515
      %v3345 = vpack.c.bf16 %v2518, %v2517
      %v3346 = vpack.c.bf16 %v2520, %v2519
      %s3347 = scalar_lea.vmem %s1, 832
      %v3348 = vld [vmem:[%s3347] sm:$0xf]
      %v3349 = vld [vmem:[%s3347 + $0x4] sm:$0xf]
      %v3350 = vld [vmem:[%s3347 + $0x8] sm:$0xf]
      %v3351 = vld [vmem:[%s3347 + $0xc] sm:$0xf]
      %v3352 = vld [vmem:[%s3347 + $0x10] sm:$0xf]
      %v3353 = vld [vmem:[%s3347 + $0x14] sm:$0xf]
      %v3354 = vld [vmem:[%s3347 + $0x18] sm:$0xf]
      %v3355 = vld [vmem:[%s3347 + $0x1c] sm:$0xf]
      %v3356 = vld [vmem:[%s3347 + $0x20] sm:$0xf]
      %v3357 = vld [vmem:[%s3347 + $0x24] sm:$0xf]
      %v3358 = vld [vmem:[%s3347 + $0x28] sm:$0xf]
      %v3359 = vld [vmem:[%s3347 + $0x2c] sm:$0xf]
      %v3360 = vld [vmem:[%s3347 + $0x30] sm:$0xf]
      %v3361 = vld [vmem:[%s3347 + $0x34] sm:$0xf]
      %v3362 = vld [vmem:[%s3347 + $0x38] sm:$0xf]
      %v3363 = vld [vmem:[%s3347 + $0x3c] sm:$0xf]
      %v3380 = vunpack.c.l.b16 %v3348
      %v3381 = vunpack.c.l.b16 %v3349
      %v3382 = vunpack.c.l.b16 %v3350
      %v3383 = vunpack.c.l.b16 %v3351
      %v3384 = vunpack.c.l.b16 %v3352
      %v3385 = vunpack.c.l.b16 %v3353
      %v3386 = vunpack.c.l.b16 %v3354
      %v3387 = vunpack.c.l.b16 %v3355
      %v3388 = vunpack.c.l.b16 %v3356
      %v3389 = vunpack.c.l.b16 %v3357
      %v3390 = vunpack.c.l.b16 %v3358
      %v3391 = vunpack.c.l.b16 %v3359
      %v3392 = vunpack.c.l.b16 %v3360
      %v3393 = vunpack.c.l.b16 %v3361
      %v3394 = vunpack.c.l.b16 %v3362
      %v3395 = vunpack.c.l.b16 %v3363
      %v3396 = vpack.c.b16 %v3381, %v3380
      %v3397 = vpack.c.b16 %v3383, %v3382
      %v3398 = vpack.c.b16 %v3385, %v3384
      %v3399 = vpack.c.b16 %v3387, %v3386
      %v3400 = vpack.c.b16 %v3389, %v3388
      %v3401 = vpack.c.b16 %v3391, %v3390
      %v3402 = vpack.c.b16 %v3393, %v3392
      %v3403 = vpack.c.b16 %v3395, %v3394
      %3412 = vmatprep.subr.bf16.mxu0 0
      %3413 = vmatpush1.bf16.msra.mxu0 %v3396
      %3414 = vmatprep.subr.bf16.mxu0 0
      %3415 = vmatpush1.bf16.msra.mxu0 %v3397
      %3416 = vmatprep.subr.bf16.mxu0 0
      %3417 = vmatpush1.bf16.msra.mxu0 %v3398
      %3418 = vmatprep.subr.bf16.mxu0 0
      %3419 = vmatpush1.bf16.msra.mxu0 %v3399
      %3420 = vmatprep.subr.bf16.mxu0 0
      %3421 = vmatpush1.bf16.msra.mxu0 %v3400
      %3422 = vmatprep.subr.bf16.mxu0 0
      %3423 = vmatpush1.bf16.msra.mxu0 %v3401
      %3424 = vmatprep.subr.bf16.mxu0 0
      %3425 = vmatpush1.bf16.msra.mxu0 %v3402
      %3426 = vmatprep.subr.bf16.mxu0 0
      %3427 = vmatpush1.bf16.msra.mxu0 %v3403
      %3428 = vmatprep.subr.bf16.mxu0 0
      %3429 = vmatpush1.bf16.msra.mxu0 0
      %3430 = vmatprep.subr.bf16.mxu0 0
      %3431 = vmatpush1.bf16.msra.mxu0 0
      %3432 = vmatprep.subr.bf16.mxu0 0
      %3433 = vmatpush1.bf16.msra.mxu0 0
      %3434 = vmatprep.subr.bf16.mxu0 0
      %3435 = vmatpush1.bf16.msra.mxu0 0
      %3436 = vmatprep.subr.bf16.mxu0 0
      %3437 = vmatpush1.bf16.msra.mxu0 0
      %3438 = vmatprep.subr.bf16.mxu0 0
      %3439 = vmatpush1.bf16.msra.mxu0 0
      %3440 = vmatprep.subr.bf16.mxu0 0
      %3441 = vmatpush1.bf16.msra.mxu0 0
      %3442 = vmatprep.subr.bf16.mxu0 0
      %3443 = vmatpush1.bf16.msra.mxu0 0
      %3444 = vmatprep.mubr.bf16.mxu0 0
      %3445 = vmatmul.mubr.bf16.gmra.mrb[0].mxu0 %v3339
      %v3446 = vpop.f32.mrb[0].mxu0
      %v3447 = vadd.f32 0.0, %v3446
      %v3448 = vpop.f32.mrb[0].mxu0
      %v3449 = vpop.f32.mrb[0].mxu0
      %v3450 = vadd.f32 0.0, %v3449
      %v3451 = vpop.f32.mrb[0].mxu0
      %3452 = vmatprep.mubr.bf16.mxu0 0
      %3453 = vmatmul.mubr.bf16.gmra.mrb[0].mxu0 %v3340
      %v3454 = vpop.f32.mrb[0].mxu0
      %v3455 = vadd.f32 0.0, %v3454
      %v3456 = vpop.f32.mrb[0].mxu0
      %v3457 = vpop.f32.mrb[0].mxu0
      %v3458 = vadd.f32 0.0, %v3457
      %v3459 = vpop.f32.mrb[0].mxu0
      %3460 = vmatprep.mubr.bf16.mxu0 0
      %3461 = vmatmul.mubr.bf16.gmra.mrb[0].mxu0 %v3341
      %v3462 = vpop.f32.mrb[0].mxu0
      %v3463 = vadd.f32 0.0, %v3462
      %v3464 = vpop.f32.mrb[0].mxu0
      %v3465 = vpop.f32.mrb[0].mxu0
      %v3466 = vadd.f32 0.0, %v3465
      %v3467 = vpop.f32.mrb[0].mxu0
      %3468 = vmatprep.mubr.bf16.mxu0 0
      %3469 = vmatmul.mubr.bf16.gmra.mrb[0].mxu0 %v3342
      %v3470 = vpop.f32.mrb[0].mxu0
      %v3471 = vadd.f32 0.0, %v3470
      %v3472 = vpop.f32.mrb[0].mxu0
      %v3473 = vpop.f32.mrb[0].mxu0
      %v3474 = vadd.f32 0.0, %v3473
      %v3475 = vpop.f32.mrb[0].mxu0
      %3476 = vmatprep.mubr.bf16.mxu0 0
      %3477 = vmatmul.mubr.bf16.gmra.mrb[0].mxu0 %v3343
      %v3478 = vpop.f32.mrb[0].mxu0
      %v3479 = vadd.f32 0.0, %v3478
      %v3480 = vpop.f32.mrb[0].mxu0
      %v3481 = vpop.f32.mrb[0].mxu0
      %v3482 = vadd.f32 0.0, %v3481
      %v3483 = vpop.f32.mrb[0].mxu0
      %3484 = vmatprep.mubr.bf16.mxu0 0
      %3485 = vmatmul.mubr.bf16.gmra.mrb[0].mxu0 %v3344
      %v3486 = vpop.f32.mrb[0].mxu0
      %v3487 = vadd.f32 0.0, %v3486
      %v3488 = vpop.f32.mrb[0].mxu0
      %v3489 = vpop.f32.mrb[0].mxu0
      %v3490 = vadd.f32 0.0, %v3489
      %v3491 = vpop.f32.mrb[0].mxu0
      %3492 = vmatprep.mubr.bf16.mxu0 0
      %3493 = vmatmul.mubr.bf16.gmra.mrb[0].mxu0 %v3345
      %v3494 = vpop.f32.mrb[0].mxu0
      %v3495 = vadd.f32 0.0, %v3494
      %v3496 = vpop.f32.mrb[0].mxu0
      %v3497 = vpop.f32.mrb[0].mxu0
      %v3498 = vadd.f32 0.0, %v3497
      %v3499 = vpop.f32.mrb[0].mxu0
      %3500 = vmatprep.mubr.bf16.mxu0 0
      %3501 = vmatmul.mubr.bf16.gmra.mrb[0].mxu0 %v3346
      %v3502 = vpop.f32.mrb[0].mxu0
      %v3503 = vadd.f32 0.0, %v3502
      %v3504 = vpop.f32.mrb[0].mxu0
      %v3505 = vpop.f32.mrb[0].mxu0
      %v3506 = vadd.f32 0.0, %v3505
      %v3507 = vpop.f32.mrb[0].mxu0
      %3508 = vdwg.mxu0
      %v3509 = vadd.f32 %v3323, %v3447
      %v3510 = vadd.f32 %v3324, %v3450
      %v3511 = vadd.f32 %v3325, %v3455
      %v3512 = vadd.f32 %v3326, %v3458
      %v3513 = vadd.f32 %v3327, %v3463
      %v3514 = vadd.f32 %v3328, %v3466
      %v3515 = vadd.f32 %v3329, %v3471
      %v3516 = vadd.f32 %v3330, %v3474
      %v3517 = vadd.f32 %v3331, %v3479
      %v3518 = vadd.f32 %v3332, %v3482
      %v3519 = vadd.f32 %v3333, %v3487
      %v3520 = vadd.f32 %v3334, %v3490
      %v3521 = vadd.f32 %v3335, %v3495
      %v3522 = vadd.f32 %v3336, %v3498
      %v3523 = vadd.f32 %v3337, %v3503
      %v3524 = vadd.f32 %v3338, %v3506
      %v3525 = vrot.slane %v2512, 1
      %v3526 = vrot.slane %v2520, 1
      %v3529 = vsel %vm815, %v3525, 0.0
      %v3530 = vsel %vm815, %v3526, 0.0
      %v3531 = vpack.c.bf16 %v2946, %v2945
      %v3532 = vpack.c.bf16 %v2948, %v2947
      %v3533 = vpack.c.bf16 %v2950, %v2949
      %v3534 = vpack.c.bf16 %v3529, %v2951
      %v3535 = vpack.c.bf16 %v2953, %v2952
      %v3536 = vpack.c.bf16 %v2955, %v2954
      %v3537 = vpack.c.bf16 %v2957, %v2956
      %v3538 = vpack.c.bf16 %v3530, %v2958
      %s3539 = scalar_lea.vmem %s1, 896
      %v3540 = vld [vmem:[%s3539] sm:$0xf]
      %v3541 = vld [vmem:[%s3539 + $0x4] sm:$0xf]
      %v3542 = vld [vmem:[%s3539 + $0x8] sm:$0xf]
      %v3543 = vld [vmem:[%s3539 + $0xc] sm:$0xf]
      %v3544 = vld [vmem:[%s3539 + $0x10] sm:$0xf]
      %v3545 = vld [vmem:[%s3539 + $0x14] sm:$0xf]
      %v3546 = vld [vmem:[%s3539 + $0x18] sm:$0xf]
      %v3547 = vld [vmem:[%s3539 + $0x1c] sm:$0xf]
      %v3548 = vld [vmem:[%s3539 + $0x20] sm:$0xf]
      %v3549 = vld [vmem:[%s3539 + $0x24] sm:$0xf]
      %v3550 = vld [vmem:[%s3539 + $0x28] sm:$0xf]
      %v3551 = vld [vmem:[%s3539 + $0x2c] sm:$0xf]
      %v3552 = vld [vmem:[%s3539 + $0x30] sm:$0xf]
      %v3553 = vld [vmem:[%s3539 + $0x34] sm:$0xf]
      %v3554 = vld [vmem:[%s3539 + $0x38] sm:$0xf]
      %v3555 = vld [vmem:[%s3539 + $0x3c] sm:$0xf]
      %v3572 = vunpack.c.l.b16 %v3540
      %v3573 = vunpack.c.l.b16 %v3541
      %v3574 = vunpack.c.l.b16 %v3542
      %v3575 = vunpack.c.l.b16 %v3543
      %v3576 = vunpack.c.l.b16 %v3544
      %v3577 = vunpack.c.l.b16 %v3545
      %v3578 = vunpack.c.l.b16 %v3546
      %v3579 = vunpack.c.l.b16 %v3547
      %v3580 = vunpack.c.l.b16 %v3548
      %v3581 = vunpack.c.l.b16 %v3549
      %v3582 = vunpack.c.l.b16 %v3550
      %v3583 = vunpack.c.l.b16 %v3551
      %v3584 = vunpack.c.l.b16 %v3552
      %v3585 = vunpack.c.l.b16 %v3553
      %v3586 = vunpack.c.l.b16 %v3554
      %v3587 = vunpack.c.l.b16 %v3555
      %v3588 = vpack.c.b16 %v3573, %v3572
      %v3589 = vpack.c.b16 %v3575, %v3574
      %v3590 = vpack.c.b16 %v3577, %v3576
      %v3591 = vpack.c.b16 %v3579, %v3578
      %v3592 = vpack.c.b16 %v3581, %v3580
      %v3593 = vpack.c.b16 %v3583, %v3582
      %v3594 = vpack.c.b16 %v3585, %v3584
      %v3595 = vpack.c.b16 %v3587, %v3586
      %3604 = vmatprep.subr.bf16.mxu0 0
      %3605 = vmatpush1.bf16.msra.mxu0 %v3588
      %3606 = vmatprep.subr.bf16.mxu0 0
      %3607 = vmatpush1.bf16.msra.mxu0 %v3589
      %3608 = vmatprep.subr.bf16.mxu0 0
      %3609 = vmatpush1.bf16.msra.mxu0 %v3590
      %3610 = vmatprep.subr.bf16.mxu0 0
      %3611 = vmatpush1.bf16.msra.mxu0 %v3591
      %3612 = vmatprep.subr.bf16.mxu0 0
      %3613 = vmatpush1.bf16.msra.mxu0 %v3592
      %3614 = vmatprep.subr.bf16.mxu0 0
      %3615 = vmatpush1.bf16.msra.mxu0 %v3593
      %3616 = vmatprep.subr.bf16.mxu0 0
      %3617 = vmatpush1.bf16.msra.mxu0 %v3594
      %3618 = vmatprep.subr.bf16.mxu0 0
      %3619 = vmatpush1.bf16.msra.mxu0 %v3595
      %3620 = vmatprep.subr.bf16.mxu0 0
      %3621 = vmatpush1.bf16.msra.mxu0 0
      %3622 = vmatprep.subr.bf16.mxu0 0
      %3623 = vmatpush1.bf16.msra.mxu0 0
      %3624 = vmatprep.subr.bf16.mxu0 0
      %3625 = vmatpush1.bf16.msra.mxu0 0
      %3626 = vmatprep.subr.bf16.mxu0 0
      %3627 = vmatpush1.bf16.msra.mxu0 0
      %3628 = vmatprep.subr.bf16.mxu0 0
      %3629 = vmatpush1.bf16.msra.mxu0 0
      %3630 = vmatprep.subr.bf16.mxu0 0
      %3631 = vmatpush1.bf16.msra.mxu0 0
      %3632 = vmatprep.subr.bf16.mxu0 0
      %3633 = vmatpush1.bf16.msra.mxu0 0
      %3634 = vmatprep.subr.bf16.mxu0 0
      %3635 = vmatpush1.bf16.msra.mxu0 0
      %3636 = vmatprep.mubr.bf16.mxu0 0
      %3637 = vmatmul.mubr.bf16.gmra.mrb[0].mxu0 %v3531
      %v3638 = vpop.f32.mrb[0].mxu0
      %v3639 = vadd.f32 0.0, %v3638
      %v3640 = vpop.f32.mrb[0].mxu0
      %v3641 = vpop.f32.mrb[0].mxu0
      %v3642 = vadd.f32 0.0, %v3641
      %v3643 = vpop.f32.mrb[0].mxu0
      %3644 = vmatprep.mubr.bf16.mxu0 0
      %3645 = vmatmul.mubr.bf16.gmra.mrb[0].mxu0 %v3532
      %v3646 = vpop.f32.mrb[0].mxu0
      %v3647 = vadd.f32 0.0, %v3646
      %v3648 = vpop.f32.mrb[0].mxu0
      %v3649 = vpop.f32.mrb[0].mxu0
      %v3650 = vadd.f32 0.0, %v3649
      %v3651 = vpop.f32.mrb[0].mxu0
      %3652 = vmatprep.mubr.bf16.mxu0 0
      %3653 = vmatmul.mubr.bf16.gmra.mrb[0].mxu0 %v3533
      %v3654 = vpop.f32.mrb[0].mxu0
      %v3655 = vadd.f32 0.0, %v3654
      %v3656 = vpop.f32.mrb[0].mxu0
      %v3657 = vpop.f32.mrb[0].mxu0
      %v3658 = vadd.f32 0.0, %v3657
      %v3659 = vpop.f32.mrb[0].mxu0
      %3660 = vmatprep.mubr.bf16.mxu0 0
      %3661 = vmatmul.mubr.bf16.gmra.mrb[0].mxu0 %v3534
      %v3662 = vpop.f32.mrb[0].mxu0
      %v3663 = vadd.f32 0.0, %v3662
      %v3664 = vpop.f32.mrb[0].mxu0
      %v3665 = vpop.f32.mrb[0].mxu0
      %v3666 = vadd.f32 0.0, %v3665
      %v3667 = vpop.f32.mrb[0].mxu0
      %3668 = vmatprep.mubr.bf16.mxu0 0
      %3669 = vmatmul.mubr.bf16.gmra.mrb[0].mxu0 %v3535
      %v3670 = vpop.f32.mrb[0].mxu0
      %v3671 = vadd.f32 0.0, %v3670
      %v3672 = vpop.f32.mrb[0].mxu0
      %v3673 = vpop.f32.mrb[0].mxu0
      %v3674 = vadd.f32 0.0, %v3673
      %v3675 = vpop.f32.mrb[0].mxu0
      %3676 = vmatprep.mubr.bf16.mxu0 0
      %3677 = vmatmul.mubr.bf16.gmra.mrb[0].mxu0 %v3536
      %v3678 = vpop.f32.mrb[0].mxu0
      %v3679 = vadd.f32 0.0, %v3678
      %v3680 = vpop.f32.mrb[0].mxu0
      %v3681 = vpop.f32.mrb[0].mxu0
      %v3682 = vadd.f32 0.0, %v3681
      %v3683 = vpop.f32.mrb[0].mxu0
      %3684 = vmatprep.mubr.bf16.mxu0 0
      %3685 = vmatmul.mubr.bf16.gmra.mrb[0].mxu0 %v3537
      %v3686 = vpop.f32.mrb[0].mxu0
      %v3687 = vadd.f32 0.0, %v3686
      %v3688 = vpop.f32.mrb[0].mxu0
      %v3689 = vpop.f32.mrb[0].mxu0
      %v3690 = vadd.f32 0.0, %v3689
      %v3691 = vpop.f32.mrb[0].mxu0
      %3692 = vmatprep.mubr.bf16.mxu0 0
      %3693 = vmatmul.mubr.bf16.gmra.mrb[0].mxu0 %v3538
      %v3694 = vpop.f32.mrb[0].mxu0
      %v3695 = vadd.f32 0.0, %v3694
      %v3696 = vpop.f32.mrb[0].mxu0
      %v3697 = vpop.f32.mrb[0].mxu0
      %v3698 = vadd.f32 0.0, %v3697
      %v3699 = vpop.f32.mrb[0].mxu0
      %3700 = vdwg.mxu0
      %v3701 = vadd.f32 %v3509, %v3639
      %v3702 = vadd.f32 %v3510, %v3642
      %v3703 = vadd.f32 %v3511, %v3647
      %v3704 = vadd.f32 %v3512, %v3650
      %v3705 = vadd.f32 %v3513, %v3655
      %v3706 = vadd.f32 %v3514, %v3658
      %v3707 = vadd.f32 %v3515, %v3663
      %v3708 = vadd.f32 %v3516, %v3666
      %v3709 = vadd.f32 %v3517, %v3671
      %v3710 = vadd.f32 %v3518, %v3674
      %v3711 = vadd.f32 %v3519, %v3679
      %v3712 = vadd.f32 %v3520, %v3682
      %v3713 = vadd.f32 %v3521, %v3687
      %v3714 = vadd.f32 %v3522, %v3690
      %v3715 = vadd.f32 %v3523, %v3695
      %v3716 = vadd.f32 %v3524, %v3698
      %v3717 = vpack.c.bf16 %v431, %v3151
      %v3718 = vpack.c.bf16 %v431, %v3152
      %s3719 = scalar_lea.vmem %s1, 960
      %v3720 = vld [vmem:[%s3719] sm:$0xf]
      %v3721 = vld [vmem:[%s3719 + $0x4] sm:$0xf]
      %v3722 = vld [vmem:[%s3719 + $0x8] sm:$0xf]
      %v3723 = vld [vmem:[%s3719 + $0xc] sm:$0xf]
      %v3724 = vld [vmem:[%s3719 + $0x10] sm:$0xf]
      %v3725 = vld [vmem:[%s3719 + $0x14] sm:$0xf]
      %v3726 = vld [vmem:[%s3719 + $0x18] sm:$0xf]
      %v3727 = vld [vmem:[%s3719 + $0x1c] sm:$0xf]
      %v3728 = vld [vmem:[%s3719 + $0x20] sm:$0xf]
      %v3729 = vld [vmem:[%s3719 + $0x24] sm:$0xf]
      %v3730 = vld [vmem:[%s3719 + $0x28] sm:$0xf]
      %v3731 = vld [vmem:[%s3719 + $0x2c] sm:$0xf]
      %v3732 = vld [vmem:[%s3719 + $0x30] sm:$0xf]
      %v3733 = vld [vmem:[%s3719 + $0x34] sm:$0xf]
      %v3734 = vld [vmem:[%s3719 + $0x38] sm:$0xf]
      %v3735 = vld [vmem:[%s3719 + $0x3c] sm:$0xf]
      %v3752 = vunpack.c.l.b16 %v3720
      %v3753 = vunpack.c.l.b16 %v3721
      %v3754 = vunpack.c.l.b16 %v3722
      %v3755 = vunpack.c.l.b16 %v3723
      %v3756 = vunpack.c.l.b16 %v3724
      %v3757 = vunpack.c.l.b16 %v3725
      %v3758 = vunpack.c.l.b16 %v3726
      %v3759 = vunpack.c.l.b16 %v3727
      %v3760 = vunpack.c.l.b16 %v3728
      %v3761 = vunpack.c.l.b16 %v3729
      %v3762 = vunpack.c.l.b16 %v3730
      %v3763 = vunpack.c.l.b16 %v3731
      %v3764 = vunpack.c.l.b16 %v3732
      %v3765 = vunpack.c.l.b16 %v3733
      %v3766 = vunpack.c.l.b16 %v3734
      %v3767 = vunpack.c.l.b16 %v3735
      %v3768 = vpack.c.b16 %v3753, %v3752
      %v3769 = vpack.c.b16 %v3755, %v3754
      %v3770 = vpack.c.b16 %v3757, %v3756
      %v3771 = vpack.c.b16 %v3759, %v3758
      %v3772 = vpack.c.b16 %v3761, %v3760
      %v3773 = vpack.c.b16 %v3763, %v3762
      %v3774 = vpack.c.b16 %v3765, %v3764
      %v3775 = vpack.c.b16 %v3767, %v3766
      %3784 = vmatprep.subr.bf16.mxu0 0
      %3785 = vmatpush1.bf16.msra.mxu0 %v3768
      %3786 = vmatprep.subr.bf16.mxu0 0
      %3787 = vmatpush1.bf16.msra.mxu0 %v3769
      %3788 = vmatprep.subr.bf16.mxu0 0
      %3789 = vmatpush1.bf16.msra.mxu0 %v3770
      %3790 = vmatprep.subr.bf16.mxu0 0
      %3791 = vmatpush1.bf16.msra.mxu0 %v3771
      %3792 = vmatprep.subr.bf16.mxu0 0
      %3793 = vmatpush1.bf16.msra.mxu0 %v3772
      %3794 = vmatprep.subr.bf16.mxu0 0
      %3795 = vmatpush1.bf16.msra.mxu0 %v3773
      %3796 = vmatprep.subr.bf16.mxu0 0
      %3797 = vmatpush1.bf16.msra.mxu0 %v3774
      %3798 = vmatprep.subr.bf16.mxu0 0
      %3799 = vmatpush1.bf16.msra.mxu0 %v3775
      %3800 = vmatprep.subr.bf16.mxu0 0
      %3801 = vmatpush1.bf16.msra.mxu0 0
      %3802 = vmatprep.subr.bf16.mxu0 0
      %3803 = vmatpush1.bf16.msra.mxu0 0
      %3804 = vmatprep.subr.bf16.mxu0 0
      %3805 = vmatpush1.bf16.msra.mxu0 0
      %3806 = vmatprep.subr.bf16.mxu0 0
      %3807 = vmatpush1.bf16.msra.mxu0 0
      %3808 = vmatprep.subr.bf16.mxu0 0
      %3809 = vmatpush1.bf16.msra.mxu0 0
      %3810 = vmatprep.subr.bf16.mxu0 0
      %3811 = vmatpush1.bf16.msra.mxu0 0
      %3812 = vmatprep.subr.bf16.mxu0 0
      %3813 = vmatpush1.bf16.msra.mxu0 0
      %3814 = vmatprep.subr.bf16.mxu0 0
      %3815 = vmatpush1.bf16.msra.mxu0 0
      %3816 = vmatprep.mubr.bf16.mxu0 0
      %3817 = vmatmul.mubr.bf16.gmra.mrb[0].mxu0 %v2578
      %v3818 = vpop.f32.mrb[0].mxu0
      %v3819 = vadd.f32 0.0, %v3818
      %v3820 = vpop.f32.mrb[0].mxu0
      %v3821 = vpop.f32.mrb[0].mxu0
      %v3822 = vadd.f32 0.0, %v3821
      %v3823 = vpop.f32.mrb[0].mxu0
      %3824 = vmatprep.mubr.bf16.mxu0 0
      %3825 = vmatmul.mubr.bf16.gmra.mrb[0].mxu0 %v2579
      %v3826 = vpop.f32.mrb[0].mxu0
      %v3827 = vadd.f32 0.0, %v3826
      %v3828 = vpop.f32.mrb[0].mxu0
      %v3829 = vpop.f32.mrb[0].mxu0
      %v3830 = vadd.f32 0.0, %v3829
      %v3831 = vpop.f32.mrb[0].mxu0
      %3832 = vmatprep.mubr.bf16.mxu0 0
      %3833 = vmatmul.mubr.bf16.gmra.mrb[0].mxu0 %v2580
      %v3834 = vpop.f32.mrb[0].mxu0
      %v3835 = vadd.f32 0.0, %v3834
      %v3836 = vpop.f32.mrb[0].mxu0
      %v3837 = vpop.f32.mrb[0].mxu0
      %v3838 = vadd.f32 0.0, %v3837
      %v3839 = vpop.f32.mrb[0].mxu0
      %3840 = vmatprep.mubr.bf16.mxu0 0
      %3841 = vmatmul.mubr.bf16.gmra.mrb[0].mxu0 %v3717
      %v3842 = vpop.f32.mrb[0].mxu0
      %v3843 = vadd.f32 0.0, %v3842
      %v3844 = vpop.f32.mrb[0].mxu0
      %v3845 = vpop.f32.mrb[0].mxu0
      %v3846 = vadd.f32 0.0, %v3845
      %v3847 = vpop.f32.mrb[0].mxu0
      %3848 = vmatprep.mubr.bf16.mxu0 0
      %3849 = vmatmul.mubr.bf16.gmra.mrb[0].mxu0 %v2582
      %v3850 = vpop.f32.mrb[0].mxu0
      %v3851 = vadd.f32 0.0, %v3850
      %v3852 = vpop.f32.mrb[0].mxu0
      %v3853 = vpop.f32.mrb[0].mxu0
      %v3854 = vadd.f32 0.0, %v3853
      %v3855 = vpop.f32.mrb[0].mxu0
      %3856 = vmatprep.mubr.bf16.mxu0 0
      %3857 = vmatmul.mubr.bf16.gmra.mrb[0].mxu0 %v2583
      %v3858 = vpop.f32.mrb[0].mxu0
      %v3859 = vadd.f32 0.0, %v3858
      %v3860 = vpop.f32.mrb[0].mxu0
      %v3861 = vpop.f32.mrb[0].mxu0
      %v3862 = vadd.f32 0.0, %v3861
      %v3863 = vpop.f32.mrb[0].mxu0
      %3864 = vmatprep.mubr.bf16.mxu0 0
      %3865 = vmatmul.mubr.bf16.gmra.mrb[0].mxu0 %v2584
      %v3866 = vpop.f32.mrb[0].mxu0
      %v3867 = vadd.f32 0.0, %v3866
      %v3868 = vpop.f32.mrb[0].mxu0
      %v3869 = vpop.f32.mrb[0].mxu0
      %v3870 = vadd.f32 0.0, %v3869
      %v3871 = vpop.f32.mrb[0].mxu0
      %3872 = vmatprep.mubr.bf16.mxu0 0
      %3873 = vmatmul.mubr.bf16.gmra.mrb[0].mxu0 %v3718
      %v3874 = vpop.f32.mrb[0].mxu0
      %v3875 = vadd.f32 0.0, %v3874
      %v3876 = vpop.f32.mrb[0].mxu0
      %v3877 = vpop.f32.mrb[0].mxu0
      %v3878 = vadd.f32 0.0, %v3877
      %v3879 = vpop.f32.mrb[0].mxu0
      %3880 = vdwg.mxu0
      %v3881 = vadd.f32 %v3701, %v3819
      %v3882 = vadd.f32 %v3702, %v3822
      %v3883 = vadd.f32 %v3703, %v3827
      %v3884 = vadd.f32 %v3704, %v3830
      %v3885 = vadd.f32 %v3705, %v3835
      %v3886 = vadd.f32 %v3706, %v3838
      %v3887 = vadd.f32 %v3707, %v3843
      %v3888 = vadd.f32 %v3708, %v3846
      %v3889 = vadd.f32 %v3709, %v3851
      %v3890 = vadd.f32 %v3710, %v3854
      %v3891 = vadd.f32 %v3711, %v3859
      %v3892 = vadd.f32 %v3712, %v3862
      %v3893 = vadd.f32 %v3713, %v3867
      %v3894 = vadd.f32 %v3714, %v3870
      %v3895 = vadd.f32 %v3715, %v3875
      %v3896 = vadd.f32 %v3716, %v3878
      %v3897 = vpack.c.bf16 0.0, %v2512
      %v3898 = vpack.c.bf16 0.0, %v2520
      %s3899 = scalar_lea.vmem %s1, 1024
      %v3900 = vld [vmem:[%s3899] sm:$0xf]
      %v3901 = vld [vmem:[%s3899 + $0x4] sm:$0xf]
      %v3902 = vld [vmem:[%s3899 + $0x8] sm:$0xf]
      %v3903 = vld [vmem:[%s3899 + $0xc] sm:$0xf]
      %v3904 = vld [vmem:[%s3899 + $0x10] sm:$0xf]
      %v3905 = vld [vmem:[%s3899 + $0x14] sm:$0xf]
      %v3906 = vld [vmem:[%s3899 + $0x18] sm:$0xf]
      %v3907 = vld [vmem:[%s3899 + $0x1c] sm:$0xf]
      %v3908 = vld [vmem:[%s3899 + $0x20] sm:$0xf]
      %v3909 = vld [vmem:[%s3899 + $0x24] sm:$0xf]
      %v3910 = vld [vmem:[%s3899 + $0x28] sm:$0xf]
      %v3911 = vld [vmem:[%s3899 + $0x2c] sm:$0xf]
      %v3912 = vld [vmem:[%s3899 + $0x30] sm:$0xf]
      %v3913 = vld [vmem:[%s3899 + $0x34] sm:$0xf]
      %v3914 = vld [vmem:[%s3899 + $0x38] sm:$0xf]
      %v3915 = vld [vmem:[%s3899 + $0x3c] sm:$0xf]
      %v3932 = vunpack.c.l.b16 %v3900
      %v3933 = vunpack.c.l.b16 %v3901
      %v3934 = vunpack.c.l.b16 %v3902
      %v3935 = vunpack.c.l.b16 %v3903
      %v3936 = vunpack.c.l.b16 %v3904
      %v3937 = vunpack.c.l.b16 %v3905
      %v3938 = vunpack.c.l.b16 %v3906
      %v3939 = vunpack.c.l.b16 %v3907
      %v3940 = vunpack.c.l.b16 %v3908
      %v3941 = vunpack.c.l.b16 %v3909
      %v3942 = vunpack.c.l.b16 %v3910
      %v3943 = vunpack.c.l.b16 %v3911
      %v3944 = vunpack.c.l.b16 %v3912
      %v3945 = vunpack.c.l.b16 %v3913
      %v3946 = vunpack.c.l.b16 %v3914
      %v3947 = vunpack.c.l.b16 %v3915
      %v3948 = vpack.c.b16 %v3933, %v3932
      %v3949 = vpack.c.b16 %v3935, %v3934
      %v3950 = vpack.c.b16 %v3937, %v3936
      %v3951 = vpack.c.b16 %v3939, %v3938
      %v3952 = vpack.c.b16 %v3941, %v3940
      %v3953 = vpack.c.b16 %v3943, %v3942
      %v3954 = vpack.c.b16 %v3945, %v3944
      %v3955 = vpack.c.b16 %v3947, %v3946
      %3964 = vmatprep.subr.bf16.mxu0 0
      %3965 = vmatpush1.bf16.msra.mxu0 %v3948
      %3966 = vmatprep.subr.bf16.mxu0 0
      %3967 = vmatpush1.bf16.msra.mxu0 %v3949
      %3968 = vmatprep.subr.bf16.mxu0 0
      %3969 = vmatpush1.bf16.msra.mxu0 %v3950
      %3970 = vmatprep.subr.bf16.mxu0 0
      %3971 = vmatpush1.bf16.msra.mxu0 %v3951
      %3972 = vmatprep.subr.bf16.mxu0 0
      %3973 = vmatpush1.bf16.msra.mxu0 %v3952
      %3974 = vmatprep.subr.bf16.mxu0 0
      %3975 = vmatpush1.bf16.msra.mxu0 %v3953
      %3976 = vmatprep.subr.bf16.mxu0 0
      %3977 = vmatpush1.bf16.msra.mxu0 %v3954
      %3978 = vmatprep.subr.bf16.mxu0 0
      %3979 = vmatpush1.bf16.msra.mxu0 %v3955
      %3980 = vmatprep.subr.bf16.mxu0 0
      %3981 = vmatpush1.bf16.msra.mxu0 0
      %3982 = vmatprep.subr.bf16.mxu0 0
      %3983 = vmatpush1.bf16.msra.mxu0 0
      %3984 = vmatprep.subr.bf16.mxu0 0
      %3985 = vmatpush1.bf16.msra.mxu0 0
      %3986 = vmatprep.subr.bf16.mxu0 0
      %3987 = vmatpush1.bf16.msra.mxu0 0
      %3988 = vmatprep.subr.bf16.mxu0 0
      %3989 = vmatpush1.bf16.msra.mxu0 0
      %3990 = vmatprep.subr.bf16.mxu0 0
      %3991 = vmatpush1.bf16.msra.mxu0 0
      %3992 = vmatprep.subr.bf16.mxu0 0
      %3993 = vmatpush1.bf16.msra.mxu0 0
      %3994 = vmatprep.subr.bf16.mxu0 0
      %3995 = vmatpush1.bf16.msra.mxu0 0
      %3996 = vmatprep.mubr.bf16.mxu0 0
      %3997 = vmatmul.mubr.bf16.gmra.mrb[0].mxu0 %v2603
      %v3998 = vpop.f32.mrb[0].mxu0
      %v3999 = vadd.f32 0.0, %v3998
      %v4000 = vpop.f32.mrb[0].mxu0
      %v4001 = vpop.f32.mrb[0].mxu0
      %v4002 = vadd.f32 0.0, %v4001
      %v4003 = vpop.f32.mrb[0].mxu0
      %4004 = vmatprep.mubr.bf16.mxu0 0
      %4005 = vmatmul.mubr.bf16.gmra.mrb[0].mxu0 %v2604
      %v4006 = vpop.f32.mrb[0].mxu0
      %v4007 = vadd.f32 0.0, %v4006
      %v4008 = vpop.f32.mrb[0].mxu0
      %v4009 = vpop.f32.mrb[0].mxu0
      %v4010 = vadd.f32 0.0, %v4009
      %v4011 = vpop.f32.mrb[0].mxu0
      %4012 = vmatprep.mubr.bf16.mxu0 0
      %4013 = vmatmul.mubr.bf16.gmra.mrb[0].mxu0 %v2605
      %v4014 = vpop.f32.mrb[0].mxu0
      %v4015 = vadd.f32 0.0, %v4014
      %v4016 = vpop.f32.mrb[0].mxu0
      %v4017 = vpop.f32.mrb[0].mxu0
      %v4018 = vadd.f32 0.0, %v4017
      %v4019 = vpop.f32.mrb[0].mxu0
      %4020 = vmatprep.mubr.bf16.mxu0 0
      %4021 = vmatmul.mubr.bf16.gmra.mrb[0].mxu0 %v3897
      %v4022 = vpop.f32.mrb[0].mxu0
      %v4023 = vadd.f32 0.0, %v4022
      %v4024 = vpop.f32.mrb[0].mxu0
      %v4025 = vpop.f32.mrb[0].mxu0
      %v4026 = vadd.f32 0.0, %v4025
      %v4027 = vpop.f32.mrb[0].mxu0
      %4028 = vmatprep.mubr.bf16.mxu0 0
      %4029 = vmatmul.mubr.bf16.gmra.mrb[0].mxu0 %v2607
      %v4030 = vpop.f32.mrb[0].mxu0
      %v4031 = vadd.f32 0.0, %v4030
      %v4032 = vpop.f32.mrb[0].mxu0
      %v4033 = vpop.f32.mrb[0].mxu0
      %v4034 = vadd.f32 0.0, %v4033
      %v4035 = vpop.f32.mrb[0].mxu0
      %4036 = vmatprep.mubr.bf16.mxu0 0
      %4037 = vmatmul.mubr.bf16.gmra.mrb[0].mxu0 %v2608
      %v4038 = vpop.f32.mrb[0].mxu0
      %v4039 = vadd.f32 0.0, %v4038
      %v4040 = vpop.f32.mrb[0].mxu0
      %v4041 = vpop.f32.mrb[0].mxu0
      %v4042 = vadd.f32 0.0, %v4041
      %v4043 = vpop.f32.mrb[0].mxu0
      %4044 = vmatprep.mubr.bf16.mxu0 0
      %4045 = vmatmul.mubr.bf16.gmra.mrb[0].mxu0 %v2609
      %v4046 = vpop.f32.mrb[0].mxu0
      %v4047 = vadd.f32 0.0, %v4046
      %v4048 = vpop.f32.mrb[0].mxu0
      %v4049 = vpop.f32.mrb[0].mxu0
      %v4050 = vadd.f32 0.0, %v4049
      %v4051 = vpop.f32.mrb[0].mxu0
      %4052 = vmatprep.mubr.bf16.mxu0 0
      %4053 = vmatmul.mubr.bf16.gmra.mrb[0].mxu0 %v3898
      %v4054 = vpop.f32.mrb[0].mxu0
      %v4055 = vadd.f32 0.0, %v4054
      %v4056 = vpop.f32.mrb[0].mxu0
      %v4057 = vpop.f32.mrb[0].mxu0
      %v4058 = vadd.f32 0.0, %v4057
      %v4059 = vpop.f32.mrb[0].mxu0
      %4060 = vdwg.mxu0
      %v4061 = vadd.f32 %v3881, %v3999
      %v4062 = vadd.f32 %v3882, %v4002
      %v4063 = vadd.f32 %v3883, %v4007
      %v4064 = vadd.f32 %v3884, %v4010
      %v4065 = vadd.f32 %v3885, %v4015
      %v4066 = vadd.f32 %v3886, %v4018
      %v4067 = vadd.f32 %v3887, %v4023
      %v4068 = vadd.f32 %v3888, %v4026
      %v4069 = vadd.f32 %v3889, %v4031
      %v4070 = vadd.f32 %v3890, %v4034
      %v4071 = vadd.f32 %v3891, %v4039
      %v4072 = vadd.f32 %v3892, %v4042
      %v4073 = vadd.f32 %v3893, %v4047
      %v4074 = vadd.f32 %v3894, %v4050
      %v4075 = vadd.f32 %v3895, %v4055
      %v4076 = vadd.f32 %v3896, %v4058
      %v4077 = vpack.c.bf16 %v816, %v3529
      %v4078 = vpack.c.bf16 %v816, %v3530
      %s4079 = scalar_lea.vmem %s1, 1088
      %v4080 = vld [vmem:[%s4079] sm:$0xf]
      %v4081 = vld [vmem:[%s4079 + $0x4] sm:$0xf]
      %v4082 = vld [vmem:[%s4079 + $0x8] sm:$0xf]
      %v4083 = vld [vmem:[%s4079 + $0xc] sm:$0xf]
      %v4084 = vld [vmem:[%s4079 + $0x10] sm:$0xf]
      %v4085 = vld [vmem:[%s4079 + $0x14] sm:$0xf]
      %v4086 = vld [vmem:[%s4079 + $0x18] sm:$0xf]
      %v4087 = vld [vmem:[%s4079 + $0x1c] sm:$0xf]
      %v4088 = vld [vmem:[%s4079 + $0x20] sm:$0xf]
      %v4089 = vld [vmem:[%s4079 + $0x24] sm:$0xf]
      %v4090 = vld [vmem:[%s4079 + $0x28] sm:$0xf]
      %v4091 = vld [vmem:[%s4079 + $0x2c] sm:$0xf]
      %v4092 = vld [vmem:[%s4079 + $0x30] sm:$0xf]
      %v4093 = vld [vmem:[%s4079 + $0x34] sm:$0xf]
      %v4094 = vld [vmem:[%s4079 + $0x38] sm:$0xf]
      %v4095 = vld [vmem:[%s4079 + $0x3c] sm:$0xf]
      %v4112 = vunpack.c.l.b16 %v4080
      %v4113 = vunpack.c.l.b16 %v4081
      %v4114 = vunpack.c.l.b16 %v4082
      %v4115 = vunpack.c.l.b16 %v4083
      %v4116 = vunpack.c.l.b16 %v4084
      %v4117 = vunpack.c.l.b16 %v4085
      %v4118 = vunpack.c.l.b16 %v4086
      %v4119 = vunpack.c.l.b16 %v4087
      %v4120 = vunpack.c.l.b16 %v4088
      %v4121 = vunpack.c.l.b16 %v4089
      %v4122 = vunpack.c.l.b16 %v4090
      %v4123 = vunpack.c.l.b16 %v4091
      %v4124 = vunpack.c.l.b16 %v4092
      %v4125 = vunpack.c.l.b16 %v4093
      %v4126 = vunpack.c.l.b16 %v4094
      %v4127 = vunpack.c.l.b16 %v4095
      %v4128 = vpack.c.b16 %v4113, %v4112
      %v4129 = vpack.c.b16 %v4115, %v4114
      %v4130 = vpack.c.b16 %v4117, %v4116
      %v4131 = vpack.c.b16 %v4119, %v4118
      %v4132 = vpack.c.b16 %v4121, %v4120
      %v4133 = vpack.c.b16 %v4123, %v4122
      %v4134 = vpack.c.b16 %v4125, %v4124
      %v4135 = vpack.c.b16 %v4127, %v4126
      %4144 = vmatprep.subr.bf16.mxu0 0
      %4145 = vmatpush1.bf16.msra.mxu0 %v4128
      %4146 = vmatprep.subr.bf16.mxu0 0
      %4147 = vmatpush1.bf16.msra.mxu0 %v4129
      %4148 = vmatprep.subr.bf16.mxu0 0
      %4149 = vmatpush1.bf16.msra.mxu0 %v4130
      %4150 = vmatprep.subr.bf16.mxu0 0
      %4151 = vmatpush1.bf16.msra.mxu0 %v4131
      %4152 = vmatprep.subr.bf16.mxu0 0
      %4153 = vmatpush1.bf16.msra.mxu0 %v4132
      %4154 = vmatprep.subr.bf16.mxu0 0
      %4155 = vmatpush1.bf16.msra.mxu0 %v4133
      %4156 = vmatprep.subr.bf16.mxu0 0
      %4157 = vmatpush1.bf16.msra.mxu0 %v4134
      %4158 = vmatprep.subr.bf16.mxu0 0
      %4159 = vmatpush1.bf16.msra.mxu0 %v4135
      %4160 = vmatprep.subr.bf16.mxu0 0
      %4161 = vmatpush1.bf16.msra.mxu0 0
      %4162 = vmatprep.subr.bf16.mxu0 0
      %4163 = vmatpush1.bf16.msra.mxu0 0
      %4164 = vmatprep.subr.bf16.mxu0 0
      %4165 = vmatpush1.bf16.msra.mxu0 0
      %4166 = vmatprep.subr.bf16.mxu0 0
      %4167 = vmatpush1.bf16.msra.mxu0 0
      %4168 = vmatprep.subr.bf16.mxu0 0
      %4169 = vmatpush1.bf16.msra.mxu0 0
      %4170 = vmatprep.subr.bf16.mxu0 0
      %4171 = vmatpush1.bf16.msra.mxu0 0
      %4172 = vmatprep.subr.bf16.mxu0 0
      %4173 = vmatpush1.bf16.msra.mxu0 0
      %4174 = vmatprep.subr.bf16.mxu0 0
      %4175 = vmatpush1.bf16.msra.mxu0 0
      %4176 = vmatprep.mubr.bf16.mxu0 0
      %4177 = vmatmul.mubr.bf16.gmra.mrb[0].mxu0 %v2960
      %v4178 = vpop.f32.mrb[0].mxu0
      %v4179 = vadd.f32 0.0, %v4178
      %v4180 = vpop.f32.mrb[0].mxu0
      %v4181 = vpop.f32.mrb[0].mxu0
      %v4182 = vadd.f32 0.0, %v4181
      %v4183 = vpop.f32.mrb[0].mxu0
      %4184 = vmatprep.mubr.bf16.mxu0 0
      %4185 = vmatmul.mubr.bf16.gmra.mrb[0].mxu0 %v2961
      %v4186 = vpop.f32.mrb[0].mxu0
      %v4187 = vadd.f32 0.0, %v4186
      %v4188 = vpop.f32.mrb[0].mxu0
      %v4189 = vpop.f32.mrb[0].mxu0
      %v4190 = vadd.f32 0.0, %v4189
      %v4191 = vpop.f32.mrb[0].mxu0
      %4192 = vmatprep.mubr.bf16.mxu0 0
      %4193 = vmatmul.mubr.bf16.gmra.mrb[0].mxu0 %v2962
      %v4194 = vpop.f32.mrb[0].mxu0
      %v4195 = vadd.f32 0.0, %v4194
      %v4196 = vpop.f32.mrb[0].mxu0
      %v4197 = vpop.f32.mrb[0].mxu0
      %v4198 = vadd.f32 0.0, %v4197
      %v4199 = vpop.f32.mrb[0].mxu0
      %4200 = vmatprep.mubr.bf16.mxu0 0
      %4201 = vmatmul.mubr.bf16.gmra.mrb[0].mxu0 %v4077
      %v4202 = vpop.f32.mrb[0].mxu0
      %v4203 = vadd.f32 0.0, %v4202
      %v4204 = vpop.f32.mrb[0].mxu0
      %v4205 = vpop.f32.mrb[0].mxu0
      %v4206 = vadd.f32 0.0, %v4205
      %v4207 = vpop.f32.mrb[0].mxu0
      %4208 = vmatprep.mubr.bf16.mxu0 0
      %4209 = vmatmul.mubr.bf16.gmra.mrb[0].mxu0 %v2964
      %v4210 = vpop.f32.mrb[0].mxu0
      %v4211 = vadd.f32 0.0, %v4210
      %v4212 = vpop.f32.mrb[0].mxu0
      %v4213 = vpop.f32.mrb[0].mxu0
      %v4214 = vadd.f32 0.0, %v4213
      %v4215 = vpop.f32.mrb[0].mxu0
      %4216 = vmatprep.mubr.bf16.mxu0 0
      %4217 = vmatmul.mubr.bf16.gmra.mrb[0].mxu0 %v2965
      %v4218 = vpop.f32.mrb[0].mxu0
      %v4219 = vadd.f32 0.0, %v4218
      %v4220 = vpop.f32.mrb[0].mxu0
      %v4221 = vpop.f32.mrb[0].mxu0
      %v4222 = vadd.f32 0.0, %v4221
      %v4223 = vpop.f32.mrb[0].mxu0
      %4224 = vmatprep.mubr.bf16.mxu0 0
      %4225 = vmatmul.mubr.bf16.gmra.mrb[0].mxu0 %v2966
      %v4226 = vpop.f32.mrb[0].mxu0
      %v4227 = vadd.f32 0.0, %v4226
      %v4228 = vpop.f32.mrb[0].mxu0
      %v4229 = vpop.f32.mrb[0].mxu0
      %v4230 = vadd.f32 0.0, %v4229
      %v4231 = vpop.f32.mrb[0].mxu0
      %4232 = vmatprep.mubr.bf16.mxu0 0
      %4233 = vmatmul.mubr.bf16.gmra.mrb[0].mxu0 %v4078
      %v4234 = vpop.f32.mrb[0].mxu0
      %v4235 = vadd.f32 0.0, %v4234
      %v4236 = vpop.f32.mrb[0].mxu0
      %v4237 = vpop.f32.mrb[0].mxu0
      %v4238 = vadd.f32 0.0, %v4237
      %v4239 = vpop.f32.mrb[0].mxu0
      %4240 = vdwg.mxu0
      %v4241 = vadd.f32 %v4061, %v4179
      %v4242 = vadd.f32 %v4062, %v4182
      %v4243 = vadd.f32 %v4063, %v4187
      %v4244 = vadd.f32 %v4064, %v4190
      %v4245 = vadd.f32 %v4065, %v4195
      %v4246 = vadd.f32 %v4066, %v4198
      %v4247 = vadd.f32 %v4067, %v4203
      %v4248 = vadd.f32 %v4068, %v4206
      %v4249 = vadd.f32 %v4069, %v4211
      %v4250 = vadd.f32 %v4070, %v4214
      %v4251 = vadd.f32 %v4071, %v4219
      %v4252 = vadd.f32 %v4072, %v4222
      %v4253 = vadd.f32 %v4073, %v4227
      %v4254 = vadd.f32 %v4074, %v4230
      %v4255 = vadd.f32 %v4075, %v4235
      %v4256 = vadd.f32 %v4076, %v4238
      %s4257 = scalar_lea.vmem %s2, 1
      %v4258 = vld [vmem:[%s4257] sm:$0x1]
      %v4260 = vlaneseq
      %v4261 = vshrl.u32 %v4260, 7
      %v4262 = vsub.s32 0, %v4261
      %v4263 = vrot.slane %v4258, %v4262
      %v4265 = vadd.f32 %v4241, %v4263
      %v4266 = vadd.f32 %v4242, %v4263
      %v4267 = vadd.f32 %v4243, %v4263
      %v4268 = vadd.f32 %v4244, %v4263
      %v4269 = vadd.f32 %v4245, %v4263
      %v4270 = vadd.f32 %v4246, %v4263
      %v4271 = vadd.f32 %v4247, %v4263
      %v4272 = vadd.f32 %v4248, %v4263
      %v4273 = vadd.f32 %v4249, %v4263
      %v4274 = vadd.f32 %v4250, %v4263
      %v4275 = vadd.f32 %v4251, %v4263
      %v4276 = vadd.f32 %v4252, %v4263
      %v4277 = vadd.f32 %v4253, %v4263
      %v4278 = vadd.f32 %v4254, %v4263
      %v4279 = vadd.f32 %v4255, %v4263
      %v4280 = vadd.f32 %v4256, %v4263
      %v4281 = vadd.f32 %v4265, %v4266
      %v4282 = vadd.f32 %v4281, %v4267
      %v4283 = vadd.f32 %v4282, %v4268
      %v4284 = vadd.f32 %v4283, %v4269
      %v4285 = vadd.f32 %v4284, %v4270
      %v4286 = vadd.f32 %v4285, %v4271
      %v4287 = vadd.f32 %v4286, %v4272
      %v4288 = vrot.slane %v4287, 4
      %v4289 = vadd.f32 %v4287, %v4288
      %v4290 = vrot.slane %v4289, 2
      %v4291 = vadd.f32 %v4289, %v4290
      %v4292 = vrot.slane %v4291, 1
      %v4293 = vadd.f32 %v4291, %v4292
      %v4294 = vadd.f32 %v4273, %v4274
      %v4295 = vadd.f32 %v4294, %v4275
      %v4296 = vadd.f32 %v4295, %v4276
      %v4297 = vadd.f32 %v4296, %v4277
      %v4298 = vadd.f32 %v4297, %v4278
      %v4299 = vadd.f32 %v4298, %v4279
      %v4300 = vadd.f32 %v4299, %v4280
      %v4301 = vrot.slane %v4300, 4
      %v4302 = vadd.f32 %v4300, %v4301
      %v4303 = vrot.slane %v4302, 2
      %v4304 = vadd.f32 %v4302, %v4303
      %v4305 = vrot.slane %v4304, 1
      %v4306 = vadd.f32 %v4304, %v4305
      %v4307 = vmul.f32 %v4265, %v4265
      %v4308 = vmul.f32 %v4266, %v4266
      %v4309 = vmul.f32 %v4267, %v4267
      %v4310 = vmul.f32 %v4268, %v4268
      %v4311 = vmul.f32 %v4269, %v4269
      %v4312 = vmul.f32 %v4270, %v4270
      %v4313 = vmul.f32 %v4271, %v4271
      %v4314 = vmul.f32 %v4272, %v4272
      %v4315 = vmul.f32 %v4273, %v4273
      %v4316 = vmul.f32 %v4274, %v4274
      %v4317 = vmul.f32 %v4275, %v4275
      %v4318 = vmul.f32 %v4276, %v4276
      %v4319 = vmul.f32 %v4277, %v4277
      %v4320 = vmul.f32 %v4278, %v4278
      %v4321 = vmul.f32 %v4279, %v4279
      %v4322 = vmul.f32 %v4280, %v4280
      %v4323 = vadd.f32 %v4307, %v4308
      %v4324 = vadd.f32 %v4323, %v4309
      %v4325 = vadd.f32 %v4324, %v4310
      %v4326 = vadd.f32 %v4325, %v4311
      %v4327 = vadd.f32 %v4326, %v4312
      %v4328 = vadd.f32 %v4327, %v4313
      %v4329 = vadd.f32 %v4328, %v4314
      %v4330 = vrot.slane %v4329, 4
      %v4331 = vadd.f32 %v4329, %v4330
      %v4332 = vrot.slane %v4331, 2
      %v4333 = vadd.f32 %v4331, %v4332
      %v4334 = vrot.slane %v4333, 1
      %v4335 = vadd.f32 %v4333, %v4334
      %v4336 = vadd.f32 %v4315, %v4316
      %v4337 = vadd.f32 %v4336, %v4317
      %v4338 = vadd.f32 %v4337, %v4318
      %v4339 = vadd.f32 %v4338, %v4319
      %v4340 = vadd.f32 %v4339, %v4320
      %v4341 = vadd.f32 %v4340, %v4321
      %v4342 = vadd.f32 %v4341, %v4322
      %v4343 = vrot.slane %v4342, 4
      %v4344 = vadd.f32 %v4342, %v4343
      %v4345 = vrot.slane %v4344, 2
      %v4346 = vadd.f32 %v4344, %v4345
      %v4347 = vrot.slane %v4346, 1
      %v4348 = vadd.f32 %v4346, %v4347
      %v4351 = vsel %vm2238, %v4306, %v4293
      %4353 = vmatprep.subr.mxu0 0.0
      %4354 = vmatpush1.msra.mxu0 %v2220
      %4355 = vmatprep.subr.mxu0 0.0
      %4356 = vmatpush1.msra.mxu0 %v2221
      %4357 = vmatprep.subr.mxu0 0.0
      %4358 = vmatpush1.msra.mxu0 %v2222
      %4359 = vmatprep.subr.mxu0 0.0
      %4360 = vmatpush1.msra.mxu0 %v2223
      %4361 = vmatprep.subr.mxu0 0.0
      %4362 = vmatpush1.msra.mxu0 %v2224
      %4363 = vmatprep.subr.mxu0 0.0
      %4364 = vmatpush1.msra.mxu0 %v2225
      %4365 = vmatprep.subr.mxu0 0.0
      %4366 = vmatpush1.msra.mxu0 %v2226
      %4367 = vmatprep.subr.mxu0 0.0
      %4368 = vmatpush1.msra.mxu0 %v2227
      %4369 = vmatprep.subr.mxu0 0.0
      %4370 = vmatpush1.msra.mxu0 %v2228
      %4371 = vmatprep.subr.mxu0 0.0
      %4372 = vmatpush1.msra.mxu0 %v2229
      %4373 = vmatprep.subr.mxu0 0.0
      %4374 = vmatpush1.msra.mxu0 %v2230
      %4375 = vmatprep.subr.mxu0 0.0
      %4376 = vmatpush1.msra.mxu0 %v2231
      %4377 = vmatprep.subr.mxu0 0.0
      %4378 = vmatpush1.msra.mxu0 %v2232
      %4379 = vmatprep.subr.mxu0 0.0
      %4380 = vmatpush1.msra.mxu0 %v2233
      %4381 = vmatprep.subr.mxu0 0.0
      %4382 = vmatpush1.msra.mxu0 %v2234
      %4383 = vmatprep.subr.mxu0 0.0
      %4384 = vmatpush1.msra.mxu0 %v2235
      %4385 = vmatprep.subr.mxu0 0.0
      %4386 = vmatpush1.msra.mxu0 0.0
      %4387 = vmatprep.subr.mxu0 0.0
      %4388 = vmatpush1.msra.mxu0 0.0
      %4389 = vmatprep.subr.mxu0 0.0
      %4390 = vmatpush1.msra.mxu0 0.0
      %4391 = vmatprep.subr.mxu0 0.0
      %4392 = vmatpush1.msra.mxu0 0.0
      %4393 = vmatprep.subr.mxu0 0.0
      %4394 = vmatpush1.msra.mxu0 0.0
      %4395 = vmatprep.subr.mxu0 0.0
      %4396 = vmatpush1.msra.mxu0 0.0
      %4397 = vmatprep.subr.mxu0 0.0
      %4398 = vmatpush1.msra.mxu0 0.0
      %4399 = vmatprep.subr.mxu0 0.0
      %4400 = vmatpush1.msra.mxu0 0.0
      %4401 = vmatprep.subr.mxu0 0.0
      %4402 = vmatpush1.msra.mxu0 0.0
      %4403 = vmatprep.subr.mxu0 0.0
      %4404 = vmatpush1.msra.mxu0 0.0
      %4405 = vmatprep.subr.mxu0 0.0
      %4406 = vmatpush1.msra.mxu0 0.0
      %4407 = vmatprep.subr.mxu0 0.0
      %4408 = vmatpush1.msra.mxu0 0.0
      %4409 = vmatprep.subr.mxu0 0.0
      %4410 = vmatpush1.msra.mxu0 0.0
      %4411 = vmatprep.subr.mxu0 0.0
      %4412 = vmatpush1.msra.mxu0 0.0
      %4413 = vmatprep.subr.mxu0 0.0
      %4414 = vmatpush1.msra.mxu0 0.0
      %4415 = vmatprep.subr.mxu0 0.0
      %4416 = vmatpush1.msra.mxu0 0.0
      %4417 = vmatprep.mubr.f32.mxu0 0.0
      %4418 = vmatmul.mubr.f32.gmra.mrb[0].mxu0 %v4351
      %v4419 = vpop.f32.mrb[0].mxu0
      %v4420 = vadd.f32 0.0, %v4419
      %v4421 = vpop.f32.mrb[0].mxu0
      %4422 = vdwg.mxu0
      %v4425 = vsel %vm2238, %v4348, %v4335
      %4427 = vmatprep.subr.mxu0 0.0
      %4428 = vmatpush1.msra.mxu0 %v2220
      %4429 = vmatprep.subr.mxu0 0.0
      %4430 = vmatpush1.msra.mxu0 %v2221
      %4431 = vmatprep.subr.mxu0 0.0
      %4432 = vmatpush1.msra.mxu0 %v2222
      %4433 = vmatprep.subr.mxu0 0.0
      %4434 = vmatpush1.msra.mxu0 %v2223
      %4435 = vmatprep.subr.mxu0 0.0
      %4436 = vmatpush1.msra.mxu0 %v2224
      %4437 = vmatprep.subr.mxu0 0.0
      %4438 = vmatpush1.msra.mxu0 %v2225
      %4439 = vmatprep.subr.mxu0 0.0
      %4440 = vmatpush1.msra.mxu0 %v2226
      %4441 = vmatprep.subr.mxu0 0.0
      %4442 = vmatpush1.msra.mxu0 %v2227
      %4443 = vmatprep.subr.mxu0 0.0
      %4444 = vmatpush1.msra.mxu0 %v2228
      %4445 = vmatprep.subr.mxu0 0.0
      %4446 = vmatpush1.msra.mxu0 %v2229
      %4447 = vmatprep.subr.mxu0 0.0
      %4448 = vmatpush1.msra.mxu0 %v2230
      %4449 = vmatprep.subr.mxu0 0.0
      %4450 = vmatpush1.msra.mxu0 %v2231
      %4451 = vmatprep.subr.mxu0 0.0
      %4452 = vmatpush1.msra.mxu0 %v2232
      %4453 = vmatprep.subr.mxu0 0.0
      %4454 = vmatpush1.msra.mxu0 %v2233
      %4455 = vmatprep.subr.mxu0 0.0
      %4456 = vmatpush1.msra.mxu0 %v2234
      %4457 = vmatprep.subr.mxu0 0.0
      %4458 = vmatpush1.msra.mxu0 %v2235
      %4459 = vmatprep.subr.mxu0 0.0
      %4460 = vmatpush1.msra.mxu0 0.0
      %4461 = vmatprep.subr.mxu0 0.0
      %4462 = vmatpush1.msra.mxu0 0.0
      %4463 = vmatprep.subr.mxu0 0.0
      %4464 = vmatpush1.msra.mxu0 0.0
      %4465 = vmatprep.subr.mxu0 0.0
      %4466 = vmatpush1.msra.mxu0 0.0
      %4467 = vmatprep.subr.mxu0 0.0
      %4468 = vmatpush1.msra.mxu0 0.0
      %4469 = vmatprep.subr.mxu0 0.0
      %4470 = vmatpush1.msra.mxu0 0.0
      %4471 = vmatprep.subr.mxu0 0.0
      %4472 = vmatpush1.msra.mxu0 0.0
      %4473 = vmatprep.subr.mxu0 0.0
      %4474 = vmatpush1.msra.mxu0 0.0
      %4475 = vmatprep.subr.mxu0 0.0
      %4476 = vmatpush1.msra.mxu0 0.0
      %4477 = vmatprep.subr.mxu0 0.0
      %4478 = vmatpush1.msra.mxu0 0.0
      %4479 = vmatprep.subr.mxu0 0.0
      %4480 = vmatpush1.msra.mxu0 0.0
      %4481 = vmatprep.subr.mxu0 0.0
      %4482 = vmatpush1.msra.mxu0 0.0
      %4483 = vmatprep.subr.mxu0 0.0
      %4484 = vmatpush1.msra.mxu0 0.0
      %4485 = vmatprep.subr.mxu0 0.0
      %4486 = vmatpush1.msra.mxu0 0.0
      %4487 = vmatprep.subr.mxu0 0.0
      %4488 = vmatpush1.msra.mxu0 0.0
      %4489 = vmatprep.subr.mxu0 0.0
      %4490 = vmatpush1.msra.mxu0 0.0
      %4491 = vmatprep.mubr.f32.mxu0 0.0
      %4492 = vmatmul.mubr.f32.gmra.mrb[0].mxu0 %v4425
      %v4493 = vpop.f32.mrb[0].mxu0
      %v4494 = vadd.f32 0.0, %v4493
      %v4495 = vpop.f32.mrb[0].mxu0
      %4496 = vdwg.mxu0
      %v4497 = vmul.f32 %v4420, %v4420
      %v4498 = vsub.f32 %v4494, %v4497
      %v4499 = vmax.f32 %v4498, 0.0
      %v4500 = vadd.f32 %v4499, 1e-05
      %v4501 = vrsqrt.pop %v4500
      %s4502 = scalar_lea.vmem %s3, 1
      %v4503 = vld [vmem:[%s4502] sm:$0x1]
      %v4505 = vlaneseq
      %v4506 = vshrl.u32 %v4505, 7
      %v4507 = vsub.s32 0, %v4506
      %v4508 = vrot.slane %v4503, %v4507
      %v4510 = vmul.f32 %v4501, %v4508
      %s4511 = scalar_lea.vmem %s4, 1
      %v4512 = vld [vmem:[%s4511] sm:$0x1]
      %v4513 = vmul.f32 %v4420, %v4510
      %v4515 = vlaneseq
      %v4516 = vshrl.u32 %v4515, 7
      %v4517 = vsub.s32 0, %v4516
      %v4518 = vrot.slane %v4512, %v4517
      %v4520 = vsub.f32 %v4518, %v4513
      %v4523 = vunpack.c.l.s4 1966171168
      %v4524 = vunpack.c.0.s8 %v4523
      %v4525 = vlaneseq
      %v4526 = vshrl.u32 %v4525, 7
      %v4527 = vsub.s32 %v4524, %v4526
      %v4528 = vrot.slane %v4510, %v4527
      %v4529 = vcombine.high %v4528, %v4528
      %v4531 = vunpack.c.l.s4 1966171168
      %v4532 = vunpack.c.0.s8 %v4531
      %v4533 = vlaneseq
      %v4534 = vshrl.u32 %v4533, 7
      %v4535 = vsub.s32 %v4532, %v4534
      %v4536 = vrot.slane %v4528, %v4535
      %v4538 = vunpack.c.l.s4 1966171168
      %v4539 = vunpack.c.0.s8 %v4538
      %v4540 = vlaneseq
      %v4541 = vshrl.u32 %v4540, 7
      %v4542 = vsub.s32 %v4539, %v4541
      %v4543 = vrot.slane %v4529, %v4542
      %v4544 = vlaneseq
      %v4545 = vshrl.u32 %v4544, 7
      %v4546 = vsub.s32 0, %v4545
      %v4547 = vrot.slane %v4536, %v4546
      %v4548 = vlaneseq
      %v4549 = vshrl.u32 %v4548, 7
      %v4550 = vsub.s32 0, %v4549
      %v4551 = vrot.slane %v4543, %v4550
      %v4554 = vmul.f32 %v4265, %v4547
      %v4555 = vmul.f32 %v4266, %v4547
      %v4556 = vmul.f32 %v4267, %v4547
      %v4557 = vmul.f32 %v4268, %v4547
      %v4558 = vmul.f32 %v4269, %v4547
      %v4559 = vmul.f32 %v4270, %v4547
      %v4560 = vmul.f32 %v4271, %v4547
      %v4561 = vmul.f32 %v4272, %v4547
      %v4562 = vmul.f32 %v4273, %v4551
      %v4563 = vmul.f32 %v4274, %v4551
      %v4564 = vmul.f32 %v4275, %v4551
      %v4565 = vmul.f32 %v4276, %v4551
      %v4566 = vmul.f32 %v4277, %v4551
      %v4567 = vmul.f32 %v4278, %v4551
      %v4568 = vmul.f32 %v4279, %v4551
      %v4569 = vmul.f32 %v4280, %v4551
      %v4572 = vunpack.c.l.s4 1966171168
      %v4573 = vunpack.c.0.s8 %v4572
      %v4574 = vlaneseq
      %v4575 = vshrl.u32 %v4574, 7
      %v4576 = vsub.s32 %v4573, %v4575
      %v4577 = vrot.slane %v4520, %v4576
      %v4578 = vcombine.high %v4577, %v4577
      %v4580 = vunpack.c.l.s4 1966171168
      %v4581 = vunpack.c.0.s8 %v4580
      %v4582 = vlaneseq
      %v4583 = vshrl.u32 %v4582, 7
      %v4584 = vsub.s32 %v4581, %v4583
      %v4585 = vrot.slane %v4577, %v4584
      %v4587 = vunpack.c.l.s4 1966171168
      %v4588 = vunpack.c.0.s8 %v4587
      %v4589 = vlaneseq
      %v4590 = vshrl.u32 %v4589, 7
      %v4591 = vsub.s32 %v4588, %v4590
      %v4592 = vrot.slane %v4578, %v4591
      %v4593 = vlaneseq
      %v4594 = vshrl.u32 %v4593, 7
      %v4595 = vsub.s32 0, %v4594
      %v4596 = vrot.slane %v4585, %v4595
      %v4597 = vlaneseq
      %v4598 = vshrl.u32 %v4597, 7
      %v4599 = vsub.s32 0, %v4598
      %v4600 = vrot.slane %v4592, %v4599
      %v4603 = vadd.f32 %v4554, %v4596
      %v4604 = vadd.f32 %v4555, %v4596
      %v4605 = vadd.f32 %v4556, %v4596
      %v4606 = vadd.f32 %v4557, %v4596
      %v4607 = vadd.f32 %v4558, %v4596
      %v4608 = vadd.f32 %v4559, %v4596
      %v4609 = vadd.f32 %v4560, %v4596
      %v4610 = vadd.f32 %v4561, %v4596
      %v4611 = vadd.f32 %v4562, %v4600
      %v4612 = vadd.f32 %v4563, %v4600
      %v4613 = vadd.f32 %v4564, %v4600
      %v4614 = vadd.f32 %v4565, %v4600
      %v4615 = vadd.f32 %v4566, %v4600
      %v4616 = vadd.f32 %v4567, %v4600
      %v4617 = vadd.f32 %v4568, %v4600
      %v4618 = vadd.f32 %v4569, %v4600
      %v4619 = vmax.f32 %v4603, 0.0
      %v4620 = vmax.f32 %v4604, 0.0
      %v4621 = vmax.f32 %v4605, 0.0
      %v4622 = vmax.f32 %v4606, 0.0
      %v4623 = vmax.f32 %v4607, 0.0
      %v4624 = vmax.f32 %v4608, 0.0
      %v4625 = vmax.f32 %v4609, 0.0
      %v4626 = vmax.f32 %v4610, 0.0
      %v4627 = vmax.f32 %v4611, 0.0
      %v4628 = vmax.f32 %v4612, 0.0
      %v4629 = vmax.f32 %v4613, 0.0
      %v4630 = vmax.f32 %v4614, 0.0
      %v4631 = vmax.f32 %v4615, 0.0
      %v4632 = vmax.f32 %v4616, 0.0
      %v4633 = vmax.f32 %v4617, 0.0
      %v4634 = vmax.f32 %v4618, 0.0
      %v4649 = vrot.slane %v4619, 7
      %v4650 = vrot.slane %v4620, 7
      %v4651 = vrot.slane %v4621, 7
      %v4652 = vrot.slane %v4622, 7
      %v4653 = vrot.slane %v4623, 7
      %v4654 = vrot.slane %v4624, 7
      %v4655 = vrot.slane %v4625, 7
      %v4656 = vrot.slane %v4627, 7
      %v4657 = vrot.slane %v4628, 7
      %v4658 = vrot.slane %v4629, 7
      %v4659 = vrot.slane %v4630, 7
      %v4660 = vrot.slane %v4631, 7
      %v4661 = vrot.slane %v4632, 7
      %v4662 = vrot.slane %v4633, 7
      %v4677 = vsel %vm430, 0.0, %v4649
      %v4678 = vsel %vm430, 0.0, %v4650
      %v4679 = vsel %vm430, 0.0, %v4651
      %v4680 = vsel %vm430, 0.0, %v4652
      %v4681 = vsel %vm430, 0.0, %v4653
      %v4682 = vsel %vm430, 0.0, %v4654
      %v4683 = vsel %vm430, 0.0, %v4655
      %v4684 = vsel %vm430, 0.0, %v4656
      %v4685 = vsel %vm430, 0.0, %v4657
      %v4686 = vsel %vm430, 0.0, %v4658
      %v4687 = vsel %vm430, 0.0, %v4659
      %v4688 = vsel %vm430, 0.0, %v4660
      %v4689 = vsel %vm430, 0.0, %v4661
      %v4690 = vsel %vm430, 0.0, %v4662
      %v4691 = vpack.c.bf16 %v4677, %v431
      %v4692 = vpack.c.bf16 %v4679, %v4678
      %v4693 = vpack.c.bf16 %v4681, %v4680
      %v4694 = vpack.c.bf16 %v4683, %v4682
      %v4695 = vpack.c.bf16 %v4684, %v431
      %v4696 = vpack.c.bf16 %v4686, %v4685
      %v4697 = vpack.c.bf16 %v4688, %v4687
      %v4698 = vpack.c.bf16 %v4690, %v4689
      %s4699 = scalar_lea.vmem %s1, 1152
      %v4700 = vld [vmem:[%s4699] sm:$0xf]
      %v4701 = vld [vmem:[%s4699 + $0x4] sm:$0xf]
      %v4702 = vld [vmem:[%s4699 + $0x8] sm:$0xf]
      %v4703 = vld [vmem:[%s4699 + $0xc] sm:$0xf]
      %v4704 = vld [vmem:[%s4699 + $0x10] sm:$0xf]
      %v4705 = vld [vmem:[%s4699 + $0x14] sm:$0xf]
      %v4706 = vld [vmem:[%s4699 + $0x18] sm:$0xf]
      %v4707 = vld [vmem:[%s4699 + $0x1c] sm:$0xf]
      %v4708 = vld [vmem:[%s4699 + $0x20] sm:$0xf]
      %v4709 = vld [vmem:[%s4699 + $0x24] sm:$0xf]
      %v4710 = vld [vmem:[%s4699 + $0x28] sm:$0xf]
      %v4711 = vld [vmem:[%s4699 + $0x2c] sm:$0xf]
      %v4712 = vld [vmem:[%s4699 + $0x30] sm:$0xf]
      %v4713 = vld [vmem:[%s4699 + $0x34] sm:$0xf]
      %v4714 = vld [vmem:[%s4699 + $0x38] sm:$0xf]
      %v4715 = vld [vmem:[%s4699 + $0x3c] sm:$0xf]
      %v4716 = vpack.c.bf16 %v4619, 0.0
      %v4717 = vpack.c.bf16 %v4621, %v4620
      %v4718 = vpack.c.bf16 %v4623, %v4622
      %v4719 = vpack.c.bf16 %v4625, %v4624
      %v4720 = vpack.c.bf16 %v4627, 0.0
      %v4721 = vpack.c.bf16 %v4629, %v4628
      %v4722 = vpack.c.bf16 %v4631, %v4630
      %v4723 = vpack.c.bf16 %v4633, %v4632
      %s4724 = scalar_lea.vmem %s1, 1216
      %v4725 = vld [vmem:[%s4724] sm:$0xf]
      %v4726 = vld [vmem:[%s4724 + $0x4] sm:$0xf]
      %v4727 = vld [vmem:[%s4724 + $0x8] sm:$0xf]
      %v4728 = vld [vmem:[%s4724 + $0xc] sm:$0xf]
      %v4729 = vld [vmem:[%s4724 + $0x10] sm:$0xf]
      %v4730 = vld [vmem:[%s4724 + $0x14] sm:$0xf]
      %v4731 = vld [vmem:[%s4724 + $0x18] sm:$0xf]
      %v4732 = vld [vmem:[%s4724 + $0x1c] sm:$0xf]
      %v4733 = vld [vmem:[%s4724 + $0x20] sm:$0xf]
      %v4734 = vld [vmem:[%s4724 + $0x24] sm:$0xf]
      %v4735 = vld [vmem:[%s4724 + $0x28] sm:$0xf]
      %v4736 = vld [vmem:[%s4724 + $0x2c] sm:$0xf]
      %v4737 = vld [vmem:[%s4724 + $0x30] sm:$0xf]
      %v4738 = vld [vmem:[%s4724 + $0x34] sm:$0xf]
      %v4739 = vld [vmem:[%s4724 + $0x38] sm:$0xf]
      %v4740 = vld [vmem:[%s4724 + $0x3c] sm:$0xf]
      %v4757 = vunpack.c.l.b16 %v4725
      %v4758 = vunpack.c.l.b16 %v4726
      %v4759 = vunpack.c.l.b16 %v4727
      %v4760 = vunpack.c.l.b16 %v4728
      %v4761 = vunpack.c.l.b16 %v4729
      %v4762 = vunpack.c.l.b16 %v4730
      %v4763 = vunpack.c.l.b16 %v4731
      %v4764 = vunpack.c.l.b16 %v4732
      %v4765 = vunpack.c.l.b16 %v4733
      %v4766 = vunpack.c.l.b16 %v4734
      %v4767 = vunpack.c.l.b16 %v4735
      %v4768 = vunpack.c.l.b16 %v4736
      %v4769 = vunpack.c.l.b16 %v4737
      %v4770 = vunpack.c.l.b16 %v4738
      %v4771 = vunpack.c.l.b16 %v4739
      %v4772 = vunpack.c.l.b16 %v4740
      %v4773 = vpack.c.b16 %v4758, %v4757
      %v4774 = vpack.c.b16 %v4760, %v4759
      %v4775 = vpack.c.b16 %v4762, %v4761
      %v4776 = vpack.c.b16 %v4764, %v4763
      %v4777 = vpack.c.b16 %v4766, %v4765
      %v4778 = vpack.c.b16 %v4768, %v4767
      %v4779 = vpack.c.b16 %v4770, %v4769
      %v4780 = vpack.c.b16 %v4772, %v4771
      %4789 = vmatprep.subr.bf16.mxu0 0
      %4790 = vmatpush1.bf16.msra.mxu0 %v4773
      %4791 = vmatprep.subr.bf16.mxu0 0
      %4792 = vmatpush1.bf16.msra.mxu0 %v4774
      %4793 = vmatprep.subr.bf16.mxu0 0
      %4794 = vmatpush1.bf16.msra.mxu0 %v4775
      %4795 = vmatprep.subr.bf16.mxu0 0
      %4796 = vmatpush1.bf16.msra.mxu0 %v4776
      %4797 = vmatprep.subr.bf16.mxu0 0
      %4798 = vmatpush1.bf16.msra.mxu0 %v4777
      %4799 = vmatprep.subr.bf16.mxu0 0
      %4800 = vmatpush1.bf16.msra.mxu0 %v4778
      %4801 = vmatprep.subr.bf16.mxu0 0
      %4802 = vmatpush1.bf16.msra.mxu0 %v4779
      %4803 = vmatprep.subr.bf16.mxu0 0
      %4804 = vmatpush1.bf16.msra.mxu0 %v4780
      %4805 = vmatprep.subr.bf16.mxu0 0
      %4806 = vmatpush1.bf16.msra.mxu0 0
      %4807 = vmatprep.subr.bf16.mxu0 0
      %4808 = vmatpush1.bf16.msra.mxu0 0
      %4809 = vmatprep.subr.bf16.mxu0 0
      %4810 = vmatpush1.bf16.msra.mxu0 0
      %4811 = vmatprep.subr.bf16.mxu0 0
      %4812 = vmatpush1.bf16.msra.mxu0 0
      %4813 = vmatprep.subr.bf16.mxu0 0
      %4814 = vmatpush1.bf16.msra.mxu0 0
      %4815 = vmatprep.subr.bf16.mxu0 0
      %4816 = vmatpush1.bf16.msra.mxu0 0
      %4817 = vmatprep.subr.bf16.mxu0 0
      %4818 = vmatpush1.bf16.msra.mxu0 0
      %4819 = vmatprep.subr.bf16.mxu0 0
      %4820 = vmatpush1.bf16.msra.mxu0 0
      %4821 = vmatprep.mubr.bf16.mxu0 0
      %4822 = vmatmul.mubr.bf16.gmra.mrb[0].mxu0 %v4716
      %v4823 = vpop.f32.mrb[0].mxu0
      %v4824 = vadd.f32 0.0, %v4823
      %v4825 = vpop.f32.mrb[0].mxu0
      %v4826 = vpop.f32.mrb[0].mxu0
      %v4827 = vadd.f32 0.0, %v4826
      %v4828 = vpop.f32.mrb[0].mxu0
      %4829 = vmatprep.mubr.bf16.mxu0 0
      %4830 = vmatmul.mubr.bf16.gmra.mrb[0].mxu0 %v4717
      %v4831 = vpop.f32.mrb[0].mxu0
      %v4832 = vadd.f32 0.0, %v4831
      %v4833 = vpop.f32.mrb[0].mxu0
      %v4834 = vpop.f32.mrb[0].mxu0
      %v4835 = vadd.f32 0.0, %v4834
      %v4836 = vpop.f32.mrb[0].mxu0
      %4837 = vmatprep.mubr.bf16.mxu0 0
      %4838 = vmatmul.mubr.bf16.gmra.mrb[0].mxu0 %v4718
      %v4839 = vpop.f32.mrb[0].mxu0
      %v4840 = vadd.f32 0.0, %v4839
      %v4841 = vpop.f32.mrb[0].mxu0
      %v4842 = vpop.f32.mrb[0].mxu0
      %v4843 = vadd.f32 0.0, %v4842
      %v4844 = vpop.f32.mrb[0].mxu0
      %4845 = vmatprep.mubr.bf16.mxu0 0
      %4846 = vmatmul.mubr.bf16.gmra.mrb[0].mxu0 %v4719
      %v4847 = vpop.f32.mrb[0].mxu0
      %v4848 = vadd.f32 0.0, %v4847
      %v4849 = vpop.f32.mrb[0].mxu0
      %v4850 = vpop.f32.mrb[0].mxu0
      %v4851 = vadd.f32 0.0, %v4850
      %v4852 = vpop.f32.mrb[0].mxu0
      %4853 = vmatprep.mubr.bf16.mxu0 0
      %4854 = vmatmul.mubr.bf16.gmra.mrb[0].mxu0 %v4720
      %v4855 = vpop.f32.mrb[0].mxu0
      %v4856 = vadd.f32 0.0, %v4855
      %v4857 = vpop.f32.mrb[0].mxu0
      %v4858 = vpop.f32.mrb[0].mxu0
      %v4859 = vadd.f32 0.0, %v4858
      %v4860 = vpop.f32.mrb[0].mxu0
      %4861 = vmatprep.mubr.bf16.mxu0 0
      %4862 = vmatmul.mubr.bf16.gmra.mrb[0].mxu0 %v4721
      %v4863 = vpop.f32.mrb[0].mxu0
      %v4864 = vadd.f32 0.0, %v4863
      %v4865 = vpop.f32.mrb[0].mxu0
      %v4866 = vpop.f32.mrb[0].mxu0
      %v4867 = vadd.f32 0.0, %v4866
      %v4868 = vpop.f32.mrb[0].mxu0
      %4869 = vmatprep.mubr.bf16.mxu0 0
      %4870 = vmatmul.mubr.bf16.gmra.mrb[0].mxu0 %v4722
      %v4871 = vpop.f32.mrb[0].mxu0
      %v4872 = vadd.f32 0.0, %v4871
      %v4873 = vpop.f32.mrb[0].mxu0
      %v4874 = vpop.f32.mrb[0].mxu0
      %v4875 = vadd.f32 0.0, %v4874
      %v4876 = vpop.f32.mrb[0].mxu0
      %4877 = vmatprep.mubr.bf16.mxu0 0
      %4878 = vmatmul.mubr.bf16.gmra.mrb[0].mxu0 %v4723
      %v4879 = vpop.f32.mrb[0].mxu0
      %v4880 = vadd.f32 0.0, %v4879
      %v4881 = vpop.f32.mrb[0].mxu0
      %v4882 = vpop.f32.mrb[0].mxu0
      %v4883 = vadd.f32 0.0, %v4882
      %v4884 = vpop.f32.mrb[0].mxu0
      %4885 = vdwg.mxu0
      %v4902 = vunpack.c.l.b16 %v4700
      %v4903 = vunpack.c.l.b16 %v4701
      %v4904 = vunpack.c.l.b16 %v4702
      %v4905 = vunpack.c.l.b16 %v4703
      %v4906 = vunpack.c.l.b16 %v4704
      %v4907 = vunpack.c.l.b16 %v4705
      %v4908 = vunpack.c.l.b16 %v4706
      %v4909 = vunpack.c.l.b16 %v4707
      %v4910 = vunpack.c.l.b16 %v4708
      %v4911 = vunpack.c.l.b16 %v4709
      %v4912 = vunpack.c.l.b16 %v4710
      %v4913 = vunpack.c.l.b16 %v4711
      %v4914 = vunpack.c.l.b16 %v4712
      %v4915 = vunpack.c.l.b16 %v4713
      %v4916 = vunpack.c.l.b16 %v4714
      %v4917 = vunpack.c.l.b16 %v4715
      %v4918 = vpack.c.b16 %v4903, %v4902
      %v4919 = vpack.c.b16 %v4905, %v4904
      %v4920 = vpack.c.b16 %v4907, %v4906
      %v4921 = vpack.c.b16 %v4909, %v4908
      %v4922 = vpack.c.b16 %v4911, %v4910
      %v4923 = vpack.c.b16 %v4913, %v4912
      %v4924 = vpack.c.b16 %v4915, %v4914
      %v4925 = vpack.c.b16 %v4917, %v4916
      %4934 = vmatprep.subr.bf16.mxu0 0
      %4935 = vmatpush1.bf16.msra.mxu0 %v4918
      %4936 = vmatprep.subr.bf16.mxu0 0
      %4937 = vmatpush1.bf16.msra.mxu0 %v4919
      %4938 = vmatprep.subr.bf16.mxu0 0
      %4939 = vmatpush1.bf16.msra.mxu0 %v4920
      %4940 = vmatprep.subr.bf16.mxu0 0
      %4941 = vmatpush1.bf16.msra.mxu0 %v4921
      %4942 = vmatprep.subr.bf16.mxu0 0
      %4943 = vmatpush1.bf16.msra.mxu0 %v4922
      %4944 = vmatprep.subr.bf16.mxu0 0
      %4945 = vmatpush1.bf16.msra.mxu0 %v4923
      %4946 = vmatprep.subr.bf16.mxu0 0
      %4947 = vmatpush1.bf16.msra.mxu0 %v4924
      %4948 = vmatprep.subr.bf16.mxu0 0
      %4949 = vmatpush1.bf16.msra.mxu0 %v4925
      %4950 = vmatprep.subr.bf16.mxu0 0
      %4951 = vmatpush1.bf16.msra.mxu0 0
      %4952 = vmatprep.subr.bf16.mxu0 0
      %4953 = vmatpush1.bf16.msra.mxu0 0
      %4954 = vmatprep.subr.bf16.mxu0 0
      %4955 = vmatpush1.bf16.msra.mxu0 0
      %4956 = vmatprep.subr.bf16.mxu0 0
      %4957 = vmatpush1.bf16.msra.mxu0 0
      %4958 = vmatprep.subr.bf16.mxu0 0
      %4959 = vmatpush1.bf16.msra.mxu0 0
      %4960 = vmatprep.subr.bf16.mxu0 0
      %4961 = vmatpush1.bf16.msra.mxu0 0
      %4962 = vmatprep.subr.bf16.mxu0 0
      %4963 = vmatpush1.bf16.msra.mxu0 0
      %4964 = vmatprep.subr.bf16.mxu0 0
      %4965 = vmatpush1.bf16.msra.mxu0 0
      %4966 = vmatprep.mubr.bf16.mxu0 0
      %4967 = vmatmul.mubr.bf16.gmra.mrb[0].mxu0 %v4691
      %v4968 = vpop.f32.mrb[0].mxu0
      %v4969 = vadd.f32 %v4824, %v4968
      %v4970 = vpop.f32.mrb[0].mxu0
      %v4971 = vpop.f32.mrb[0].mxu0
      %v4972 = vadd.f32 %v4827, %v4971
      %v4973 = vpop.f32.mrb[0].mxu0
      %4974 = vmatprep.mubr.bf16.mxu0 0
      %4975 = vmatmul.mubr.bf16.gmra.mrb[0].mxu0 %v4692
      %v4976 = vpop.f32.mrb[0].mxu0
      %v4977 = vadd.f32 %v4832, %v4976
      %v4978 = vpop.f32.mrb[0].mxu0
      %v4979 = vpop.f32.mrb[0].mxu0
      %v4980 = vadd.f32 %v4835, %v4979
      %v4981 = vpop.f32.mrb[0].mxu0
      %4982 = vmatprep.mubr.bf16.mxu0 0
      %4983 = vmatmul.mubr.bf16.gmra.mrb[0].mxu0 %v4693
      %v4984 = vpop.f32.mrb[0].mxu0
      %v4985 = vadd.f32 %v4840, %v4984
      %v4986 = vpop.f32.mrb[0].mxu0
      %v4987 = vpop.f32.mrb[0].mxu0
      %v4988 = vadd.f32 %v4843, %v4987
      %v4989 = vpop.f32.mrb[0].mxu0
      %4990 = vmatprep.mubr.bf16.mxu0 0
      %4991 = vmatmul.mubr.bf16.gmra.mrb[0].mxu0 %v4694
      %v4992 = vpop.f32.mrb[0].mxu0
      %v4993 = vadd.f32 %v4848, %v4992
      %v4994 = vpop.f32.mrb[0].mxu0
      %v4995 = vpop.f32.mrb[0].mxu0
      %v4996 = vadd.f32 %v4851, %v4995
      %v4997 = vpop.f32.mrb[0].mxu0
      %4998 = vmatprep.mubr.bf16.mxu0 0
      %4999 = vmatmul.mubr.bf16.gmra.mrb[0].mxu0 %v4695
      %v5000 = vpop.f32.mrb[0].mxu0
      %v5001 = vadd.f32 %v4856, %v5000
      %v5002 = vpop.f32.mrb[0].mxu0
      %v5003 = vpop.f32.mrb[0].mxu0
      %v5004 = vadd.f32 %v4859, %v5003
      %v5005 = vpop.f32.mrb[0].mxu0
      %5006 = vmatprep.mubr.bf16.mxu0 0
      %5007 = vmatmul.mubr.bf16.gmra.mrb[0].mxu0 %v4696
      %v5008 = vpop.f32.mrb[0].mxu0
      %v5009 = vadd.f32 %v4864, %v5008
      %v5010 = vpop.f32.mrb[0].mxu0
      %v5011 = vpop.f32.mrb[0].mxu0
      %v5012 = vadd.f32 %v4867, %v5011
      %v5013 = vpop.f32.mrb[0].mxu0
      %5014 = vmatprep.mubr.bf16.mxu0 0
      %5015 = vmatmul.mubr.bf16.gmra.mrb[0].mxu0 %v4697
      %v5016 = vpop.f32.mrb[0].mxu0
      %v5017 = vadd.f32 %v4872, %v5016
      %v5018 = vpop.f32.mrb[0].mxu0
      %v5019 = vpop.f32.mrb[0].mxu0
      %v5020 = vadd.f32 %v4875, %v5019
      %v5021 = vpop.f32.mrb[0].mxu0
      %5022 = vmatprep.mubr.bf16.mxu0 0
      %5023 = vmatmul.mubr.bf16.gmra.mrb[0].mxu0 %v4698
      %v5024 = vpop.f32.mrb[0].mxu0
      %v5025 = vadd.f32 %v4880, %v5024
      %v5026 = vpop.f32.mrb[0].mxu0
      %v5027 = vpop.f32.mrb[0].mxu0
      %v5028 = vadd.f32 %v4883, %v5027
      %v5029 = vpop.f32.mrb[0].mxu0
      %5030 = vdwg.mxu0
      %v5031 = vrot.slane %v4619, 1
      %v5032 = vrot.slane %v4620, 1
      %v5033 = vrot.slane %v4621, 1
      %v5034 = vrot.slane %v4622, 1
      %v5035 = vrot.slane %v4623, 1
      %v5036 = vrot.slane %v4624, 1
      %v5037 = vrot.slane %v4625, 1
      %v5038 = vrot.slane %v4627, 1
      %v5039 = vrot.slane %v4628, 1
      %v5040 = vrot.slane %v4629, 1
      %v5041 = vrot.slane %v4630, 1
      %v5042 = vrot.slane %v4631, 1
      %v5043 = vrot.slane %v4632, 1
      %v5044 = vrot.slane %v4633, 1
      %v5059 = vsel %vm815, %v5031, 0.0
      %v5060 = vsel %vm815, %v5032, 0.0
      %v5061 = vsel %vm815, %v5033, 0.0
      %v5062 = vsel %vm815, %v5034, 0.0
      %v5063 = vsel %vm815, %v5035, 0.0
      %v5064 = vsel %vm815, %v5036, 0.0
      %v5065 = vsel %vm815, %v5037, 0.0
      %v5066 = vsel %vm815, %v5038, 0.0
      %v5067 = vsel %vm815, %v5039, 0.0
      %v5068 = vsel %vm815, %v5040, 0.0
      %v5069 = vsel %vm815, %v5041, 0.0
      %v5070 = vsel %vm815, %v5042, 0.0
      %v5071 = vsel %vm815, %v5043, 0.0
      %v5072 = vsel %vm815, %v5044, 0.0
      %v5073 = vpack.c.bf16 %v5059, %v816
      %v5074 = vpack.c.bf16 %v5061, %v5060
      %v5075 = vpack.c.bf16 %v5063, %v5062
      %v5076 = vpack.c.bf16 %v5065, %v5064
      %v5077 = vpack.c.bf16 %v5066, %v816
      %v5078 = vpack.c.bf16 %v5068, %v5067
      %v5079 = vpack.c.bf16 %v5070, %v5069
      %v5080 = vpack.c.bf16 %v5072, %v5071
      %s5081 = scalar_lea.vmem %s1, 1280
      %v5082 = vld [vmem:[%s5081] sm:$0xf]
      %v5083 = vld [vmem:[%s5081 + $0x4] sm:$0xf]
      %v5084 = vld [vmem:[%s5081 + $0x8] sm:$0xf]
      %v5085 = vld [vmem:[%s5081 + $0xc] sm:$0xf]
      %v5086 = vld [vmem:[%s5081 + $0x10] sm:$0xf]
      %v5087 = vld [vmem:[%s5081 + $0x14] sm:$0xf]
      %v5088 = vld [vmem:[%s5081 + $0x18] sm:$0xf]
      %v5089 = vld [vmem:[%s5081 + $0x1c] sm:$0xf]
      %v5090 = vld [vmem:[%s5081 + $0x20] sm:$0xf]
      %v5091 = vld [vmem:[%s5081 + $0x24] sm:$0xf]
      %v5092 = vld [vmem:[%s5081 + $0x28] sm:$0xf]
      %v5093 = vld [vmem:[%s5081 + $0x2c] sm:$0xf]
      %v5094 = vld [vmem:[%s5081 + $0x30] sm:$0xf]
      %v5095 = vld [vmem:[%s5081 + $0x34] sm:$0xf]
      %v5096 = vld [vmem:[%s5081 + $0x38] sm:$0xf]
      %v5097 = vld [vmem:[%s5081 + $0x3c] sm:$0xf]
      %v5114 = vunpack.c.l.b16 %v5082
      %v5115 = vunpack.c.l.b16 %v5083
      %v5116 = vunpack.c.l.b16 %v5084
      %v5117 = vunpack.c.l.b16 %v5085
      %v5118 = vunpack.c.l.b16 %v5086
      %v5119 = vunpack.c.l.b16 %v5087
      %v5120 = vunpack.c.l.b16 %v5088
      %v5121 = vunpack.c.l.b16 %v5089
      %v5122 = vunpack.c.l.b16 %v5090
      %v5123 = vunpack.c.l.b16 %v5091
      %v5124 = vunpack.c.l.b16 %v5092
      %v5125 = vunpack.c.l.b16 %v5093
      %v5126 = vunpack.c.l.b16 %v5094
      %v5127 = vunpack.c.l.b16 %v5095
      %v5128 = vunpack.c.l.b16 %v5096
      %v5129 = vunpack.c.l.b16 %v5097
      %v5130 = vpack.c.b16 %v5115, %v5114
      %v5131 = vpack.c.b16 %v5117, %v5116
      %v5132 = vpack.c.b16 %v5119, %v5118
      %v5133 = vpack.c.b16 %v5121, %v5120
      %v5134 = vpack.c.b16 %v5123, %v5122
      %v5135 = vpack.c.b16 %v5125, %v5124
      %v5136 = vpack.c.b16 %v5127, %v5126
      %v5137 = vpack.c.b16 %v5129, %v5128
      %5146 = vmatprep.subr.bf16.mxu0 0
      %5147 = vmatpush1.bf16.msra.mxu0 %v5130
      %5148 = vmatprep.subr.bf16.mxu0 0
      %5149 = vmatpush1.bf16.msra.mxu0 %v5131
      %5150 = vmatprep.subr.bf16.mxu0 0
      %5151 = vmatpush1.bf16.msra.mxu0 %v5132
      %5152 = vmatprep.subr.bf16.mxu0 0
      %5153 = vmatpush1.bf16.msra.mxu0 %v5133
      %5154 = vmatprep.subr.bf16.mxu0 0
      %5155 = vmatpush1.bf16.msra.mxu0 %v5134
      %5156 = vmatprep.subr.bf16.mxu0 0
      %5157 = vmatpush1.bf16.msra.mxu0 %v5135
      %5158 = vmatprep.subr.bf16.mxu0 0
      %5159 = vmatpush1.bf16.msra.mxu0 %v5136
      %5160 = vmatprep.subr.bf16.mxu0 0
      %5161 = vmatpush1.bf16.msra.mxu0 %v5137
      %5162 = vmatprep.subr.bf16.mxu0 0
      %5163 = vmatpush1.bf16.msra.mxu0 0
      %5164 = vmatprep.subr.bf16.mxu0 0
      %5165 = vmatpush1.bf16.msra.mxu0 0
      %5166 = vmatprep.subr.bf16.mxu0 0
      %5167 = vmatpush1.bf16.msra.mxu0 0
      %5168 = vmatprep.subr.bf16.mxu0 0
      %5169 = vmatpush1.bf16.msra.mxu0 0
      %5170 = vmatprep.subr.bf16.mxu0 0
      %5171 = vmatpush1.bf16.msra.mxu0 0
      %5172 = vmatprep.subr.bf16.mxu0 0
      %5173 = vmatpush1.bf16.msra.mxu0 0
      %5174 = vmatprep.subr.bf16.mxu0 0
      %5175 = vmatpush1.bf16.msra.mxu0 0
      %5176 = vmatprep.subr.bf16.mxu0 0
      %5177 = vmatpush1.bf16.msra.mxu0 0
      %5178 = vmatprep.mubr.bf16.mxu0 0
      %5179 = vmatmul.mubr.bf16.gmra.mrb[0].mxu0 %v5073
      %v5180 = vpop.f32.mrb[0].mxu0
      %v5181 = vadd.f32 0.0, %v5180
      %v5182 = vpop.f32.mrb[0].mxu0
      %v5183 = vpop.f32.mrb[0].mxu0
      %v5184 = vadd.f32 0.0, %v5183
      %v5185 = vpop.f32.mrb[0].mxu0
      %5186 = vmatprep.mubr.bf16.mxu0 0
      %5187 = vmatmul.mubr.bf16.gmra.mrb[0].mxu0 %v5074
      %v5188 = vpop.f32.mrb[0].mxu0
      %v5189 = vadd.f32 0.0, %v5188
      %v5190 = vpop.f32.mrb[0].mxu0
      %v5191 = vpop.f32.mrb[0].mxu0
      %v5192 = vadd.f32 0.0, %v5191
      %v5193 = vpop.f32.mrb[0].mxu0
      %5194 = vmatprep.mubr.bf16.mxu0 0
      %5195 = vmatmul.mubr.bf16.gmra.mrb[0].mxu0 %v5075
      %v5196 = vpop.f32.mrb[0].mxu0
      %v5197 = vadd.f32 0.0, %v5196
      %v5198 = vpop.f32.mrb[0].mxu0
      %v5199 = vpop.f32.mrb[0].mxu0
      %v5200 = vadd.f32 0.0, %v5199
      %v5201 = vpop.f32.mrb[0].mxu0
      %5202 = vmatprep.mubr.bf16.mxu0 0
      %5203 = vmatmul.mubr.bf16.gmra.mrb[0].mxu0 %v5076
      %v5204 = vpop.f32.mrb[0].mxu0
      %v5205 = vadd.f32 0.0, %v5204
      %v5206 = vpop.f32.mrb[0].mxu0
      %v5207 = vpop.f32.mrb[0].mxu0
      %v5208 = vadd.f32 0.0, %v5207
      %v5209 = vpop.f32.mrb[0].mxu0
      %5210 = vmatprep.mubr.bf16.mxu0 0
      %5211 = vmatmul.mubr.bf16.gmra.mrb[0].mxu0 %v5077
      %v5212 = vpop.f32.mrb[0].mxu0
      %v5213 = vadd.f32 0.0, %v5212
      %v5214 = vpop.f32.mrb[0].mxu0
      %v5215 = vpop.f32.mrb[0].mxu0
      %v5216 = vadd.f32 0.0, %v5215
      %v5217 = vpop.f32.mrb[0].mxu0
      %5218 = vmatprep.mubr.bf16.mxu0 0
      %5219 = vmatmul.mubr.bf16.gmra.mrb[0].mxu0 %v5078
      %v5220 = vpop.f32.mrb[0].mxu0
      %v5221 = vadd.f32 0.0, %v5220
      %v5222 = vpop.f32.mrb[0].mxu0
      %v5223 = vpop.f32.mrb[0].mxu0
      %v5224 = vadd.f32 0.0, %v5223
      %v5225 = vpop.f32.mrb[0].mxu0
      %5226 = vmatprep.mubr.bf16.mxu0 0
      %5227 = vmatmul.mubr.bf16.gmra.mrb[0].mxu0 %v5079
      %v5228 = vpop.f32.mrb[0].mxu0
      %v5229 = vadd.f32 0.0, %v5228
      %v5230 = vpop.f32.mrb[0].mxu0
      %v5231 = vpop.f32.mrb[0].mxu0
      %v5232 = vadd.f32 0.0, %v5231
      %v5233 = vpop.f32.mrb[0].mxu0
      %5234 = vmatprep.mubr.bf16.mxu0 0
      %5235 = vmatmul.mubr.bf16.gmra.mrb[0].mxu0 %v5080
      %v5236 = vpop.f32.mrb[0].mxu0
      %v5237 = vadd.f32 0.0, %v5236
      %v5238 = vpop.f32.mrb[0].mxu0
      %v5239 = vpop.f32.mrb[0].mxu0
      %v5240 = vadd.f32 0.0, %v5239
      %v5241 = vpop.f32.mrb[0].mxu0
      %5242 = vdwg.mxu0
      %v5243 = vadd.f32 %v4969, %v5181
      %v5244 = vadd.f32 %v4972, %v5184
      %v5245 = vadd.f32 %v4977, %v5189
      %v5246 = vadd.f32 %v4980, %v5192
      %v5247 = vadd.f32 %v4985, %v5197
      %v5248 = vadd.f32 %v4988, %v5200
      %v5249 = vadd.f32 %v4993, %v5205
      %v5250 = vadd.f32 %v4996, %v5208
      %v5251 = vadd.f32 %v5001, %v5213
      %v5252 = vadd.f32 %v5004, %v5216
      %v5253 = vadd.f32 %v5009, %v5221
      %v5254 = vadd.f32 %v5012, %v5224
      %v5255 = vadd.f32 %v5017, %v5229
      %v5256 = vadd.f32 %v5020, %v5232
      %v5257 = vadd.f32 %v5025, %v5237
      %v5258 = vadd.f32 %v5028, %v5240
      %v5261 = vrot.slane %v4626, 7
      %v5262 = vrot.slane %v4634, 7
      %v5265 = vsel %vm430, 0.0, %v5261
      %v5266 = vsel %vm430, 0.0, %v5262
      %v5267 = vpack.c.bf16 %v4678, %v4677
      %v5268 = vpack.c.bf16 %v4680, %v4679
      %v5269 = vpack.c.bf16 %v4682, %v4681
      %v5270 = vpack.c.bf16 %v5265, %v4683
      %v5271 = vpack.c.bf16 %v4685, %v4684
      %v5272 = vpack.c.bf16 %v4687, %v4686
      %v5273 = vpack.c.bf16 %v4689, %v4688
      %v5274 = vpack.c.bf16 %v5266, %v4690
      %s5275 = scalar_lea.vmem %s1, 1344
      %v5276 = vld [vmem:[%s5275] sm:$0xf]
      %v5277 = vld [vmem:[%s5275 + $0x4] sm:$0xf]
      %v5278 = vld [vmem:[%s5275 + $0x8] sm:$0xf]
      %v5279 = vld [vmem:[%s5275 + $0xc] sm:$0xf]
      %v5280 = vld [vmem:[%s5275 + $0x10] sm:$0xf]
      %v5281 = vld [vmem:[%s5275 + $0x14] sm:$0xf]
      %v5282 = vld [vmem:[%s5275 + $0x18] sm:$0xf]
      %v5283 = vld [vmem:[%s5275 + $0x1c] sm:$0xf]
      %v5284 = vld [vmem:[%s5275 + $0x20] sm:$0xf]
      %v5285 = vld [vmem:[%s5275 + $0x24] sm:$0xf]
      %v5286 = vld [vmem:[%s5275 + $0x28] sm:$0xf]
      %v5287 = vld [vmem:[%s5275 + $0x2c] sm:$0xf]
      %v5288 = vld [vmem:[%s5275 + $0x30] sm:$0xf]
      %v5289 = vld [vmem:[%s5275 + $0x34] sm:$0xf]
      %v5290 = vld [vmem:[%s5275 + $0x38] sm:$0xf]
      %v5291 = vld [vmem:[%s5275 + $0x3c] sm:$0xf]
      %v5308 = vunpack.c.l.b16 %v5276
      %v5309 = vunpack.c.l.b16 %v5277
      %v5310 = vunpack.c.l.b16 %v5278
      %v5311 = vunpack.c.l.b16 %v5279
      %v5312 = vunpack.c.l.b16 %v5280
      %v5313 = vunpack.c.l.b16 %v5281
      %v5314 = vunpack.c.l.b16 %v5282
      %v5315 = vunpack.c.l.b16 %v5283
      %v5316 = vunpack.c.l.b16 %v5284
      %v5317 = vunpack.c.l.b16 %v5285
      %v5318 = vunpack.c.l.b16 %v5286
      %v5319 = vunpack.c.l.b16 %v5287
      %v5320 = vunpack.c.l.b16 %v5288
      %v5321 = vunpack.c.l.b16 %v5289
      %v5322 = vunpack.c.l.b16 %v5290
      %v5323 = vunpack.c.l.b16 %v5291
      %v5324 = vpack.c.b16 %v5309, %v5308
      %v5325 = vpack.c.b16 %v5311, %v5310
      %v5326 = vpack.c.b16 %v5313, %v5312
      %v5327 = vpack.c.b16 %v5315, %v5314
      %v5328 = vpack.c.b16 %v5317, %v5316
      %v5329 = vpack.c.b16 %v5319, %v5318
      %v5330 = vpack.c.b16 %v5321, %v5320
      %v5331 = vpack.c.b16 %v5323, %v5322
      %5340 = vmatprep.subr.bf16.mxu0 0
      %5341 = vmatpush1.bf16.msra.mxu0 %v5324
      %5342 = vmatprep.subr.bf16.mxu0 0
      %5343 = vmatpush1.bf16.msra.mxu0 %v5325
      %5344 = vmatprep.subr.bf16.mxu0 0
      %5345 = vmatpush1.bf16.msra.mxu0 %v5326
      %5346 = vmatprep.subr.bf16.mxu0 0
      %5347 = vmatpush1.bf16.msra.mxu0 %v5327
      %5348 = vmatprep.subr.bf16.mxu0 0
      %5349 = vmatpush1.bf16.msra.mxu0 %v5328
      %5350 = vmatprep.subr.bf16.mxu0 0
      %5351 = vmatpush1.bf16.msra.mxu0 %v5329
      %5352 = vmatprep.subr.bf16.mxu0 0
      %5353 = vmatpush1.bf16.msra.mxu0 %v5330
      %5354 = vmatprep.subr.bf16.mxu0 0
      %5355 = vmatpush1.bf16.msra.mxu0 %v5331
      %5356 = vmatprep.subr.bf16.mxu0 0
      %5357 = vmatpush1.bf16.msra.mxu0 0
      %5358 = vmatprep.subr.bf16.mxu0 0
      %5359 = vmatpush1.bf16.msra.mxu0 0
      %5360 = vmatprep.subr.bf16.mxu0 0
      %5361 = vmatpush1.bf16.msra.mxu0 0
      %5362 = vmatprep.subr.bf16.mxu0 0
      %5363 = vmatpush1.bf16.msra.mxu0 0
      %5364 = vmatprep.subr.bf16.mxu0 0
      %5365 = vmatpush1.bf16.msra.mxu0 0
      %5366 = vmatprep.subr.bf16.mxu0 0
      %5367 = vmatpush1.bf16.msra.mxu0 0
      %5368 = vmatprep.subr.bf16.mxu0 0
      %5369 = vmatpush1.bf16.msra.mxu0 0
      %5370 = vmatprep.subr.bf16.mxu0 0
      %5371 = vmatpush1.bf16.msra.mxu0 0
      %5372 = vmatprep.mubr.bf16.mxu0 0
      %5373 = vmatmul.mubr.bf16.gmra.mrb[0].mxu0 %v5267
      %v5374 = vpop.f32.mrb[0].mxu0
      %v5375 = vadd.f32 0.0, %v5374
      %v5376 = vpop.f32.mrb[0].mxu0
      %v5377 = vpop.f32.mrb[0].mxu0
      %v5378 = vadd.f32 0.0, %v5377
      %v5379 = vpop.f32.mrb[0].mxu0
      %5380 = vmatprep.mubr.bf16.mxu0 0
      %5381 = vmatmul.mubr.bf16.gmra.mrb[0].mxu0 %v5268
      %v5382 = vpop.f32.mrb[0].mxu0
      %v5383 = vadd.f32 0.0, %v5382
      %v5384 = vpop.f32.mrb[0].mxu0
      %v5385 = vpop.f32.mrb[0].mxu0
      %v5386 = vadd.f32 0.0, %v5385
      %v5387 = vpop.f32.mrb[0].mxu0
      %5388 = vmatprep.mubr.bf16.mxu0 0
      %5389 = vmatmul.mubr.bf16.gmra.mrb[0].mxu0 %v5269
      %v5390 = vpop.f32.mrb[0].mxu0
      %v5391 = vadd.f32 0.0, %v5390
      %v5392 = vpop.f32.mrb[0].mxu0
      %v5393 = vpop.f32.mrb[0].mxu0
      %v5394 = vadd.f32 0.0, %v5393
      %v5395 = vpop.f32.mrb[0].mxu0
      %5396 = vmatprep.mubr.bf16.mxu0 0
      %5397 = vmatmul.mubr.bf16.gmra.mrb[0].mxu0 %v5270
      %v5398 = vpop.f32.mrb[0].mxu0
      %v5399 = vadd.f32 0.0, %v5398
      %v5400 = vpop.f32.mrb[0].mxu0
      %v5401 = vpop.f32.mrb[0].mxu0
      %v5402 = vadd.f32 0.0, %v5401
      %v5403 = vpop.f32.mrb[0].mxu0
      %5404 = vmatprep.mubr.bf16.mxu0 0
      %5405 = vmatmul.mubr.bf16.gmra.mrb[0].mxu0 %v5271
      %v5406 = vpop.f32.mrb[0].mxu0
      %v5407 = vadd.f32 0.0, %v5406
      %v5408 = vpop.f32.mrb[0].mxu0
      %v5409 = vpop.f32.mrb[0].mxu0
      %v5410 = vadd.f32 0.0, %v5409
      %v5411 = vpop.f32.mrb[0].mxu0
      %5412 = vmatprep.mubr.bf16.mxu0 0
      %5413 = vmatmul.mubr.bf16.gmra.mrb[0].mxu0 %v5272
      %v5414 = vpop.f32.mrb[0].mxu0
      %v5415 = vadd.f32 0.0, %v5414
      %v5416 = vpop.f32.mrb[0].mxu0
      %v5417 = vpop.f32.mrb[0].mxu0
      %v5418 = vadd.f32 0.0, %v5417
      %v5419 = vpop.f32.mrb[0].mxu0
      %5420 = vmatprep.mubr.bf16.mxu0 0
      %5421 = vmatmul.mubr.bf16.gmra.mrb[0].mxu0 %v5273
      %v5422 = vpop.f32.mrb[0].mxu0
      %v5423 = vadd.f32 0.0, %v5422
      %v5424 = vpop.f32.mrb[0].mxu0
      %v5425 = vpop.f32.mrb[0].mxu0
      %v5426 = vadd.f32 0.0, %v5425
      %v5427 = vpop.f32.mrb[0].mxu0
      %5428 = vmatprep.mubr.bf16.mxu0 0
      %5429 = vmatmul.mubr.bf16.gmra.mrb[0].mxu0 %v5274
      %v5430 = vpop.f32.mrb[0].mxu0
      %v5431 = vadd.f32 0.0, %v5430
      %v5432 = vpop.f32.mrb[0].mxu0
      %v5433 = vpop.f32.mrb[0].mxu0
      %v5434 = vadd.f32 0.0, %v5433
      %v5435 = vpop.f32.mrb[0].mxu0
      %5436 = vdwg.mxu0
      %v5437 = vadd.f32 %v5243, %v5375
      %v5438 = vadd.f32 %v5244, %v5378
      %v5439 = vadd.f32 %v5245, %v5383
      %v5440 = vadd.f32 %v5246, %v5386
      %v5441 = vadd.f32 %v5247, %v5391
      %v5442 = vadd.f32 %v5248, %v5394
      %v5443 = vadd.f32 %v5249, %v5399
      %v5444 = vadd.f32 %v5250, %v5402
      %v5445 = vadd.f32 %v5251, %v5407
      %v5446 = vadd.f32 %v5252, %v5410
      %v5447 = vadd.f32 %v5253, %v5415
      %v5448 = vadd.f32 %v5254, %v5418
      %v5449 = vadd.f32 %v5255, %v5423
      %v5450 = vadd.f32 %v5256, %v5426
      %v5451 = vadd.f32 %v5257, %v5431
      %v5452 = vadd.f32 %v5258, %v5434
      %v5453 = vpack.c.bf16 %v4620, %v4619
      %v5454 = vpack.c.bf16 %v4622, %v4621
      %v5455 = vpack.c.bf16 %v4624, %v4623
      %v5456 = vpack.c.bf16 %v4626, %v4625
      %v5457 = vpack.c.bf16 %v4628, %v4627
      %v5458 = vpack.c.bf16 %v4630, %v4629
      %v5459 = vpack.c.bf16 %v4632, %v4631
      %v5460 = vpack.c.bf16 %v4634, %v4633
      %s5461 = scalar_lea.vmem %s1, 1408
      %v5462 = vld [vmem:[%s5461] sm:$0xf]
      %v5463 = vld [vmem:[%s5461 + $0x4] sm:$0xf]
      %v5464 = vld [vmem:[%s5461 + $0x8] sm:$0xf]
      %v5465 = vld [vmem:[%s5461 + $0xc] sm:$0xf]
      %v5466 = vld [vmem:[%s5461 + $0x10] sm:$0xf]
      %v5467 = vld [vmem:[%s5461 + $0x14] sm:$0xf]
      %v5468 = vld [vmem:[%s5461 + $0x18] sm:$0xf]
      %v5469 = vld [vmem:[%s5461 + $0x1c] sm:$0xf]
      %v5470 = vld [vmem:[%s5461 + $0x20] sm:$0xf]
      %v5471 = vld [vmem:[%s5461 + $0x24] sm:$0xf]
      %v5472 = vld [vmem:[%s5461 + $0x28] sm:$0xf]
      %v5473 = vld [vmem:[%s5461 + $0x2c] sm:$0xf]
      %v5474 = vld [vmem:[%s5461 + $0x30] sm:$0xf]
      %v5475 = vld [vmem:[%s5461 + $0x34] sm:$0xf]
      %v5476 = vld [vmem:[%s5461 + $0x38] sm:$0xf]
      %v5477 = vld [vmem:[%s5461 + $0x3c] sm:$0xf]
      %v5494 = vunpack.c.l.b16 %v5462
      %v5495 = vunpack.c.l.b16 %v5463
      %v5496 = vunpack.c.l.b16 %v5464
      %v5497 = vunpack.c.l.b16 %v5465
      %v5498 = vunpack.c.l.b16 %v5466
      %v5499 = vunpack.c.l.b16 %v5467
      %v5500 = vunpack.c.l.b16 %v5468
      %v5501 = vunpack.c.l.b16 %v5469
      %v5502 = vunpack.c.l.b16 %v5470
      %v5503 = vunpack.c.l.b16 %v5471
      %v5504 = vunpack.c.l.b16 %v5472
      %v5505 = vunpack.c.l.b16 %v5473
      %v5506 = vunpack.c.l.b16 %v5474
      %v5507 = vunpack.c.l.b16 %v5475
      %v5508 = vunpack.c.l.b16 %v5476
      %v5509 = vunpack.c.l.b16 %v5477
      %v5510 = vpack.c.b16 %v5495, %v5494
      %v5511 = vpack.c.b16 %v5497, %v5496
      %v5512 = vpack.c.b16 %v5499, %v5498
      %v5513 = vpack.c.b16 %v5501, %v5500
      %v5514 = vpack.c.b16 %v5503, %v5502
      %v5515 = vpack.c.b16 %v5505, %v5504
      %v5516 = vpack.c.b16 %v5507, %v5506
      %v5517 = vpack.c.b16 %v5509, %v5508
      %5526 = vmatprep.subr.bf16.mxu0 0
      %5527 = vmatpush1.bf16.msra.mxu0 %v5510
      %5528 = vmatprep.subr.bf16.mxu0 0
      %5529 = vmatpush1.bf16.msra.mxu0 %v5511
      %5530 = vmatprep.subr.bf16.mxu0 0
      %5531 = vmatpush1.bf16.msra.mxu0 %v5512
      %5532 = vmatprep.subr.bf16.mxu0 0
      %5533 = vmatpush1.bf16.msra.mxu0 %v5513
      %5534 = vmatprep.subr.bf16.mxu0 0
      %5535 = vmatpush1.bf16.msra.mxu0 %v5514
      %5536 = vmatprep.subr.bf16.mxu0 0
      %5537 = vmatpush1.bf16.msra.mxu0 %v5515
      %5538 = vmatprep.subr.bf16.mxu0 0
      %5539 = vmatpush1.bf16.msra.mxu0 %v5516
      %5540 = vmatprep.subr.bf16.mxu0 0
      %5541 = vmatpush1.bf16.msra.mxu0 %v5517
      %5542 = vmatprep.subr.bf16.mxu0 0
      %5543 = vmatpush1.bf16.msra.mxu0 0
      %5544 = vmatprep.subr.bf16.mxu0 0
      %5545 = vmatpush1.bf16.msra.mxu0 0
      %5546 = vmatprep.subr.bf16.mxu0 0
      %5547 = vmatpush1.bf16.msra.mxu0 0
      %5548 = vmatprep.subr.bf16.mxu0 0
      %5549 = vmatpush1.bf16.msra.mxu0 0
      %5550 = vmatprep.subr.bf16.mxu0 0
      %5551 = vmatpush1.bf16.msra.mxu0 0
      %5552 = vmatprep.subr.bf16.mxu0 0
      %5553 = vmatpush1.bf16.msra.mxu0 0
      %5554 = vmatprep.subr.bf16.mxu0 0
      %5555 = vmatpush1.bf16.msra.mxu0 0
      %5556 = vmatprep.subr.bf16.mxu0 0
      %5557 = vmatpush1.bf16.msra.mxu0 0
      %5558 = vmatprep.mubr.bf16.mxu0 0
      %5559 = vmatmul.mubr.bf16.gmra.mrb[0].mxu0 %v5453
      %v5560 = vpop.f32.mrb[0].mxu0
      %v5561 = vadd.f32 0.0, %v5560
      %v5562 = vpop.f32.mrb[0].mxu0
      %v5563 = vpop.f32.mrb[0].mxu0
      %v5564 = vadd.f32 0.0, %v5563
      %v5565 = vpop.f32.mrb[0].mxu0
      %5566 = vmatprep.mubr.bf16.mxu0 0
      %5567 = vmatmul.mubr.bf16.gmra.mrb[0].mxu0 %v5454
      %v5568 = vpop.f32.mrb[0].mxu0
      %v5569 = vadd.f32 0.0, %v5568
      %v5570 = vpop.f32.mrb[0].mxu0
      %v5571 = vpop.f32.mrb[0].mxu0
      %v5572 = vadd.f32 0.0, %v5571
      %v5573 = vpop.f32.mrb[0].mxu0
      %5574 = vmatprep.mubr.bf16.mxu0 0
      %5575 = vmatmul.mubr.bf16.gmra.mrb[0].mxu0 %v5455
      %v5576 = vpop.f32.mrb[0].mxu0
      %v5577 = vadd.f32 0.0, %v5576
      %v5578 = vpop.f32.mrb[0].mxu0
      %v5579 = vpop.f32.mrb[0].mxu0
      %v5580 = vadd.f32 0.0, %v5579
      %v5581 = vpop.f32.mrb[0].mxu0
      %5582 = vmatprep.mubr.bf16.mxu0 0
      %5583 = vmatmul.mubr.bf16.gmra.mrb[0].mxu0 %v5456
      %v5584 = vpop.f32.mrb[0].mxu0
      %v5585 = vadd.f32 0.0, %v5584
      %v5586 = vpop.f32.mrb[0].mxu0
      %v5587 = vpop.f32.mrb[0].mxu0
      %v5588 = vadd.f32 0.0, %v5587
      %v5589 = vpop.f32.mrb[0].mxu0
      %5590 = vmatprep.mubr.bf16.mxu0 0
      %5591 = vmatmul.mubr.bf16.gmra.mrb[0].mxu0 %v5457
      %v5592 = vpop.f32.mrb[0].mxu0
      %v5593 = vadd.f32 0.0, %v5592
      %v5594 = vpop.f32.mrb[0].mxu0
      %v5595 = vpop.f32.mrb[0].mxu0
      %v5596 = vadd.f32 0.0, %v5595
      %v5597 = vpop.f32.mrb[0].mxu0
      %5598 = vmatprep.mubr.bf16.mxu0 0
      %5599 = vmatmul.mubr.bf16.gmra.mrb[0].mxu0 %v5458
      %v5600 = vpop.f32.mrb[0].mxu0
      %v5601 = vadd.f32 0.0, %v5600
      %v5602 = vpop.f32.mrb[0].mxu0
      %v5603 = vpop.f32.mrb[0].mxu0
      %v5604 = vadd.f32 0.0, %v5603
      %v5605 = vpop.f32.mrb[0].mxu0
      %5606 = vmatprep.mubr.bf16.mxu0 0
      %5607 = vmatmul.mubr.bf16.gmra.mrb[0].mxu0 %v5459
      %v5608 = vpop.f32.mrb[0].mxu0
      %v5609 = vadd.f32 0.0, %v5608
      %v5610 = vpop.f32.mrb[0].mxu0
      %v5611 = vpop.f32.mrb[0].mxu0
      %v5612 = vadd.f32 0.0, %v5611
      %v5613 = vpop.f32.mrb[0].mxu0
      %5614 = vmatprep.mubr.bf16.mxu0 0
      %5615 = vmatmul.mubr.bf16.gmra.mrb[0].mxu0 %v5460
      %v5616 = vpop.f32.mrb[0].mxu0
      %v5617 = vadd.f32 0.0, %v5616
      %v5618 = vpop.f32.mrb[0].mxu0
      %v5619 = vpop.f32.mrb[0].mxu0
      %v5620 = vadd.f32 0.0, %v5619
      %v5621 = vpop.f32.mrb[0].mxu0
      %5622 = vdwg.mxu0
      %v5623 = vadd.f32 %v5437, %v5561
      %v5624 = vadd.f32 %v5438, %v5564
      %v5625 = vadd.f32 %v5439, %v5569
      %v5626 = vadd.f32 %v5440, %v5572
      %v5627 = vadd.f32 %v5441, %v5577
      %v5628 = vadd.f32 %v5442, %v5580
      %v5629 = vadd.f32 %v5443, %v5585
      %v5630 = vadd.f32 %v5444, %v5588
      %v5631 = vadd.f32 %v5445, %v5593
      %v5632 = vadd.f32 %v5446, %v5596
      %v5633 = vadd.f32 %v5447, %v5601
      %v5634 = vadd.f32 %v5448, %v5604
      %v5635 = vadd.f32 %v5449, %v5609
      %v5636 = vadd.f32 %v5450, %v5612
      %v5637 = vadd.f32 %v5451, %v5617
      %v5638 = vadd.f32 %v5452, %v5620
      %v5639 = vrot.slane %v4626, 1
      %v5640 = vrot.slane %v4634, 1
      %v5643 = vsel %vm815, %v5639, 0.0
      %v5644 = vsel %vm815, %v5640, 0.0
      %v5645 = vpack.c.bf16 %v5060, %v5059
      %v5646 = vpack.c.bf16 %v5062, %v5061
      %v5647 = vpack.c.bf16 %v5064, %v5063
      %v5648 = vpack.c.bf16 %v5643, %v5065
      %v5649 = vpack.c.bf16 %v5067, %v5066
      %v5650 = vpack.c.bf16 %v5069, %v5068
      %v5651 = vpack.c.bf16 %v5071, %v5070
      %v5652 = vpack.c.bf16 %v5644, %v5072
      %s5653 = scalar_lea.vmem %s1, 1472
      %v5654 = vld [vmem:[%s5653] sm:$0xf]
      %v5655 = vld [vmem:[%s5653 + $0x4] sm:$0xf]
      %v5656 = vld [vmem:[%s5653 + $0x8] sm:$0xf]
      %v5657 = vld [vmem:[%s5653 + $0xc] sm:$0xf]
      %v5658 = vld [vmem:[%s5653 + $0x10] sm:$0xf]
      %v5659 = vld [vmem:[%s5653 + $0x14] sm:$0xf]
      %v5660 = vld [vmem:[%s5653 + $0x18] sm:$0xf]
      %v5661 = vld [vmem:[%s5653 + $0x1c] sm:$0xf]
      %v5662 = vld [vmem:[%s5653 + $0x20] sm:$0xf]
      %v5663 = vld [vmem:[%s5653 + $0x24] sm:$0xf]
      %v5664 = vld [vmem:[%s5653 + $0x28] sm:$0xf]
      %v5665 = vld [vmem:[%s5653 + $0x2c] sm:$0xf]
      %v5666 = vld [vmem:[%s5653 + $0x30] sm:$0xf]
      %v5667 = vld [vmem:[%s5653 + $0x34] sm:$0xf]
      %v5668 = vld [vmem:[%s5653 + $0x38] sm:$0xf]
      %v5669 = vld [vmem:[%s5653 + $0x3c] sm:$0xf]
      %v5686 = vunpack.c.l.b16 %v5654
      %v5687 = vunpack.c.l.b16 %v5655
      %v5688 = vunpack.c.l.b16 %v5656
      %v5689 = vunpack.c.l.b16 %v5657
      %v5690 = vunpack.c.l.b16 %v5658
      %v5691 = vunpack.c.l.b16 %v5659
      %v5692 = vunpack.c.l.b16 %v5660
      %v5693 = vunpack.c.l.b16 %v5661
      %v5694 = vunpack.c.l.b16 %v5662
      %v5695 = vunpack.c.l.b16 %v5663
      %v5696 = vunpack.c.l.b16 %v5664
      %v5697 = vunpack.c.l.b16 %v5665
      %v5698 = vunpack.c.l.b16 %v5666
      %v5699 = vunpack.c.l.b16 %v5667
      %v5700 = vunpack.c.l.b16 %v5668
      %v5701 = vunpack.c.l.b16 %v5669
      %v5702 = vpack.c.b16 %v5687, %v5686
      %v5703 = vpack.c.b16 %v5689, %v5688
      %v5704 = vpack.c.b16 %v5691, %v5690
      %v5705 = vpack.c.b16 %v5693, %v5692
      %v5706 = vpack.c.b16 %v5695, %v5694
      %v5707 = vpack.c.b16 %v5697, %v5696
      %v5708 = vpack.c.b16 %v5699, %v5698
      %v5709 = vpack.c.b16 %v5701, %v5700
      %5718 = vmatprep.subr.bf16.mxu0 0
      %5719 = vmatpush1.bf16.msra.mxu0 %v5702
      %5720 = vmatprep.subr.bf16.mxu0 0
      %5721 = vmatpush1.bf16.msra.mxu0 %v5703
      %5722 = vmatprep.subr.bf16.mxu0 0
      %5723 = vmatpush1.bf16.msra.mxu0 %v5704
      %5724 = vmatprep.subr.bf16.mxu0 0
      %5725 = vmatpush1.bf16.msra.mxu0 %v5705
      %5726 = vmatprep.subr.bf16.mxu0 0
      %5727 = vmatpush1.bf16.msra.mxu0 %v5706
      %5728 = vmatprep.subr.bf16.mxu0 0
      %5729 = vmatpush1.bf16.msra.mxu0 %v5707
      %5730 = vmatprep.subr.bf16.mxu0 0
      %5731 = vmatpush1.bf16.msra.mxu0 %v5708
      %5732 = vmatprep.subr.bf16.mxu0 0
      %5733 = vmatpush1.bf16.msra.mxu0 %v5709
      %5734 = vmatprep.subr.bf16.mxu0 0
      %5735 = vmatpush1.bf16.msra.mxu0 0
      %5736 = vmatprep.subr.bf16.mxu0 0
      %5737 = vmatpush1.bf16.msra.mxu0 0
      %5738 = vmatprep.subr.bf16.mxu0 0
      %5739 = vmatpush1.bf16.msra.mxu0 0
      %5740 = vmatprep.subr.bf16.mxu0 0
      %5741 = vmatpush1.bf16.msra.mxu0 0
      %5742 = vmatprep.subr.bf16.mxu0 0
      %5743 = vmatpush1.bf16.msra.mxu0 0
      %5744 = vmatprep.subr.bf16.mxu0 0
      %5745 = vmatpush1.bf16.msra.mxu0 0
      %5746 = vmatprep.subr.bf16.mxu0 0
      %5747 = vmatpush1.bf16.msra.mxu0 0
      %5748 = vmatprep.subr.bf16.mxu0 0
      %5749 = vmatpush1.bf16.msra.mxu0 0
      %5750 = vmatprep.mubr.bf16.mxu0 0
      %5751 = vmatmul.mubr.bf16.gmra.mrb[0].mxu0 %v5645
      %v5752 = vpop.f32.mrb[0].mxu0
      %v5753 = vadd.f32 0.0, %v5752
      %v5754 = vpop.f32.mrb[0].mxu0
      %v5755 = vpop.f32.mrb[0].mxu0
      %v5756 = vadd.f32 0.0, %v5755
      %v5757 = vpop.f32.mrb[0].mxu0
      %5758 = vmatprep.mubr.bf16.mxu0 0
      %5759 = vmatmul.mubr.bf16.gmra.mrb[0].mxu0 %v5646
      %v5760 = vpop.f32.mrb[0].mxu0
      %v5761 = vadd.f32 0.0, %v5760
      %v5762 = vpop.f32.mrb[0].mxu0
      %v5763 = vpop.f32.mrb[0].mxu0
      %v5764 = vadd.f32 0.0, %v5763
      %v5765 = vpop.f32.mrb[0].mxu0
      %5766 = vmatprep.mubr.bf16.mxu0 0
      %5767 = vmatmul.mubr.bf16.gmra.mrb[0].mxu0 %v5647
      %v5768 = vpop.f32.mrb[0].mxu0
      %v5769 = vadd.f32 0.0, %v5768
      %v5770 = vpop.f32.mrb[0].mxu0
      %v5771 = vpop.f32.mrb[0].mxu0
      %v5772 = vadd.f32 0.0, %v5771
      %v5773 = vpop.f32.mrb[0].mxu0
      %5774 = vmatprep.mubr.bf16.mxu0 0
      %5775 = vmatmul.mubr.bf16.gmra.mrb[0].mxu0 %v5648
      %v5776 = vpop.f32.mrb[0].mxu0
      %v5777 = vadd.f32 0.0, %v5776
      %v5778 = vpop.f32.mrb[0].mxu0
      %v5779 = vpop.f32.mrb[0].mxu0
      %v5780 = vadd.f32 0.0, %v5779
      %v5781 = vpop.f32.mrb[0].mxu0
      %5782 = vmatprep.mubr.bf16.mxu0 0
      %5783 = vmatmul.mubr.bf16.gmra.mrb[0].mxu0 %v5649
      %v5784 = vpop.f32.mrb[0].mxu0
      %v5785 = vadd.f32 0.0, %v5784
      %v5786 = vpop.f32.mrb[0].mxu0
      %v5787 = vpop.f32.mrb[0].mxu0
      %v5788 = vadd.f32 0.0, %v5787
      %v5789 = vpop.f32.mrb[0].mxu0
      %5790 = vmatprep.mubr.bf16.mxu0 0
      %5791 = vmatmul.mubr.bf16.gmra.mrb[0].mxu0 %v5650
      %v5792 = vpop.f32.mrb[0].mxu0
      %v5793 = vadd.f32 0.0, %v5792
      %v5794 = vpop.f32.mrb[0].mxu0
      %v5795 = vpop.f32.mrb[0].mxu0
      %v5796 = vadd.f32 0.0, %v5795
      %v5797 = vpop.f32.mrb[0].mxu0
      %5798 = vmatprep.mubr.bf16.mxu0 0
      %5799 = vmatmul.mubr.bf16.gmra.mrb[0].mxu0 %v5651
      %v5800 = vpop.f32.mrb[0].mxu0
      %v5801 = vadd.f32 0.0, %v5800
      %v5802 = vpop.f32.mrb[0].mxu0
      %v5803 = vpop.f32.mrb[0].mxu0
      %v5804 = vadd.f32 0.0, %v5803
      %v5805 = vpop.f32.mrb[0].mxu0
      %5806 = vmatprep.mubr.bf16.mxu0 0
      %5807 = vmatmul.mubr.bf16.gmra.mrb[0].mxu0 %v5652
      %v5808 = vpop.f32.mrb[0].mxu0
      %v5809 = vadd.f32 0.0, %v5808
      %v5810 = vpop.f32.mrb[0].mxu0
      %v5811 = vpop.f32.mrb[0].mxu0
      %v5812 = vadd.f32 0.0, %v5811
      %v5813 = vpop.f32.mrb[0].mxu0
      %5814 = vdwg.mxu0
      %v5815 = vadd.f32 %v5623, %v5753
      %v5816 = vadd.f32 %v5624, %v5756
      %v5817 = vadd.f32 %v5625, %v5761
      %v5818 = vadd.f32 %v5626, %v5764
      %v5819 = vadd.f32 %v5627, %v5769
      %v5820 = vadd.f32 %v5628, %v5772
      %v5821 = vadd.f32 %v5629, %v5777
      %v5822 = vadd.f32 %v5630, %v5780
      %v5823 = vadd.f32 %v5631, %v5785
      %v5824 = vadd.f32 %v5632, %v5788
      %v5825 = vadd.f32 %v5633, %v5793
      %v5826 = vadd.f32 %v5634, %v5796
      %v5827 = vadd.f32 %v5635, %v5801
      %v5828 = vadd.f32 %v5636, %v5804
      %v5829 = vadd.f32 %v5637, %v5809
      %v5830 = vadd.f32 %v5638, %v5812
      %v5831 = vpack.c.bf16 %v431, %v5265
      %v5832 = vpack.c.bf16 %v431, %v5266
      %s5833 = scalar_lea.vmem %s1, 1536
      %v5834 = vld [vmem:[%s5833] sm:$0xf]
      %v5835 = vld [vmem:[%s5833 + $0x4] sm:$0xf]
      %v5836 = vld [vmem:[%s5833 + $0x8] sm:$0xf]
      %v5837 = vld [vmem:[%s5833 + $0xc] sm:$0xf]
      %v5838 = vld [vmem:[%s5833 + $0x10] sm:$0xf]
      %v5839 = vld [vmem:[%s5833 + $0x14] sm:$0xf]
      %v5840 = vld [vmem:[%s5833 + $0x18] sm:$0xf]
      %v5841 = vld [vmem:[%s5833 + $0x1c] sm:$0xf]
      %v5842 = vld [vmem:[%s5833 + $0x20] sm:$0xf]
      %v5843 = vld [vmem:[%s5833 + $0x24] sm:$0xf]
      %v5844 = vld [vmem:[%s5833 + $0x28] sm:$0xf]
      %v5845 = vld [vmem:[%s5833 + $0x2c] sm:$0xf]
      %v5846 = vld [vmem:[%s5833 + $0x30] sm:$0xf]
      %v5847 = vld [vmem:[%s5833 + $0x34] sm:$0xf]
      %v5848 = vld [vmem:[%s5833 + $0x38] sm:$0xf]
      %v5849 = vld [vmem:[%s5833 + $0x3c] sm:$0xf]
      %v5866 = vunpack.c.l.b16 %v5834
      %v5867 = vunpack.c.l.b16 %v5835
      %v5868 = vunpack.c.l.b16 %v5836
      %v5869 = vunpack.c.l.b16 %v5837
      %v5870 = vunpack.c.l.b16 %v5838
      %v5871 = vunpack.c.l.b16 %v5839
      %v5872 = vunpack.c.l.b16 %v5840
      %v5873 = vunpack.c.l.b16 %v5841
      %v5874 = vunpack.c.l.b16 %v5842
      %v5875 = vunpack.c.l.b16 %v5843
      %v5876 = vunpack.c.l.b16 %v5844
      %v5877 = vunpack.c.l.b16 %v5845
      %v5878 = vunpack.c.l.b16 %v5846
      %v5879 = vunpack.c.l.b16 %v5847
      %v5880 = vunpack.c.l.b16 %v5848
      %v5881 = vunpack.c.l.b16 %v5849
      %v5882 = vpack.c.b16 %v5867, %v5866
      %v5883 = vpack.c.b16 %v5869, %v5868
      %v5884 = vpack.c.b16 %v5871, %v5870
      %v5885 = vpack.c.b16 %v5873, %v5872
      %v5886 = vpack.c.b16 %v5875, %v5874
      %v5887 = vpack.c.b16 %v5877, %v5876
      %v5888 = vpack.c.b16 %v5879, %v5878
      %v5889 = vpack.c.b16 %v5881, %v5880
      %5898 = vmatprep.subr.bf16.mxu0 0
      %5899 = vmatpush1.bf16.msra.mxu0 %v5882
      %5900 = vmatprep.subr.bf16.mxu0 0
      %5901 = vmatpush1.bf16.msra.mxu0 %v5883
      %5902 = vmatprep.subr.bf16.mxu0 0
      %5903 = vmatpush1.bf16.msra.mxu0 %v5884
      %5904 = vmatprep.subr.bf16.mxu0 0
      %5905 = vmatpush1.bf16.msra.mxu0 %v5885
      %5906 = vmatprep.subr.bf16.mxu0 0
      %5907 = vmatpush1.bf16.msra.mxu0 %v5886
      %5908 = vmatprep.subr.bf16.mxu0 0
      %5909 = vmatpush1.bf16.msra.mxu0 %v5887
      %5910 = vmatprep.subr.bf16.mxu0 0
      %5911 = vmatpush1.bf16.msra.mxu0 %v5888
      %5912 = vmatprep.subr.bf16.mxu0 0
      %5913 = vmatpush1.bf16.msra.mxu0 %v5889
      %5914 = vmatprep.subr.bf16.mxu0 0
      %5915 = vmatpush1.bf16.msra.mxu0 0
      %5916 = vmatprep.subr.bf16.mxu0 0
      %5917 = vmatpush1.bf16.msra.mxu0 0
      %5918 = vmatprep.subr.bf16.mxu0 0
      %5919 = vmatpush1.bf16.msra.mxu0 0
      %5920 = vmatprep.subr.bf16.mxu0 0
      %5921 = vmatpush1.bf16.msra.mxu0 0
      %5922 = vmatprep.subr.bf16.mxu0 0
      %5923 = vmatpush1.bf16.msra.mxu0 0
      %5924 = vmatprep.subr.bf16.mxu0 0
      %5925 = vmatpush1.bf16.msra.mxu0 0
      %5926 = vmatprep.subr.bf16.mxu0 0
      %5927 = vmatpush1.bf16.msra.mxu0 0
      %5928 = vmatprep.subr.bf16.mxu0 0
      %5929 = vmatpush1.bf16.msra.mxu0 0
      %5930 = vmatprep.mubr.bf16.mxu0 0
      %5931 = vmatmul.mubr.bf16.gmra.mrb[0].mxu0 %v4692
      %v5932 = vpop.f32.mrb[0].mxu0
      %v5933 = vadd.f32 0.0, %v5932
      %v5934 = vpop.f32.mrb[0].mxu0
      %v5935 = vpop.f32.mrb[0].mxu0
      %v5936 = vadd.f32 0.0, %v5935
      %v5937 = vpop.f32.mrb[0].mxu0
      %5938 = vmatprep.mubr.bf16.mxu0 0
      %5939 = vmatmul.mubr.bf16.gmra.mrb[0].mxu0 %v4693
      %v5940 = vpop.f32.mrb[0].mxu0
      %v5941 = vadd.f32 0.0, %v5940
      %v5942 = vpop.f32.mrb[0].mxu0
      %v5943 = vpop.f32.mrb[0].mxu0
      %v5944 = vadd.f32 0.0, %v5943
      %v5945 = vpop.f32.mrb[0].mxu0
      %5946 = vmatprep.mubr.bf16.mxu0 0
      %5947 = vmatmul.mubr.bf16.gmra.mrb[0].mxu0 %v4694
      %v5948 = vpop.f32.mrb[0].mxu0
      %v5949 = vadd.f32 0.0, %v5948
      %v5950 = vpop.f32.mrb[0].mxu0
      %v5951 = vpop.f32.mrb[0].mxu0
      %v5952 = vadd.f32 0.0, %v5951
      %v5953 = vpop.f32.mrb[0].mxu0
      %5954 = vmatprep.mubr.bf16.mxu0 0
      %5955 = vmatmul.mubr.bf16.gmra.mrb[0].mxu0 %v5831
      %v5956 = vpop.f32.mrb[0].mxu0
      %v5957 = vadd.f32 0.0, %v5956
      %v5958 = vpop.f32.mrb[0].mxu0
      %v5959 = vpop.f32.mrb[0].mxu0
      %v5960 = vadd.f32 0.0, %v5959
      %v5961 = vpop.f32.mrb[0].mxu0
      %5962 = vmatprep.mubr.bf16.mxu0 0
      %5963 = vmatmul.mubr.bf16.gmra.mrb[0].mxu0 %v4696
      %v5964 = vpop.f32.mrb[0].mxu0
      %v5965 = vadd.f32 0.0, %v5964
      %v5966 = vpop.f32.mrb[0].mxu0
      %v5967 = vpop.f32.mrb[0].mxu0
      %v5968 = vadd.f32 0.0, %v5967
      %v5969 = vpop.f32.mrb[0].mxu0
      %5970 = vmatprep.mubr.bf16.mxu0 0
      %5971 = vmatmul.mubr.bf16.gmra.mrb[0].mxu0 %v4697
      %v5972 = vpop.f32.mrb[0].mxu0
      %v5973 = vadd.f32 0.0, %v5972
      %v5974 = vpop.f32.mrb[0].mxu0
      %v5975 = vpop.f32.mrb[0].mxu0
      %v5976 = vadd.f32 0.0, %v5975
      %v5977 = vpop.f32.mrb[0].mxu0
      %5978 = vmatprep.mubr.bf16.mxu0 0
      %5979 = vmatmul.mubr.bf16.gmra.mrb[0].mxu0 %v4698
      %v5980 = vpop.f32.mrb[0].mxu0
      %v5981 = vadd.f32 0.0, %v5980
      %v5982 = vpop.f32.mrb[0].mxu0
      %v5983 = vpop.f32.mrb[0].mxu0
      %v5984 = vadd.f32 0.0, %v5983
      %v5985 = vpop.f32.mrb[0].mxu0
      %5986 = vmatprep.mubr.bf16.mxu0 0
      %5987 = vmatmul.mubr.bf16.gmra.mrb[0].mxu0 %v5832
      %v5988 = vpop.f32.mrb[0].mxu0
      %v5989 = vadd.f32 0.0, %v5988
      %v5990 = vpop.f32.mrb[0].mxu0
      %v5991 = vpop.f32.mrb[0].mxu0
      %v5992 = vadd.f32 0.0, %v5991
      %v5993 = vpop.f32.mrb[0].mxu0
      %5994 = vdwg.mxu0
      %v5995 = vadd.f32 %v5815, %v5933
      %v5996 = vadd.f32 %v5816, %v5936
      %v5997 = vadd.f32 %v5817, %v5941
      %v5998 = vadd.f32 %v5818, %v5944
      %v5999 = vadd.f32 %v5819, %v5949
      %v6000 = vadd.f32 %v5820, %v5952
      %v6001 = vadd.f32 %v5821, %v5957
      %v6002 = vadd.f32 %v5822, %v5960
      %v6003 = vadd.f32 %v5823, %v5965
      %v6004 = vadd.f32 %v5824, %v5968
      %v6005 = vadd.f32 %v5825, %v5973
      %v6006 = vadd.f32 %v5826, %v5976
      %v6007 = vadd.f32 %v5827, %v5981
      %v6008 = vadd.f32 %v5828, %v5984
      %v6009 = vadd.f32 %v5829, %v5989
      %v6010 = vadd.f32 %v5830, %v5992
      %v6011 = vpack.c.bf16 0.0, %v4626
      %v6012 = vpack.c.bf16 0.0, %v4634
      %s6013 = scalar_lea.vmem %s1, 1600
      %v6014 = vld [vmem:[%s6013] sm:$0xf]
      %v6015 = vld [vmem:[%s6013 + $0x4] sm:$0xf]
      %v6016 = vld [vmem:[%s6013 + $0x8] sm:$0xf]
      %v6017 = vld [vmem:[%s6013 + $0xc] sm:$0xf]
      %v6018 = vld [vmem:[%s6013 + $0x10] sm:$0xf]
      %v6019 = vld [vmem:[%s6013 + $0x14] sm:$0xf]
      %v6020 = vld [vmem:[%s6013 + $0x18] sm:$0xf]
      %v6021 = vld [vmem:[%s6013 + $0x1c] sm:$0xf]
      %v6022 = vld [vmem:[%s6013 + $0x20] sm:$0xf]
      %v6023 = vld [vmem:[%s6013 + $0x24] sm:$0xf]
      %v6024 = vld [vmem:[%s6013 + $0x28] sm:$0xf]
      %v6025 = vld [vmem:[%s6013 + $0x2c] sm:$0xf]
      %v6026 = vld [vmem:[%s6013 + $0x30] sm:$0xf]
      %v6027 = vld [vmem:[%s6013 + $0x34] sm:$0xf]
      %v6028 = vld [vmem:[%s6013 + $0x38] sm:$0xf]
      %v6029 = vld [vmem:[%s6013 + $0x3c] sm:$0xf]
      %v6046 = vunpack.c.l.b16 %v6014
      %v6047 = vunpack.c.l.b16 %v6015
      %v6048 = vunpack.c.l.b16 %v6016
      %v6049 = vunpack.c.l.b16 %v6017
      %v6050 = vunpack.c.l.b16 %v6018
      %v6051 = vunpack.c.l.b16 %v6019
      %v6052 = vunpack.c.l.b16 %v6020
      %v6053 = vunpack.c.l.b16 %v6021
      %v6054 = vunpack.c.l.b16 %v6022
      %v6055 = vunpack.c.l.b16 %v6023
      %v6056 = vunpack.c.l.b16 %v6024
      %v6057 = vunpack.c.l.b16 %v6025
      %v6058 = vunpack.c.l.b16 %v6026
      %v6059 = vunpack.c.l.b16 %v6027
      %v6060 = vunpack.c.l.b16 %v6028
      %v6061 = vunpack.c.l.b16 %v6029
      %v6062 = vpack.c.b16 %v6047, %v6046
      %v6063 = vpack.c.b16 %v6049, %v6048
      %v6064 = vpack.c.b16 %v6051, %v6050
      %v6065 = vpack.c.b16 %v6053, %v6052
      %v6066 = vpack.c.b16 %v6055, %v6054
      %v6067 = vpack.c.b16 %v6057, %v6056
      %v6068 = vpack.c.b16 %v6059, %v6058
      %v6069 = vpack.c.b16 %v6061, %v6060
      %6078 = vmatprep.subr.bf16.mxu0 0
      %6079 = vmatpush1.bf16.msra.mxu0 %v6062
      %6080 = vmatprep.subr.bf16.mxu0 0
      %6081 = vmatpush1.bf16.msra.mxu0 %v6063
      %6082 = vmatprep.subr.bf16.mxu0 0
      %6083 = vmatpush1.bf16.msra.mxu0 %v6064
      %6084 = vmatprep.subr.bf16.mxu0 0
      %6085 = vmatpush1.bf16.msra.mxu0 %v6065
      %6086 = vmatprep.subr.bf16.mxu0 0
      %6087 = vmatpush1.bf16.msra.mxu0 %v6066
      %6088 = vmatprep.subr.bf16.mxu0 0
      %6089 = vmatpush1.bf16.msra.mxu0 %v6067
      %6090 = vmatprep.subr.bf16.mxu0 0
      %6091 = vmatpush1.bf16.msra.mxu0 %v6068
      %6092 = vmatprep.subr.bf16.mxu0 0
      %6093 = vmatpush1.bf16.msra.mxu0 %v6069
      %6094 = vmatprep.subr.bf16.mxu0 0
      %6095 = vmatpush1.bf16.msra.mxu0 0
      %6096 = vmatprep.subr.bf16.mxu0 0
      %6097 = vmatpush1.bf16.msra.mxu0 0
      %6098 = vmatprep.subr.bf16.mxu0 0
      %6099 = vmatpush1.bf16.msra.mxu0 0
      %6100 = vmatprep.subr.bf16.mxu0 0
      %6101 = vmatpush1.bf16.msra.mxu0 0
      %6102 = vmatprep.subr.bf16.mxu0 0
      %6103 = vmatpush1.bf16.msra.mxu0 0
      %6104 = vmatprep.subr.bf16.mxu0 0
      %6105 = vmatpush1.bf16.msra.mxu0 0
      %6106 = vmatprep.subr.bf16.mxu0 0
      %6107 = vmatpush1.bf16.msra.mxu0 0
      %6108 = vmatprep.subr.bf16.mxu0 0
      %6109 = vmatpush1.bf16.msra.mxu0 0
      %6110 = vmatprep.mubr.bf16.mxu0 0
      %6111 = vmatmul.mubr.bf16.gmra.mrb[0].mxu0 %v4717
      %v6112 = vpop.f32.mrb[0].mxu0
      %v6113 = vadd.f32 0.0, %v6112
      %v6114 = vpop.f32.mrb[0].mxu0
      %v6115 = vpop.f32.mrb[0].mxu0
      %v6116 = vadd.f32 0.0, %v6115
      %v6117 = vpop.f32.mrb[0].mxu0
      %6118 = vmatprep.mubr.bf16.mxu0 0
      %6119 = vmatmul.mubr.bf16.gmra.mrb[0].mxu0 %v4718
      %v6120 = vpop.f32.mrb[0].mxu0
      %v6121 = vadd.f32 0.0, %v6120
      %v6122 = vpop.f32.mrb[0].mxu0
      %v6123 = vpop.f32.mrb[0].mxu0
      %v6124 = vadd.f32 0.0, %v6123
      %v6125 = vpop.f32.mrb[0].mxu0
      %6126 = vmatprep.mubr.bf16.mxu0 0
      %6127 = vmatmul.mubr.bf16.gmra.mrb[0].mxu0 %v4719
      %v6128 = vpop.f32.mrb[0].mxu0
      %v6129 = vadd.f32 0.0, %v6128
      %v6130 = vpop.f32.mrb[0].mxu0
      %v6131 = vpop.f32.mrb[0].mxu0
      %v6132 = vadd.f32 0.0, %v6131
      %v6133 = vpop.f32.mrb[0].mxu0
      %6134 = vmatprep.mubr.bf16.mxu0 0
      %6135 = vmatmul.mubr.bf16.gmra.mrb[0].mxu0 %v6011
      %v6136 = vpop.f32.mrb[0].mxu0
      %v6137 = vadd.f32 0.0, %v6136
      %v6138 = vpop.f32.mrb[0].mxu0
      %v6139 = vpop.f32.mrb[0].mxu0
      %v6140 = vadd.f32 0.0, %v6139
      %v6141 = vpop.f32.mrb[0].mxu0
      %6142 = vmatprep.mubr.bf16.mxu0 0
      %6143 = vmatmul.mubr.bf16.gmra.mrb[0].mxu0 %v4721
      %v6144 = vpop.f32.mrb[0].mxu0
      %v6145 = vadd.f32 0.0, %v6144
      %v6146 = vpop.f32.mrb[0].mxu0
      %v6147 = vpop.f32.mrb[0].mxu0
      %v6148 = vadd.f32 0.0, %v6147
      %v6149 = vpop.f32.mrb[0].mxu0
      %6150 = vmatprep.mubr.bf16.mxu0 0
      %6151 = vmatmul.mubr.bf16.gmra.mrb[0].mxu0 %v4722
      %v6152 = vpop.f32.mrb[0].mxu0
      %v6153 = vadd.f32 0.0, %v6152
      %v6154 = vpop.f32.mrb[0].mxu0
      %v6155 = vpop.f32.mrb[0].mxu0
      %v6156 = vadd.f32 0.0, %v6155
      %v6157 = vpop.f32.mrb[0].mxu0
      %6158 = vmatprep.mubr.bf16.mxu0 0
      %6159 = vmatmul.mubr.bf16.gmra.mrb[0].mxu0 %v4723
      %v6160 = vpop.f32.mrb[0].mxu0
      %v6161 = vadd.f32 0.0, %v6160
      %v6162 = vpop.f32.mrb[0].mxu0
      %v6163 = vpop.f32.mrb[0].mxu0
      %v6164 = vadd.f32 0.0, %v6163
      %v6165 = vpop.f32.mrb[0].mxu0
      %6166 = vmatprep.mubr.bf16.mxu0 0
      %6167 = vmatmul.mubr.bf16.gmra.mrb[0].mxu0 %v6012
      %v6168 = vpop.f32.mrb[0].mxu0
      %v6169 = vadd.f32 0.0, %v6168
      %v6170 = vpop.f32.mrb[0].mxu0
      %v6171 = vpop.f32.mrb[0].mxu0
      %v6172 = vadd.f32 0.0, %v6171
      %v6173 = vpop.f32.mrb[0].mxu0
      %6174 = vdwg.mxu0
      %v6175 = vadd.f32 %v5995, %v6113
      %v6176 = vadd.f32 %v5996, %v6116
      %v6177 = vadd.f32 %v5997, %v6121
      %v6178 = vadd.f32 %v5998, %v6124
      %v6179 = vadd.f32 %v5999, %v6129
      %v6180 = vadd.f32 %v6000, %v6132
      %v6181 = vadd.f32 %v6001, %v6137
      %v6182 = vadd.f32 %v6002, %v6140
      %v6183 = vadd.f32 %v6003, %v6145
      %v6184 = vadd.f32 %v6004, %v6148
      %v6185 = vadd.f32 %v6005, %v6153
      %v6186 = vadd.f32 %v6006, %v6156
      %v6187 = vadd.f32 %v6007, %v6161
      %v6188 = vadd.f32 %v6008, %v6164
      %v6189 = vadd.f32 %v6009, %v6169
      %v6190 = vadd.f32 %v6010, %v6172
      %v6191 = vpack.c.bf16 %v816, %v5643
      %v6192 = vpack.c.bf16 %v816, %v5644
      %s6193 = scalar_lea.vmem %s1, 1664
      %v6194 = vld [vmem:[%s6193] sm:$0xf]
      %v6195 = vld [vmem:[%s6193 + $0x4] sm:$0xf]
      %v6196 = vld [vmem:[%s6193 + $0x8] sm:$0xf]
      %v6197 = vld [vmem:[%s6193 + $0xc] sm:$0xf]
      %v6198 = vld [vmem:[%s6193 + $0x10] sm:$0xf]
      %v6199 = vld [vmem:[%s6193 + $0x14] sm:$0xf]
      %v6200 = vld [vmem:[%s6193 + $0x18] sm:$0xf]
      %v6201 = vld [vmem:[%s6193 + $0x1c] sm:$0xf]
      %v6202 = vld [vmem:[%s6193 + $0x20] sm:$0xf]
      %v6203 = vld [vmem:[%s6193 + $0x24] sm:$0xf]
      %v6204 = vld [vmem:[%s6193 + $0x28] sm:$0xf]
      %v6205 = vld [vmem:[%s6193 + $0x2c] sm:$0xf]
      %v6206 = vld [vmem:[%s6193 + $0x30] sm:$0xf]
      %v6207 = vld [vmem:[%s6193 + $0x34] sm:$0xf]
      %v6208 = vld [vmem:[%s6193 + $0x38] sm:$0xf]
      %v6209 = vld [vmem:[%s6193 + $0x3c] sm:$0xf]
      %v6226 = vunpack.c.l.b16 %v6194
      %v6227 = vunpack.c.l.b16 %v6195
      %v6228 = vunpack.c.l.b16 %v6196
      %v6229 = vunpack.c.l.b16 %v6197
      %v6230 = vunpack.c.l.b16 %v6198
      %v6231 = vunpack.c.l.b16 %v6199
      %v6232 = vunpack.c.l.b16 %v6200
      %v6233 = vunpack.c.l.b16 %v6201
      %v6234 = vunpack.c.l.b16 %v6202
      %v6235 = vunpack.c.l.b16 %v6203
      %v6236 = vunpack.c.l.b16 %v6204
      %v6237 = vunpack.c.l.b16 %v6205
      %v6238 = vunpack.c.l.b16 %v6206
      %v6239 = vunpack.c.l.b16 %v6207
      %v6240 = vunpack.c.l.b16 %v6208
      %v6241 = vunpack.c.l.b16 %v6209
      %v6242 = vpack.c.b16 %v6227, %v6226
      %v6243 = vpack.c.b16 %v6229, %v6228
      %v6244 = vpack.c.b16 %v6231, %v6230
      %v6245 = vpack.c.b16 %v6233, %v6232
      %v6246 = vpack.c.b16 %v6235, %v6234
      %v6247 = vpack.c.b16 %v6237, %v6236
      %v6248 = vpack.c.b16 %v6239, %v6238
      %v6249 = vpack.c.b16 %v6241, %v6240
      %6258 = vmatprep.subr.bf16.mxu0 0
      %6259 = vmatpush1.bf16.msra.mxu0 %v6242
      %6260 = vmatprep.subr.bf16.mxu0 0
      %6261 = vmatpush1.bf16.msra.mxu0 %v6243
      %6262 = vmatprep.subr.bf16.mxu0 0
      %6263 = vmatpush1.bf16.msra.mxu0 %v6244
      %6264 = vmatprep.subr.bf16.mxu0 0
      %6265 = vmatpush1.bf16.msra.mxu0 %v6245
      %6266 = vmatprep.subr.bf16.mxu0 0
      %6267 = vmatpush1.bf16.msra.mxu0 %v6246
      %6268 = vmatprep.subr.bf16.mxu0 0
      %6269 = vmatpush1.bf16.msra.mxu0 %v6247
      %6270 = vmatprep.subr.bf16.mxu0 0
      %6271 = vmatpush1.bf16.msra.mxu0 %v6248
      %6272 = vmatprep.subr.bf16.mxu0 0
      %6273 = vmatpush1.bf16.msra.mxu0 %v6249
      %6274 = vmatprep.subr.bf16.mxu0 0
      %6275 = vmatpush1.bf16.msra.mxu0 0
      %6276 = vmatprep.subr.bf16.mxu0 0
      %6277 = vmatpush1.bf16.msra.mxu0 0
      %6278 = vmatprep.subr.bf16.mxu0 0
      %6279 = vmatpush1.bf16.msra.mxu0 0
      %6280 = vmatprep.subr.bf16.mxu0 0
      %6281 = vmatpush1.bf16.msra.mxu0 0
      %6282 = vmatprep.subr.bf16.mxu0 0
      %6283 = vmatpush1.bf16.msra.mxu0 0
      %6284 = vmatprep.subr.bf16.mxu0 0
      %6285 = vmatpush1.bf16.msra.mxu0 0
      %6286 = vmatprep.subr.bf16.mxu0 0
      %6287 = vmatpush1.bf16.msra.mxu0 0
      %6288 = vmatprep.subr.bf16.mxu0 0
      %6289 = vmatpush1.bf16.msra.mxu0 0
      %6290 = vmatprep.mubr.bf16.mxu0 0
      %6291 = vmatmul.mubr.bf16.gmra.mrb[0].mxu0 %v5074
      %v6292 = vpop.f32.mrb[0].mxu0
      %v6293 = vadd.f32 0.0, %v6292
      %v6294 = vpop.f32.mrb[0].mxu0
      %v6295 = vpop.f32.mrb[0].mxu0
      %v6296 = vadd.f32 0.0, %v6295
      %v6297 = vpop.f32.mrb[0].mxu0
      %6298 = vmatprep.mubr.bf16.mxu0 0
      %6299 = vmatmul.mubr.bf16.gmra.mrb[0].mxu0 %v5075
      %v6300 = vpop.f32.mrb[0].mxu0
      %v6301 = vadd.f32 0.0, %v6300
      %v6302 = vpop.f32.mrb[0].mxu0
      %v6303 = vpop.f32.mrb[0].mxu0
      %v6304 = vadd.f32 0.0, %v6303
      %v6305 = vpop.f32.mrb[0].mxu0
      %6306 = vmatprep.mubr.bf16.mxu0 0
      %6307 = vmatmul.mubr.bf16.gmra.mrb[0].mxu0 %v5076
      %v6308 = vpop.f32.mrb[0].mxu0
      %v6309 = vadd.f32 0.0, %v6308
      %v6310 = vpop.f32.mrb[0].mxu0
      %v6311 = vpop.f32.mrb[0].mxu0
      %v6312 = vadd.f32 0.0, %v6311
      %v6313 = vpop.f32.mrb[0].mxu0
      %6314 = vmatprep.mubr.bf16.mxu0 0
      %6315 = vmatmul.mubr.bf16.gmra.mrb[0].mxu0 %v6191
      %v6316 = vpop.f32.mrb[0].mxu0
      %v6317 = vadd.f32 0.0, %v6316
      %v6318 = vpop.f32.mrb[0].mxu0
      %v6319 = vpop.f32.mrb[0].mxu0
      %v6320 = vadd.f32 0.0, %v6319
      %v6321 = vpop.f32.mrb[0].mxu0
      %6322 = vmatprep.mubr.bf16.mxu0 0
      %6323 = vmatmul.mubr.bf16.gmra.mrb[0].mxu0 %v5078
      %v6324 = vpop.f32.mrb[0].mxu0
      %v6325 = vadd.f32 0.0, %v6324
      %v6326 = vpop.f32.mrb[0].mxu0
      %v6327 = vpop.f32.mrb[0].mxu0
      %v6328 = vadd.f32 0.0, %v6327
      %v6329 = vpop.f32.mrb[0].mxu0
      %6330 = vmatprep.mubr.bf16.mxu0 0
      %6331 = vmatmul.mubr.bf16.gmra.mrb[0].mxu0 %v5079
      %v6332 = vpop.f32.mrb[0].mxu0
      %v6333 = vadd.f32 0.0, %v6332
      %v6334 = vpop.f32.mrb[0].mxu0
      %v6335 = vpop.f32.mrb[0].mxu0
      %v6336 = vadd.f32 0.0, %v6335
      %v6337 = vpop.f32.mrb[0].mxu0
      %6338 = vmatprep.mubr.bf16.mxu0 0
      %6339 = vmatmul.mubr.bf16.gmra.mrb[0].mxu0 %v5080
      %v6340 = vpop.f32.mrb[0].mxu0
      %v6341 = vadd.f32 0.0, %v6340
      %v6342 = vpop.f32.mrb[0].mxu0
      %v6343 = vpop.f32.mrb[0].mxu0
      %v6344 = vadd.f32 0.0, %v6343
      %v6345 = vpop.f32.mrb[0].mxu0
      %6346 = vmatprep.mubr.bf16.mxu0 0
      %6347 = vmatmul.mubr.bf16.gmra.mrb[0].mxu0 %v6192
      %v6348 = vpop.f32.mrb[0].mxu0
      %v6349 = vadd.f32 0.0, %v6348
      %v6350 = vpop.f32.mrb[0].mxu0
      %v6351 = vpop.f32.mrb[0].mxu0
      %v6352 = vadd.f32 0.0, %v6351
      %v6353 = vpop.f32.mrb[0].mxu0
      %6354 = vdwg.mxu0
      %v6355 = vadd.f32 %v6175, %v6293
      %v6356 = vadd.f32 %v6176, %v6296
      %v6357 = vadd.f32 %v6177, %v6301
      %v6358 = vadd.f32 %v6178, %v6304
      %v6359 = vadd.f32 %v6179, %v6309
      %v6360 = vadd.f32 %v6180, %v6312
      %v6361 = vadd.f32 %v6181, %v6317
      %v6362 = vadd.f32 %v6182, %v6320
      %v6363 = vadd.f32 %v6183, %v6325
      %v6364 = vadd.f32 %v6184, %v6328
      %v6365 = vadd.f32 %v6185, %v6333
      %v6366 = vadd.f32 %v6186, %v6336
      %v6367 = vadd.f32 %v6187, %v6341
      %v6368 = vadd.f32 %v6188, %v6344
      %v6369 = vadd.f32 %v6189, %v6349
      %v6370 = vadd.f32 %v6190, %v6352
      %s6371 = scalar_lea.vmem %s2, 2
      %v6372 = vld [vmem:[%s6371] sm:$0x1]
      %v6374 = vlaneseq
      %v6375 = vshrl.u32 %v6374, 7
      %v6376 = vsub.s32 0, %v6375
      %v6377 = vrot.slane %v6372, %v6376
      %v6379 = vadd.f32 %v6355, %v6377
      %v6380 = vadd.f32 %v6356, %v6377
      %v6381 = vadd.f32 %v6357, %v6377
      %v6382 = vadd.f32 %v6358, %v6377
      %v6383 = vadd.f32 %v6359, %v6377
      %v6384 = vadd.f32 %v6360, %v6377
      %v6385 = vadd.f32 %v6361, %v6377
      %v6386 = vadd.f32 %v6362, %v6377
      %v6387 = vadd.f32 %v6363, %v6377
      %v6388 = vadd.f32 %v6364, %v6377
      %v6389 = vadd.f32 %v6365, %v6377
      %v6390 = vadd.f32 %v6366, %v6377
      %v6391 = vadd.f32 %v6367, %v6377
      %v6392 = vadd.f32 %v6368, %v6377
      %v6393 = vadd.f32 %v6369, %v6377
      %v6394 = vadd.f32 %v6370, %v6377
      %v6395 = vadd.f32 %v6379, %v6380
      %v6396 = vadd.f32 %v6395, %v6381
      %v6397 = vadd.f32 %v6396, %v6382
      %v6398 = vadd.f32 %v6397, %v6383
      %v6399 = vadd.f32 %v6398, %v6384
      %v6400 = vadd.f32 %v6399, %v6385
      %v6401 = vadd.f32 %v6400, %v6386
      %v6402 = vrot.slane %v6401, 4
      %v6403 = vadd.f32 %v6401, %v6402
      %v6404 = vrot.slane %v6403, 2
      %v6405 = vadd.f32 %v6403, %v6404
      %v6406 = vrot.slane %v6405, 1
      %v6407 = vadd.f32 %v6405, %v6406
      %v6408 = vadd.f32 %v6387, %v6388
      %v6409 = vadd.f32 %v6408, %v6389
      %v6410 = vadd.f32 %v6409, %v6390
      %v6411 = vadd.f32 %v6410, %v6391
      %v6412 = vadd.f32 %v6411, %v6392
      %v6413 = vadd.f32 %v6412, %v6393
      %v6414 = vadd.f32 %v6413, %v6394
      %v6415 = vrot.slane %v6414, 4
      %v6416 = vadd.f32 %v6414, %v6415
      %v6417 = vrot.slane %v6416, 2
      %v6418 = vadd.f32 %v6416, %v6417
      %v6419 = vrot.slane %v6418, 1
      %v6420 = vadd.f32 %v6418, %v6419
      %v6421 = vmul.f32 %v6379, %v6379
      %v6422 = vmul.f32 %v6380, %v6380
      %v6423 = vmul.f32 %v6381, %v6381
      %v6424 = vmul.f32 %v6382, %v6382
      %v6425 = vmul.f32 %v6383, %v6383
      %v6426 = vmul.f32 %v6384, %v6384
      %v6427 = vmul.f32 %v6385, %v6385
      %v6428 = vmul.f32 %v6386, %v6386
      %v6429 = vmul.f32 %v6387, %v6387
      %v6430 = vmul.f32 %v6388, %v6388
      %v6431 = vmul.f32 %v6389, %v6389
      %v6432 = vmul.f32 %v6390, %v6390
      %v6433 = vmul.f32 %v6391, %v6391
      %v6434 = vmul.f32 %v6392, %v6392
      %v6435 = vmul.f32 %v6393, %v6393
      %v6436 = vmul.f32 %v6394, %v6394
      %v6437 = vadd.f32 %v6421, %v6422
      %v6438 = vadd.f32 %v6437, %v6423
      %v6439 = vadd.f32 %v6438, %v6424
      %v6440 = vadd.f32 %v6439, %v6425
      %v6441 = vadd.f32 %v6440, %v6426
      %v6442 = vadd.f32 %v6441, %v6427
      %v6443 = vadd.f32 %v6442, %v6428
      %v6444 = vrot.slane %v6443, 4
      %v6445 = vadd.f32 %v6443, %v6444
      %v6446 = vrot.slane %v6445, 2
      %v6447 = vadd.f32 %v6445, %v6446
      %v6448 = vrot.slane %v6447, 1
      %v6449 = vadd.f32 %v6447, %v6448
      %v6450 = vadd.f32 %v6429, %v6430
      %v6451 = vadd.f32 %v6450, %v6431
      %v6452 = vadd.f32 %v6451, %v6432
      %v6453 = vadd.f32 %v6452, %v6433
      %v6454 = vadd.f32 %v6453, %v6434
      %v6455 = vadd.f32 %v6454, %v6435
      %v6456 = vadd.f32 %v6455, %v6436
      %v6457 = vrot.slane %v6456, 4
      %v6458 = vadd.f32 %v6456, %v6457
      %v6459 = vrot.slane %v6458, 2
      %v6460 = vadd.f32 %v6458, %v6459
      %v6461 = vrot.slane %v6460, 1
      %v6462 = vadd.f32 %v6460, %v6461
      %v6465 = vsel %vm2238, %v6420, %v6407
      %6467 = vmatprep.subr.mxu0 0.0
      %6468 = vmatpush1.msra.mxu0 %v2220
      %6469 = vmatprep.subr.mxu0 0.0
      %6470 = vmatpush1.msra.mxu0 %v2221
      %6471 = vmatprep.subr.mxu0 0.0
      %6472 = vmatpush1.msra.mxu0 %v2222
      %6473 = vmatprep.subr.mxu0 0.0
      %6474 = vmatpush1.msra.mxu0 %v2223
      %6475 = vmatprep.subr.mxu0 0.0
      %6476 = vmatpush1.msra.mxu0 %v2224
      %6477 = vmatprep.subr.mxu0 0.0
      %6478 = vmatpush1.msra.mxu0 %v2225
      %6479 = vmatprep.subr.mxu0 0.0
      %6480 = vmatpush1.msra.mxu0 %v2226
      %6481 = vmatprep.subr.mxu0 0.0
      %6482 = vmatpush1.msra.mxu0 %v2227
      %6483 = vmatprep.subr.mxu0 0.0
      %6484 = vmatpush1.msra.mxu0 %v2228
      %6485 = vmatprep.subr.mxu0 0.0
      %6486 = vmatpush1.msra.mxu0 %v2229
      %6487 = vmatprep.subr.mxu0 0.0
      %6488 = vmatpush1.msra.mxu0 %v2230
      %6489 = vmatprep.subr.mxu0 0.0
      %6490 = vmatpush1.msra.mxu0 %v2231
      %6491 = vmatprep.subr.mxu0 0.0
      %6492 = vmatpush1.msra.mxu0 %v2232
      %6493 = vmatprep.subr.mxu0 0.0
      %6494 = vmatpush1.msra.mxu0 %v2233
      %6495 = vmatprep.subr.mxu0 0.0
      %6496 = vmatpush1.msra.mxu0 %v2234
      %6497 = vmatprep.subr.mxu0 0.0
      %6498 = vmatpush1.msra.mxu0 %v2235
      %6499 = vmatprep.subr.mxu0 0.0
      %6500 = vmatpush1.msra.mxu0 0.0
      %6501 = vmatprep.subr.mxu0 0.0
      %6502 = vmatpush1.msra.mxu0 0.0
      %6503 = vmatprep.subr.mxu0 0.0
      %6504 = vmatpush1.msra.mxu0 0.0
      %6505 = vmatprep.subr.mxu0 0.0
      %6506 = vmatpush1.msra.mxu0 0.0
      %6507 = vmatprep.subr.mxu0 0.0
      %6508 = vmatpush1.msra.mxu0 0.0
      %6509 = vmatprep.subr.mxu0 0.0
      %6510 = vmatpush1.msra.mxu0 0.0
      %6511 = vmatprep.subr.mxu0 0.0
      %6512 = vmatpush1.msra.mxu0 0.0
      %6513 = vmatprep.subr.mxu0 0.0
      %6514 = vmatpush1.msra.mxu0 0.0
      %6515 = vmatprep.subr.mxu0 0.0
      %6516 = vmatpush1.msra.mxu0 0.0
      %6517 = vmatprep.subr.mxu0 0.0
      %6518 = vmatpush1.msra.mxu0 0.0
      %6519 = vmatprep.subr.mxu0 0.0
      %6520 = vmatpush1.msra.mxu0 0.0
      %6521 = vmatprep.subr.mxu0 0.0
      %6522 = vmatpush1.msra.mxu0 0.0
      %6523 = vmatprep.subr.mxu0 0.0
      %6524 = vmatpush1.msra.mxu0 0.0
      %6525 = vmatprep.subr.mxu0 0.0
      %6526 = vmatpush1.msra.mxu0 0.0
      %6527 = vmatprep.subr.mxu0 0.0
      %6528 = vmatpush1.msra.mxu0 0.0
      %6529 = vmatprep.subr.mxu0 0.0
      %6530 = vmatpush1.msra.mxu0 0.0
      %6531 = vmatprep.mubr.f32.mxu0 0.0
      %6532 = vmatmul.mubr.f32.gmra.mrb[0].mxu0 %v6465
      %v6533 = vpop.f32.mrb[0].mxu0
      %v6534 = vadd.f32 0.0, %v6533
      %v6535 = vpop.f32.mrb[0].mxu0
      %6536 = vdwg.mxu0
      %v6539 = vsel %vm2238, %v6462, %v6449
      %6541 = vmatprep.subr.mxu0 0.0
      %6542 = vmatpush1.msra.mxu0 %v2220
      %6543 = vmatprep.subr.mxu0 0.0
      %6544 = vmatpush1.msra.mxu0 %v2221
      %6545 = vmatprep.subr.mxu0 0.0
      %6546 = vmatpush1.msra.mxu0 %v2222
      %6547 = vmatprep.subr.mxu0 0.0
      %6548 = vmatpush1.msra.mxu0 %v2223
      %6549 = vmatprep.subr.mxu0 0.0
      %6550 = vmatpush1.msra.mxu0 %v2224
      %6551 = vmatprep.subr.mxu0 0.0
      %6552 = vmatpush1.msra.mxu0 %v2225
      %6553 = vmatprep.subr.mxu0 0.0
      %6554 = vmatpush1.msra.mxu0 %v2226
      %6555 = vmatprep.subr.mxu0 0.0
      %6556 = vmatpush1.msra.mxu0 %v2227
      %6557 = vmatprep.subr.mxu0 0.0
      %6558 = vmatpush1.msra.mxu0 %v2228
      %6559 = vmatprep.subr.mxu0 0.0
      %6560 = vmatpush1.msra.mxu0 %v2229
      %6561 = vmatprep.subr.mxu0 0.0
      %6562 = vmatpush1.msra.mxu0 %v2230
      %6563 = vmatprep.subr.mxu0 0.0
      %6564 = vmatpush1.msra.mxu0 %v2231
      %6565 = vmatprep.subr.mxu0 0.0
      %6566 = vmatpush1.msra.mxu0 %v2232
      %6567 = vmatprep.subr.mxu0 0.0
      %6568 = vmatpush1.msra.mxu0 %v2233
      %6569 = vmatprep.subr.mxu0 0.0
      %6570 = vmatpush1.msra.mxu0 %v2234
      %6571 = vmatprep.subr.mxu0 0.0
      %6572 = vmatpush1.msra.mxu0 %v2235
      %6573 = vmatprep.subr.mxu0 0.0
      %6574 = vmatpush1.msra.mxu0 0.0
      %6575 = vmatprep.subr.mxu0 0.0
      %6576 = vmatpush1.msra.mxu0 0.0
      %6577 = vmatprep.subr.mxu0 0.0
      %6578 = vmatpush1.msra.mxu0 0.0
      %6579 = vmatprep.subr.mxu0 0.0
      %6580 = vmatpush1.msra.mxu0 0.0
      %6581 = vmatprep.subr.mxu0 0.0
      %6582 = vmatpush1.msra.mxu0 0.0
      %6583 = vmatprep.subr.mxu0 0.0
      %6584 = vmatpush1.msra.mxu0 0.0
      %6585 = vmatprep.subr.mxu0 0.0
      %6586 = vmatpush1.msra.mxu0 0.0
      %6587 = vmatprep.subr.mxu0 0.0
      %6588 = vmatpush1.msra.mxu0 0.0
      %6589 = vmatprep.subr.mxu0 0.0
      %6590 = vmatpush1.msra.mxu0 0.0
      %6591 = vmatprep.subr.mxu0 0.0
      %6592 = vmatpush1.msra.mxu0 0.0
      %6593 = vmatprep.subr.mxu0 0.0
      %6594 = vmatpush1.msra.mxu0 0.0
      %6595 = vmatprep.subr.mxu0 0.0
      %6596 = vmatpush1.msra.mxu0 0.0
      %6597 = vmatprep.subr.mxu0 0.0
      %6598 = vmatpush1.msra.mxu0 0.0
      %6599 = vmatprep.subr.mxu0 0.0
      %6600 = vmatpush1.msra.mxu0 0.0
      %6601 = vmatprep.subr.mxu0 0.0
      %6602 = vmatpush1.msra.mxu0 0.0
      %6603 = vmatprep.subr.mxu0 0.0
      %6604 = vmatpush1.msra.mxu0 0.0
      %6605 = vmatprep.mubr.f32.mxu0 0.0
      %6606 = vmatmul.mubr.f32.gmra.mrb[0].mxu0 %v6539
      %v6607 = vpop.f32.mrb[0].mxu0
      %v6608 = vadd.f32 0.0, %v6607
      %v6609 = vpop.f32.mrb[0].mxu0
      %6610 = vdwg.mxu0
      %v6611 = vmul.f32 %v6534, %v6534
      %v6612 = vsub.f32 %v6608, %v6611
      %v6613 = vmax.f32 %v6612, 0.0
      %v6614 = vadd.f32 %v6613, 1e-05
      %v6615 = vrsqrt.pop %v6614
      %s6616 = scalar_lea.vmem %s3, 2
      %v6617 = vld [vmem:[%s6616] sm:$0x1]
      %v6619 = vlaneseq
      %v6620 = vshrl.u32 %v6619, 7
      %v6621 = vsub.s32 0, %v6620
      %v6622 = vrot.slane %v6617, %v6621
      %v6624 = vmul.f32 %v6615, %v6622
      %s6625 = scalar_lea.vmem %s4, 2
      %v6626 = vld [vmem:[%s6625] sm:$0x1]
      %v6627 = vmul.f32 %v6534, %v6624
      %v6629 = vlaneseq
      %v6630 = vshrl.u32 %v6629, 7
      %v6631 = vsub.s32 0, %v6630
      %v6632 = vrot.slane %v6626, %v6631
      %v6634 = vsub.f32 %v6632, %v6627
      %v6637 = vunpack.c.l.s4 1966171168
      %v6638 = vunpack.c.0.s8 %v6637
      %v6639 = vlaneseq
      %v6640 = vshrl.u32 %v6639, 7
      %v6641 = vsub.s32 %v6638, %v6640
      %v6642 = vrot.slane %v6624, %v6641
      %v6643 = vcombine.high %v6642, %v6642
      %v6645 = vunpack.c.l.s4 1966171168
      %v6646 = vunpack.c.0.s8 %v6645
      %v6647 = vlaneseq
      %v6648 = vshrl.u32 %v6647, 7
      %v6649 = vsub.s32 %v6646, %v6648
      %v6650 = vrot.slane %v6642, %v6649
      %v6652 = vunpack.c.l.s4 1966171168
      %v6653 = vunpack.c.0.s8 %v6652
      %v6654 = vlaneseq
      %v6655 = vshrl.u32 %v6654, 7
      %v6656 = vsub.s32 %v6653, %v6655
      %v6657 = vrot.slane %v6643, %v6656
      %v6658 = vlaneseq
      %v6659 = vshrl.u32 %v6658, 7
      %v6660 = vsub.s32 0, %v6659
      %v6661 = vrot.slane %v6650, %v6660
      %v6662 = vlaneseq
      %v6663 = vshrl.u32 %v6662, 7
      %v6664 = vsub.s32 0, %v6663
      %v6665 = vrot.slane %v6657, %v6664
      %v6668 = vmul.f32 %v6379, %v6661
      %v6669 = vmul.f32 %v6380, %v6661
      %v6670 = vmul.f32 %v6381, %v6661
      %v6671 = vmul.f32 %v6382, %v6661
      %v6672 = vmul.f32 %v6383, %v6661
      %v6673 = vmul.f32 %v6384, %v6661
      %v6674 = vmul.f32 %v6385, %v6661
      %v6675 = vmul.f32 %v6386, %v6661
      %v6676 = vmul.f32 %v6387, %v6665
      %v6677 = vmul.f32 %v6388, %v6665
      %v6678 = vmul.f32 %v6389, %v6665
      %v6679 = vmul.f32 %v6390, %v6665
      %v6680 = vmul.f32 %v6391, %v6665
      %v6681 = vmul.f32 %v6392, %v6665
      %v6682 = vmul.f32 %v6393, %v6665
      %v6683 = vmul.f32 %v6394, %v6665
      %v6686 = vunpack.c.l.s4 1966171168
      %v6687 = vunpack.c.0.s8 %v6686
      %v6688 = vlaneseq
      %v6689 = vshrl.u32 %v6688, 7
      %v6690 = vsub.s32 %v6687, %v6689
      %v6691 = vrot.slane %v6634, %v6690
      %v6692 = vcombine.high %v6691, %v6691
      %v6694 = vunpack.c.l.s4 1966171168
      %v6695 = vunpack.c.0.s8 %v6694
      %v6696 = vlaneseq
      %v6697 = vshrl.u32 %v6696, 7
      %v6698 = vsub.s32 %v6695, %v6697
      %v6699 = vrot.slane %v6691, %v6698
      %v6701 = vunpack.c.l.s4 1966171168
      %v6702 = vunpack.c.0.s8 %v6701
      %v6703 = vlaneseq
      %v6704 = vshrl.u32 %v6703, 7
      %v6705 = vsub.s32 %v6702, %v6704
      %v6706 = vrot.slane %v6692, %v6705
      %v6707 = vlaneseq
      %v6708 = vshrl.u32 %v6707, 7
      %v6709 = vsub.s32 0, %v6708
      %v6710 = vrot.slane %v6699, %v6709
      %v6711 = vlaneseq
      %v6712 = vshrl.u32 %v6711, 7
      %v6713 = vsub.s32 0, %v6712
      %v6714 = vrot.slane %v6706, %v6713
      %v6717 = vadd.f32 %v6668, %v6710
      %v6718 = vadd.f32 %v6669, %v6710
      %v6719 = vadd.f32 %v6670, %v6710
      %v6720 = vadd.f32 %v6671, %v6710
      %v6721 = vadd.f32 %v6672, %v6710
      %v6722 = vadd.f32 %v6673, %v6710
      %v6723 = vadd.f32 %v6674, %v6710
      %v6724 = vadd.f32 %v6675, %v6710
      %v6725 = vadd.f32 %v6676, %v6714
      %v6726 = vadd.f32 %v6677, %v6714
      %v6727 = vadd.f32 %v6678, %v6714
      %v6728 = vadd.f32 %v6679, %v6714
      %v6729 = vadd.f32 %v6680, %v6714
      %v6730 = vadd.f32 %v6681, %v6714
      %v6731 = vadd.f32 %v6682, %v6714
      %v6732 = vadd.f32 %v6683, %v6714
      %v6733 = vmax.f32 %v6717, 0.0
      %v6734 = vmax.f32 %v6718, 0.0
      %v6735 = vmax.f32 %v6719, 0.0
      %v6736 = vmax.f32 %v6720, 0.0
      %v6737 = vmax.f32 %v6721, 0.0
      %v6738 = vmax.f32 %v6722, 0.0
      %v6739 = vmax.f32 %v6723, 0.0
      %v6740 = vmax.f32 %v6724, 0.0
      %v6741 = vmax.f32 %v6725, 0.0
      %v6742 = vmax.f32 %v6726, 0.0
      %v6743 = vmax.f32 %v6727, 0.0
      %v6744 = vmax.f32 %v6728, 0.0
      %v6745 = vmax.f32 %v6729, 0.0
      %v6746 = vmax.f32 %v6730, 0.0
      %v6747 = vmax.f32 %v6731, 0.0
      %v6748 = vmax.f32 %v6732, 0.0
      %v6763 = vrot.slane %v6733, 7
      %v6764 = vrot.slane %v6734, 7
      %v6765 = vrot.slane %v6735, 7
      %v6766 = vrot.slane %v6736, 7
      %v6767 = vrot.slane %v6737, 7
      %v6768 = vrot.slane %v6738, 7
      %v6769 = vrot.slane %v6739, 7
      %v6770 = vrot.slane %v6741, 7
      %v6771 = vrot.slane %v6742, 7
      %v6772 = vrot.slane %v6743, 7
      %v6773 = vrot.slane %v6744, 7
      %v6774 = vrot.slane %v6745, 7
      %v6775 = vrot.slane %v6746, 7
      %v6776 = vrot.slane %v6747, 7
      %v6791 = vsel %vm430, 0.0, %v6763
      %v6792 = vsel %vm430, 0.0, %v6764
      %v6793 = vsel %vm430, 0.0, %v6765
      %v6794 = vsel %vm430, 0.0, %v6766
      %v6795 = vsel %vm430, 0.0, %v6767
      %v6796 = vsel %vm430, 0.0, %v6768
      %v6797 = vsel %vm430, 0.0, %v6769
      %v6798 = vsel %vm430, 0.0, %v6770
      %v6799 = vsel %vm430, 0.0, %v6771
      %v6800 = vsel %vm430, 0.0, %v6772
      %v6801 = vsel %vm430, 0.0, %v6773
      %v6802 = vsel %vm430, 0.0, %v6774
      %v6803 = vsel %vm430, 0.0, %v6775
      %v6804 = vsel %vm430, 0.0, %v6776
      %v6805 = vpack.c.bf16 %v6791, %v431
      %v6806 = vpack.c.bf16 %v6793, %v6792
      %v6807 = vpack.c.bf16 %v6795, %v6794
      %v6808 = vpack.c.bf16 %v6797, %v6796
      %v6809 = vpack.c.bf16 %v6798, %v431
      %v6810 = vpack.c.bf16 %v6800, %v6799
      %v6811 = vpack.c.bf16 %v6802, %v6801
      %v6812 = vpack.c.bf16 %v6804, %v6803
      %s6813 = scalar_lea.vmem %s1, 1728
      %v6814 = vld [vmem:[%s6813] sm:$0xf]
      %v6815 = vld [vmem:[%s6813 + $0x4] sm:$0xf]
      %v6816 = vld [vmem:[%s6813 + $0x8] sm:$0xf]
      %v6817 = vld [vmem:[%s6813 + $0xc] sm:$0xf]
      %v6818 = vld [vmem:[%s6813 + $0x10] sm:$0xf]
      %v6819 = vld [vmem:[%s6813 + $0x14] sm:$0xf]
      %v6820 = vld [vmem:[%s6813 + $0x18] sm:$0xf]
      %v6821 = vld [vmem:[%s6813 + $0x1c] sm:$0xf]
      %v6822 = vld [vmem:[%s6813 + $0x20] sm:$0xf]
      %v6823 = vld [vmem:[%s6813 + $0x24] sm:$0xf]
      %v6824 = vld [vmem:[%s6813 + $0x28] sm:$0xf]
      %v6825 = vld [vmem:[%s6813 + $0x2c] sm:$0xf]
      %v6826 = vld [vmem:[%s6813 + $0x30] sm:$0xf]
      %v6827 = vld [vmem:[%s6813 + $0x34] sm:$0xf]
      %v6828 = vld [vmem:[%s6813 + $0x38] sm:$0xf]
      %v6829 = vld [vmem:[%s6813 + $0x3c] sm:$0xf]
      %v6830 = vpack.c.bf16 %v6733, 0.0
      %v6831 = vpack.c.bf16 %v6735, %v6734
      %v6832 = vpack.c.bf16 %v6737, %v6736
      %v6833 = vpack.c.bf16 %v6739, %v6738
      %v6834 = vpack.c.bf16 %v6741, 0.0
      %v6835 = vpack.c.bf16 %v6743, %v6742
      %v6836 = vpack.c.bf16 %v6745, %v6744
      %v6837 = vpack.c.bf16 %v6747, %v6746
      %s6838 = scalar_lea.vmem %s1, 1792
      %v6839 = vld [vmem:[%s6838] sm:$0xf]
      %v6840 = vld [vmem:[%s6838 + $0x4] sm:$0xf]
      %v6841 = vld [vmem:[%s6838 + $0x8] sm:$0xf]
      %v6842 = vld [vmem:[%s6838 + $0xc] sm:$0xf]
      %v6843 = vld [vmem:[%s6838 + $0x10] sm:$0xf]
      %v6844 = vld [vmem:[%s6838 + $0x14] sm:$0xf]
      %v6845 = vld [vmem:[%s6838 + $0x18] sm:$0xf]
      %v6846 = vld [vmem:[%s6838 + $0x1c] sm:$0xf]
      %v6847 = vld [vmem:[%s6838 + $0x20] sm:$0xf]
      %v6848 = vld [vmem:[%s6838 + $0x24] sm:$0xf]
      %v6849 = vld [vmem:[%s6838 + $0x28] sm:$0xf]
      %v6850 = vld [vmem:[%s6838 + $0x2c] sm:$0xf]
      %v6851 = vld [vmem:[%s6838 + $0x30] sm:$0xf]
      %v6852 = vld [vmem:[%s6838 + $0x34] sm:$0xf]
      %v6853 = vld [vmem:[%s6838 + $0x38] sm:$0xf]
      %v6854 = vld [vmem:[%s6838 + $0x3c] sm:$0xf]
      %v6871 = vunpack.c.l.b16 %v6839
      %v6872 = vunpack.c.l.b16 %v6840
      %v6873 = vunpack.c.l.b16 %v6841
      %v6874 = vunpack.c.l.b16 %v6842
      %v6875 = vunpack.c.l.b16 %v6843
      %v6876 = vunpack.c.l.b16 %v6844
      %v6877 = vunpack.c.l.b16 %v6845
      %v6878 = vunpack.c.l.b16 %v6846
      %v6879 = vunpack.c.l.b16 %v6847
      %v6880 = vunpack.c.l.b16 %v6848
      %v6881 = vunpack.c.l.b16 %v6849
      %v6882 = vunpack.c.l.b16 %v6850
      %v6883 = vunpack.c.l.b16 %v6851
      %v6884 = vunpack.c.l.b16 %v6852
      %v6885 = vunpack.c.l.b16 %v6853
      %v6886 = vunpack.c.l.b16 %v6854
      %v6887 = vpack.c.b16 %v6872, %v6871
      %v6888 = vpack.c.b16 %v6874, %v6873
      %v6889 = vpack.c.b16 %v6876, %v6875
      %v6890 = vpack.c.b16 %v6878, %v6877
      %v6891 = vpack.c.b16 %v6880, %v6879
      %v6892 = vpack.c.b16 %v6882, %v6881
      %v6893 = vpack.c.b16 %v6884, %v6883
      %v6894 = vpack.c.b16 %v6886, %v6885
      %6903 = vmatprep.subr.bf16.mxu0 0
      %6904 = vmatpush1.bf16.msra.mxu0 %v6887
      %6905 = vmatprep.subr.bf16.mxu0 0
      %6906 = vmatpush1.bf16.msra.mxu0 %v6888
      %6907 = vmatprep.subr.bf16.mxu0 0
      %6908 = vmatpush1.bf16.msra.mxu0 %v6889
      %6909 = vmatprep.subr.bf16.mxu0 0
      %6910 = vmatpush1.bf16.msra.mxu0 %v6890
      %6911 = vmatprep.subr.bf16.mxu0 0
      %6912 = vmatpush1.bf16.msra.mxu0 %v6891
      %6913 = vmatprep.subr.bf16.mxu0 0
      %6914 = vmatpush1.bf16.msra.mxu0 %v6892
      %6915 = vmatprep.subr.bf16.mxu0 0
      %6916 = vmatpush1.bf16.msra.mxu0 %v6893
      %6917 = vmatprep.subr.bf16.mxu0 0
      %6918 = vmatpush1.bf16.msra.mxu0 %v6894
      %6919 = vmatprep.subr.bf16.mxu0 0
      %6920 = vmatpush1.bf16.msra.mxu0 0
      %6921 = vmatprep.subr.bf16.mxu0 0
      %6922 = vmatpush1.bf16.msra.mxu0 0
      %6923 = vmatprep.subr.bf16.mxu0 0
      %6924 = vmatpush1.bf16.msra.mxu0 0
      %6925 = vmatprep.subr.bf16.mxu0 0
      %6926 = vmatpush1.bf16.msra.mxu0 0
      %6927 = vmatprep.subr.bf16.mxu0 0
      %6928 = vmatpush1.bf16.msra.mxu0 0
      %6929 = vmatprep.subr.bf16.mxu0 0
      %6930 = vmatpush1.bf16.msra.mxu0 0
      %6931 = vmatprep.subr.bf16.mxu0 0
      %6932 = vmatpush1.bf16.msra.mxu0 0
      %6933 = vmatprep.subr.bf16.mxu0 0
      %6934 = vmatpush1.bf16.msra.mxu0 0
      %6935 = vmatprep.mubr.bf16.mxu0 0
      %6936 = vmatmul.mubr.bf16.gmra.mrb[0].mxu0 %v6830
      %v6937 = vpop.f32.mrb[0].mxu0
      %v6938 = vadd.f32 0.0, %v6937
      %v6939 = vpop.f32.mrb[0].mxu0
      %v6940 = vpop.f32.mrb[0].mxu0
      %v6941 = vadd.f32 0.0, %v6940
      %v6942 = vpop.f32.mrb[0].mxu0
      %6943 = vmatprep.mubr.bf16.mxu0 0
      %6944 = vmatmul.mubr.bf16.gmra.mrb[0].mxu0 %v6831
      %v6945 = vpop.f32.mrb[0].mxu0
      %v6946 = vadd.f32 0.0, %v6945
      %v6947 = vpop.f32.mrb[0].mxu0
      %v6948 = vpop.f32.mrb[0].mxu0
      %v6949 = vadd.f32 0.0, %v6948
      %v6950 = vpop.f32.mrb[0].mxu0
      %6951 = vmatprep.mubr.bf16.mxu0 0
      %6952 = vmatmul.mubr.bf16.gmra.mrb[0].mxu0 %v6832
      %v6953 = vpop.f32.mrb[0].mxu0
      %v6954 = vadd.f32 0.0, %v6953
      %v6955 = vpop.f32.mrb[0].mxu0
      %v6956 = vpop.f32.mrb[0].mxu0
      %v6957 = vadd.f32 0.0, %v6956
      %v6958 = vpop.f32.mrb[0].mxu0
      %6959 = vmatprep.mubr.bf16.mxu0 0
      %6960 = vmatmul.mubr.bf16.gmra.mrb[0].mxu0 %v6833
      %v6961 = vpop.f32.mrb[0].mxu0
      %v6962 = vadd.f32 0.0, %v6961
      %v6963 = vpop.f32.mrb[0].mxu0
      %v6964 = vpop.f32.mrb[0].mxu0
      %v6965 = vadd.f32 0.0, %v6964
      %v6966 = vpop.f32.mrb[0].mxu0
      %6967 = vmatprep.mubr.bf16.mxu0 0
      %6968 = vmatmul.mubr.bf16.gmra.mrb[0].mxu0 %v6834
      %v6969 = vpop.f32.mrb[0].mxu0
      %v6970 = vadd.f32 0.0, %v6969
      %v6971 = vpop.f32.mrb[0].mxu0
      %v6972 = vpop.f32.mrb[0].mxu0
      %v6973 = vadd.f32 0.0, %v6972
      %v6974 = vpop.f32.mrb[0].mxu0
      %6975 = vmatprep.mubr.bf16.mxu0 0
      %6976 = vmatmul.mubr.bf16.gmra.mrb[0].mxu0 %v6835
      %v6977 = vpop.f32.mrb[0].mxu0
      %v6978 = vadd.f32 0.0, %v6977
      %v6979 = vpop.f32.mrb[0].mxu0
      %v6980 = vpop.f32.mrb[0].mxu0
      %v6981 = vadd.f32 0.0, %v6980
      %v6982 = vpop.f32.mrb[0].mxu0
      %6983 = vmatprep.mubr.bf16.mxu0 0
      %6984 = vmatmul.mubr.bf16.gmra.mrb[0].mxu0 %v6836
      %v6985 = vpop.f32.mrb[0].mxu0
      %v6986 = vadd.f32 0.0, %v6985
      %v6987 = vpop.f32.mrb[0].mxu0
      %v6988 = vpop.f32.mrb[0].mxu0
      %v6989 = vadd.f32 0.0, %v6988
      %v6990 = vpop.f32.mrb[0].mxu0
      %6991 = vmatprep.mubr.bf16.mxu0 0
      %6992 = vmatmul.mubr.bf16.gmra.mrb[0].mxu0 %v6837
      %v6993 = vpop.f32.mrb[0].mxu0
      %v6994 = vadd.f32 0.0, %v6993
      %v6995 = vpop.f32.mrb[0].mxu0
      %v6996 = vpop.f32.mrb[0].mxu0
      %v6997 = vadd.f32 0.0, %v6996
      %v6998 = vpop.f32.mrb[0].mxu0
      %6999 = vdwg.mxu0
      %v7016 = vunpack.c.l.b16 %v6814
      %v7017 = vunpack.c.l.b16 %v6815
      %v7018 = vunpack.c.l.b16 %v6816
      %v7019 = vunpack.c.l.b16 %v6817
      %v7020 = vunpack.c.l.b16 %v6818
      %v7021 = vunpack.c.l.b16 %v6819
      %v7022 = vunpack.c.l.b16 %v6820
      %v7023 = vunpack.c.l.b16 %v6821
      %v7024 = vunpack.c.l.b16 %v6822
      %v7025 = vunpack.c.l.b16 %v6823
      %v7026 = vunpack.c.l.b16 %v6824
      %v7027 = vunpack.c.l.b16 %v6825
      %v7028 = vunpack.c.l.b16 %v6826
      %v7029 = vunpack.c.l.b16 %v6827
      %v7030 = vunpack.c.l.b16 %v6828
      %v7031 = vunpack.c.l.b16 %v6829
      %v7032 = vpack.c.b16 %v7017, %v7016
      %v7033 = vpack.c.b16 %v7019, %v7018
      %v7034 = vpack.c.b16 %v7021, %v7020
      %v7035 = vpack.c.b16 %v7023, %v7022
      %v7036 = vpack.c.b16 %v7025, %v7024
      %v7037 = vpack.c.b16 %v7027, %v7026
      %v7038 = vpack.c.b16 %v7029, %v7028
      %v7039 = vpack.c.b16 %v7031, %v7030
      %7048 = vmatprep.subr.bf16.mxu0 0
      %7049 = vmatpush1.bf16.msra.mxu0 %v7032
      %7050 = vmatprep.subr.bf16.mxu0 0
      %7051 = vmatpush1.bf16.msra.mxu0 %v7033
      %7052 = vmatprep.subr.bf16.mxu0 0
      %7053 = vmatpush1.bf16.msra.mxu0 %v7034
      %7054 = vmatprep.subr.bf16.mxu0 0
      %7055 = vmatpush1.bf16.msra.mxu0 %v7035
      %7056 = vmatprep.subr.bf16.mxu0 0
      %7057 = vmatpush1.bf16.msra.mxu0 %v7036
      %7058 = vmatprep.subr.bf16.mxu0 0
      %7059 = vmatpush1.bf16.msra.mxu0 %v7037
      %7060 = vmatprep.subr.bf16.mxu0 0
      %7061 = vmatpush1.bf16.msra.mxu0 %v7038
      %7062 = vmatprep.subr.bf16.mxu0 0
      %7063 = vmatpush1.bf16.msra.mxu0 %v7039
      %7064 = vmatprep.subr.bf16.mxu0 0
      %7065 = vmatpush1.bf16.msra.mxu0 0
      %7066 = vmatprep.subr.bf16.mxu0 0
      %7067 = vmatpush1.bf16.msra.mxu0 0
      %7068 = vmatprep.subr.bf16.mxu0 0
      %7069 = vmatpush1.bf16.msra.mxu0 0
      %7070 = vmatprep.subr.bf16.mxu0 0
      %7071 = vmatpush1.bf16.msra.mxu0 0
      %7072 = vmatprep.subr.bf16.mxu0 0
      %7073 = vmatpush1.bf16.msra.mxu0 0
      %7074 = vmatprep.subr.bf16.mxu0 0
      %7075 = vmatpush1.bf16.msra.mxu0 0
      %7076 = vmatprep.subr.bf16.mxu0 0
      %7077 = vmatpush1.bf16.msra.mxu0 0
      %7078 = vmatprep.subr.bf16.mxu0 0
      %7079 = vmatpush1.bf16.msra.mxu0 0
      %7080 = vmatprep.mubr.bf16.mxu0 0
      %7081 = vmatmul.mubr.bf16.gmra.mrb[0].mxu0 %v6805
      %v7082 = vpop.f32.mrb[0].mxu0
      %v7083 = vadd.f32 %v6938, %v7082
      %v7084 = vpop.f32.mrb[0].mxu0
      %v7085 = vpop.f32.mrb[0].mxu0
      %v7086 = vadd.f32 %v6941, %v7085
      %v7087 = vpop.f32.mrb[0].mxu0
      %7088 = vmatprep.mubr.bf16.mxu0 0
      %7089 = vmatmul.mubr.bf16.gmra.mrb[0].mxu0 %v6806
      %v7090 = vpop.f32.mrb[0].mxu0
      %v7091 = vadd.f32 %v6946, %v7090
      %v7092 = vpop.f32.mrb[0].mxu0
      %v7093 = vpop.f32.mrb[0].mxu0
      %v7094 = vadd.f32 %v6949, %v7093
      %v7095 = vpop.f32.mrb[0].mxu0
      %7096 = vmatprep.mubr.bf16.mxu0 0
      %7097 = vmatmul.mubr.bf16.gmra.mrb[0].mxu0 %v6807
      %v7098 = vpop.f32.mrb[0].mxu0
      %v7099 = vadd.f32 %v6954, %v7098
      %v7100 = vpop.f32.mrb[0].mxu0
      %v7101 = vpop.f32.mrb[0].mxu0
      %v7102 = vadd.f32 %v6957, %v7101
      %v7103 = vpop.f32.mrb[0].mxu0
      %7104 = vmatprep.mubr.bf16.mxu0 0
      %7105 = vmatmul.mubr.bf16.gmra.mrb[0].mxu0 %v6808
      %v7106 = vpop.f32.mrb[0].mxu0
      %v7107 = vadd.f32 %v6962, %v7106
      %v7108 = vpop.f32.mrb[0].mxu0
      %v7109 = vpop.f32.mrb[0].mxu0
      %v7110 = vadd.f32 %v6965, %v7109
      %v7111 = vpop.f32.mrb[0].mxu0
      %7112 = vmatprep.mubr.bf16.mxu0 0
      %7113 = vmatmul.mubr.bf16.gmra.mrb[0].mxu0 %v6809
      %v7114 = vpop.f32.mrb[0].mxu0
      %v7115 = vadd.f32 %v6970, %v7114
      %v7116 = vpop.f32.mrb[0].mxu0
      %v7117 = vpop.f32.mrb[0].mxu0
      %v7118 = vadd.f32 %v6973, %v7117
      %v7119 = vpop.f32.mrb[0].mxu0
      %7120 = vmatprep.mubr.bf16.mxu0 0
      %7121 = vmatmul.mubr.bf16.gmra.mrb[0].mxu0 %v6810
      %v7122 = vpop.f32.mrb[0].mxu0
      %v7123 = vadd.f32 %v6978, %v7122
      %v7124 = vpop.f32.mrb[0].mxu0
      %v7125 = vpop.f32.mrb[0].mxu0
      %v7126 = vadd.f32 %v6981, %v7125
      %v7127 = vpop.f32.mrb[0].mxu0
      %7128 = vmatprep.mubr.bf16.mxu0 0
      %7129 = vmatmul.mubr.bf16.gmra.mrb[0].mxu0 %v6811
      %v7130 = vpop.f32.mrb[0].mxu0
      %v7131 = vadd.f32 %v6986, %v7130
      %v7132 = vpop.f32.mrb[0].mxu0
      %v7133 = vpop.f32.mrb[0].mxu0
      %v7134 = vadd.f32 %v6989, %v7133
      %v7135 = vpop.f32.mrb[0].mxu0
      %7136 = vmatprep.mubr.bf16.mxu0 0
      %7137 = vmatmul.mubr.bf16.gmra.mrb[0].mxu0 %v6812
      %v7138 = vpop.f32.mrb[0].mxu0
      %v7139 = vadd.f32 %v6994, %v7138
      %v7140 = vpop.f32.mrb[0].mxu0
      %v7141 = vpop.f32.mrb[0].mxu0
      %v7142 = vadd.f32 %v6997, %v7141
      %v7143 = vpop.f32.mrb[0].mxu0
      %7144 = vdwg.mxu0
      %v7145 = vrot.slane %v6733, 1
      %v7146 = vrot.slane %v6734, 1
      %v7147 = vrot.slane %v6735, 1
      %v7148 = vrot.slane %v6736, 1
      %v7149 = vrot.slane %v6737, 1
      %v7150 = vrot.slane %v6738, 1
      %v7151 = vrot.slane %v6739, 1
      %v7152 = vrot.slane %v6741, 1
      %v7153 = vrot.slane %v6742, 1
      %v7154 = vrot.slane %v6743, 1
      %v7155 = vrot.slane %v6744, 1
      %v7156 = vrot.slane %v6745, 1
      %v7157 = vrot.slane %v6746, 1
      %v7158 = vrot.slane %v6747, 1
      %v7173 = vsel %vm815, %v7145, 0.0
      %v7174 = vsel %vm815, %v7146, 0.0
      %v7175 = vsel %vm815, %v7147, 0.0
      %v7176 = vsel %vm815, %v7148, 0.0
      %v7177 = vsel %vm815, %v7149, 0.0
      %v7178 = vsel %vm815, %v7150, 0.0
      %v7179 = vsel %vm815, %v7151, 0.0
      %v7180 = vsel %vm815, %v7152, 0.0
      %v7181 = vsel %vm815, %v7153, 0.0
      %v7182 = vsel %vm815, %v7154, 0.0
      %v7183 = vsel %vm815, %v7155, 0.0
      %v7184 = vsel %vm815, %v7156, 0.0
      %v7185 = vsel %vm815, %v7157, 0.0
      %v7186 = vsel %vm815, %v7158, 0.0
      %v7187 = vpack.c.bf16 %v7173, %v816
      %v7188 = vpack.c.bf16 %v7175, %v7174
      %v7189 = vpack.c.bf16 %v7177, %v7176
      %v7190 = vpack.c.bf16 %v7179, %v7178
      %v7191 = vpack.c.bf16 %v7180, %v816
      %v7192 = vpack.c.bf16 %v7182, %v7181
      %v7193 = vpack.c.bf16 %v7184, %v7183
      %v7194 = vpack.c.bf16 %v7186, %v7185
      %s7195 = scalar_lea.vmem %s1, 1856
      %v7196 = vld [vmem:[%s7195] sm:$0xf]
      %v7197 = vld [vmem:[%s7195 + $0x4] sm:$0xf]
      %v7198 = vld [vmem:[%s7195 + $0x8] sm:$0xf]
      %v7199 = vld [vmem:[%s7195 + $0xc] sm:$0xf]
      %v7200 = vld [vmem:[%s7195 + $0x10] sm:$0xf]
      %v7201 = vld [vmem:[%s7195 + $0x14] sm:$0xf]
      %v7202 = vld [vmem:[%s7195 + $0x18] sm:$0xf]
      %v7203 = vld [vmem:[%s7195 + $0x1c] sm:$0xf]
      %v7204 = vld [vmem:[%s7195 + $0x20] sm:$0xf]
      %v7205 = vld [vmem:[%s7195 + $0x24] sm:$0xf]
      %v7206 = vld [vmem:[%s7195 + $0x28] sm:$0xf]
      %v7207 = vld [vmem:[%s7195 + $0x2c] sm:$0xf]
      %v7208 = vld [vmem:[%s7195 + $0x30] sm:$0xf]
      %v7209 = vld [vmem:[%s7195 + $0x34] sm:$0xf]
      %v7210 = vld [vmem:[%s7195 + $0x38] sm:$0xf]
      %v7211 = vld [vmem:[%s7195 + $0x3c] sm:$0xf]
      %v7228 = vunpack.c.l.b16 %v7196
      %v7229 = vunpack.c.l.b16 %v7197
      %v7230 = vunpack.c.l.b16 %v7198
      %v7231 = vunpack.c.l.b16 %v7199
      %v7232 = vunpack.c.l.b16 %v7200
      %v7233 = vunpack.c.l.b16 %v7201
      %v7234 = vunpack.c.l.b16 %v7202
      %v7235 = vunpack.c.l.b16 %v7203
      %v7236 = vunpack.c.l.b16 %v7204
      %v7237 = vunpack.c.l.b16 %v7205
      %v7238 = vunpack.c.l.b16 %v7206
      %v7239 = vunpack.c.l.b16 %v7207
      %v7240 = vunpack.c.l.b16 %v7208
      %v7241 = vunpack.c.l.b16 %v7209
      %v7242 = vunpack.c.l.b16 %v7210
      %v7243 = vunpack.c.l.b16 %v7211
      %v7244 = vpack.c.b16 %v7229, %v7228
      %v7245 = vpack.c.b16 %v7231, %v7230
      %v7246 = vpack.c.b16 %v7233, %v7232
      %v7247 = vpack.c.b16 %v7235, %v7234
      %v7248 = vpack.c.b16 %v7237, %v7236
      %v7249 = vpack.c.b16 %v7239, %v7238
      %v7250 = vpack.c.b16 %v7241, %v7240
      %v7251 = vpack.c.b16 %v7243, %v7242
      %7260 = vmatprep.subr.bf16.mxu0 0
      %7261 = vmatpush1.bf16.msra.mxu0 %v7244
      %7262 = vmatprep.subr.bf16.mxu0 0
      %7263 = vmatpush1.bf16.msra.mxu0 %v7245
      %7264 = vmatprep.subr.bf16.mxu0 0
      %7265 = vmatpush1.bf16.msra.mxu0 %v7246
      %7266 = vmatprep.subr.bf16.mxu0 0
      %7267 = vmatpush1.bf16.msra.mxu0 %v7247
      %7268 = vmatprep.subr.bf16.mxu0 0
      %7269 = vmatpush1.bf16.msra.mxu0 %v7248
      %7270 = vmatprep.subr.bf16.mxu0 0
      %7271 = vmatpush1.bf16.msra.mxu0 %v7249
      %7272 = vmatprep.subr.bf16.mxu0 0
      %7273 = vmatpush1.bf16.msra.mxu0 %v7250
      %7274 = vmatprep.subr.bf16.mxu0 0
      %7275 = vmatpush1.bf16.msra.mxu0 %v7251
      %7276 = vmatprep.subr.bf16.mxu0 0
      %7277 = vmatpush1.bf16.msra.mxu0 0
      %7278 = vmatprep.subr.bf16.mxu0 0
      %7279 = vmatpush1.bf16.msra.mxu0 0
      %7280 = vmatprep.subr.bf16.mxu0 0
      %7281 = vmatpush1.bf16.msra.mxu0 0
      %7282 = vmatprep.subr.bf16.mxu0 0
      %7283 = vmatpush1.bf16.msra.mxu0 0
      %7284 = vmatprep.subr.bf16.mxu0 0
      %7285 = vmatpush1.bf16.msra.mxu0 0
      %7286 = vmatprep.subr.bf16.mxu0 0
      %7287 = vmatpush1.bf16.msra.mxu0 0
      %7288 = vmatprep.subr.bf16.mxu0 0
      %7289 = vmatpush1.bf16.msra.mxu0 0
      %7290 = vmatprep.subr.bf16.mxu0 0
      %7291 = vmatpush1.bf16.msra.mxu0 0
      %7292 = vmatprep.mubr.bf16.mxu0 0
      %7293 = vmatmul.mubr.bf16.gmra.mrb[0].mxu0 %v7187
      %v7294 = vpop.f32.mrb[0].mxu0
      %v7295 = vadd.f32 0.0, %v7294
      %v7296 = vpop.f32.mrb[0].mxu0
      %v7297 = vpop.f32.mrb[0].mxu0
      %v7298 = vadd.f32 0.0, %v7297
      %v7299 = vpop.f32.mrb[0].mxu0
      %7300 = vmatprep.mubr.bf16.mxu0 0
      %7301 = vmatmul.mubr.bf16.gmra.mrb[0].mxu0 %v7188
      %v7302 = vpop.f32.mrb[0].mxu0
      %v7303 = vadd.f32 0.0, %v7302
      %v7304 = vpop.f32.mrb[0].mxu0
      %v7305 = vpop.f32.mrb[0].mxu0
      %v7306 = vadd.f32 0.0, %v7305
      %v7307 = vpop.f32.mrb[0].mxu0
      %7308 = vmatprep.mubr.bf16.mxu0 0
      %7309 = vmatmul.mubr.bf16.gmra.mrb[0].mxu0 %v7189
      %v7310 = vpop.f32.mrb[0].mxu0
      %v7311 = vadd.f32 0.0, %v7310
      %v7312 = vpop.f32.mrb[0].mxu0
      %v7313 = vpop.f32.mrb[0].mxu0
      %v7314 = vadd.f32 0.0, %v7313
      %v7315 = vpop.f32.mrb[0].mxu0
      %7316 = vmatprep.mubr.bf16.mxu0 0
      %7317 = vmatmul.mubr.bf16.gmra.mrb[0].mxu0 %v7190
      %v7318 = vpop.f32.mrb[0].mxu0
      %v7319 = vadd.f32 0.0, %v7318
      %v7320 = vpop.f32.mrb[0].mxu0
      %v7321 = vpop.f32.mrb[0].mxu0
      %v7322 = vadd.f32 0.0, %v7321
      %v7323 = vpop.f32.mrb[0].mxu0
      %7324 = vmatprep.mubr.bf16.mxu0 0
      %7325 = vmatmul.mubr.bf16.gmra.mrb[0].mxu0 %v7191
      %v7326 = vpop.f32.mrb[0].mxu0
      %v7327 = vadd.f32 0.0, %v7326
      %v7328 = vpop.f32.mrb[0].mxu0
      %v7329 = vpop.f32.mrb[0].mxu0
      %v7330 = vadd.f32 0.0, %v7329
      %v7331 = vpop.f32.mrb[0].mxu0
      %7332 = vmatprep.mubr.bf16.mxu0 0
      %7333 = vmatmul.mubr.bf16.gmra.mrb[0].mxu0 %v7192
      %v7334 = vpop.f32.mrb[0].mxu0
      %v7335 = vadd.f32 0.0, %v7334
      %v7336 = vpop.f32.mrb[0].mxu0
      %v7337 = vpop.f32.mrb[0].mxu0
      %v7338 = vadd.f32 0.0, %v7337
      %v7339 = vpop.f32.mrb[0].mxu0
      %7340 = vmatprep.mubr.bf16.mxu0 0
      %7341 = vmatmul.mubr.bf16.gmra.mrb[0].mxu0 %v7193
      %v7342 = vpop.f32.mrb[0].mxu0
      %v7343 = vadd.f32 0.0, %v7342
      %v7344 = vpop.f32.mrb[0].mxu0
      %v7345 = vpop.f32.mrb[0].mxu0
      %v7346 = vadd.f32 0.0, %v7345
      %v7347 = vpop.f32.mrb[0].mxu0
      %7348 = vmatprep.mubr.bf16.mxu0 0
      %7349 = vmatmul.mubr.bf16.gmra.mrb[0].mxu0 %v7194
      %v7350 = vpop.f32.mrb[0].mxu0
      %v7351 = vadd.f32 0.0, %v7350
      %v7352 = vpop.f32.mrb[0].mxu0
      %v7353 = vpop.f32.mrb[0].mxu0
      %v7354 = vadd.f32 0.0, %v7353
      %v7355 = vpop.f32.mrb[0].mxu0
      %7356 = vdwg.mxu0
      %v7357 = vadd.f32 %v7083, %v7295
      %v7358 = vadd.f32 %v7086, %v7298
      %v7359 = vadd.f32 %v7091, %v7303
      %v7360 = vadd.f32 %v7094, %v7306
      %v7361 = vadd.f32 %v7099, %v7311
      %v7362 = vadd.f32 %v7102, %v7314
      %v7363 = vadd.f32 %v7107, %v7319
      %v7364 = vadd.f32 %v7110, %v7322
      %v7365 = vadd.f32 %v7115, %v7327
      %v7366 = vadd.f32 %v7118, %v7330
      %v7367 = vadd.f32 %v7123, %v7335
      %v7368 = vadd.f32 %v7126, %v7338
      %v7369 = vadd.f32 %v7131, %v7343
      %v7370 = vadd.f32 %v7134, %v7346
      %v7371 = vadd.f32 %v7139, %v7351
      %v7372 = vadd.f32 %v7142, %v7354
      %v7375 = vrot.slane %v6740, 7
      %v7376 = vrot.slane %v6748, 7
      %v7379 = vsel %vm430, 0.0, %v7375
      %v7380 = vsel %vm430, 0.0, %v7376
      %v7381 = vpack.c.bf16 %v6792, %v6791
      %v7382 = vpack.c.bf16 %v6794, %v6793
      %v7383 = vpack.c.bf16 %v6796, %v6795
      %v7384 = vpack.c.bf16 %v7379, %v6797
      %v7385 = vpack.c.bf16 %v6799, %v6798
      %v7386 = vpack.c.bf16 %v6801, %v6800
      %v7387 = vpack.c.bf16 %v6803, %v6802
      %v7388 = vpack.c.bf16 %v7380, %v6804
      %s7389 = scalar_lea.vmem %s1, 1920
      %v7390 = vld [vmem:[%s7389] sm:$0xf]
      %v7391 = vld [vmem:[%s7389 + $0x4] sm:$0xf]
      %v7392 = vld [vmem:[%s7389 + $0x8] sm:$0xf]
      %v7393 = vld [vmem:[%s7389 + $0xc] sm:$0xf]
      %v7394 = vld [vmem:[%s7389 + $0x10] sm:$0xf]
      %v7395 = vld [vmem:[%s7389 + $0x14] sm:$0xf]
      %v7396 = vld [vmem:[%s7389 + $0x18] sm:$0xf]
      %v7397 = vld [vmem:[%s7389 + $0x1c] sm:$0xf]
      %v7398 = vld [vmem:[%s7389 + $0x20] sm:$0xf]
      %v7399 = vld [vmem:[%s7389 + $0x24] sm:$0xf]
      %v7400 = vld [vmem:[%s7389 + $0x28] sm:$0xf]
      %v7401 = vld [vmem:[%s7389 + $0x2c] sm:$0xf]
      %v7402 = vld [vmem:[%s7389 + $0x30] sm:$0xf]
      %v7403 = vld [vmem:[%s7389 + $0x34] sm:$0xf]
      %v7404 = vld [vmem:[%s7389 + $0x38] sm:$0xf]
      %v7405 = vld [vmem:[%s7389 + $0x3c] sm:$0xf]
      %v7422 = vunpack.c.l.b16 %v7390
      %v7423 = vunpack.c.l.b16 %v7391
      %v7424 = vunpack.c.l.b16 %v7392
      %v7425 = vunpack.c.l.b16 %v7393
      %v7426 = vunpack.c.l.b16 %v7394
      %v7427 = vunpack.c.l.b16 %v7395
      %v7428 = vunpack.c.l.b16 %v7396
      %v7429 = vunpack.c.l.b16 %v7397
      %v7430 = vunpack.c.l.b16 %v7398
      %v7431 = vunpack.c.l.b16 %v7399
      %v7432 = vunpack.c.l.b16 %v7400
      %v7433 = vunpack.c.l.b16 %v7401
      %v7434 = vunpack.c.l.b16 %v7402
      %v7435 = vunpack.c.l.b16 %v7403
      %v7436 = vunpack.c.l.b16 %v7404
      %v7437 = vunpack.c.l.b16 %v7405
      %v7438 = vpack.c.b16 %v7423, %v7422
      %v7439 = vpack.c.b16 %v7425, %v7424
      %v7440 = vpack.c.b16 %v7427, %v7426
      %v7441 = vpack.c.b16 %v7429, %v7428
      %v7442 = vpack.c.b16 %v7431, %v7430
      %v7443 = vpack.c.b16 %v7433, %v7432
      %v7444 = vpack.c.b16 %v7435, %v7434
      %v7445 = vpack.c.b16 %v7437, %v7436
      %7454 = vmatprep.subr.bf16.mxu0 0
      %7455 = vmatpush1.bf16.msra.mxu0 %v7438
      %7456 = vmatprep.subr.bf16.mxu0 0
      %7457 = vmatpush1.bf16.msra.mxu0 %v7439
      %7458 = vmatprep.subr.bf16.mxu0 0
      %7459 = vmatpush1.bf16.msra.mxu0 %v7440
      %7460 = vmatprep.subr.bf16.mxu0 0
      %7461 = vmatpush1.bf16.msra.mxu0 %v7441
      %7462 = vmatprep.subr.bf16.mxu0 0
      %7463 = vmatpush1.bf16.msra.mxu0 %v7442
      %7464 = vmatprep.subr.bf16.mxu0 0
      %7465 = vmatpush1.bf16.msra.mxu0 %v7443
      %7466 = vmatprep.subr.bf16.mxu0 0
      %7467 = vmatpush1.bf16.msra.mxu0 %v7444
      %7468 = vmatprep.subr.bf16.mxu0 0
      %7469 = vmatpush1.bf16.msra.mxu0 %v7445
      %7470 = vmatprep.subr.bf16.mxu0 0
      %7471 = vmatpush1.bf16.msra.mxu0 0
      %7472 = vmatprep.subr.bf16.mxu0 0
      %7473 = vmatpush1.bf16.msra.mxu0 0
      %7474 = vmatprep.subr.bf16.mxu0 0
      %7475 = vmatpush1.bf16.msra.mxu0 0
      %7476 = vmatprep.subr.bf16.mxu0 0
      %7477 = vmatpush1.bf16.msra.mxu0 0
      %7478 = vmatprep.subr.bf16.mxu0 0
      %7479 = vmatpush1.bf16.msra.mxu0 0
      %7480 = vmatprep.subr.bf16.mxu0 0
      %7481 = vmatpush1.bf16.msra.mxu0 0
      %7482 = vmatprep.subr.bf16.mxu0 0
      %7483 = vmatpush1.bf16.msra.mxu0 0
      %7484 = vmatprep.subr.bf16.mxu0 0
      %7485 = vmatpush1.bf16.msra.mxu0 0
      %7486 = vmatprep.mubr.bf16.mxu0 0
      %7487 = vmatmul.mubr.bf16.gmra.mrb[0].mxu0 %v7381
      %v7488 = vpop.f32.mrb[0].mxu0
      %v7489 = vadd.f32 0.0, %v7488
      %v7490 = vpop.f32.mrb[0].mxu0
      %v7491 = vpop.f32.mrb[0].mxu0
      %v7492 = vadd.f32 0.0, %v7491
      %v7493 = vpop.f32.mrb[0].mxu0
      %7494 = vmatprep.mubr.bf16.mxu0 0
      %7495 = vmatmul.mubr.bf16.gmra.mrb[0].mxu0 %v7382
      %v7496 = vpop.f32.mrb[0].mxu0
      %v7497 = vadd.f32 0.0, %v7496
      %v7498 = vpop.f32.mrb[0].mxu0
      %v7499 = vpop.f32.mrb[0].mxu0
      %v7500 = vadd.f32 0.0, %v7499
      %v7501 = vpop.f32.mrb[0].mxu0
      %7502 = vmatprep.mubr.bf16.mxu0 0
      %7503 = vmatmul.mubr.bf16.gmra.mrb[0].mxu0 %v7383
      %v7504 = vpop.f32.mrb[0].mxu0
      %v7505 = vadd.f32 0.0, %v7504
      %v7506 = vpop.f32.mrb[0].mxu0
      %v7507 = vpop.f32.mrb[0].mxu0
      %v7508 = vadd.f32 0.0, %v7507
      %v7509 = vpop.f32.mrb[0].mxu0
      %7510 = vmatprep.mubr.bf16.mxu0 0
      %7511 = vmatmul.mubr.bf16.gmra.mrb[0].mxu0 %v7384
      %v7512 = vpop.f32.mrb[0].mxu0
      %v7513 = vadd.f32 0.0, %v7512
      %v7514 = vpop.f32.mrb[0].mxu0
      %v7515 = vpop.f32.mrb[0].mxu0
      %v7516 = vadd.f32 0.0, %v7515
      %v7517 = vpop.f32.mrb[0].mxu0
      %7518 = vmatprep.mubr.bf16.mxu0 0
      %7519 = vmatmul.mubr.bf16.gmra.mrb[0].mxu0 %v7385
      %v7520 = vpop.f32.mrb[0].mxu0
      %v7521 = vadd.f32 0.0, %v7520
      %v7522 = vpop.f32.mrb[0].mxu0
      %v7523 = vpop.f32.mrb[0].mxu0
      %v7524 = vadd.f32 0.0, %v7523
      %v7525 = vpop.f32.mrb[0].mxu0
      %7526 = vmatprep.mubr.bf16.mxu0 0
      %7527 = vmatmul.mubr.bf16.gmra.mrb[0].mxu0 %v7386
      %v7528 = vpop.f32.mrb[0].mxu0
      %v7529 = vadd.f32 0.0, %v7528
      %v7530 = vpop.f32.mrb[0].mxu0
      %v7531 = vpop.f32.mrb[0].mxu0
      %v7532 = vadd.f32 0.0, %v7531
      %v7533 = vpop.f32.mrb[0].mxu0
      %7534 = vmatprep.mubr.bf16.mxu0 0
      %7535 = vmatmul.mubr.bf16.gmra.mrb[0].mxu0 %v7387
      %v7536 = vpop.f32.mrb[0].mxu0
      %v7537 = vadd.f32 0.0, %v7536
      %v7538 = vpop.f32.mrb[0].mxu0
      %v7539 = vpop.f32.mrb[0].mxu0
      %v7540 = vadd.f32 0.0, %v7539
      %v7541 = vpop.f32.mrb[0].mxu0
      %7542 = vmatprep.mubr.bf16.mxu0 0
      %7543 = vmatmul.mubr.bf16.gmra.mrb[0].mxu0 %v7388
      %v7544 = vpop.f32.mrb[0].mxu0
      %v7545 = vadd.f32 0.0, %v7544
      %v7546 = vpop.f32.mrb[0].mxu0
      %v7547 = vpop.f32.mrb[0].mxu0
      %v7548 = vadd.f32 0.0, %v7547
      %v7549 = vpop.f32.mrb[0].mxu0
      %7550 = vdwg.mxu0
      %v7551 = vadd.f32 %v7357, %v7489
      %v7552 = vadd.f32 %v7358, %v7492
      %v7553 = vadd.f32 %v7359, %v7497
      %v7554 = vadd.f32 %v7360, %v7500
      %v7555 = vadd.f32 %v7361, %v7505
      %v7556 = vadd.f32 %v7362, %v7508
      %v7557 = vadd.f32 %v7363, %v7513
      %v7558 = vadd.f32 %v7364, %v7516
      %v7559 = vadd.f32 %v7365, %v7521
      %v7560 = vadd.f32 %v7366, %v7524
      %v7561 = vadd.f32 %v7367, %v7529
      %v7562 = vadd.f32 %v7368, %v7532
      %v7563 = vadd.f32 %v7369, %v7537
      %v7564 = vadd.f32 %v7370, %v7540
      %v7565 = vadd.f32 %v7371, %v7545
      %v7566 = vadd.f32 %v7372, %v7548
      %v7567 = vpack.c.bf16 %v6734, %v6733
      %v7568 = vpack.c.bf16 %v6736, %v6735
      %v7569 = vpack.c.bf16 %v6738, %v6737
      %v7570 = vpack.c.bf16 %v6740, %v6739
      %v7571 = vpack.c.bf16 %v6742, %v6741
      %v7572 = vpack.c.bf16 %v6744, %v6743
      %v7573 = vpack.c.bf16 %v6746, %v6745
      %v7574 = vpack.c.bf16 %v6748, %v6747
      %s7575 = scalar_lea.vmem %s1, 1984
      %v7576 = vld [vmem:[%s7575] sm:$0xf]
      %v7577 = vld [vmem:[%s7575 + $0x4] sm:$0xf]
      %v7578 = vld [vmem:[%s7575 + $0x8] sm:$0xf]
      %v7579 = vld [vmem:[%s7575 + $0xc] sm:$0xf]
      %v7580 = vld [vmem:[%s7575 + $0x10] sm:$0xf]
      %v7581 = vld [vmem:[%s7575 + $0x14] sm:$0xf]
      %v7582 = vld [vmem:[%s7575 + $0x18] sm:$0xf]
      %v7583 = vld [vmem:[%s7575 + $0x1c] sm:$0xf]
      %v7584 = vld [vmem:[%s7575 + $0x20] sm:$0xf]
      %v7585 = vld [vmem:[%s7575 + $0x24] sm:$0xf]
      %v7586 = vld [vmem:[%s7575 + $0x28] sm:$0xf]
      %v7587 = vld [vmem:[%s7575 + $0x2c] sm:$0xf]
      %v7588 = vld [vmem:[%s7575 + $0x30] sm:$0xf]
      %v7589 = vld [vmem:[%s7575 + $0x34] sm:$0xf]
      %v7590 = vld [vmem:[%s7575 + $0x38] sm:$0xf]
      %v7591 = vld [vmem:[%s7575 + $0x3c] sm:$0xf]
      %v7608 = vunpack.c.l.b16 %v7576
      %v7609 = vunpack.c.l.b16 %v7577
      %v7610 = vunpack.c.l.b16 %v7578
      %v7611 = vunpack.c.l.b16 %v7579
      %v7612 = vunpack.c.l.b16 %v7580
      %v7613 = vunpack.c.l.b16 %v7581
      %v7614 = vunpack.c.l.b16 %v7582
      %v7615 = vunpack.c.l.b16 %v7583
      %v7616 = vunpack.c.l.b16 %v7584
      %v7617 = vunpack.c.l.b16 %v7585
      %v7618 = vunpack.c.l.b16 %v7586
      %v7619 = vunpack.c.l.b16 %v7587
      %v7620 = vunpack.c.l.b16 %v7588
      %v7621 = vunpack.c.l.b16 %v7589
      %v7622 = vunpack.c.l.b16 %v7590
      %v7623 = vunpack.c.l.b16 %v7591
      %v7624 = vpack.c.b16 %v7609, %v7608
      %v7625 = vpack.c.b16 %v7611, %v7610
      %v7626 = vpack.c.b16 %v7613, %v7612
      %v7627 = vpack.c.b16 %v7615, %v7614
      %v7628 = vpack.c.b16 %v7617, %v7616
      %v7629 = vpack.c.b16 %v7619, %v7618
      %v7630 = vpack.c.b16 %v7621, %v7620
      %v7631 = vpack.c.b16 %v7623, %v7622
      %7640 = vmatprep.subr.bf16.mxu0 0
      %7641 = vmatpush1.bf16.msra.mxu0 %v7624
      %7642 = vmatprep.subr.bf16.mxu0 0
      %7643 = vmatpush1.bf16.msra.mxu0 %v7625
      %7644 = vmatprep.subr.bf16.mxu0 0
      %7645 = vmatpush1.bf16.msra.mxu0 %v7626
      %7646 = vmatprep.subr.bf16.mxu0 0
      %7647 = vmatpush1.bf16.msra.mxu0 %v7627
      %7648 = vmatprep.subr.bf16.mxu0 0
      %7649 = vmatpush1.bf16.msra.mxu0 %v7628
      %7650 = vmatprep.subr.bf16.mxu0 0
      %7651 = vmatpush1.bf16.msra.mxu0 %v7629
      %7652 = vmatprep.subr.bf16.mxu0 0
      %7653 = vmatpush1.bf16.msra.mxu0 %v7630
      %7654 = vmatprep.subr.bf16.mxu0 0
      %7655 = vmatpush1.bf16.msra.mxu0 %v7631
      %7656 = vmatprep.subr.bf16.mxu0 0
      %7657 = vmatpush1.bf16.msra.mxu0 0
      %7658 = vmatprep.subr.bf16.mxu0 0
      %7659 = vmatpush1.bf16.msra.mxu0 0
      %7660 = vmatprep.subr.bf16.mxu0 0
      %7661 = vmatpush1.bf16.msra.mxu0 0
      %7662 = vmatprep.subr.bf16.mxu0 0
      %7663 = vmatpush1.bf16.msra.mxu0 0
      %7664 = vmatprep.subr.bf16.mxu0 0
      %7665 = vmatpush1.bf16.msra.mxu0 0
      %7666 = vmatprep.subr.bf16.mxu0 0
      %7667 = vmatpush1.bf16.msra.mxu0 0
      %7668 = vmatprep.subr.bf16.mxu0 0
      %7669 = vmatpush1.bf16.msra.mxu0 0
      %7670 = vmatprep.subr.bf16.mxu0 0
      %7671 = vmatpush1.bf16.msra.mxu0 0
      %7672 = vmatprep.mubr.bf16.mxu0 0
      %7673 = vmatmul.mubr.bf16.gmra.mrb[0].mxu0 %v7567
      %v7674 = vpop.f32.mrb[0].mxu0
      %v7675 = vadd.f32 0.0, %v7674
      %v7676 = vpop.f32.mrb[0].mxu0
      %v7677 = vpop.f32.mrb[0].mxu0
      %v7678 = vadd.f32 0.0, %v7677
      %v7679 = vpop.f32.mrb[0].mxu0
      %7680 = vmatprep.mubr.bf16.mxu0 0
      %7681 = vmatmul.mubr.bf16.gmra.mrb[0].mxu0 %v7568
      %v7682 = vpop.f32.mrb[0].mxu0
      %v7683 = vadd.f32 0.0, %v7682
      %v7684 = vpop.f32.mrb[0].mxu0
      %v7685 = vpop.f32.mrb[0].mxu0
      %v7686 = vadd.f32 0.0, %v7685
      %v7687 = vpop.f32.mrb[0].mxu0
      %7688 = vmatprep.mubr.bf16.mxu0 0
      %7689 = vmatmul.mubr.bf16.gmra.mrb[0].mxu0 %v7569
      %v7690 = vpop.f32.mrb[0].mxu0
      %v7691 = vadd.f32 0.0, %v7690
      %v7692 = vpop.f32.mrb[0].mxu0
      %v7693 = vpop.f32.mrb[0].mxu0
      %v7694 = vadd.f32 0.0, %v7693
      %v7695 = vpop.f32.mrb[0].mxu0
      %7696 = vmatprep.mubr.bf16.mxu0 0
      %7697 = vmatmul.mubr.bf16.gmra.mrb[0].mxu0 %v7570
      %v7698 = vpop.f32.mrb[0].mxu0
      %v7699 = vadd.f32 0.0, %v7698
      %v7700 = vpop.f32.mrb[0].mxu0
      %v7701 = vpop.f32.mrb[0].mxu0
      %v7702 = vadd.f32 0.0, %v7701
      %v7703 = vpop.f32.mrb[0].mxu0
      %7704 = vmatprep.mubr.bf16.mxu0 0
      %7705 = vmatmul.mubr.bf16.gmra.mrb[0].mxu0 %v7571
      %v7706 = vpop.f32.mrb[0].mxu0
      %v7707 = vadd.f32 0.0, %v7706
      %v7708 = vpop.f32.mrb[0].mxu0
      %v7709 = vpop.f32.mrb[0].mxu0
      %v7710 = vadd.f32 0.0, %v7709
      %v7711 = vpop.f32.mrb[0].mxu0
      %7712 = vmatprep.mubr.bf16.mxu0 0
      %7713 = vmatmul.mubr.bf16.gmra.mrb[0].mxu0 %v7572
      %v7714 = vpop.f32.mrb[0].mxu0
      %v7715 = vadd.f32 0.0, %v7714
      %v7716 = vpop.f32.mrb[0].mxu0
      %v7717 = vpop.f32.mrb[0].mxu0
      %v7718 = vadd.f32 0.0, %v7717
      %v7719 = vpop.f32.mrb[0].mxu0
      %7720 = vmatprep.mubr.bf16.mxu0 0
      %7721 = vmatmul.mubr.bf16.gmra.mrb[0].mxu0 %v7573
      %v7722 = vpop.f32.mrb[0].mxu0
      %v7723 = vadd.f32 0.0, %v7722
      %v7724 = vpop.f32.mrb[0].mxu0
      %v7725 = vpop.f32.mrb[0].mxu0
      %v7726 = vadd.f32 0.0, %v7725
      %v7727 = vpop.f32.mrb[0].mxu0
      %7728 = vmatprep.mubr.bf16.mxu0 0
      %7729 = vmatmul.mubr.bf16.gmra.mrb[0].mxu0 %v7574
      %v7730 = vpop.f32.mrb[0].mxu0
      %v7731 = vadd.f32 0.0, %v7730
      %v7732 = vpop.f32.mrb[0].mxu0
      %v7733 = vpop.f32.mrb[0].mxu0
      %v7734 = vadd.f32 0.0, %v7733
      %v7735 = vpop.f32.mrb[0].mxu0
      %7736 = vdwg.mxu0
      %v7737 = vadd.f32 %v7551, %v7675
      %v7738 = vadd.f32 %v7552, %v7678
      %v7739 = vadd.f32 %v7553, %v7683
      %v7740 = vadd.f32 %v7554, %v7686
      %v7741 = vadd.f32 %v7555, %v7691
      %v7742 = vadd.f32 %v7556, %v7694
      %v7743 = vadd.f32 %v7557, %v7699
      %v7744 = vadd.f32 %v7558, %v7702
      %v7745 = vadd.f32 %v7559, %v7707
      %v7746 = vadd.f32 %v7560, %v7710
      %v7747 = vadd.f32 %v7561, %v7715
      %v7748 = vadd.f32 %v7562, %v7718
      %v7749 = vadd.f32 %v7563, %v7723
      %v7750 = vadd.f32 %v7564, %v7726
      %v7751 = vadd.f32 %v7565, %v7731
      %v7752 = vadd.f32 %v7566, %v7734
      %v7753 = vrot.slane %v6740, 1
      %v7754 = vrot.slane %v6748, 1
      %v7757 = vsel %vm815, %v7753, 0.0
      %v7758 = vsel %vm815, %v7754, 0.0
      %v7759 = vpack.c.bf16 %v7174, %v7173
      %v7760 = vpack.c.bf16 %v7176, %v7175
      %v7761 = vpack.c.bf16 %v7178, %v7177
      %v7762 = vpack.c.bf16 %v7757, %v7179
      %v7763 = vpack.c.bf16 %v7181, %v7180
      %v7764 = vpack.c.bf16 %v7183, %v7182
      %v7765 = vpack.c.bf16 %v7185, %v7184
      %v7766 = vpack.c.bf16 %v7758, %v7186
      %s7767 = scalar_lea.vmem %s1, 2048
      %v7768 = vld [vmem:[%s7767] sm:$0xf]
      %v7769 = vld [vmem:[%s7767 + $0x4] sm:$0xf]
      %v7770 = vld [vmem:[%s7767 + $0x8] sm:$0xf]
      %v7771 = vld [vmem:[%s7767 + $0xc] sm:$0xf]
      %v7772 = vld [vmem:[%s7767 + $0x10] sm:$0xf]
      %v7773 = vld [vmem:[%s7767 + $0x14] sm:$0xf]
      %v7774 = vld [vmem:[%s7767 + $0x18] sm:$0xf]
      %v7775 = vld [vmem:[%s7767 + $0x1c] sm:$0xf]
      %v7776 = vld [vmem:[%s7767 + $0x20] sm:$0xf]
      %v7777 = vld [vmem:[%s7767 + $0x24] sm:$0xf]
      %v7778 = vld [vmem:[%s7767 + $0x28] sm:$0xf]
      %v7779 = vld [vmem:[%s7767 + $0x2c] sm:$0xf]
      %v7780 = vld [vmem:[%s7767 + $0x30] sm:$0xf]
      %v7781 = vld [vmem:[%s7767 + $0x34] sm:$0xf]
      %v7782 = vld [vmem:[%s7767 + $0x38] sm:$0xf]
      %v7783 = vld [vmem:[%s7767 + $0x3c] sm:$0xf]
      %v7800 = vunpack.c.l.b16 %v7768
      %v7801 = vunpack.c.l.b16 %v7769
      %v7802 = vunpack.c.l.b16 %v7770
      %v7803 = vunpack.c.l.b16 %v7771
      %v7804 = vunpack.c.l.b16 %v7772
      %v7805 = vunpack.c.l.b16 %v7773
      %v7806 = vunpack.c.l.b16 %v7774
      %v7807 = vunpack.c.l.b16 %v7775
      %v7808 = vunpack.c.l.b16 %v7776
      %v7809 = vunpack.c.l.b16 %v7777
      %v7810 = vunpack.c.l.b16 %v7778
      %v7811 = vunpack.c.l.b16 %v7779
      %v7812 = vunpack.c.l.b16 %v7780
      %v7813 = vunpack.c.l.b16 %v7781
      %v7814 = vunpack.c.l.b16 %v7782
      %v7815 = vunpack.c.l.b16 %v7783
      %v7816 = vpack.c.b16 %v7801, %v7800
      %v7817 = vpack.c.b16 %v7803, %v7802
      %v7818 = vpack.c.b16 %v7805, %v7804
      %v7819 = vpack.c.b16 %v7807, %v7806
      %v7820 = vpack.c.b16 %v7809, %v7808
      %v7821 = vpack.c.b16 %v7811, %v7810
      %v7822 = vpack.c.b16 %v7813, %v7812
      %v7823 = vpack.c.b16 %v7815, %v7814
      %7832 = vmatprep.subr.bf16.mxu0 0
      %7833 = vmatpush1.bf16.msra.mxu0 %v7816
      %7834 = vmatprep.subr.bf16.mxu0 0
      %7835 = vmatpush1.bf16.msra.mxu0 %v7817
      %7836 = vmatprep.subr.bf16.mxu0 0
      %7837 = vmatpush1.bf16.msra.mxu0 %v7818
      %7838 = vmatprep.subr.bf16.mxu0 0
      %7839 = vmatpush1.bf16.msra.mxu0 %v7819
      %7840 = vmatprep.subr.bf16.mxu0 0
      %7841 = vmatpush1.bf16.msra.mxu0 %v7820
      %7842 = vmatprep.subr.bf16.mxu0 0
      %7843 = vmatpush1.bf16.msra.mxu0 %v7821
      %7844 = vmatprep.subr.bf16.mxu0 0
      %7845 = vmatpush1.bf16.msra.mxu0 %v7822
      %7846 = vmatprep.subr.bf16.mxu0 0
      %7847 = vmatpush1.bf16.msra.mxu0 %v7823
      %7848 = vmatprep.subr.bf16.mxu0 0
      %7849 = vmatpush1.bf16.msra.mxu0 0
      %7850 = vmatprep.subr.bf16.mxu0 0
      %7851 = vmatpush1.bf16.msra.mxu0 0
      %7852 = vmatprep.subr.bf16.mxu0 0
      %7853 = vmatpush1.bf16.msra.mxu0 0
      %7854 = vmatprep.subr.bf16.mxu0 0
      %7855 = vmatpush1.bf16.msra.mxu0 0
      %7856 = vmatprep.subr.bf16.mxu0 0
      %7857 = vmatpush1.bf16.msra.mxu0 0
      %7858 = vmatprep.subr.bf16.mxu0 0
      %7859 = vmatpush1.bf16.msra.mxu0 0
      %7860 = vmatprep.subr.bf16.mxu0 0
      %7861 = vmatpush1.bf16.msra.mxu0 0
      %7862 = vmatprep.subr.bf16.mxu0 0
      %7863 = vmatpush1.bf16.msra.mxu0 0
      %7864 = vmatprep.mubr.bf16.mxu0 0
      %7865 = vmatmul.mubr.bf16.gmra.mrb[0].mxu0 %v7759
      %v7866 = vpop.f32.mrb[0].mxu0
      %v7867 = vadd.f32 0.0, %v7866
      %v7868 = vpop.f32.mrb[0].mxu0
      %v7869 = vpop.f32.mrb[0].mxu0
      %v7870 = vadd.f32 0.0, %v7869
      %v7871 = vpop.f32.mrb[0].mxu0
      %7872 = vmatprep.mubr.bf16.mxu0 0
      %7873 = vmatmul.mubr.bf16.gmra.mrb[0].mxu0 %v7760
      %v7874 = vpop.f32.mrb[0].mxu0
      %v7875 = vadd.f32 0.0, %v7874
      %v7876 = vpop.f32.mrb[0].mxu0
      %v7877 = vpop.f32.mrb[0].mxu0
      %v7878 = vadd.f32 0.0, %v7877
      %v7879 = vpop.f32.mrb[0].mxu0
      %7880 = vmatprep.mubr.bf16.mxu0 0
      %7881 = vmatmul.mubr.bf16.gmra.mrb[0].mxu0 %v7761
      %v7882 = vpop.f32.mrb[0].mxu0
      %v7883 = vadd.f32 0.0, %v7882
      %v7884 = vpop.f32.mrb[0].mxu0
      %v7885 = vpop.f32.mrb[0].mxu0
      %v7886 = vadd.f32 0.0, %v7885
      %v7887 = vpop.f32.mrb[0].mxu0
      %7888 = vmatprep.mubr.bf16.mxu0 0
      %7889 = vmatmul.mubr.bf16.gmra.mrb[0].mxu0 %v7762
      %v7890 = vpop.f32.mrb[0].mxu0
      %v7891 = vadd.f32 0.0, %v7890
      %v7892 = vpop.f32.mrb[0].mxu0
      %v7893 = vpop.f32.mrb[0].mxu0
      %v7894 = vadd.f32 0.0, %v7893
      %v7895 = vpop.f32.mrb[0].mxu0
      %7896 = vmatprep.mubr.bf16.mxu0 0
      %7897 = vmatmul.mubr.bf16.gmra.mrb[0].mxu0 %v7763
      %v7898 = vpop.f32.mrb[0].mxu0
      %v7899 = vadd.f32 0.0, %v7898
      %v7900 = vpop.f32.mrb[0].mxu0
      %v7901 = vpop.f32.mrb[0].mxu0
      %v7902 = vadd.f32 0.0, %v7901
      %v7903 = vpop.f32.mrb[0].mxu0
      %7904 = vmatprep.mubr.bf16.mxu0 0
      %7905 = vmatmul.mubr.bf16.gmra.mrb[0].mxu0 %v7764
      %v7906 = vpop.f32.mrb[0].mxu0
      %v7907 = vadd.f32 0.0, %v7906
      %v7908 = vpop.f32.mrb[0].mxu0
      %v7909 = vpop.f32.mrb[0].mxu0
      %v7910 = vadd.f32 0.0, %v7909
      %v7911 = vpop.f32.mrb[0].mxu0
      %7912 = vmatprep.mubr.bf16.mxu0 0
      %7913 = vmatmul.mubr.bf16.gmra.mrb[0].mxu0 %v7765
      %v7914 = vpop.f32.mrb[0].mxu0
      %v7915 = vadd.f32 0.0, %v7914
      %v7916 = vpop.f32.mrb[0].mxu0
      %v7917 = vpop.f32.mrb[0].mxu0
      %v7918 = vadd.f32 0.0, %v7917
      %v7919 = vpop.f32.mrb[0].mxu0
      %7920 = vmatprep.mubr.bf16.mxu0 0
      %7921 = vmatmul.mubr.bf16.gmra.mrb[0].mxu0 %v7766
      %v7922 = vpop.f32.mrb[0].mxu0
      %v7923 = vadd.f32 0.0, %v7922
      %v7924 = vpop.f32.mrb[0].mxu0
      %v7925 = vpop.f32.mrb[0].mxu0
      %v7926 = vadd.f32 0.0, %v7925
      %v7927 = vpop.f32.mrb[0].mxu0
      %7928 = vdwg.mxu0
      %v7929 = vadd.f32 %v7737, %v7867
      %v7930 = vadd.f32 %v7738, %v7870
      %v7931 = vadd.f32 %v7739, %v7875
      %v7932 = vadd.f32 %v7740, %v7878
      %v7933 = vadd.f32 %v7741, %v7883
      %v7934 = vadd.f32 %v7742, %v7886
      %v7935 = vadd.f32 %v7743, %v7891
      %v7936 = vadd.f32 %v7744, %v7894
      %v7937 = vadd.f32 %v7745, %v7899
      %v7938 = vadd.f32 %v7746, %v7902
      %v7939 = vadd.f32 %v7747, %v7907
      %v7940 = vadd.f32 %v7748, %v7910
      %v7941 = vadd.f32 %v7749, %v7915
      %v7942 = vadd.f32 %v7750, %v7918
      %v7943 = vadd.f32 %v7751, %v7923
      %v7944 = vadd.f32 %v7752, %v7926
      %v7945 = vpack.c.bf16 %v431, %v7379
      %v7946 = vpack.c.bf16 %v431, %v7380
      %s7947 = scalar_lea.vmem %s1, 2112
      %v7948 = vld [vmem:[%s7947] sm:$0xf]
      %v7949 = vld [vmem:[%s7947 + $0x4] sm:$0xf]
      %v7950 = vld [vmem:[%s7947 + $0x8] sm:$0xf]
      %v7951 = vld [vmem:[%s7947 + $0xc] sm:$0xf]
      %v7952 = vld [vmem:[%s7947 + $0x10] sm:$0xf]
      %v7953 = vld [vmem:[%s7947 + $0x14] sm:$0xf]
      %v7954 = vld [vmem:[%s7947 + $0x18] sm:$0xf]
      %v7955 = vld [vmem:[%s7947 + $0x1c] sm:$0xf]
      %v7956 = vld [vmem:[%s7947 + $0x20] sm:$0xf]
      %v7957 = vld [vmem:[%s7947 + $0x24] sm:$0xf]
      %v7958 = vld [vmem:[%s7947 + $0x28] sm:$0xf]
      %v7959 = vld [vmem:[%s7947 + $0x2c] sm:$0xf]
      %v7960 = vld [vmem:[%s7947 + $0x30] sm:$0xf]
      %v7961 = vld [vmem:[%s7947 + $0x34] sm:$0xf]
      %v7962 = vld [vmem:[%s7947 + $0x38] sm:$0xf]
      %v7963 = vld [vmem:[%s7947 + $0x3c] sm:$0xf]
      %v7980 = vunpack.c.l.b16 %v7948
      %v7981 = vunpack.c.l.b16 %v7949
      %v7982 = vunpack.c.l.b16 %v7950
      %v7983 = vunpack.c.l.b16 %v7951
      %v7984 = vunpack.c.l.b16 %v7952
      %v7985 = vunpack.c.l.b16 %v7953
      %v7986 = vunpack.c.l.b16 %v7954
      %v7987 = vunpack.c.l.b16 %v7955
      %v7988 = vunpack.c.l.b16 %v7956
      %v7989 = vunpack.c.l.b16 %v7957
      %v7990 = vunpack.c.l.b16 %v7958
      %v7991 = vunpack.c.l.b16 %v7959
      %v7992 = vunpack.c.l.b16 %v7960
      %v7993 = vunpack.c.l.b16 %v7961
      %v7994 = vunpack.c.l.b16 %v7962
      %v7995 = vunpack.c.l.b16 %v7963
      %v7996 = vpack.c.b16 %v7981, %v7980
      %v7997 = vpack.c.b16 %v7983, %v7982
      %v7998 = vpack.c.b16 %v7985, %v7984
      %v7999 = vpack.c.b16 %v7987, %v7986
      %v8000 = vpack.c.b16 %v7989, %v7988
      %v8001 = vpack.c.b16 %v7991, %v7990
      %v8002 = vpack.c.b16 %v7993, %v7992
      %v8003 = vpack.c.b16 %v7995, %v7994
      %8012 = vmatprep.subr.bf16.mxu0 0
      %8013 = vmatpush1.bf16.msra.mxu0 %v7996
      %8014 = vmatprep.subr.bf16.mxu0 0
      %8015 = vmatpush1.bf16.msra.mxu0 %v7997
      %8016 = vmatprep.subr.bf16.mxu0 0
      %8017 = vmatpush1.bf16.msra.mxu0 %v7998
      %8018 = vmatprep.subr.bf16.mxu0 0
      %8019 = vmatpush1.bf16.msra.mxu0 %v7999
      %8020 = vmatprep.subr.bf16.mxu0 0
      %8021 = vmatpush1.bf16.msra.mxu0 %v8000
      %8022 = vmatprep.subr.bf16.mxu0 0
      %8023 = vmatpush1.bf16.msra.mxu0 %v8001
      %8024 = vmatprep.subr.bf16.mxu0 0
      %8025 = vmatpush1.bf16.msra.mxu0 %v8002
      %8026 = vmatprep.subr.bf16.mxu0 0
      %8027 = vmatpush1.bf16.msra.mxu0 %v8003
      %8028 = vmatprep.subr.bf16.mxu0 0
      %8029 = vmatpush1.bf16.msra.mxu0 0
      %8030 = vmatprep.subr.bf16.mxu0 0
      %8031 = vmatpush1.bf16.msra.mxu0 0
      %8032 = vmatprep.subr.bf16.mxu0 0
      %8033 = vmatpush1.bf16.msra.mxu0 0
      %8034 = vmatprep.subr.bf16.mxu0 0
      %8035 = vmatpush1.bf16.msra.mxu0 0
      %8036 = vmatprep.subr.bf16.mxu0 0
      %8037 = vmatpush1.bf16.msra.mxu0 0
      %8038 = vmatprep.subr.bf16.mxu0 0
      %8039 = vmatpush1.bf16.msra.mxu0 0
      %8040 = vmatprep.subr.bf16.mxu0 0
      %8041 = vmatpush1.bf16.msra.mxu0 0
      %8042 = vmatprep.subr.bf16.mxu0 0
      %8043 = vmatpush1.bf16.msra.mxu0 0
      %8044 = vmatprep.mubr.bf16.mxu0 0
      %8045 = vmatmul.mubr.bf16.gmra.mrb[0].mxu0 %v6806
      %v8046 = vpop.f32.mrb[0].mxu0
      %v8047 = vadd.f32 0.0, %v8046
      %v8048 = vpop.f32.mrb[0].mxu0
      %v8049 = vpop.f32.mrb[0].mxu0
      %v8050 = vadd.f32 0.0, %v8049
      %v8051 = vpop.f32.mrb[0].mxu0
      %8052 = vmatprep.mubr.bf16.mxu0 0
      %8053 = vmatmul.mubr.bf16.gmra.mrb[0].mxu0 %v6807
      %v8054 = vpop.f32.mrb[0].mxu0
      %v8055 = vadd.f32 0.0, %v8054
      %v8056 = vpop.f32.mrb[0].mxu0
      %v8057 = vpop.f32.mrb[0].mxu0
      %v8058 = vadd.f32 0.0, %v8057
      %v8059 = vpop.f32.mrb[0].mxu0
      %8060 = vmatprep.mubr.bf16.mxu0 0
      %8061 = vmatmul.mubr.bf16.gmra.mrb[0].mxu0 %v6808
      %v8062 = vpop.f32.mrb[0].mxu0
      %v8063 = vadd.f32 0.0, %v8062
      %v8064 = vpop.f32.mrb[0].mxu0
      %v8065 = vpop.f32.mrb[0].mxu0
      %v8066 = vadd.f32 0.0, %v8065
      %v8067 = vpop.f32.mrb[0].mxu0
      %8068 = vmatprep.mubr.bf16.mxu0 0
      %8069 = vmatmul.mubr.bf16.gmra.mrb[0].mxu0 %v7945
      %v8070 = vpop.f32.mrb[0].mxu0
      %v8071 = vadd.f32 0.0, %v8070
      %v8072 = vpop.f32.mrb[0].mxu0
      %v8073 = vpop.f32.mrb[0].mxu0
      %v8074 = vadd.f32 0.0, %v8073
      %v8075 = vpop.f32.mrb[0].mxu0
      %8076 = vmatprep.mubr.bf16.mxu0 0
      %8077 = vmatmul.mubr.bf16.gmra.mrb[0].mxu0 %v6810
      %v8078 = vpop.f32.mrb[0].mxu0
      %v8079 = vadd.f32 0.0, %v8078
      %v8080 = vpop.f32.mrb[0].mxu0
      %v8081 = vpop.f32.mrb[0].mxu0
      %v8082 = vadd.f32 0.0, %v8081
      %v8083 = vpop.f32.mrb[0].mxu0
      %8084 = vmatprep.mubr.bf16.mxu0 0
      %8085 = vmatmul.mubr.bf16.gmra.mrb[0].mxu0 %v6811
      %v8086 = vpop.f32.mrb[0].mxu0
      %v8087 = vadd.f32 0.0, %v8086
      %v8088 = vpop.f32.mrb[0].mxu0
      %v8089 = vpop.f32.mrb[0].mxu0
      %v8090 = vadd.f32 0.0, %v8089
      %v8091 = vpop.f32.mrb[0].mxu0
      %8092 = vmatprep.mubr.bf16.mxu0 0
      %8093 = vmatmul.mubr.bf16.gmra.mrb[0].mxu0 %v6812
      %v8094 = vpop.f32.mrb[0].mxu0
      %v8095 = vadd.f32 0.0, %v8094
      %v8096 = vpop.f32.mrb[0].mxu0
      %v8097 = vpop.f32.mrb[0].mxu0
      %v8098 = vadd.f32 0.0, %v8097
      %v8099 = vpop.f32.mrb[0].mxu0
      %8100 = vmatprep.mubr.bf16.mxu0 0
      %8101 = vmatmul.mubr.bf16.gmra.mrb[0].mxu0 %v7946
      %v8102 = vpop.f32.mrb[0].mxu0
      %v8103 = vadd.f32 0.0, %v8102
      %v8104 = vpop.f32.mrb[0].mxu0
      %v8105 = vpop.f32.mrb[0].mxu0
      %v8106 = vadd.f32 0.0, %v8105
      %v8107 = vpop.f32.mrb[0].mxu0
      %8108 = vdwg.mxu0
      %v8109 = vadd.f32 %v7929, %v8047
      %v8110 = vadd.f32 %v7930, %v8050
      %v8111 = vadd.f32 %v7931, %v8055
      %v8112 = vadd.f32 %v7932, %v8058
      %v8113 = vadd.f32 %v7933, %v8063
      %v8114 = vadd.f32 %v7934, %v8066
      %v8115 = vadd.f32 %v7935, %v8071
      %v8116 = vadd.f32 %v7936, %v8074
      %v8117 = vadd.f32 %v7937, %v8079
      %v8118 = vadd.f32 %v7938, %v8082
      %v8119 = vadd.f32 %v7939, %v8087
      %v8120 = vadd.f32 %v7940, %v8090
      %v8121 = vadd.f32 %v7941, %v8095
      %v8122 = vadd.f32 %v7942, %v8098
      %v8123 = vadd.f32 %v7943, %v8103
      %v8124 = vadd.f32 %v7944, %v8106
      %v8125 = vpack.c.bf16 0.0, %v6740
      %v8126 = vpack.c.bf16 0.0, %v6748
      %s8127 = scalar_lea.vmem %s1, 2176
      %v8128 = vld [vmem:[%s8127] sm:$0xf]
      %v8129 = vld [vmem:[%s8127 + $0x4] sm:$0xf]
      %v8130 = vld [vmem:[%s8127 + $0x8] sm:$0xf]
      %v8131 = vld [vmem:[%s8127 + $0xc] sm:$0xf]
      %v8132 = vld [vmem:[%s8127 + $0x10] sm:$0xf]
      %v8133 = vld [vmem:[%s8127 + $0x14] sm:$0xf]
      %v8134 = vld [vmem:[%s8127 + $0x18] sm:$0xf]
      %v8135 = vld [vmem:[%s8127 + $0x1c] sm:$0xf]
      %v8136 = vld [vmem:[%s8127 + $0x20] sm:$0xf]
      %v8137 = vld [vmem:[%s8127 + $0x24] sm:$0xf]
      %v8138 = vld [vmem:[%s8127 + $0x28] sm:$0xf]
      %v8139 = vld [vmem:[%s8127 + $0x2c] sm:$0xf]
      %v8140 = vld [vmem:[%s8127 + $0x30] sm:$0xf]
      %v8141 = vld [vmem:[%s8127 + $0x34] sm:$0xf]
      %v8142 = vld [vmem:[%s8127 + $0x38] sm:$0xf]
      %v8143 = vld [vmem:[%s8127 + $0x3c] sm:$0xf]
      %v8160 = vunpack.c.l.b16 %v8128
      %v8161 = vunpack.c.l.b16 %v8129
      %v8162 = vunpack.c.l.b16 %v8130
      %v8163 = vunpack.c.l.b16 %v8131
      %v8164 = vunpack.c.l.b16 %v8132
      %v8165 = vunpack.c.l.b16 %v8133
      %v8166 = vunpack.c.l.b16 %v8134
      %v8167 = vunpack.c.l.b16 %v8135
      %v8168 = vunpack.c.l.b16 %v8136
      %v8169 = vunpack.c.l.b16 %v8137
      %v8170 = vunpack.c.l.b16 %v8138
      %v8171 = vunpack.c.l.b16 %v8139
      %v8172 = vunpack.c.l.b16 %v8140
      %v8173 = vunpack.c.l.b16 %v8141
      %v8174 = vunpack.c.l.b16 %v8142
      %v8175 = vunpack.c.l.b16 %v8143
      %v8176 = vpack.c.b16 %v8161, %v8160
      %v8177 = vpack.c.b16 %v8163, %v8162
      %v8178 = vpack.c.b16 %v8165, %v8164
      %v8179 = vpack.c.b16 %v8167, %v8166
      %v8180 = vpack.c.b16 %v8169, %v8168
      %v8181 = vpack.c.b16 %v8171, %v8170
      %v8182 = vpack.c.b16 %v8173, %v8172
      %v8183 = vpack.c.b16 %v8175, %v8174
      %8192 = vmatprep.subr.bf16.mxu0 0
      %8193 = vmatpush1.bf16.msra.mxu0 %v8176
      %8194 = vmatprep.subr.bf16.mxu0 0
      %8195 = vmatpush1.bf16.msra.mxu0 %v8177
      %8196 = vmatprep.subr.bf16.mxu0 0
      %8197 = vmatpush1.bf16.msra.mxu0 %v8178
      %8198 = vmatprep.subr.bf16.mxu0 0
      %8199 = vmatpush1.bf16.msra.mxu0 %v8179
      %8200 = vmatprep.subr.bf16.mxu0 0
      %8201 = vmatpush1.bf16.msra.mxu0 %v8180
      %8202 = vmatprep.subr.bf16.mxu0 0
      %8203 = vmatpush1.bf16.msra.mxu0 %v8181
      %8204 = vmatprep.subr.bf16.mxu0 0
      %8205 = vmatpush1.bf16.msra.mxu0 %v8182
      %8206 = vmatprep.subr.bf16.mxu0 0
      %8207 = vmatpush1.bf16.msra.mxu0 %v8183
      %8208 = vmatprep.subr.bf16.mxu0 0
      %8209 = vmatpush1.bf16.msra.mxu0 0
      %8210 = vmatprep.subr.bf16.mxu0 0
      %8211 = vmatpush1.bf16.msra.mxu0 0
      %8212 = vmatprep.subr.bf16.mxu0 0
      %8213 = vmatpush1.bf16.msra.mxu0 0
      %8214 = vmatprep.subr.bf16.mxu0 0
      %8215 = vmatpush1.bf16.msra.mxu0 0
      %8216 = vmatprep.subr.bf16.mxu0 0
      %8217 = vmatpush1.bf16.msra.mxu0 0
      %8218 = vmatprep.subr.bf16.mxu0 0
      %8219 = vmatpush1.bf16.msra.mxu0 0
      %8220 = vmatprep.subr.bf16.mxu0 0
      %8221 = vmatpush1.bf16.msra.mxu0 0
      %8222 = vmatprep.subr.bf16.mxu0 0
      %8223 = vmatpush1.bf16.msra.mxu0 0
      %8224 = vmatprep.mubr.bf16.mxu0 0
      %8225 = vmatmul.mubr.bf16.gmra.mrb[0].mxu0 %v6831
      %v8226 = vpop.f32.mrb[0].mxu0
      %v8227 = vadd.f32 0.0, %v8226
      %v8228 = vpop.f32.mrb[0].mxu0
      %v8229 = vpop.f32.mrb[0].mxu0
      %v8230 = vadd.f32 0.0, %v8229
      %v8231 = vpop.f32.mrb[0].mxu0
      %8232 = vmatprep.mubr.bf16.mxu0 0
      %8233 = vmatmul.mubr.bf16.gmra.mrb[0].mxu0 %v6832
      %v8234 = vpop.f32.mrb[0].mxu0
      %v8235 = vadd.f32 0.0, %v8234
      %v8236 = vpop.f32.mrb[0].mxu0
      %v8237 = vpop.f32.mrb[0].mxu0
      %v8238 = vadd.f32 0.0, %v8237
      %v8239 = vpop.f32.mrb[0].mxu0
      %8240 = vmatprep.mubr.bf16.mxu0 0
      %8241 = vmatmul.mubr.bf16.gmra.mrb[0].mxu0 %v6833
      %v8242 = vpop.f32.mrb[0].mxu0
      %v8243 = vadd.f32 0.0, %v8242
      %v8244 = vpop.f32.mrb[0].mxu0
      %v8245 = vpop.f32.mrb[0].mxu0
      %v8246 = vadd.f32 0.0, %v8245
      %v8247 = vpop.f32.mrb[0].mxu0
      %8248 = vmatprep.mubr.bf16.mxu0 0
      %8249 = vmatmul.mubr.bf16.gmra.mrb[0].mxu0 %v8125
      %v8250 = vpop.f32.mrb[0].mxu0
      %v8251 = vadd.f32 0.0, %v8250
      %v8252 = vpop.f32.mrb[0].mxu0
      %v8253 = vpop.f32.mrb[0].mxu0
      %v8254 = vadd.f32 0.0, %v8253
      %v8255 = vpop.f32.mrb[0].mxu0
      %8256 = vmatprep.mubr.bf16.mxu0 0
      %8257 = vmatmul.mubr.bf16.gmra.mrb[0].mxu0 %v6835
      %v8258 = vpop.f32.mrb[0].mxu0
      %v8259 = vadd.f32 0.0, %v8258
      %v8260 = vpop.f32.mrb[0].mxu0
      %v8261 = vpop.f32.mrb[0].mxu0
      %v8262 = vadd.f32 0.0, %v8261
      %v8263 = vpop.f32.mrb[0].mxu0
      %8264 = vmatprep.mubr.bf16.mxu0 0
      %8265 = vmatmul.mubr.bf16.gmra.mrb[0].mxu0 %v6836
      %v8266 = vpop.f32.mrb[0].mxu0
      %v8267 = vadd.f32 0.0, %v8266
      %v8268 = vpop.f32.mrb[0].mxu0
      %v8269 = vpop.f32.mrb[0].mxu0
      %v8270 = vadd.f32 0.0, %v8269
      %v8271 = vpop.f32.mrb[0].mxu0
      %8272 = vmatprep.mubr.bf16.mxu0 0
      %8273 = vmatmul.mubr.bf16.gmra.mrb[0].mxu0 %v6837
      %v8274 = vpop.f32.mrb[0].mxu0
      %v8275 = vadd.f32 0.0, %v8274
      %v8276 = vpop.f32.mrb[0].mxu0
      %v8277 = vpop.f32.mrb[0].mxu0
      %v8278 = vadd.f32 0.0, %v8277
      %v8279 = vpop.f32.mrb[0].mxu0
      %8280 = vmatprep.mubr.bf16.mxu0 0
      %8281 = vmatmul.mubr.bf16.gmra.mrb[0].mxu0 %v8126
      %v8282 = vpop.f32.mrb[0].mxu0
      %v8283 = vadd.f32 0.0, %v8282
      %v8284 = vpop.f32.mrb[0].mxu0
      %v8285 = vpop.f32.mrb[0].mxu0
      %v8286 = vadd.f32 0.0, %v8285
      %v8287 = vpop.f32.mrb[0].mxu0
      %8288 = vdwg.mxu0
      %v8289 = vadd.f32 %v8109, %v8227
      %v8290 = vadd.f32 %v8110, %v8230
      %v8291 = vadd.f32 %v8111, %v8235
      %v8292 = vadd.f32 %v8112, %v8238
      %v8293 = vadd.f32 %v8113, %v8243
      %v8294 = vadd.f32 %v8114, %v8246
      %v8295 = vadd.f32 %v8115, %v8251
      %v8296 = vadd.f32 %v8116, %v8254
      %v8297 = vadd.f32 %v8117, %v8259
      %v8298 = vadd.f32 %v8118, %v8262
      %v8299 = vadd.f32 %v8119, %v8267
      %v8300 = vadd.f32 %v8120, %v8270
      %v8301 = vadd.f32 %v8121, %v8275
      %v8302 = vadd.f32 %v8122, %v8278
      %v8303 = vadd.f32 %v8123, %v8283
      %v8304 = vadd.f32 %v8124, %v8286
      %v8305 = vpack.c.bf16 %v816, %v7757
      %v8306 = vpack.c.bf16 %v816, %v7758
      %s8307 = scalar_lea.vmem %s1, 2240
      %v8308 = vld [vmem:[%s8307] sm:$0xf]
      %v8309 = vld [vmem:[%s8307 + $0x4] sm:$0xf]
      %v8310 = vld [vmem:[%s8307 + $0x8] sm:$0xf]
      %v8311 = vld [vmem:[%s8307 + $0xc] sm:$0xf]
      %v8312 = vld [vmem:[%s8307 + $0x10] sm:$0xf]
      %v8313 = vld [vmem:[%s8307 + $0x14] sm:$0xf]
      %v8314 = vld [vmem:[%s8307 + $0x18] sm:$0xf]
      %v8315 = vld [vmem:[%s8307 + $0x1c] sm:$0xf]
      %v8316 = vld [vmem:[%s8307 + $0x20] sm:$0xf]
      %v8317 = vld [vmem:[%s8307 + $0x24] sm:$0xf]
      %v8318 = vld [vmem:[%s8307 + $0x28] sm:$0xf]
      %v8319 = vld [vmem:[%s8307 + $0x2c] sm:$0xf]
      %v8320 = vld [vmem:[%s8307 + $0x30] sm:$0xf]
      %v8321 = vld [vmem:[%s8307 + $0x34] sm:$0xf]
      %v8322 = vld [vmem:[%s8307 + $0x38] sm:$0xf]
      %v8323 = vld [vmem:[%s8307 + $0x3c] sm:$0xf]
      %v8340 = vunpack.c.l.b16 %v8308
      %v8341 = vunpack.c.l.b16 %v8309
      %v8342 = vunpack.c.l.b16 %v8310
      %v8343 = vunpack.c.l.b16 %v8311
      %v8344 = vunpack.c.l.b16 %v8312
      %v8345 = vunpack.c.l.b16 %v8313
      %v8346 = vunpack.c.l.b16 %v8314
      %v8347 = vunpack.c.l.b16 %v8315
      %v8348 = vunpack.c.l.b16 %v8316
      %v8349 = vunpack.c.l.b16 %v8317
      %v8350 = vunpack.c.l.b16 %v8318
      %v8351 = vunpack.c.l.b16 %v8319
      %v8352 = vunpack.c.l.b16 %v8320
      %v8353 = vunpack.c.l.b16 %v8321
      %v8354 = vunpack.c.l.b16 %v8322
      %v8355 = vunpack.c.l.b16 %v8323
      %v8356 = vpack.c.b16 %v8341, %v8340
      %v8357 = vpack.c.b16 %v8343, %v8342
      %v8358 = vpack.c.b16 %v8345, %v8344
      %v8359 = vpack.c.b16 %v8347, %v8346
      %v8360 = vpack.c.b16 %v8349, %v8348
      %v8361 = vpack.c.b16 %v8351, %v8350
      %v8362 = vpack.c.b16 %v8353, %v8352
      %v8363 = vpack.c.b16 %v8355, %v8354
      %8372 = vmatprep.subr.bf16.mxu0 0
      %8373 = vmatpush1.bf16.msra.mxu0 %v8356
      %8374 = vmatprep.subr.bf16.mxu0 0
      %8375 = vmatpush1.bf16.msra.mxu0 %v8357
      %8376 = vmatprep.subr.bf16.mxu0 0
      %8377 = vmatpush1.bf16.msra.mxu0 %v8358
      %8378 = vmatprep.subr.bf16.mxu0 0
      %8379 = vmatpush1.bf16.msra.mxu0 %v8359
      %8380 = vmatprep.subr.bf16.mxu0 0
      %8381 = vmatpush1.bf16.msra.mxu0 %v8360
      %8382 = vmatprep.subr.bf16.mxu0 0
      %8383 = vmatpush1.bf16.msra.mxu0 %v8361
      %8384 = vmatprep.subr.bf16.mxu0 0
      %8385 = vmatpush1.bf16.msra.mxu0 %v8362
      %8386 = vmatprep.subr.bf16.mxu0 0
      %8387 = vmatpush1.bf16.msra.mxu0 %v8363
      %8388 = vmatprep.subr.bf16.mxu0 0
      %8389 = vmatpush1.bf16.msra.mxu0 0
      %8390 = vmatprep.subr.bf16.mxu0 0
      %8391 = vmatpush1.bf16.msra.mxu0 0
      %8392 = vmatprep.subr.bf16.mxu0 0
      %8393 = vmatpush1.bf16.msra.mxu0 0
      %8394 = vmatprep.subr.bf16.mxu0 0
      %8395 = vmatpush1.bf16.msra.mxu0 0
      %8396 = vmatprep.subr.bf16.mxu0 0
      %8397 = vmatpush1.bf16.msra.mxu0 0
      %8398 = vmatprep.subr.bf16.mxu0 0
      %8399 = vmatpush1.bf16.msra.mxu0 0
      %8400 = vmatprep.subr.bf16.mxu0 0
      %8401 = vmatpush1.bf16.msra.mxu0 0
      %8402 = vmatprep.subr.bf16.mxu0 0
      %8403 = vmatpush1.bf16.msra.mxu0 0
      %8404 = vmatprep.mubr.bf16.mxu0 0
      %8405 = vmatmul.mubr.bf16.gmra.mrb[0].mxu0 %v7188
      %v8406 = vpop.f32.mrb[0].mxu0
      %v8407 = vadd.f32 0.0, %v8406
      %v8408 = vpop.f32.mrb[0].mxu0
      %v8409 = vpop.f32.mrb[0].mxu0
      %v8410 = vadd.f32 0.0, %v8409
      %v8411 = vpop.f32.mrb[0].mxu0
      %8412 = vmatprep.mubr.bf16.mxu0 0
      %8413 = vmatmul.mubr.bf16.gmra.mrb[0].mxu0 %v7189
      %v8414 = vpop.f32.mrb[0].mxu0
      %v8415 = vadd.f32 0.0, %v8414
      %v8416 = vpop.f32.mrb[0].mxu0
      %v8417 = vpop.f32.mrb[0].mxu0
      %v8418 = vadd.f32 0.0, %v8417
      %v8419 = vpop.f32.mrb[0].mxu0
      %8420 = vmatprep.mubr.bf16.mxu0 0
      %8421 = vmatmul.mubr.bf16.gmra.mrb[0].mxu0 %v7190
      %v8422 = vpop.f32.mrb[0].mxu0
      %v8423 = vadd.f32 0.0, %v8422
      %v8424 = vpop.f32.mrb[0].mxu0
      %v8425 = vpop.f32.mrb[0].mxu0
      %v8426 = vadd.f32 0.0, %v8425
      %v8427 = vpop.f32.mrb[0].mxu0
      %8428 = vmatprep.mubr.bf16.mxu0 0
      %8429 = vmatmul.mubr.bf16.gmra.mrb[0].mxu0 %v8305
      %v8430 = vpop.f32.mrb[0].mxu0
      %v8431 = vadd.f32 0.0, %v8430
      %v8432 = vpop.f32.mrb[0].mxu0
      %v8433 = vpop.f32.mrb[0].mxu0
      %v8434 = vadd.f32 0.0, %v8433
      %v8435 = vpop.f32.mrb[0].mxu0
      %8436 = vmatprep.mubr.bf16.mxu0 0
      %8437 = vmatmul.mubr.bf16.gmra.mrb[0].mxu0 %v7192
      %v8438 = vpop.f32.mrb[0].mxu0
      %v8439 = vadd.f32 0.0, %v8438
      %v8440 = vpop.f32.mrb[0].mxu0
      %v8441 = vpop.f32.mrb[0].mxu0
      %v8442 = vadd.f32 0.0, %v8441
      %v8443 = vpop.f32.mrb[0].mxu0
      %8444 = vmatprep.mubr.bf16.mxu0 0
      %8445 = vmatmul.mubr.bf16.gmra.mrb[0].mxu0 %v7193
      %v8446 = vpop.f32.mrb[0].mxu0
      %v8447 = vadd.f32 0.0, %v8446
      %v8448 = vpop.f32.mrb[0].mxu0
      %v8449 = vpop.f32.mrb[0].mxu0
      %v8450 = vadd.f32 0.0, %v8449
      %v8451 = vpop.f32.mrb[0].mxu0
      %8452 = vmatprep.mubr.bf16.mxu0 0
      %8453 = vmatmul.mubr.bf16.gmra.mrb[0].mxu0 %v7194
      %v8454 = vpop.f32.mrb[0].mxu0
      %v8455 = vadd.f32 0.0, %v8454
      %v8456 = vpop.f32.mrb[0].mxu0
      %v8457 = vpop.f32.mrb[0].mxu0
      %v8458 = vadd.f32 0.0, %v8457
      %v8459 = vpop.f32.mrb[0].mxu0
      %8460 = vmatprep.mubr.bf16.mxu0 0
      %8461 = vmatmul.mubr.bf16.gmra.mrb[0].mxu0 %v8306
      %v8462 = vpop.f32.mrb[0].mxu0
      %v8463 = vadd.f32 0.0, %v8462
      %v8464 = vpop.f32.mrb[0].mxu0
      %v8465 = vpop.f32.mrb[0].mxu0
      %v8466 = vadd.f32 0.0, %v8465
      %v8467 = vpop.f32.mrb[0].mxu0
      %8468 = vdwg.mxu0
      %v8469 = vadd.f32 %v8289, %v8407
      %v8470 = vadd.f32 %v8290, %v8410
      %v8471 = vadd.f32 %v8291, %v8415
      %v8472 = vadd.f32 %v8292, %v8418
      %v8473 = vadd.f32 %v8293, %v8423
      %v8474 = vadd.f32 %v8294, %v8426
      %v8475 = vadd.f32 %v8295, %v8431
      %v8476 = vadd.f32 %v8296, %v8434
      %v8477 = vadd.f32 %v8297, %v8439
      %v8478 = vadd.f32 %v8298, %v8442
      %v8479 = vadd.f32 %v8299, %v8447
      %v8480 = vadd.f32 %v8300, %v8450
      %v8481 = vadd.f32 %v8301, %v8455
      %v8482 = vadd.f32 %v8302, %v8458
      %v8483 = vadd.f32 %v8303, %v8463
      %v8484 = vadd.f32 %v8304, %v8466
      %s8485 = scalar_lea.vmem %s2, 3
      %v8486 = vld [vmem:[%s8485] sm:$0x1]
      %v8488 = vlaneseq
      %v8489 = vshrl.u32 %v8488, 7
      %v8490 = vsub.s32 0, %v8489
      %v8491 = vrot.slane %v8486, %v8490
      %v8493 = vadd.f32 %v8469, %v8491
      %v8494 = vadd.f32 %v8470, %v8491
      %v8495 = vadd.f32 %v8471, %v8491
      %v8496 = vadd.f32 %v8472, %v8491
      %v8497 = vadd.f32 %v8473, %v8491
      %v8498 = vadd.f32 %v8474, %v8491
      %v8499 = vadd.f32 %v8475, %v8491
      %v8500 = vadd.f32 %v8476, %v8491
      %v8501 = vadd.f32 %v8477, %v8491
      %v8502 = vadd.f32 %v8478, %v8491
      %v8503 = vadd.f32 %v8479, %v8491
      %v8504 = vadd.f32 %v8480, %v8491
      %v8505 = vadd.f32 %v8481, %v8491
      %v8506 = vadd.f32 %v8482, %v8491
      %v8507 = vadd.f32 %v8483, %v8491
      %v8508 = vadd.f32 %v8484, %v8491
      %v8509 = vadd.f32 %v8493, %v8494
      %v8510 = vadd.f32 %v8509, %v8495
      %v8511 = vadd.f32 %v8510, %v8496
      %v8512 = vadd.f32 %v8511, %v8497
      %v8513 = vadd.f32 %v8512, %v8498
      %v8514 = vadd.f32 %v8513, %v8499
      %v8515 = vadd.f32 %v8514, %v8500
      %v8516 = vrot.slane %v8515, 4
      %v8517 = vadd.f32 %v8515, %v8516
      %v8518 = vrot.slane %v8517, 2
      %v8519 = vadd.f32 %v8517, %v8518
      %v8520 = vrot.slane %v8519, 1
      %v8521 = vadd.f32 %v8519, %v8520
      %v8522 = vadd.f32 %v8501, %v8502
      %v8523 = vadd.f32 %v8522, %v8503
      %v8524 = vadd.f32 %v8523, %v8504
      %v8525 = vadd.f32 %v8524, %v8505
      %v8526 = vadd.f32 %v8525, %v8506
      %v8527 = vadd.f32 %v8526, %v8507
      %v8528 = vadd.f32 %v8527, %v8508
      %v8529 = vrot.slane %v8528, 4
      %v8530 = vadd.f32 %v8528, %v8529
      %v8531 = vrot.slane %v8530, 2
      %v8532 = vadd.f32 %v8530, %v8531
      %v8533 = vrot.slane %v8532, 1
      %v8534 = vadd.f32 %v8532, %v8533
      %v8535 = vmul.f32 %v8493, %v8493
      %v8536 = vmul.f32 %v8494, %v8494
      %v8537 = vmul.f32 %v8495, %v8495
      %v8538 = vmul.f32 %v8496, %v8496
      %v8539 = vmul.f32 %v8497, %v8497
      %v8540 = vmul.f32 %v8498, %v8498
      %v8541 = vmul.f32 %v8499, %v8499
      %v8542 = vmul.f32 %v8500, %v8500
      %v8543 = vmul.f32 %v8501, %v8501
      %v8544 = vmul.f32 %v8502, %v8502
      %v8545 = vmul.f32 %v8503, %v8503
      %v8546 = vmul.f32 %v8504, %v8504
      %v8547 = vmul.f32 %v8505, %v8505
      %v8548 = vmul.f32 %v8506, %v8506
      %v8549 = vmul.f32 %v8507, %v8507
      %v8550 = vmul.f32 %v8508, %v8508
      %v8551 = vadd.f32 %v8535, %v8536
      %v8552 = vadd.f32 %v8551, %v8537
      %v8553 = vadd.f32 %v8552, %v8538
      %v8554 = vadd.f32 %v8553, %v8539
      %v8555 = vadd.f32 %v8554, %v8540
      %v8556 = vadd.f32 %v8555, %v8541
      %v8557 = vadd.f32 %v8556, %v8542
      %v8558 = vrot.slane %v8557, 4
      %v8559 = vadd.f32 %v8557, %v8558
      %v8560 = vrot.slane %v8559, 2
      %v8561 = vadd.f32 %v8559, %v8560
      %v8562 = vrot.slane %v8561, 1
      %v8563 = vadd.f32 %v8561, %v8562
      %v8564 = vadd.f32 %v8543, %v8544
      %v8565 = vadd.f32 %v8564, %v8545
      %v8566 = vadd.f32 %v8565, %v8546
      %v8567 = vadd.f32 %v8566, %v8547
      %v8568 = vadd.f32 %v8567, %v8548
      %v8569 = vadd.f32 %v8568, %v8549
      %v8570 = vadd.f32 %v8569, %v8550
      %v8571 = vrot.slane %v8570, 4
      %v8572 = vadd.f32 %v8570, %v8571
      %v8573 = vrot.slane %v8572, 2
      %v8574 = vadd.f32 %v8572, %v8573
      %v8575 = vrot.slane %v8574, 1
      %v8576 = vadd.f32 %v8574, %v8575
      %v8579 = vsel %vm2238, %v8534, %v8521
      %8581 = vmatprep.subr.mxu0 0.0
      %8582 = vmatpush1.msra.mxu0 %v2220
      %8583 = vmatprep.subr.mxu0 0.0
      %8584 = vmatpush1.msra.mxu0 %v2221
      %8585 = vmatprep.subr.mxu0 0.0
      %8586 = vmatpush1.msra.mxu0 %v2222
      %8587 = vmatprep.subr.mxu0 0.0
      %8588 = vmatpush1.msra.mxu0 %v2223
      %8589 = vmatprep.subr.mxu0 0.0
      %8590 = vmatpush1.msra.mxu0 %v2224
      %8591 = vmatprep.subr.mxu0 0.0
      %8592 = vmatpush1.msra.mxu0 %v2225
      %8593 = vmatprep.subr.mxu0 0.0
      %8594 = vmatpush1.msra.mxu0 %v2226
      %8595 = vmatprep.subr.mxu0 0.0
      %8596 = vmatpush1.msra.mxu0 %v2227
      %8597 = vmatprep.subr.mxu0 0.0
      %8598 = vmatpush1.msra.mxu0 %v2228
      %8599 = vmatprep.subr.mxu0 0.0
      %8600 = vmatpush1.msra.mxu0 %v2229
      %8601 = vmatprep.subr.mxu0 0.0
      %8602 = vmatpush1.msra.mxu0 %v2230
      %8603 = vmatprep.subr.mxu0 0.0
      %8604 = vmatpush1.msra.mxu0 %v2231
      %8605 = vmatprep.subr.mxu0 0.0
      %8606 = vmatpush1.msra.mxu0 %v2232
      %8607 = vmatprep.subr.mxu0 0.0
      %8608 = vmatpush1.msra.mxu0 %v2233
      %8609 = vmatprep.subr.mxu0 0.0
      %8610 = vmatpush1.msra.mxu0 %v2234
      %8611 = vmatprep.subr.mxu0 0.0
      %8612 = vmatpush1.msra.mxu0 %v2235
      %8613 = vmatprep.subr.mxu0 0.0
      %8614 = vmatpush1.msra.mxu0 0.0
      %8615 = vmatprep.subr.mxu0 0.0
      %8616 = vmatpush1.msra.mxu0 0.0
      %8617 = vmatprep.subr.mxu0 0.0
      %8618 = vmatpush1.msra.mxu0 0.0
      %8619 = vmatprep.subr.mxu0 0.0
      %8620 = vmatpush1.msra.mxu0 0.0
      %8621 = vmatprep.subr.mxu0 0.0
      %8622 = vmatpush1.msra.mxu0 0.0
      %8623 = vmatprep.subr.mxu0 0.0
      %8624 = vmatpush1.msra.mxu0 0.0
      %8625 = vmatprep.subr.mxu0 0.0
      %8626 = vmatpush1.msra.mxu0 0.0
      %8627 = vmatprep.subr.mxu0 0.0
      %8628 = vmatpush1.msra.mxu0 0.0
      %8629 = vmatprep.subr.mxu0 0.0
      %8630 = vmatpush1.msra.mxu0 0.0
      %8631 = vmatprep.subr.mxu0 0.0
      %8632 = vmatpush1.msra.mxu0 0.0
      %8633 = vmatprep.subr.mxu0 0.0
      %8634 = vmatpush1.msra.mxu0 0.0
      %8635 = vmatprep.subr.mxu0 0.0
      %8636 = vmatpush1.msra.mxu0 0.0
      %8637 = vmatprep.subr.mxu0 0.0
      %8638 = vmatpush1.msra.mxu0 0.0
      %8639 = vmatprep.subr.mxu0 0.0
      %8640 = vmatpush1.msra.mxu0 0.0
      %8641 = vmatprep.subr.mxu0 0.0
      %8642 = vmatpush1.msra.mxu0 0.0
      %8643 = vmatprep.subr.mxu0 0.0
      %8644 = vmatpush1.msra.mxu0 0.0
      %8645 = vmatprep.mubr.f32.mxu0 0.0
      %8646 = vmatmul.mubr.f32.gmra.mrb[0].mxu0 %v8579
      %v8647 = vpop.f32.mrb[0].mxu0
      %v8648 = vadd.f32 0.0, %v8647
      %v8649 = vpop.f32.mrb[0].mxu0
      %8650 = vdwg.mxu0
      %v8653 = vsel %vm2238, %v8576, %v8563
      %8655 = vmatprep.subr.mxu0 0.0
      %8656 = vmatpush1.msra.mxu0 %v2220
      %8657 = vmatprep.subr.mxu0 0.0
      %8658 = vmatpush1.msra.mxu0 %v2221
      %8659 = vmatprep.subr.mxu0 0.0
      %8660 = vmatpush1.msra.mxu0 %v2222
      %8661 = vmatprep.subr.mxu0 0.0
      %8662 = vmatpush1.msra.mxu0 %v2223
      %8663 = vmatprep.subr.mxu0 0.0
      %8664 = vmatpush1.msra.mxu0 %v2224
      %8665 = vmatprep.subr.mxu0 0.0
      %8666 = vmatpush1.msra.mxu0 %v2225
      %8667 = vmatprep.subr.mxu0 0.0
      %8668 = vmatpush1.msra.mxu0 %v2226
      %8669 = vmatprep.subr.mxu0 0.0
      %8670 = vmatpush1.msra.mxu0 %v2227
      %8671 = vmatprep.subr.mxu0 0.0
      %8672 = vmatpush1.msra.mxu0 %v2228
      %8673 = vmatprep.subr.mxu0 0.0
      %8674 = vmatpush1.msra.mxu0 %v2229
      %8675 = vmatprep.subr.mxu0 0.0
      %8676 = vmatpush1.msra.mxu0 %v2230
      %8677 = vmatprep.subr.mxu0 0.0
      %8678 = vmatpush1.msra.mxu0 %v2231
      %8679 = vmatprep.subr.mxu0 0.0
      %8680 = vmatpush1.msra.mxu0 %v2232
      %8681 = vmatprep.subr.mxu0 0.0
      %8682 = vmatpush1.msra.mxu0 %v2233
      %8683 = vmatprep.subr.mxu0 0.0
      %8684 = vmatpush1.msra.mxu0 %v2234
      %8685 = vmatprep.subr.mxu0 0.0
      %8686 = vmatpush1.msra.mxu0 %v2235
      %8687 = vmatprep.subr.mxu0 0.0
      %8688 = vmatpush1.msra.mxu0 0.0
      %8689 = vmatprep.subr.mxu0 0.0
      %8690 = vmatpush1.msra.mxu0 0.0
      %8691 = vmatprep.subr.mxu0 0.0
      %8692 = vmatpush1.msra.mxu0 0.0
      %8693 = vmatprep.subr.mxu0 0.0
      %8694 = vmatpush1.msra.mxu0 0.0
      %8695 = vmatprep.subr.mxu0 0.0
      %8696 = vmatpush1.msra.mxu0 0.0
      %8697 = vmatprep.subr.mxu0 0.0
      %8698 = vmatpush1.msra.mxu0 0.0
      %8699 = vmatprep.subr.mxu0 0.0
      %8700 = vmatpush1.msra.mxu0 0.0
      %8701 = vmatprep.subr.mxu0 0.0
      %8702 = vmatpush1.msra.mxu0 0.0
      %8703 = vmatprep.subr.mxu0 0.0
      %8704 = vmatpush1.msra.mxu0 0.0
      %8705 = vmatprep.subr.mxu0 0.0
      %8706 = vmatpush1.msra.mxu0 0.0
      %8707 = vmatprep.subr.mxu0 0.0
      %8708 = vmatpush1.msra.mxu0 0.0
      %8709 = vmatprep.subr.mxu0 0.0
      %8710 = vmatpush1.msra.mxu0 0.0
      %8711 = vmatprep.subr.mxu0 0.0
      %8712 = vmatpush1.msra.mxu0 0.0
      %8713 = vmatprep.subr.mxu0 0.0
      %8714 = vmatpush1.msra.mxu0 0.0
      %8715 = vmatprep.subr.mxu0 0.0
      %8716 = vmatpush1.msra.mxu0 0.0
      %8717 = vmatprep.subr.mxu0 0.0
      %8718 = vmatpush1.msra.mxu0 0.0
      %8719 = vmatprep.mubr.f32.mxu0 0.0
      %8720 = vmatmul.mubr.f32.gmra.mrb[0].mxu0 %v8653
      %v8721 = vpop.f32.mrb[0].mxu0
      %v8722 = vadd.f32 0.0, %v8721
      %v8723 = vpop.f32.mrb[0].mxu0
      %8724 = vdwg.mxu0
      %v8725 = vmul.f32 %v8648, %v8648
      %v8726 = vsub.f32 %v8722, %v8725
      %v8727 = vmax.f32 %v8726, 0.0
      %v8728 = vadd.f32 %v8727, 1e-05
      %v8729 = vrsqrt.pop %v8728
      %s8730 = scalar_lea.vmem %s3, 3
      %v8731 = vld [vmem:[%s8730] sm:$0x1]
      %v8733 = vlaneseq
      %v8734 = vshrl.u32 %v8733, 7
      %v8735 = vsub.s32 0, %v8734
      %v8736 = vrot.slane %v8731, %v8735
      %v8738 = vmul.f32 %v8729, %v8736
      %s8739 = scalar_lea.vmem %s4, 3
      %v8740 = vld [vmem:[%s8739] sm:$0x1]
      %v8741 = vmul.f32 %v8648, %v8738
      %v8743 = vlaneseq
      %v8744 = vshrl.u32 %v8743, 7
      %v8745 = vsub.s32 0, %v8744
      %v8746 = vrot.slane %v8740, %v8745
      %v8748 = vsub.f32 %v8746, %v8741
      %v8751 = vunpack.c.l.s4 1966171168
      %v8752 = vunpack.c.0.s8 %v8751
      %v8753 = vlaneseq
      %v8754 = vshrl.u32 %v8753, 7
      %v8755 = vsub.s32 %v8752, %v8754
      %v8756 = vrot.slane %v8738, %v8755
      %v8757 = vcombine.high %v8756, %v8756
      %v8759 = vunpack.c.l.s4 1966171168
      %v8760 = vunpack.c.0.s8 %v8759
      %v8761 = vlaneseq
      %v8762 = vshrl.u32 %v8761, 7
      %v8763 = vsub.s32 %v8760, %v8762
      %v8764 = vrot.slane %v8756, %v8763
      %v8766 = vunpack.c.l.s4 1966171168
      %v8767 = vunpack.c.0.s8 %v8766
      %v8768 = vlaneseq
      %v8769 = vshrl.u32 %v8768, 7
      %v8770 = vsub.s32 %v8767, %v8769
      %v8771 = vrot.slane %v8757, %v8770
      %v8772 = vlaneseq
      %v8773 = vshrl.u32 %v8772, 7
      %v8774 = vsub.s32 0, %v8773
      %v8775 = vrot.slane %v8764, %v8774
      %v8776 = vlaneseq
      %v8777 = vshrl.u32 %v8776, 7
      %v8778 = vsub.s32 0, %v8777
      %v8779 = vrot.slane %v8771, %v8778
      %v8782 = vmul.f32 %v8493, %v8775
      %v8783 = vmul.f32 %v8494, %v8775
      %v8784 = vmul.f32 %v8495, %v8775
      %v8785 = vmul.f32 %v8496, %v8775
      %v8786 = vmul.f32 %v8497, %v8775
      %v8787 = vmul.f32 %v8498, %v8775
      %v8788 = vmul.f32 %v8499, %v8775
      %v8789 = vmul.f32 %v8500, %v8775
      %v8790 = vmul.f32 %v8501, %v8779
      %v8791 = vmul.f32 %v8502, %v8779
      %v8792 = vmul.f32 %v8503, %v8779
      %v8793 = vmul.f32 %v8504, %v8779
      %v8794 = vmul.f32 %v8505, %v8779
      %v8795 = vmul.f32 %v8506, %v8779
      %v8796 = vmul.f32 %v8507, %v8779
      %v8797 = vmul.f32 %v8508, %v8779
      %v8800 = vunpack.c.l.s4 1966171168
      %v8801 = vunpack.c.0.s8 %v8800
      %v8802 = vlaneseq
      %v8803 = vshrl.u32 %v8802, 7
      %v8804 = vsub.s32 %v8801, %v8803
      %v8805 = vrot.slane %v8748, %v8804
      %v8806 = vcombine.high %v8805, %v8805
      %v8808 = vunpack.c.l.s4 1966171168
      %v8809 = vunpack.c.0.s8 %v8808
      %v8810 = vlaneseq
      %v8811 = vshrl.u32 %v8810, 7
      %v8812 = vsub.s32 %v8809, %v8811
      %v8813 = vrot.slane %v8805, %v8812
      %v8815 = vunpack.c.l.s4 1966171168
      %v8816 = vunpack.c.0.s8 %v8815
      %v8817 = vlaneseq
      %v8818 = vshrl.u32 %v8817, 7
      %v8819 = vsub.s32 %v8816, %v8818
      %v8820 = vrot.slane %v8806, %v8819
      %v8821 = vlaneseq
      %v8822 = vshrl.u32 %v8821, 7
      %v8823 = vsub.s32 0, %v8822
      %v8824 = vrot.slane %v8813, %v8823
      %v8825 = vlaneseq
      %v8826 = vshrl.u32 %v8825, 7
      %v8827 = vsub.s32 0, %v8826
      %v8828 = vrot.slane %v8820, %v8827
      %v8831 = vadd.f32 %v8782, %v8824
      %v8832 = vadd.f32 %v8783, %v8824
      %v8833 = vadd.f32 %v8784, %v8824
      %v8834 = vadd.f32 %v8785, %v8824
      %v8835 = vadd.f32 %v8786, %v8824
      %v8836 = vadd.f32 %v8787, %v8824
      %v8837 = vadd.f32 %v8788, %v8824
      %v8838 = vadd.f32 %v8789, %v8824
      %v8839 = vadd.f32 %v8790, %v8828
      %v8840 = vadd.f32 %v8791, %v8828
      %v8841 = vadd.f32 %v8792, %v8828
      %v8842 = vadd.f32 %v8793, %v8828
      %v8843 = vadd.f32 %v8794, %v8828
      %v8844 = vadd.f32 %v8795, %v8828
      %v8845 = vadd.f32 %v8796, %v8828
      %v8846 = vadd.f32 %v8797, %v8828
      %v8847 = vmax.f32 %v8831, 0.0
      %v8848 = vmax.f32 %v8832, 0.0
      %v8849 = vmax.f32 %v8833, 0.0
      %v8850 = vmax.f32 %v8834, 0.0
      %v8851 = vmax.f32 %v8835, 0.0
      %v8852 = vmax.f32 %v8836, 0.0
      %v8853 = vmax.f32 %v8837, 0.0
      %v8854 = vmax.f32 %v8838, 0.0
      %v8855 = vmax.f32 %v8839, 0.0
      %v8856 = vmax.f32 %v8840, 0.0
      %v8857 = vmax.f32 %v8841, 0.0
      %v8858 = vmax.f32 %v8842, 0.0
      %v8859 = vmax.f32 %v8843, 0.0
      %v8860 = vmax.f32 %v8844, 0.0
      %v8861 = vmax.f32 %v8845, 0.0
      %v8862 = vmax.f32 %v8846, 0.0
      %v8863 = vpack.c.bf16 %v8848, %v8847
      %v8864 = vpack.c.bf16 %v8850, %v8849
      %v8865 = vpack.c.bf16 %v8852, %v8851
      %v8866 = vpack.c.bf16 %v8854, %v8853
      %v8867 = vpack.c.bf16 %v8856, %v8855
      %v8868 = vpack.c.bf16 %v8858, %v8857
      %v8869 = vpack.c.bf16 %v8860, %v8859
      %v8870 = vpack.c.bf16 %v8862, %v8861
      %v8871 = vld [vmem:[%s6] sm:$0xf]
      %v8872 = vld [vmem:[%s6 + $0x10] sm:$0xf]
      %v8873 = vld [vmem:[%s6 + $0x20] sm:$0xf]
      %v8874 = vld [vmem:[%s6 + $0x30] sm:$0xf]
      %v8875 = vld [vmem:[%s6 + $0x40] sm:$0xf]
      %v8876 = vld [vmem:[%s6 + $0x50] sm:$0xf]
      %v8877 = vld [vmem:[%s6 + $0x60] sm:$0xf]
      %v8878 = vld [vmem:[%s6 + $0x70] sm:$0xf]
      %v8879 = vld [vmem:[%s6 + $0x80] sm:$0xf]
      %v8880 = vld [vmem:[%s6 + $0x90] sm:$0xf]
      %v8881 = vld [vmem:[%s6 + $0xa0] sm:$0xf]
      %v8882 = vld [vmem:[%s6 + $0xb0] sm:$0xf]
      %v8883 = vld [vmem:[%s6 + $0xc0] sm:$0xf]
      %v8884 = vld [vmem:[%s6 + $0xd0] sm:$0xf]
      %v8885 = vld [vmem:[%s6 + $0xe0] sm:$0xf]
      %v8886 = vld [vmem:[%s6 + $0xf0] sm:$0xf]
      %v8887 = vld [vmem:[%s7] sm:$0x1]
      %v8889 = vlaneseq
      %v8890 = vshrl.u32 %v8889, 7
      %v8891 = vsub.s32 0, %v8890
      %v8892 = vrot.slane %v8887, %v8891
      %v8910 = vunpack.c.l.b16 %v8871
      %v8911 = vunpack.c.l.b16 %v8872
      %v8912 = vunpack.c.l.b16 %v8873
      %v8913 = vunpack.c.l.b16 %v8874
      %v8914 = vunpack.c.l.b16 %v8875
      %v8915 = vunpack.c.l.b16 %v8876
      %v8916 = vunpack.c.l.b16 %v8877
      %v8917 = vunpack.c.l.b16 %v8878
      %v8918 = vunpack.c.l.b16 %v8879
      %v8919 = vunpack.c.l.b16 %v8880
      %v8920 = vunpack.c.l.b16 %v8881
      %v8921 = vunpack.c.l.b16 %v8882
      %v8922 = vunpack.c.l.b16 %v8883
      %v8923 = vunpack.c.l.b16 %v8884
      %v8924 = vunpack.c.l.b16 %v8885
      %v8925 = vunpack.c.l.b16 %v8886
      %v8926 = vpack.c.b16 %v8911, %v8910
      %v8927 = vpack.c.b16 %v8913, %v8912
      %v8928 = vpack.c.b16 %v8915, %v8914
      %v8929 = vpack.c.b16 %v8917, %v8916
      %v8930 = vpack.c.b16 %v8919, %v8918
      %v8931 = vpack.c.b16 %v8921, %v8920
      %v8932 = vpack.c.b16 %v8923, %v8922
      %v8933 = vpack.c.b16 %v8925, %v8924
      %8942 = vmatprep.subr.bf16.mxu0 0
      %8943 = vmatpush1.bf16.msra.mxu0 %v8926
      %8944 = vmatprep.subr.bf16.mxu0 0
      %8945 = vmatpush1.bf16.msra.mxu0 %v8927
      %8946 = vmatprep.subr.bf16.mxu0 0
      %8947 = vmatpush1.bf16.msra.mxu0 %v8928
      %8948 = vmatprep.subr.bf16.mxu0 0
      %8949 = vmatpush1.bf16.msra.mxu0 %v8929
      %8950 = vmatprep.subr.bf16.mxu0 0
      %8951 = vmatpush1.bf16.msra.mxu0 %v8930
      %8952 = vmatprep.subr.bf16.mxu0 0
      %8953 = vmatpush1.bf16.msra.mxu0 %v8931
      %8954 = vmatprep.subr.bf16.mxu0 0
      %8955 = vmatpush1.bf16.msra.mxu0 %v8932
      %8956 = vmatprep.subr.bf16.mxu0 0
      %8957 = vmatpush1.bf16.msra.mxu0 %v8933
      %8958 = vmatprep.subr.bf16.mxu0 0
      %8959 = vmatpush1.bf16.msra.mxu0 0
      %8960 = vmatprep.subr.bf16.mxu0 0
      %8961 = vmatpush1.bf16.msra.mxu0 0
      %8962 = vmatprep.subr.bf16.mxu0 0
      %8963 = vmatpush1.bf16.msra.mxu0 0
      %8964 = vmatprep.subr.bf16.mxu0 0
      %8965 = vmatpush1.bf16.msra.mxu0 0
      %8966 = vmatprep.subr.bf16.mxu0 0
      %8967 = vmatpush1.bf16.msra.mxu0 0
      %8968 = vmatprep.subr.bf16.mxu0 0
      %8969 = vmatpush1.bf16.msra.mxu0 0
      %8970 = vmatprep.subr.bf16.mxu0 0
      %8971 = vmatpush1.bf16.msra.mxu0 0
      %8972 = vmatprep.subr.bf16.mxu0 0
      %8973 = vmatpush1.bf16.msra.mxu0 0
      %8974 = vmatprep.mubr.bf16.mxu0 0
      %8975 = vmatmul.mubr.bf16.gmra.mrb[0].mxu0 %v8863
      %v8976 = vpop.f32.mrb[0].mxu0
      %v8977 = vadd.f32 %v8892, %v8976
      %v8978 = vpop.f32.mrb[0].mxu0
      %v8979 = vpop.f32.mrb[0].mxu0
      %v8980 = vadd.f32 %v8892, %v8979
      %v8981 = vpop.f32.mrb[0].mxu0
      %8982 = vmatprep.mubr.bf16.mxu0 0
      %8983 = vmatmul.mubr.bf16.gmra.mrb[0].mxu0 %v8864
      %v8984 = vpop.f32.mrb[0].mxu0
      %v8985 = vadd.f32 %v8892, %v8984
      %v8986 = vpop.f32.mrb[0].mxu0
      %v8987 = vpop.f32.mrb[0].mxu0
      %v8988 = vadd.f32 %v8892, %v8987
      %v8989 = vpop.f32.mrb[0].mxu0
      %8990 = vmatprep.mubr.bf16.mxu0 0
      %8991 = vmatmul.mubr.bf16.gmra.mrb[0].mxu0 %v8865
      %v8992 = vpop.f32.mrb[0].mxu0
      %v8993 = vadd.f32 %v8892, %v8992
      %v8994 = vpop.f32.mrb[0].mxu0
      %v8995 = vpop.f32.mrb[0].mxu0
      %v8996 = vadd.f32 %v8892, %v8995
      %v8997 = vpop.f32.mrb[0].mxu0
      %8998 = vmatprep.mubr.bf16.mxu0 0
      %8999 = vmatmul.mubr.bf16.gmra.mrb[0].mxu0 %v8866
      %v9000 = vpop.f32.mrb[0].mxu0
      %v9001 = vadd.f32 %v8892, %v9000
      %v9002 = vpop.f32.mrb[0].mxu0
      %v9003 = vpop.f32.mrb[0].mxu0
      %v9004 = vadd.f32 %v8892, %v9003
      %v9005 = vpop.f32.mrb[0].mxu0
      %9006 = vmatprep.mubr.bf16.mxu0 0
      %9007 = vmatmul.mubr.bf16.gmra.mrb[0].mxu0 %v8867
      %v9008 = vpop.f32.mrb[0].mxu0
      %v9009 = vadd.f32 %v8892, %v9008
      %v9010 = vpop.f32.mrb[0].mxu0
      %v9011 = vpop.f32.mrb[0].mxu0
      %v9012 = vadd.f32 %v8892, %v9011
      %v9013 = vpop.f32.mrb[0].mxu0
      %9014 = vmatprep.mubr.bf16.mxu0 0
      %9015 = vmatmul.mubr.bf16.gmra.mrb[0].mxu0 %v8868
      %v9016 = vpop.f32.mrb[0].mxu0
      %v9017 = vadd.f32 %v8892, %v9016
      %v9018 = vpop.f32.mrb[0].mxu0
      %v9019 = vpop.f32.mrb[0].mxu0
      %v9020 = vadd.f32 %v8892, %v9019
      %v9021 = vpop.f32.mrb[0].mxu0
      %9022 = vmatprep.mubr.bf16.mxu0 0
      %9023 = vmatmul.mubr.bf16.gmra.mrb[0].mxu0 %v8869
      %v9024 = vpop.f32.mrb[0].mxu0
      %v9025 = vadd.f32 %v8892, %v9024
      %v9026 = vpop.f32.mrb[0].mxu0
      %v9027 = vpop.f32.mrb[0].mxu0
      %v9028 = vadd.f32 %v8892, %v9027
      %v9029 = vpop.f32.mrb[0].mxu0
      %9030 = vmatprep.mubr.bf16.mxu0 0
      %9031 = vmatmul.mubr.bf16.gmra.mrb[0].mxu0 %v8870
      %v9032 = vpop.f32.mrb[0].mxu0
      %v9033 = vadd.f32 %v8892, %v9032
      %v9034 = vpop.f32.mrb[0].mxu0
      %v9035 = vpop.f32.mrb[0].mxu0
      %v9036 = vadd.f32 %v8892, %v9035
      %v9037 = vpop.f32.mrb[0].mxu0
      %9038 = vdwg.mxu0
      %v9039 = vmax.f32 %v8977, 0.0
      %v9040 = vmax.f32 %v8980, 0.0
      %v9041 = vmax.f32 %v8985, 0.0
      %v9042 = vmax.f32 %v8988, 0.0
      %v9043 = vmax.f32 %v8993, 0.0
      %v9044 = vmax.f32 %v8996, 0.0
      %v9045 = vmax.f32 %v9001, 0.0
      %v9046 = vmax.f32 %v9004, 0.0
      %v9047 = vmax.f32 %v9009, 0.0
      %v9048 = vmax.f32 %v9012, 0.0
      %v9049 = vmax.f32 %v9017, 0.0
      %v9050 = vmax.f32 %v9020, 0.0
      %v9051 = vmax.f32 %v9025, 0.0
      %v9052 = vmax.f32 %v9028, 0.0
      %v9053 = vmax.f32 %v9033, 0.0
      %v9054 = vmax.f32 %v9036, 0.0
      %v9055 = vpack.c.bf16 %v9040, %v9039
      %v9056 = vpack.c.bf16 %v9042, %v9041
      %v9057 = vpack.c.bf16 %v9044, %v9043
      %v9058 = vpack.c.bf16 %v9046, %v9045
      %v9059 = vpack.c.bf16 %v9048, %v9047
      %v9060 = vpack.c.bf16 %v9050, %v9049
      %v9061 = vpack.c.bf16 %v9052, %v9051
      %v9062 = vpack.c.bf16 %v9054, %v9053
      %v9063 = vld [vmem:[%s8] sm:$0xf]
      %v9064 = vld [vmem:[%s8 + $0x4] sm:$0xf]
      %v9065 = vld [vmem:[%s8 + $0x8] sm:$0xf]
      %v9066 = vld [vmem:[%s8 + $0xc] sm:$0xf]
      %v9067 = vld [vmem:[%s8 + $0x10] sm:$0xf]
      %v9068 = vld [vmem:[%s8 + $0x14] sm:$0xf]
      %v9069 = vld [vmem:[%s8 + $0x18] sm:$0xf]
      %v9070 = vld [vmem:[%s8 + $0x1c] sm:$0xf]
      %v9071 = vld [vmem:[%s8 + $0x20] sm:$0xf]
      %v9072 = vld [vmem:[%s8 + $0x24] sm:$0xf]
      %v9073 = vld [vmem:[%s8 + $0x28] sm:$0xf]
      %v9074 = vld [vmem:[%s8 + $0x2c] sm:$0xf]
      %v9075 = vld [vmem:[%s8 + $0x30] sm:$0xf]
      %v9076 = vld [vmem:[%s8 + $0x34] sm:$0xf]
      %v9077 = vld [vmem:[%s8 + $0x38] sm:$0xf]
      %v9078 = vld [vmem:[%s8 + $0x3c] sm:$0xf]
      %v9079 = vld [vmem:[%s6 + $0x4] sm:$0xf]
      %v9080 = vld [vmem:[%s6 + $0x14] sm:$0xf]
      %v9081 = vld [vmem:[%s6 + $0x24] sm:$0xf]
      %v9082 = vld [vmem:[%s6 + $0x34] sm:$0xf]
      %v9083 = vld [vmem:[%s6 + $0x44] sm:$0xf]
      %v9084 = vld [vmem:[%s6 + $0x54] sm:$0xf]
      %v9085 = vld [vmem:[%s6 + $0x64] sm:$0xf]
      %v9086 = vld [vmem:[%s6 + $0x74] sm:$0xf]
      %v9087 = vld [vmem:[%s6 + $0x84] sm:$0xf]
      %v9088 = vld [vmem:[%s6 + $0x94] sm:$0xf]
      %v9089 = vld [vmem:[%s6 + $0xa4] sm:$0xf]
      %v9090 = vld [vmem:[%s6 + $0xb4] sm:$0xf]
      %v9091 = vld [vmem:[%s6 + $0xc4] sm:$0xf]
      %v9092 = vld [vmem:[%s6 + $0xd4] sm:$0xf]
      %v9093 = vld [vmem:[%s6 + $0xe4] sm:$0xf]
      %v9094 = vld [vmem:[%s6 + $0xf4] sm:$0xf]
      %v9095 = vld [vmem:[%s7 + $0x1] sm:$0x1]
      %v9097 = vlaneseq
      %v9098 = vshrl.u32 %v9097, 7
      %v9099 = vsub.s32 0, %v9098
      %v9100 = vrot.slane %v9095, %v9099
      %v9118 = vunpack.c.l.b16 %v9079
      %v9119 = vunpack.c.l.b16 %v9080
      %v9120 = vunpack.c.l.b16 %v9081
      %v9121 = vunpack.c.l.b16 %v9082
      %v9122 = vunpack.c.l.b16 %v9083
      %v9123 = vunpack.c.l.b16 %v9084
      %v9124 = vunpack.c.l.b16 %v9085
      %v9125 = vunpack.c.l.b16 %v9086
      %v9126 = vunpack.c.l.b16 %v9087
      %v9127 = vunpack.c.l.b16 %v9088
      %v9128 = vunpack.c.l.b16 %v9089
      %v9129 = vunpack.c.l.b16 %v9090
      %v9130 = vunpack.c.l.b16 %v9091
      %v9131 = vunpack.c.l.b16 %v9092
      %v9132 = vunpack.c.l.b16 %v9093
      %v9133 = vunpack.c.l.b16 %v9094
      %v9134 = vpack.c.b16 %v9119, %v9118
      %v9135 = vpack.c.b16 %v9121, %v9120
      %v9136 = vpack.c.b16 %v9123, %v9122
      %v9137 = vpack.c.b16 %v9125, %v9124
      %v9138 = vpack.c.b16 %v9127, %v9126
      %v9139 = vpack.c.b16 %v9129, %v9128
      %v9140 = vpack.c.b16 %v9131, %v9130
      %v9141 = vpack.c.b16 %v9133, %v9132
      %9150 = vmatprep.subr.bf16.mxu0 0
      %9151 = vmatpush1.bf16.msra.mxu0 %v9134
      %9152 = vmatprep.subr.bf16.mxu0 0
      %9153 = vmatpush1.bf16.msra.mxu0 %v9135
      %9154 = vmatprep.subr.bf16.mxu0 0
      %9155 = vmatpush1.bf16.msra.mxu0 %v9136
      %9156 = vmatprep.subr.bf16.mxu0 0
      %9157 = vmatpush1.bf16.msra.mxu0 %v9137
      %9158 = vmatprep.subr.bf16.mxu0 0
      %9159 = vmatpush1.bf16.msra.mxu0 %v9138
      %9160 = vmatprep.subr.bf16.mxu0 0
      %9161 = vmatpush1.bf16.msra.mxu0 %v9139
      %9162 = vmatprep.subr.bf16.mxu0 0
      %9163 = vmatpush1.bf16.msra.mxu0 %v9140
      %9164 = vmatprep.subr.bf16.mxu0 0
      %9165 = vmatpush1.bf16.msra.mxu0 %v9141
      %9166 = vmatprep.subr.bf16.mxu0 0
      %9167 = vmatpush1.bf16.msra.mxu0 0
      %9168 = vmatprep.subr.bf16.mxu0 0
      %9169 = vmatpush1.bf16.msra.mxu0 0
      %9170 = vmatprep.subr.bf16.mxu0 0
      %9171 = vmatpush1.bf16.msra.mxu0 0
      %9172 = vmatprep.subr.bf16.mxu0 0
      %9173 = vmatpush1.bf16.msra.mxu0 0
      %9174 = vmatprep.subr.bf16.mxu0 0
      %9175 = vmatpush1.bf16.msra.mxu0 0
      %9176 = vmatprep.subr.bf16.mxu0 0
      %9177 = vmatpush1.bf16.msra.mxu0 0
      %9178 = vmatprep.subr.bf16.mxu0 0
      %9179 = vmatpush1.bf16.msra.mxu0 0
      %9180 = vmatprep.subr.bf16.mxu0 0
      %9181 = vmatpush1.bf16.msra.mxu0 0
      %9182 = vmatprep.mubr.bf16.mxu0 0
      %9183 = vmatmul.mubr.bf16.gmra.mrb[0].mxu0 %v8863
      %v9184 = vpop.f32.mrb[0].mxu0
      %v9185 = vadd.f32 %v9100, %v9184
      %v9186 = vpop.f32.mrb[0].mxu0
      %v9187 = vpop.f32.mrb[0].mxu0
      %v9188 = vadd.f32 %v9100, %v9187
      %v9189 = vpop.f32.mrb[0].mxu0
      %9190 = vmatprep.mubr.bf16.mxu0 0
      %9191 = vmatmul.mubr.bf16.gmra.mrb[0].mxu0 %v8864
      %v9192 = vpop.f32.mrb[0].mxu0
      %v9193 = vadd.f32 %v9100, %v9192
      %v9194 = vpop.f32.mrb[0].mxu0
      %v9195 = vpop.f32.mrb[0].mxu0
      %v9196 = vadd.f32 %v9100, %v9195
      %v9197 = vpop.f32.mrb[0].mxu0
      %9198 = vmatprep.mubr.bf16.mxu0 0
      %9199 = vmatmul.mubr.bf16.gmra.mrb[0].mxu0 %v8865
      %v9200 = vpop.f32.mrb[0].mxu0
      %v9201 = vadd.f32 %v9100, %v9200
      %v9202 = vpop.f32.mrb[0].mxu0
      %v9203 = vpop.f32.mrb[0].mxu0
      %v9204 = vadd.f32 %v9100, %v9203
      %v9205 = vpop.f32.mrb[0].mxu0
      %9206 = vmatprep.mubr.bf16.mxu0 0
      %9207 = vmatmul.mubr.bf16.gmra.mrb[0].mxu0 %v8866
      %v9208 = vpop.f32.mrb[0].mxu0
      %v9209 = vadd.f32 %v9100, %v9208
      %v9210 = vpop.f32.mrb[0].mxu0
      %v9211 = vpop.f32.mrb[0].mxu0
      %v9212 = vadd.f32 %v9100, %v9211
      %v9213 = vpop.f32.mrb[0].mxu0
      %9214 = vmatprep.mubr.bf16.mxu0 0
      %9215 = vmatmul.mubr.bf16.gmra.mrb[0].mxu0 %v8867
      %v9216 = vpop.f32.mrb[0].mxu0
      %v9217 = vadd.f32 %v9100, %v9216
      %v9218 = vpop.f32.mrb[0].mxu0
      %v9219 = vpop.f32.mrb[0].mxu0
      %v9220 = vadd.f32 %v9100, %v9219
      %v9221 = vpop.f32.mrb[0].mxu0
      %9222 = vmatprep.mubr.bf16.mxu0 0
      %9223 = vmatmul.mubr.bf16.gmra.mrb[0].mxu0 %v8868
      %v9224 = vpop.f32.mrb[0].mxu0
      %v9225 = vadd.f32 %v9100, %v9224
      %v9226 = vpop.f32.mrb[0].mxu0
      %v9227 = vpop.f32.mrb[0].mxu0
      %v9228 = vadd.f32 %v9100, %v9227
      %v9229 = vpop.f32.mrb[0].mxu0
      %9230 = vmatprep.mubr.bf16.mxu0 0
      %9231 = vmatmul.mubr.bf16.gmra.mrb[0].mxu0 %v8869
      %v9232 = vpop.f32.mrb[0].mxu0
      %v9233 = vadd.f32 %v9100, %v9232
      %v9234 = vpop.f32.mrb[0].mxu0
      %v9235 = vpop.f32.mrb[0].mxu0
      %v9236 = vadd.f32 %v9100, %v9235
      %v9237 = vpop.f32.mrb[0].mxu0
      %9238 = vmatprep.mubr.bf16.mxu0 0
      %9239 = vmatmul.mubr.bf16.gmra.mrb[0].mxu0 %v8870
      %v9240 = vpop.f32.mrb[0].mxu0
      %v9241 = vadd.f32 %v9100, %v9240
      %v9242 = vpop.f32.mrb[0].mxu0
      %v9243 = vpop.f32.mrb[0].mxu0
      %v9244 = vadd.f32 %v9100, %v9243
      %v9245 = vpop.f32.mrb[0].mxu0
      %9246 = vdwg.mxu0
      %v9247 = vmax.f32 %v9185, 0.0
      %v9248 = vmax.f32 %v9188, 0.0
      %v9249 = vmax.f32 %v9193, 0.0
      %v9250 = vmax.f32 %v9196, 0.0
      %v9251 = vmax.f32 %v9201, 0.0
      %v9252 = vmax.f32 %v9204, 0.0
      %v9253 = vmax.f32 %v9209, 0.0
      %v9254 = vmax.f32 %v9212, 0.0
      %v9255 = vmax.f32 %v9217, 0.0
      %v9256 = vmax.f32 %v9220, 0.0
      %v9257 = vmax.f32 %v9225, 0.0
      %v9258 = vmax.f32 %v9228, 0.0
      %v9259 = vmax.f32 %v9233, 0.0
      %v9260 = vmax.f32 %v9236, 0.0
      %v9261 = vmax.f32 %v9241, 0.0
      %v9262 = vmax.f32 %v9244, 0.0
      %v9263 = vpack.c.bf16 %v9248, %v9247
      %v9264 = vpack.c.bf16 %v9250, %v9249
      %v9265 = vpack.c.bf16 %v9252, %v9251
      %v9266 = vpack.c.bf16 %v9254, %v9253
      %v9267 = vpack.c.bf16 %v9256, %v9255
      %v9268 = vpack.c.bf16 %v9258, %v9257
      %v9269 = vpack.c.bf16 %v9260, %v9259
      %v9270 = vpack.c.bf16 %v9262, %v9261
      %v9271 = vld [vmem:[%s8 + $0x40] sm:$0xf]
      %v9272 = vld [vmem:[%s8 + $0x44] sm:$0xf]
      %v9273 = vld [vmem:[%s8 + $0x48] sm:$0xf]
      %v9274 = vld [vmem:[%s8 + $0x4c] sm:$0xf]
      %v9275 = vld [vmem:[%s8 + $0x50] sm:$0xf]
      %v9276 = vld [vmem:[%s8 + $0x54] sm:$0xf]
      %v9277 = vld [vmem:[%s8 + $0x58] sm:$0xf]
      %v9278 = vld [vmem:[%s8 + $0x5c] sm:$0xf]
      %v9279 = vld [vmem:[%s8 + $0x60] sm:$0xf]
      %v9280 = vld [vmem:[%s8 + $0x64] sm:$0xf]
      %v9281 = vld [vmem:[%s8 + $0x68] sm:$0xf]
      %v9282 = vld [vmem:[%s8 + $0x6c] sm:$0xf]
      %v9283 = vld [vmem:[%s8 + $0x70] sm:$0xf]
      %v9284 = vld [vmem:[%s8 + $0x74] sm:$0xf]
      %v9285 = vld [vmem:[%s8 + $0x78] sm:$0xf]
      %v9286 = vld [vmem:[%s8 + $0x7c] sm:$0xf]
      %v9303 = vunpack.c.l.b16 %v9271
      %v9304 = vunpack.c.l.b16 %v9272
      %v9305 = vunpack.c.l.b16 %v9273
      %v9306 = vunpack.c.l.b16 %v9274
      %v9307 = vunpack.c.l.b16 %v9275
      %v9308 = vunpack.c.l.b16 %v9276
      %v9309 = vunpack.c.l.b16 %v9277
      %v9310 = vunpack.c.l.b16 %v9278
      %v9311 = vunpack.c.l.b16 %v9279
      %v9312 = vunpack.c.l.b16 %v9280
      %v9313 = vunpack.c.l.b16 %v9281
      %v9314 = vunpack.c.l.b16 %v9282
      %v9315 = vunpack.c.l.b16 %v9283
      %v9316 = vunpack.c.l.b16 %v9284
      %v9317 = vunpack.c.l.b16 %v9285
      %v9318 = vunpack.c.l.b16 %v9286
      %v9319 = vpack.c.b16 %v9304, %v9303
      %v9320 = vpack.c.b16 %v9306, %v9305
      %v9321 = vpack.c.b16 %v9308, %v9307
      %v9322 = vpack.c.b16 %v9310, %v9309
      %v9323 = vpack.c.b16 %v9312, %v9311
      %v9324 = vpack.c.b16 %v9314, %v9313
      %v9325 = vpack.c.b16 %v9316, %v9315
      %v9326 = vpack.c.b16 %v9318, %v9317
      %9335 = vmatprep.subr.bf16.mxu0 0
      %9336 = vmatpush1.bf16.msra.mxu0 %v9319
      %9337 = vmatprep.subr.bf16.mxu0 0
      %9338 = vmatpush1.bf16.msra.mxu0 %v9320
      %9339 = vmatprep.subr.bf16.mxu0 0
      %9340 = vmatpush1.bf16.msra.mxu0 %v9321
      %9341 = vmatprep.subr.bf16.mxu0 0
      %9342 = vmatpush1.bf16.msra.mxu0 %v9322
      %9343 = vmatprep.subr.bf16.mxu0 0
      %9344 = vmatpush1.bf16.msra.mxu0 %v9323
      %9345 = vmatprep.subr.bf16.mxu0 0
      %9346 = vmatpush1.bf16.msra.mxu0 %v9324
      %9347 = vmatprep.subr.bf16.mxu0 0
      %9348 = vmatpush1.bf16.msra.mxu0 %v9325
      %9349 = vmatprep.subr.bf16.mxu0 0
      %9350 = vmatpush1.bf16.msra.mxu0 %v9326
      %9351 = vmatprep.subr.bf16.mxu0 0
      %9352 = vmatpush1.bf16.msra.mxu0 0
      %9353 = vmatprep.subr.bf16.mxu0 0
      %9354 = vmatpush1.bf16.msra.mxu0 0
      %9355 = vmatprep.subr.bf16.mxu0 0
      %9356 = vmatpush1.bf16.msra.mxu0 0
      %9357 = vmatprep.subr.bf16.mxu0 0
      %9358 = vmatpush1.bf16.msra.mxu0 0
      %9359 = vmatprep.subr.bf16.mxu0 0
      %9360 = vmatpush1.bf16.msra.mxu0 0
      %9361 = vmatprep.subr.bf16.mxu0 0
      %9362 = vmatpush1.bf16.msra.mxu0 0
      %9363 = vmatprep.subr.bf16.mxu0 0
      %9364 = vmatpush1.bf16.msra.mxu0 0
      %9365 = vmatprep.subr.bf16.mxu0 0
      %9366 = vmatpush1.bf16.msra.mxu0 0
      %9367 = vmatprep.mubr.bf16.mxu0 0
      %9368 = vmatmul.mubr.bf16.gmra.mrb[0].mxu0 %v9263
      %v9369 = vpop.f32.mrb[0].mxu0
      %v9370 = vadd.f32 0.0, %v9369
      %v9371 = vpop.f32.mrb[0].mxu0
      %v9372 = vpop.f32.mrb[0].mxu0
      %v9373 = vadd.f32 0.0, %v9372
      %v9374 = vpop.f32.mrb[0].mxu0
      %9375 = vmatprep.mubr.bf16.mxu0 0
      %9376 = vmatmul.mubr.bf16.gmra.mrb[0].mxu0 %v9264
      %v9377 = vpop.f32.mrb[0].mxu0
      %v9378 = vadd.f32 0.0, %v9377
      %v9379 = vpop.f32.mrb[0].mxu0
      %v9380 = vpop.f32.mrb[0].mxu0
      %v9381 = vadd.f32 0.0, %v9380
      %v9382 = vpop.f32.mrb[0].mxu0
      %9383 = vmatprep.mubr.bf16.mxu0 0
      %9384 = vmatmul.mubr.bf16.gmra.mrb[0].mxu0 %v9265
      %v9385 = vpop.f32.mrb[0].mxu0
      %v9386 = vadd.f32 0.0, %v9385
      %v9387 = vpop.f32.mrb[0].mxu0
      %v9388 = vpop.f32.mrb[0].mxu0
      %v9389 = vadd.f32 0.0, %v9388
      %v9390 = vpop.f32.mrb[0].mxu0
      %9391 = vmatprep.mubr.bf16.mxu0 0
      %9392 = vmatmul.mubr.bf16.gmra.mrb[0].mxu0 %v9266
      %v9393 = vpop.f32.mrb[0].mxu0
      %v9394 = vadd.f32 0.0, %v9393
      %v9395 = vpop.f32.mrb[0].mxu0
      %v9396 = vpop.f32.mrb[0].mxu0
      %v9397 = vadd.f32 0.0, %v9396
      %v9398 = vpop.f32.mrb[0].mxu0
      %9399 = vmatprep.mubr.bf16.mxu0 0
      %9400 = vmatmul.mubr.bf16.gmra.mrb[0].mxu0 %v9267
      %v9401 = vpop.f32.mrb[0].mxu0
      %v9402 = vadd.f32 0.0, %v9401
      %v9403 = vpop.f32.mrb[0].mxu0
      %v9404 = vpop.f32.mrb[0].mxu0
      %v9405 = vadd.f32 0.0, %v9404
      %v9406 = vpop.f32.mrb[0].mxu0
      %9407 = vmatprep.mubr.bf16.mxu0 0
      %9408 = vmatmul.mubr.bf16.gmra.mrb[0].mxu0 %v9268
      %v9409 = vpop.f32.mrb[0].mxu0
      %v9410 = vadd.f32 0.0, %v9409
      %v9411 = vpop.f32.mrb[0].mxu0
      %v9412 = vpop.f32.mrb[0].mxu0
      %v9413 = vadd.f32 0.0, %v9412
      %v9414 = vpop.f32.mrb[0].mxu0
      %9415 = vmatprep.mubr.bf16.mxu0 0
      %9416 = vmatmul.mubr.bf16.gmra.mrb[0].mxu0 %v9269
      %v9417 = vpop.f32.mrb[0].mxu0
      %v9418 = vadd.f32 0.0, %v9417
      %v9419 = vpop.f32.mrb[0].mxu0
      %v9420 = vpop.f32.mrb[0].mxu0
      %v9421 = vadd.f32 0.0, %v9420
      %v9422 = vpop.f32.mrb[0].mxu0
      %9423 = vmatprep.mubr.bf16.mxu0 0
      %9424 = vmatmul.mubr.bf16.gmra.mrb[0].mxu0 %v9270
      %v9425 = vpop.f32.mrb[0].mxu0
      %v9426 = vadd.f32 0.0, %v9425
      %v9427 = vpop.f32.mrb[0].mxu0
      %v9428 = vpop.f32.mrb[0].mxu0
      %v9429 = vadd.f32 0.0, %v9428
      %v9430 = vpop.f32.mrb[0].mxu0
      %9431 = vdwg.mxu0
      %v9448 = vunpack.c.l.b16 %v9063
      %v9449 = vunpack.c.l.b16 %v9064
      %v9450 = vunpack.c.l.b16 %v9065
      %v9451 = vunpack.c.l.b16 %v9066
      %v9452 = vunpack.c.l.b16 %v9067
      %v9453 = vunpack.c.l.b16 %v9068
      %v9454 = vunpack.c.l.b16 %v9069
      %v9455 = vunpack.c.l.b16 %v9070
      %v9456 = vunpack.c.l.b16 %v9071
      %v9457 = vunpack.c.l.b16 %v9072
      %v9458 = vunpack.c.l.b16 %v9073
      %v9459 = vunpack.c.l.b16 %v9074
      %v9460 = vunpack.c.l.b16 %v9075
      %v9461 = vunpack.c.l.b16 %v9076
      %v9462 = vunpack.c.l.b16 %v9077
      %v9463 = vunpack.c.l.b16 %v9078
      %v9464 = vpack.c.b16 %v9449, %v9448
      %v9465 = vpack.c.b16 %v9451, %v9450
      %v9466 = vpack.c.b16 %v9453, %v9452
      %v9467 = vpack.c.b16 %v9455, %v9454
      %v9468 = vpack.c.b16 %v9457, %v9456
      %v9469 = vpack.c.b16 %v9459, %v9458
      %v9470 = vpack.c.b16 %v9461, %v9460
      %v9471 = vpack.c.b16 %v9463, %v9462
      %9480 = vmatprep.subr.bf16.mxu0 0
      %9481 = vmatpush1.bf16.msra.mxu0 %v9464
      %9482 = vmatprep.subr.bf16.mxu0 0
      %9483 = vmatpush1.bf16.msra.mxu0 %v9465
      %9484 = vmatprep.subr.bf16.mxu0 0
      %9485 = vmatpush1.bf16.msra.mxu0 %v9466
      %9486 = vmatprep.subr.bf16.mxu0 0
      %9487 = vmatpush1.bf16.msra.mxu0 %v9467
      %9488 = vmatprep.subr.bf16.mxu0 0
      %9489 = vmatpush1.bf16.msra.mxu0 %v9468
      %9490 = vmatprep.subr.bf16.mxu0 0
      %9491 = vmatpush1.bf16.msra.mxu0 %v9469
      %9492 = vmatprep.subr.bf16.mxu0 0
      %9493 = vmatpush1.bf16.msra.mxu0 %v9470
      %9494 = vmatprep.subr.bf16.mxu0 0
      %9495 = vmatpush1.bf16.msra.mxu0 %v9471
      %9496 = vmatprep.subr.bf16.mxu0 0
      %9497 = vmatpush1.bf16.msra.mxu0 0
      %9498 = vmatprep.subr.bf16.mxu0 0
      %9499 = vmatpush1.bf16.msra.mxu0 0
      %9500 = vmatprep.subr.bf16.mxu0 0
      %9501 = vmatpush1.bf16.msra.mxu0 0
      %9502 = vmatprep.subr.bf16.mxu0 0
      %9503 = vmatpush1.bf16.msra.mxu0 0
      %9504 = vmatprep.subr.bf16.mxu0 0
      %9505 = vmatpush1.bf16.msra.mxu0 0
      %9506 = vmatprep.subr.bf16.mxu0 0
      %9507 = vmatpush1.bf16.msra.mxu0 0
      %9508 = vmatprep.subr.bf16.mxu0 0
      %9509 = vmatpush1.bf16.msra.mxu0 0
      %9510 = vmatprep.subr.bf16.mxu0 0
      %9511 = vmatpush1.bf16.msra.mxu0 0
      %9512 = vmatprep.mubr.bf16.mxu0 0
      %9513 = vmatmul.mubr.bf16.gmra.mrb[0].mxu0 %v9055
      %v9514 = vpop.f32.mrb[0].mxu0
      %v9515 = vadd.f32 %v9370, %v9514
      %v9516 = vpop.f32.mrb[0].mxu0
      %v9517 = vpop.f32.mrb[0].mxu0
      %v9518 = vadd.f32 %v9373, %v9517
      %v9519 = vpop.f32.mrb[0].mxu0
      %9520 = vmatprep.mubr.bf16.mxu0 0
      %9521 = vmatmul.mubr.bf16.gmra.mrb[0].mxu0 %v9056
      %v9522 = vpop.f32.mrb[0].mxu0
      %v9523 = vadd.f32 %v9378, %v9522
      %v9524 = vpop.f32.mrb[0].mxu0
      %v9525 = vpop.f32.mrb[0].mxu0
      %v9526 = vadd.f32 %v9381, %v9525
      %v9527 = vpop.f32.mrb[0].mxu0
      %9528 = vmatprep.mubr.bf16.mxu0 0
      %9529 = vmatmul.mubr.bf16.gmra.mrb[0].mxu0 %v9057
      %v9530 = vpop.f32.mrb[0].mxu0
      %v9531 = vadd.f32 %v9386, %v9530
      %v9532 = vpop.f32.mrb[0].mxu0
      %v9533 = vpop.f32.mrb[0].mxu0
      %v9534 = vadd.f32 %v9389, %v9533
      %v9535 = vpop.f32.mrb[0].mxu0
      %9536 = vmatprep.mubr.bf16.mxu0 0
      %9537 = vmatmul.mubr.bf16.gmra.mrb[0].mxu0 %v9058
      %v9538 = vpop.f32.mrb[0].mxu0
      %v9539 = vadd.f32 %v9394, %v9538
      %v9540 = vpop.f32.mrb[0].mxu0
      %v9541 = vpop.f32.mrb[0].mxu0
      %v9542 = vadd.f32 %v9397, %v9541
      %v9543 = vpop.f32.mrb[0].mxu0
      %9544 = vmatprep.mubr.bf16.mxu0 0
      %9545 = vmatmul.mubr.bf16.gmra.mrb[0].mxu0 %v9059
      %v9546 = vpop.f32.mrb[0].mxu0
      %v9547 = vadd.f32 %v9402, %v9546
      %v9548 = vpop.f32.mrb[0].mxu0
      %v9549 = vpop.f32.mrb[0].mxu0
      %v9550 = vadd.f32 %v9405, %v9549
      %v9551 = vpop.f32.mrb[0].mxu0
      %9552 = vmatprep.mubr.bf16.mxu0 0
      %9553 = vmatmul.mubr.bf16.gmra.mrb[0].mxu0 %v9060
      %v9554 = vpop.f32.mrb[0].mxu0
      %v9555 = vadd.f32 %v9410, %v9554
      %v9556 = vpop.f32.mrb[0].mxu0
      %v9557 = vpop.f32.mrb[0].mxu0
      %v9558 = vadd.f32 %v9413, %v9557
      %v9559 = vpop.f32.mrb[0].mxu0
      %9560 = vmatprep.mubr.bf16.mxu0 0
      %9561 = vmatmul.mubr.bf16.gmra.mrb[0].mxu0 %v9061
      %v9562 = vpop.f32.mrb[0].mxu0
      %v9563 = vadd.f32 %v9418, %v9562
      %v9564 = vpop.f32.mrb[0].mxu0
      %v9565 = vpop.f32.mrb[0].mxu0
      %v9566 = vadd.f32 %v9421, %v9565
      %v9567 = vpop.f32.mrb[0].mxu0
      %9568 = vmatprep.mubr.bf16.mxu0 0
      %9569 = vmatmul.mubr.bf16.gmra.mrb[0].mxu0 %v9062
      %v9570 = vpop.f32.mrb[0].mxu0
      %v9571 = vadd.f32 %v9426, %v9570
      %v9572 = vpop.f32.mrb[0].mxu0
      %v9573 = vpop.f32.mrb[0].mxu0
      %v9574 = vadd.f32 %v9429, %v9573
      %v9575 = vpop.f32.mrb[0].mxu0
      %9576 = vdwg.mxu0
      %v9577 = vld [vmem:[%s6 + $0x8] sm:$0xf]
      %v9578 = vld [vmem:[%s6 + $0x18] sm:$0xf]
      %v9579 = vld [vmem:[%s6 + $0x28] sm:$0xf]
      %v9580 = vld [vmem:[%s6 + $0x38] sm:$0xf]
      %v9581 = vld [vmem:[%s6 + $0x48] sm:$0xf]
      %v9582 = vld [vmem:[%s6 + $0x58] sm:$0xf]
      %v9583 = vld [vmem:[%s6 + $0x68] sm:$0xf]
      %v9584 = vld [vmem:[%s6 + $0x78] sm:$0xf]
      %v9585 = vld [vmem:[%s6 + $0x88] sm:$0xf]
      %v9586 = vld [vmem:[%s6 + $0x98] sm:$0xf]
      %v9587 = vld [vmem:[%s6 + $0xa8] sm:$0xf]
      %v9588 = vld [vmem:[%s6 + $0xb8] sm:$0xf]
      %v9589 = vld [vmem:[%s6 + $0xc8] sm:$0xf]
      %v9590 = vld [vmem:[%s6 + $0xd8] sm:$0xf]
      %v9591 = vld [vmem:[%s6 + $0xe8] sm:$0xf]
      %v9592 = vld [vmem:[%s6 + $0xf8] sm:$0xf]
      %v9593 = vld [vmem:[%s7 + $0x2] sm:$0x1]
      %v9595 = vlaneseq
      %v9596 = vshrl.u32 %v9595, 7
      %v9597 = vsub.s32 0, %v9596
      %v9598 = vrot.slane %v9593, %v9597
      %v9616 = vunpack.c.l.b16 %v9577
      %v9617 = vunpack.c.l.b16 %v9578
      %v9618 = vunpack.c.l.b16 %v9579
      %v9619 = vunpack.c.l.b16 %v9580
      %v9620 = vunpack.c.l.b16 %v9581
      %v9621 = vunpack.c.l.b16 %v9582
      %v9622 = vunpack.c.l.b16 %v9583
      %v9623 = vunpack.c.l.b16 %v9584
      %v9624 = vunpack.c.l.b16 %v9585
      %v9625 = vunpack.c.l.b16 %v9586
      %v9626 = vunpack.c.l.b16 %v9587
      %v9627 = vunpack.c.l.b16 %v9588
      %v9628 = vunpack.c.l.b16 %v9589
      %v9629 = vunpack.c.l.b16 %v9590
      %v9630 = vunpack.c.l.b16 %v9591
      %v9631 = vunpack.c.l.b16 %v9592
      %v9632 = vpack.c.b16 %v9617, %v9616
      %v9633 = vpack.c.b16 %v9619, %v9618
      %v9634 = vpack.c.b16 %v9621, %v9620
      %v9635 = vpack.c.b16 %v9623, %v9622
      %v9636 = vpack.c.b16 %v9625, %v9624
      %v9637 = vpack.c.b16 %v9627, %v9626
      %v9638 = vpack.c.b16 %v9629, %v9628
      %v9639 = vpack.c.b16 %v9631, %v9630
      %9648 = vmatprep.subr.bf16.mxu0 0
      %9649 = vmatpush1.bf16.msra.mxu0 %v9632
      %9650 = vmatprep.subr.bf16.mxu0 0
      %9651 = vmatpush1.bf16.msra.mxu0 %v9633
      %9652 = vmatprep.subr.bf16.mxu0 0
      %9653 = vmatpush1.bf16.msra.mxu0 %v9634
      %9654 = vmatprep.subr.bf16.mxu0 0
      %9655 = vmatpush1.bf16.msra.mxu0 %v9635
      %9656 = vmatprep.subr.bf16.mxu0 0
      %9657 = vmatpush1.bf16.msra.mxu0 %v9636
      %9658 = vmatprep.subr.bf16.mxu0 0
      %9659 = vmatpush1.bf16.msra.mxu0 %v9637
      %9660 = vmatprep.subr.bf16.mxu0 0
      %9661 = vmatpush1.bf16.msra.mxu0 %v9638
      %9662 = vmatprep.subr.bf16.mxu0 0
      %9663 = vmatpush1.bf16.msra.mxu0 %v9639
      %9664 = vmatprep.subr.bf16.mxu0 0
      %9665 = vmatpush1.bf16.msra.mxu0 0
      %9666 = vmatprep.subr.bf16.mxu0 0
      %9667 = vmatpush1.bf16.msra.mxu0 0
      %9668 = vmatprep.subr.bf16.mxu0 0
      %9669 = vmatpush1.bf16.msra.mxu0 0
      %9670 = vmatprep.subr.bf16.mxu0 0
      %9671 = vmatpush1.bf16.msra.mxu0 0
      %9672 = vmatprep.subr.bf16.mxu0 0
      %9673 = vmatpush1.bf16.msra.mxu0 0
      %9674 = vmatprep.subr.bf16.mxu0 0
      %9675 = vmatpush1.bf16.msra.mxu0 0
      %9676 = vmatprep.subr.bf16.mxu0 0
      %9677 = vmatpush1.bf16.msra.mxu0 0
      %9678 = vmatprep.subr.bf16.mxu0 0
      %9679 = vmatpush1.bf16.msra.mxu0 0
      %9680 = vmatprep.mubr.bf16.mxu0 0
      %9681 = vmatmul.mubr.bf16.gmra.mrb[0].mxu0 %v8863
      %v9682 = vpop.f32.mrb[0].mxu0
      %v9683 = vadd.f32 %v9598, %v9682
      %v9684 = vpop.f32.mrb[0].mxu0
      %v9685 = vpop.f32.mrb[0].mxu0
      %v9686 = vadd.f32 %v9598, %v9685
      %v9687 = vpop.f32.mrb[0].mxu0
      %9688 = vmatprep.mubr.bf16.mxu0 0
      %9689 = vmatmul.mubr.bf16.gmra.mrb[0].mxu0 %v8864
      %v9690 = vpop.f32.mrb[0].mxu0
      %v9691 = vadd.f32 %v9598, %v9690
      %v9692 = vpop.f32.mrb[0].mxu0
      %v9693 = vpop.f32.mrb[0].mxu0
      %v9694 = vadd.f32 %v9598, %v9693
      %v9695 = vpop.f32.mrb[0].mxu0
      %9696 = vmatprep.mubr.bf16.mxu0 0
      %9697 = vmatmul.mubr.bf16.gmra.mrb[0].mxu0 %v8865
      %v9698 = vpop.f32.mrb[0].mxu0
      %v9699 = vadd.f32 %v9598, %v9698
      %v9700 = vpop.f32.mrb[0].mxu0
      %v9701 = vpop.f32.mrb[0].mxu0
      %v9702 = vadd.f32 %v9598, %v9701
      %v9703 = vpop.f32.mrb[0].mxu0
      %9704 = vmatprep.mubr.bf16.mxu0 0
      %9705 = vmatmul.mubr.bf16.gmra.mrb[0].mxu0 %v8866
      %v9706 = vpop.f32.mrb[0].mxu0
      %v9707 = vadd.f32 %v9598, %v9706
      %v9708 = vpop.f32.mrb[0].mxu0
      %v9709 = vpop.f32.mrb[0].mxu0
      %v9710 = vadd.f32 %v9598, %v9709
      %v9711 = vpop.f32.mrb[0].mxu0
      %9712 = vmatprep.mubr.bf16.mxu0 0
      %9713 = vmatmul.mubr.bf16.gmra.mrb[0].mxu0 %v8867
      %v9714 = vpop.f32.mrb[0].mxu0
      %v9715 = vadd.f32 %v9598, %v9714
      %v9716 = vpop.f32.mrb[0].mxu0
      %v9717 = vpop.f32.mrb[0].mxu0
      %v9718 = vadd.f32 %v9598, %v9717
      %v9719 = vpop.f32.mrb[0].mxu0
      %9720 = vmatprep.mubr.bf16.mxu0 0
      %9721 = vmatmul.mubr.bf16.gmra.mrb[0].mxu0 %v8868
      %v9722 = vpop.f32.mrb[0].mxu0
      %v9723 = vadd.f32 %v9598, %v9722
      %v9724 = vpop.f32.mrb[0].mxu0
      %v9725 = vpop.f32.mrb[0].mxu0
      %v9726 = vadd.f32 %v9598, %v9725
      %v9727 = vpop.f32.mrb[0].mxu0
      %9728 = vmatprep.mubr.bf16.mxu0 0
      %9729 = vmatmul.mubr.bf16.gmra.mrb[0].mxu0 %v8869
      %v9730 = vpop.f32.mrb[0].mxu0
      %v9731 = vadd.f32 %v9598, %v9730
      %v9732 = vpop.f32.mrb[0].mxu0
      %v9733 = vpop.f32.mrb[0].mxu0
      %v9734 = vadd.f32 %v9598, %v9733
      %v9735 = vpop.f32.mrb[0].mxu0
      %9736 = vmatprep.mubr.bf16.mxu0 0
      %9737 = vmatmul.mubr.bf16.gmra.mrb[0].mxu0 %v8870
      %v9738 = vpop.f32.mrb[0].mxu0
      %v9739 = vadd.f32 %v9598, %v9738
      %v9740 = vpop.f32.mrb[0].mxu0
      %v9741 = vpop.f32.mrb[0].mxu0
      %v9742 = vadd.f32 %v9598, %v9741
      %v9743 = vpop.f32.mrb[0].mxu0
      %9744 = vdwg.mxu0
      %v9745 = vmax.f32 %v9683, 0.0
      %v9746 = vmax.f32 %v9686, 0.0
      %v9747 = vmax.f32 %v9691, 0.0
      %v9748 = vmax.f32 %v9694, 0.0
      %v9749 = vmax.f32 %v9699, 0.0
      %v9750 = vmax.f32 %v9702, 0.0
      %v9751 = vmax.f32 %v9707, 0.0
      %v9752 = vmax.f32 %v9710, 0.0
      %v9753 = vmax.f32 %v9715, 0.0
      %v9754 = vmax.f32 %v9718, 0.0
      %v9755 = vmax.f32 %v9723, 0.0
      %v9756 = vmax.f32 %v9726, 0.0
      %v9757 = vmax.f32 %v9731, 0.0
      %v9758 = vmax.f32 %v9734, 0.0
      %v9759 = vmax.f32 %v9739, 0.0
      %v9760 = vmax.f32 %v9742, 0.0
      %v9761 = vpack.c.bf16 %v9746, %v9745
      %v9762 = vpack.c.bf16 %v9748, %v9747
      %v9763 = vpack.c.bf16 %v9750, %v9749
      %v9764 = vpack.c.bf16 %v9752, %v9751
      %v9765 = vpack.c.bf16 %v9754, %v9753
      %v9766 = vpack.c.bf16 %v9756, %v9755
      %v9767 = vpack.c.bf16 %v9758, %v9757
      %v9768 = vpack.c.bf16 %v9760, %v9759
      %v9769 = vld [vmem:[%s8 + $0x80] sm:$0xf]
      %v9770 = vld [vmem:[%s8 + $0x84] sm:$0xf]
      %v9771 = vld [vmem:[%s8 + $0x88] sm:$0xf]
      %v9772 = vld [vmem:[%s8 + $0x8c] sm:$0xf]
      %v9773 = vld [vmem:[%s8 + $0x90] sm:$0xf]
      %v9774 = vld [vmem:[%s8 + $0x94] sm:$0xf]
      %v9775 = vld [vmem:[%s8 + $0x98] sm:$0xf]
      %v9776 = vld [vmem:[%s8 + $0x9c] sm:$0xf]
      %v9777 = vld [vmem:[%s8 + $0xa0] sm:$0xf]
      %v9778 = vld [vmem:[%s8 + $0xa4] sm:$0xf]
      %v9779 = vld [vmem:[%s8 + $0xa8] sm:$0xf]
      %v9780 = vld [vmem:[%s8 + $0xac] sm:$0xf]
      %v9781 = vld [vmem:[%s8 + $0xb0] sm:$0xf]
      %v9782 = vld [vmem:[%s8 + $0xb4] sm:$0xf]
      %v9783 = vld [vmem:[%s8 + $0xb8] sm:$0xf]
      %v9784 = vld [vmem:[%s8 + $0xbc] sm:$0xf]
      %v9801 = vunpack.c.l.b16 %v9769
      %v9802 = vunpack.c.l.b16 %v9770
      %v9803 = vunpack.c.l.b16 %v9771
      %v9804 = vunpack.c.l.b16 %v9772
      %v9805 = vunpack.c.l.b16 %v9773
      %v9806 = vunpack.c.l.b16 %v9774
      %v9807 = vunpack.c.l.b16 %v9775
      %v9808 = vunpack.c.l.b16 %v9776
      %v9809 = vunpack.c.l.b16 %v9777
      %v9810 = vunpack.c.l.b16 %v9778
      %v9811 = vunpack.c.l.b16 %v9779
      %v9812 = vunpack.c.l.b16 %v9780
      %v9813 = vunpack.c.l.b16 %v9781
      %v9814 = vunpack.c.l.b16 %v9782
      %v9815 = vunpack.c.l.b16 %v9783
      %v9816 = vunpack.c.l.b16 %v9784
      %v9817 = vpack.c.b16 %v9802, %v9801
      %v9818 = vpack.c.b16 %v9804, %v9803
      %v9819 = vpack.c.b16 %v9806, %v9805
      %v9820 = vpack.c.b16 %v9808, %v9807
      %v9821 = vpack.c.b16 %v9810, %v9809
      %v9822 = vpack.c.b16 %v9812, %v9811
      %v9823 = vpack.c.b16 %v9814, %v9813
      %v9824 = vpack.c.b16 %v9816, %v9815
      %9833 = vmatprep.subr.bf16.mxu0 0
      %9834 = vmatpush1.bf16.msra.mxu0 %v9817
      %9835 = vmatprep.subr.bf16.mxu0 0
      %9836 = vmatpush1.bf16.msra.mxu0 %v9818
      %9837 = vmatprep.subr.bf16.mxu0 0
      %9838 = vmatpush1.bf16.msra.mxu0 %v9819
      %9839 = vmatprep.subr.bf16.mxu0 0
      %9840 = vmatpush1.bf16.msra.mxu0 %v9820
      %9841 = vmatprep.subr.bf16.mxu0 0
      %9842 = vmatpush1.bf16.msra.mxu0 %v9821
      %9843 = vmatprep.subr.bf16.mxu0 0
      %9844 = vmatpush1.bf16.msra.mxu0 %v9822
      %9845 = vmatprep.subr.bf16.mxu0 0
      %9846 = vmatpush1.bf16.msra.mxu0 %v9823
      %9847 = vmatprep.subr.bf16.mxu0 0
      %9848 = vmatpush1.bf16.msra.mxu0 %v9824
      %9849 = vmatprep.subr.bf16.mxu0 0
      %9850 = vmatpush1.bf16.msra.mxu0 0
      %9851 = vmatprep.subr.bf16.mxu0 0
      %9852 = vmatpush1.bf16.msra.mxu0 0
      %9853 = vmatprep.subr.bf16.mxu0 0
      %9854 = vmatpush1.bf16.msra.mxu0 0
      %9855 = vmatprep.subr.bf16.mxu0 0
      %9856 = vmatpush1.bf16.msra.mxu0 0
      %9857 = vmatprep.subr.bf16.mxu0 0
      %9858 = vmatpush1.bf16.msra.mxu0 0
      %9859 = vmatprep.subr.bf16.mxu0 0
      %9860 = vmatpush1.bf16.msra.mxu0 0
      %9861 = vmatprep.subr.bf16.mxu0 0
      %9862 = vmatpush1.bf16.msra.mxu0 0
      %9863 = vmatprep.subr.bf16.mxu0 0
      %9864 = vmatpush1.bf16.msra.mxu0 0
      %9865 = vmatprep.mubr.bf16.mxu0 0
      %9866 = vmatmul.mubr.bf16.gmra.mrb[0].mxu0 %v9761
      %v9867 = vpop.f32.mrb[0].mxu0
      %v9868 = vadd.f32 0.0, %v9867
      %v9869 = vpop.f32.mrb[0].mxu0
      %v9870 = vpop.f32.mrb[0].mxu0
      %v9871 = vadd.f32 0.0, %v9870
      %v9872 = vpop.f32.mrb[0].mxu0
      %9873 = vmatprep.mubr.bf16.mxu0 0
      %9874 = vmatmul.mubr.bf16.gmra.mrb[0].mxu0 %v9762
      %v9875 = vpop.f32.mrb[0].mxu0
      %v9876 = vadd.f32 0.0, %v9875
      %v9877 = vpop.f32.mrb[0].mxu0
      %v9878 = vpop.f32.mrb[0].mxu0
      %v9879 = vadd.f32 0.0, %v9878
      %v9880 = vpop.f32.mrb[0].mxu0
      %9881 = vmatprep.mubr.bf16.mxu0 0
      %9882 = vmatmul.mubr.bf16.gmra.mrb[0].mxu0 %v9763
      %v9883 = vpop.f32.mrb[0].mxu0
      %v9884 = vadd.f32 0.0, %v9883
      %v9885 = vpop.f32.mrb[0].mxu0
      %v9886 = vpop.f32.mrb[0].mxu0
      %v9887 = vadd.f32 0.0, %v9886
      %v9888 = vpop.f32.mrb[0].mxu0
      %9889 = vmatprep.mubr.bf16.mxu0 0
      %9890 = vmatmul.mubr.bf16.gmra.mrb[0].mxu0 %v9764
      %v9891 = vpop.f32.mrb[0].mxu0
      %v9892 = vadd.f32 0.0, %v9891
      %v9893 = vpop.f32.mrb[0].mxu0
      %v9894 = vpop.f32.mrb[0].mxu0
      %v9895 = vadd.f32 0.0, %v9894
      %v9896 = vpop.f32.mrb[0].mxu0
      %9897 = vmatprep.mubr.bf16.mxu0 0
      %9898 = vmatmul.mubr.bf16.gmra.mrb[0].mxu0 %v9765
      %v9899 = vpop.f32.mrb[0].mxu0
      %v9900 = vadd.f32 0.0, %v9899
      %v9901 = vpop.f32.mrb[0].mxu0
      %v9902 = vpop.f32.mrb[0].mxu0
      %v9903 = vadd.f32 0.0, %v9902
      %v9904 = vpop.f32.mrb[0].mxu0
      %9905 = vmatprep.mubr.bf16.mxu0 0
      %9906 = vmatmul.mubr.bf16.gmra.mrb[0].mxu0 %v9766
      %v9907 = vpop.f32.mrb[0].mxu0
      %v9908 = vadd.f32 0.0, %v9907
      %v9909 = vpop.f32.mrb[0].mxu0
      %v9910 = vpop.f32.mrb[0].mxu0
      %v9911 = vadd.f32 0.0, %v9910
      %v9912 = vpop.f32.mrb[0].mxu0
      %9913 = vmatprep.mubr.bf16.mxu0 0
      %9914 = vmatmul.mubr.bf16.gmra.mrb[0].mxu0 %v9767
      %v9915 = vpop.f32.mrb[0].mxu0
      %v9916 = vadd.f32 0.0, %v9915
      %v9917 = vpop.f32.mrb[0].mxu0
      %v9918 = vpop.f32.mrb[0].mxu0
      %v9919 = vadd.f32 0.0, %v9918
      %v9920 = vpop.f32.mrb[0].mxu0
      %9921 = vmatprep.mubr.bf16.mxu0 0
      %9922 = vmatmul.mubr.bf16.gmra.mrb[0].mxu0 %v9768
      %v9923 = vpop.f32.mrb[0].mxu0
      %v9924 = vadd.f32 0.0, %v9923
      %v9925 = vpop.f32.mrb[0].mxu0
      %v9926 = vpop.f32.mrb[0].mxu0
      %v9927 = vadd.f32 0.0, %v9926
      %v9928 = vpop.f32.mrb[0].mxu0
      %9929 = vdwg.mxu0
      %v9930 = vadd.f32 %v9515, %v9868
      %v9931 = vadd.f32 %v9518, %v9871
      %v9932 = vadd.f32 %v9523, %v9876
      %v9933 = vadd.f32 %v9526, %v9879
      %v9934 = vadd.f32 %v9531, %v9884
      %v9935 = vadd.f32 %v9534, %v9887
      %v9936 = vadd.f32 %v9539, %v9892
      %v9937 = vadd.f32 %v9542, %v9895
      %v9938 = vadd.f32 %v9547, %v9900
      %v9939 = vadd.f32 %v9550, %v9903
      %v9940 = vadd.f32 %v9555, %v9908
      %v9941 = vadd.f32 %v9558, %v9911
      %v9942 = vadd.f32 %v9563, %v9916
      %v9943 = vadd.f32 %v9566, %v9919
      %v9944 = vadd.f32 %v9571, %v9924
      %v9945 = vadd.f32 %v9574, %v9927
      %v9946 = vld [vmem:[%s6 + $0xc] sm:$0xf]
      %v9947 = vld [vmem:[%s6 + $0x1c] sm:$0xf]
      %v9948 = vld [vmem:[%s6 + $0x2c] sm:$0xf]
      %v9949 = vld [vmem:[%s6 + $0x3c] sm:$0xf]
      %v9950 = vld [vmem:[%s6 + $0x4c] sm:$0xf]
      %v9951 = vld [vmem:[%s6 + $0x5c] sm:$0xf]
      %v9952 = vld [vmem:[%s6 + $0x6c] sm:$0xf]
      %v9953 = vld [vmem:[%s6 + $0x7c] sm:$0xf]
      %v9954 = vld [vmem:[%s6 + $0x8c] sm:$0xf]
      %v9955 = vld [vmem:[%s6 + $0x9c] sm:$0xf]
      %v9956 = vld [vmem:[%s6 + $0xac] sm:$0xf]
      %v9957 = vld [vmem:[%s6 + $0xbc] sm:$0xf]
      %v9958 = vld [vmem:[%s6 + $0xcc] sm:$0xf]
      %v9959 = vld [vmem:[%s6 + $0xdc] sm:$0xf]
      %v9960 = vld [vmem:[%s6 + $0xec] sm:$0xf]
      %v9961 = vld [vmem:[%s6 + $0xfc] sm:$0xf]
      %v9962 = vld [vmem:[%s7 + $0x3] sm:$0x1]
      %v9964 = vlaneseq
      %v9965 = vshrl.u32 %v9964, 7
      %v9966 = vsub.s32 0, %v9965
      %v9967 = vrot.slane %v9962, %v9966
      %v9985 = vunpack.c.l.b16 %v9946
      %v9986 = vunpack.c.l.b16 %v9947
      %v9987 = vunpack.c.l.b16 %v9948
      %v9988 = vunpack.c.l.b16 %v9949
      %v9989 = vunpack.c.l.b16 %v9950
      %v9990 = vunpack.c.l.b16 %v9951
      %v9991 = vunpack.c.l.b16 %v9952
      %v9992 = vunpack.c.l.b16 %v9953
      %v9993 = vunpack.c.l.b16 %v9954
      %v9994 = vunpack.c.l.b16 %v9955
      %v9995 = vunpack.c.l.b16 %v9956
      %v9996 = vunpack.c.l.b16 %v9957
      %v9997 = vunpack.c.l.b16 %v9958
      %v9998 = vunpack.c.l.b16 %v9959
      %v9999 = vunpack.c.l.b16 %v9960
      %v10000 = vunpack.c.l.b16 %v9961
      %v10001 = vpack.c.b16 %v9986, %v9985
      %v10002 = vpack.c.b16 %v9988, %v9987
      %v10003 = vpack.c.b16 %v9990, %v9989
      %v10004 = vpack.c.b16 %v9992, %v9991
      %v10005 = vpack.c.b16 %v9994, %v9993
      %v10006 = vpack.c.b16 %v9996, %v9995
      %v10007 = vpack.c.b16 %v9998, %v9997
      %v10008 = vpack.c.b16 %v10000, %v9999
      %10017 = vmatprep.subr.bf16.mxu0 0
      %10018 = vmatpush1.bf16.msra.mxu0 %v10001
      %10019 = vmatprep.subr.bf16.mxu0 0
      %10020 = vmatpush1.bf16.msra.mxu0 %v10002
      %10021 = vmatprep.subr.bf16.mxu0 0
      %10022 = vmatpush1.bf16.msra.mxu0 %v10003
      %10023 = vmatprep.subr.bf16.mxu0 0
      %10024 = vmatpush1.bf16.msra.mxu0 %v10004
      %10025 = vmatprep.subr.bf16.mxu0 0
      %10026 = vmatpush1.bf16.msra.mxu0 %v10005
      %10027 = vmatprep.subr.bf16.mxu0 0
      %10028 = vmatpush1.bf16.msra.mxu0 %v10006
      %10029 = vmatprep.subr.bf16.mxu0 0
      %10030 = vmatpush1.bf16.msra.mxu0 %v10007
      %10031 = vmatprep.subr.bf16.mxu0 0
      %10032 = vmatpush1.bf16.msra.mxu0 %v10008
      %10033 = vmatprep.subr.bf16.mxu0 0
      %10034 = vmatpush1.bf16.msra.mxu0 0
      %10035 = vmatprep.subr.bf16.mxu0 0
      %10036 = vmatpush1.bf16.msra.mxu0 0
      %10037 = vmatprep.subr.bf16.mxu0 0
      %10038 = vmatpush1.bf16.msra.mxu0 0
      %10039 = vmatprep.subr.bf16.mxu0 0
      %10040 = vmatpush1.bf16.msra.mxu0 0
      %10041 = vmatprep.subr.bf16.mxu0 0
      %10042 = vmatpush1.bf16.msra.mxu0 0
      %10043 = vmatprep.subr.bf16.mxu0 0
      %10044 = vmatpush1.bf16.msra.mxu0 0
      %10045 = vmatprep.subr.bf16.mxu0 0
      %10046 = vmatpush1.bf16.msra.mxu0 0
      %10047 = vmatprep.subr.bf16.mxu0 0
      %10048 = vmatpush1.bf16.msra.mxu0 0
      %10049 = vmatprep.mubr.bf16.mxu0 0
      %10050 = vmatmul.mubr.bf16.gmra.mrb[0].mxu0 %v8863
      %v10051 = vpop.f32.mrb[0].mxu0
      %v10052 = vadd.f32 %v9967, %v10051
      %v10053 = vpop.f32.mrb[0].mxu0
      %v10054 = vpop.f32.mrb[0].mxu0
      %v10055 = vadd.f32 %v9967, %v10054
      %v10056 = vpop.f32.mrb[0].mxu0
      %10057 = vmatprep.mubr.bf16.mxu0 0
      %10058 = vmatmul.mubr.bf16.gmra.mrb[0].mxu0 %v8864
      %v10059 = vpop.f32.mrb[0].mxu0
      %v10060 = vadd.f32 %v9967, %v10059
      %v10061 = vpop.f32.mrb[0].mxu0
      %v10062 = vpop.f32.mrb[0].mxu0
      %v10063 = vadd.f32 %v9967, %v10062
      %v10064 = vpop.f32.mrb[0].mxu0
      %10065 = vmatprep.mubr.bf16.mxu0 0
      %10066 = vmatmul.mubr.bf16.gmra.mrb[0].mxu0 %v8865
      %v10067 = vpop.f32.mrb[0].mxu0
      %v10068 = vadd.f32 %v9967, %v10067
      %v10069 = vpop.f32.mrb[0].mxu0
      %v10070 = vpop.f32.mrb[0].mxu0
      %v10071 = vadd.f32 %v9967, %v10070
      %v10072 = vpop.f32.mrb[0].mxu0
      %10073 = vmatprep.mubr.bf16.mxu0 0
      %10074 = vmatmul.mubr.bf16.gmra.mrb[0].mxu0 %v8866
      %v10075 = vpop.f32.mrb[0].mxu0
      %v10076 = vadd.f32 %v9967, %v10075
      %v10077 = vpop.f32.mrb[0].mxu0
      %v10078 = vpop.f32.mrb[0].mxu0
      %v10079 = vadd.f32 %v9967, %v10078
      %v10080 = vpop.f32.mrb[0].mxu0
      %10081 = vmatprep.mubr.bf16.mxu0 0
      %10082 = vmatmul.mubr.bf16.gmra.mrb[0].mxu0 %v8867
      %v10083 = vpop.f32.mrb[0].mxu0
      %v10084 = vadd.f32 %v9967, %v10083
      %v10085 = vpop.f32.mrb[0].mxu0
      %v10086 = vpop.f32.mrb[0].mxu0
      %v10087 = vadd.f32 %v9967, %v10086
      %v10088 = vpop.f32.mrb[0].mxu0
      %10089 = vmatprep.mubr.bf16.mxu0 0
      %10090 = vmatmul.mubr.bf16.gmra.mrb[0].mxu0 %v8868
      %v10091 = vpop.f32.mrb[0].mxu0
      %v10092 = vadd.f32 %v9967, %v10091
      %v10093 = vpop.f32.mrb[0].mxu0
      %v10094 = vpop.f32.mrb[0].mxu0
      %v10095 = vadd.f32 %v9967, %v10094
      %v10096 = vpop.f32.mrb[0].mxu0
      %10097 = vmatprep.mubr.bf16.mxu0 0
      %10098 = vmatmul.mubr.bf16.gmra.mrb[0].mxu0 %v8869
      %v10099 = vpop.f32.mrb[0].mxu0
      %v10100 = vadd.f32 %v9967, %v10099
      %v10101 = vpop.f32.mrb[0].mxu0
      %v10102 = vpop.f32.mrb[0].mxu0
      %v10103 = vadd.f32 %v9967, %v10102
      %v10104 = vpop.f32.mrb[0].mxu0
      %10105 = vmatprep.mubr.bf16.mxu0 0
      %10106 = vmatmul.mubr.bf16.gmra.mrb[0].mxu0 %v8870
      %v10107 = vpop.f32.mrb[0].mxu0
      %v10108 = vadd.f32 %v9967, %v10107
      %v10109 = vpop.f32.mrb[0].mxu0
      %v10110 = vpop.f32.mrb[0].mxu0
      %v10111 = vadd.f32 %v9967, %v10110
      %v10112 = vpop.f32.mrb[0].mxu0
      %10113 = vdwg.mxu0
      %v10114 = vmax.f32 %v10052, 0.0
      %v10115 = vmax.f32 %v10055, 0.0
      %v10116 = vmax.f32 %v10060, 0.0
      %v10117 = vmax.f32 %v10063, 0.0
      %v10118 = vmax.f32 %v10068, 0.0
      %v10119 = vmax.f32 %v10071, 0.0
      %v10120 = vmax.f32 %v10076, 0.0
      %v10121 = vmax.f32 %v10079, 0.0
      %v10122 = vmax.f32 %v10084, 0.0
      %v10123 = vmax.f32 %v10087, 0.0
      %v10124 = vmax.f32 %v10092, 0.0
      %v10125 = vmax.f32 %v10095, 0.0
      %v10126 = vmax.f32 %v10100, 0.0
      %v10127 = vmax.f32 %v10103, 0.0
      %v10128 = vmax.f32 %v10108, 0.0
      %v10129 = vmax.f32 %v10111, 0.0
      %v10130 = vpack.c.bf16 %v10115, %v10114
      %v10131 = vpack.c.bf16 %v10117, %v10116
      %v10132 = vpack.c.bf16 %v10119, %v10118
      %v10133 = vpack.c.bf16 %v10121, %v10120
      %v10134 = vpack.c.bf16 %v10123, %v10122
      %v10135 = vpack.c.bf16 %v10125, %v10124
      %v10136 = vpack.c.bf16 %v10127, %v10126
      %v10137 = vpack.c.bf16 %v10129, %v10128
      %v10138 = vld [vmem:[%s8 + $0xc0] sm:$0xf]
      %v10139 = vld [vmem:[%s8 + $0xc4] sm:$0xf]
      %v10140 = vld [vmem:[%s8 + $0xc8] sm:$0xf]
      %v10141 = vld [vmem:[%s8 + $0xcc] sm:$0xf]
      %v10142 = vld [vmem:[%s8 + $0xd0] sm:$0xf]
      %v10143 = vld [vmem:[%s8 + $0xd4] sm:$0xf]
      %v10144 = vld [vmem:[%s8 + $0xd8] sm:$0xf]
      %v10145 = vld [vmem:[%s8 + $0xdc] sm:$0xf]
      %v10146 = vld [vmem:[%s8 + $0xe0] sm:$0xf]
      %v10147 = vld [vmem:[%s8 + $0xe4] sm:$0xf]
      %v10148 = vld [vmem:[%s8 + $0xe8] sm:$0xf]
      %v10149 = vld [vmem:[%s8 + $0xec] sm:$0xf]
      %v10150 = vld [vmem:[%s8 + $0xf0] sm:$0xf]
      %v10151 = vld [vmem:[%s8 + $0xf4] sm:$0xf]
      %v10152 = vld [vmem:[%s8 + $0xf8] sm:$0xf]
      %v10153 = vld [vmem:[%s8 + $0xfc] sm:$0xf]
      %v10170 = vunpack.c.l.b16 %v10138
      %v10171 = vunpack.c.l.b16 %v10139
      %v10172 = vunpack.c.l.b16 %v10140
      %v10173 = vunpack.c.l.b16 %v10141
      %v10174 = vunpack.c.l.b16 %v10142
      %v10175 = vunpack.c.l.b16 %v10143
      %v10176 = vunpack.c.l.b16 %v10144
      %v10177 = vunpack.c.l.b16 %v10145
      %v10178 = vunpack.c.l.b16 %v10146
      %v10179 = vunpack.c.l.b16 %v10147
      %v10180 = vunpack.c.l.b16 %v10148
      %v10181 = vunpack.c.l.b16 %v10149
      %v10182 = vunpack.c.l.b16 %v10150
      %v10183 = vunpack.c.l.b16 %v10151
      %v10184 = vunpack.c.l.b16 %v10152
      %v10185 = vunpack.c.l.b16 %v10153
      %v10186 = vpack.c.b16 %v10171, %v10170
      %v10187 = vpack.c.b16 %v10173, %v10172
      %v10188 = vpack.c.b16 %v10175, %v10174
      %v10189 = vpack.c.b16 %v10177, %v10176
      %v10190 = vpack.c.b16 %v10179, %v10178
      %v10191 = vpack.c.b16 %v10181, %v10180
      %v10192 = vpack.c.b16 %v10183, %v10182
      %v10193 = vpack.c.b16 %v10185, %v10184
      %10202 = vmatprep.subr.bf16.mxu0 0
      %10203 = vmatpush1.bf16.msra.mxu0 %v10186
      %10204 = vmatprep.subr.bf16.mxu0 0
      %10205 = vmatpush1.bf16.msra.mxu0 %v10187
      %10206 = vmatprep.subr.bf16.mxu0 0
      %10207 = vmatpush1.bf16.msra.mxu0 %v10188
      %10208 = vmatprep.subr.bf16.mxu0 0
      %10209 = vmatpush1.bf16.msra.mxu0 %v10189
      %10210 = vmatprep.subr.bf16.mxu0 0
      %10211 = vmatpush1.bf16.msra.mxu0 %v10190
      %10212 = vmatprep.subr.bf16.mxu0 0
      %10213 = vmatpush1.bf16.msra.mxu0 %v10191
      %10214 = vmatprep.subr.bf16.mxu0 0
      %10215 = vmatpush1.bf16.msra.mxu0 %v10192
      %10216 = vmatprep.subr.bf16.mxu0 0
      %10217 = vmatpush1.bf16.msra.mxu0 %v10193
      %10218 = vmatprep.subr.bf16.mxu0 0
      %10219 = vmatpush1.bf16.msra.mxu0 0
      %10220 = vmatprep.subr.bf16.mxu0 0
      %10221 = vmatpush1.bf16.msra.mxu0 0
      %10222 = vmatprep.subr.bf16.mxu0 0
      %10223 = vmatpush1.bf16.msra.mxu0 0
      %10224 = vmatprep.subr.bf16.mxu0 0
      %10225 = vmatpush1.bf16.msra.mxu0 0
      %10226 = vmatprep.subr.bf16.mxu0 0
      %10227 = vmatpush1.bf16.msra.mxu0 0
      %10228 = vmatprep.subr.bf16.mxu0 0
      %10229 = vmatpush1.bf16.msra.mxu0 0
      %10230 = vmatprep.subr.bf16.mxu0 0
      %10231 = vmatpush1.bf16.msra.mxu0 0
      %10232 = vmatprep.subr.bf16.mxu0 0
      %10233 = vmatpush1.bf16.msra.mxu0 0
      %10234 = vmatprep.mubr.bf16.mxu0 0
      %10235 = vmatmul.mubr.bf16.gmra.mrb[0].mxu0 %v10130
      %v10236 = vpop.f32.mrb[0].mxu0
      %v10237 = vadd.f32 0.0, %v10236
      %v10238 = vpop.f32.mrb[0].mxu0
      %v10239 = vpop.f32.mrb[0].mxu0
      %v10240 = vadd.f32 0.0, %v10239
      %v10241 = vpop.f32.mrb[0].mxu0
      %10242 = vmatprep.mubr.bf16.mxu0 0
      %10243 = vmatmul.mubr.bf16.gmra.mrb[0].mxu0 %v10131
      %v10244 = vpop.f32.mrb[0].mxu0
      %v10245 = vadd.f32 0.0, %v10244
      %v10246 = vpop.f32.mrb[0].mxu0
      %v10247 = vpop.f32.mrb[0].mxu0
      %v10248 = vadd.f32 0.0, %v10247
      %v10249 = vpop.f32.mrb[0].mxu0
      %10250 = vmatprep.mubr.bf16.mxu0 0
      %10251 = vmatmul.mubr.bf16.gmra.mrb[0].mxu0 %v10132
      %v10252 = vpop.f32.mrb[0].mxu0
      %v10253 = vadd.f32 0.0, %v10252
      %v10254 = vpop.f32.mrb[0].mxu0
      %v10255 = vpop.f32.mrb[0].mxu0
      %v10256 = vadd.f32 0.0, %v10255
      %v10257 = vpop.f32.mrb[0].mxu0
      %10258 = vmatprep.mubr.bf16.mxu0 0
      %10259 = vmatmul.mubr.bf16.gmra.mrb[0].mxu0 %v10133
      %v10260 = vpop.f32.mrb[0].mxu0
      %v10261 = vadd.f32 0.0, %v10260
      %v10262 = vpop.f32.mrb[0].mxu0
      %v10263 = vpop.f32.mrb[0].mxu0
      %v10264 = vadd.f32 0.0, %v10263
      %v10265 = vpop.f32.mrb[0].mxu0
      %10266 = vmatprep.mubr.bf16.mxu0 0
      %10267 = vmatmul.mubr.bf16.gmra.mrb[0].mxu0 %v10134
      %v10268 = vpop.f32.mrb[0].mxu0
      %v10269 = vadd.f32 0.0, %v10268
      %v10270 = vpop.f32.mrb[0].mxu0
      %v10271 = vpop.f32.mrb[0].mxu0
      %v10272 = vadd.f32 0.0, %v10271
      %v10273 = vpop.f32.mrb[0].mxu0
      %10274 = vmatprep.mubr.bf16.mxu0 0
      %10275 = vmatmul.mubr.bf16.gmra.mrb[0].mxu0 %v10135
      %v10276 = vpop.f32.mrb[0].mxu0
      %v10277 = vadd.f32 0.0, %v10276
      %v10278 = vpop.f32.mrb[0].mxu0
      %v10279 = vpop.f32.mrb[0].mxu0
      %v10280 = vadd.f32 0.0, %v10279
      %v10281 = vpop.f32.mrb[0].mxu0
      %10282 = vmatprep.mubr.bf16.mxu0 0
      %10283 = vmatmul.mubr.bf16.gmra.mrb[0].mxu0 %v10136
      %v10284 = vpop.f32.mrb[0].mxu0
      %v10285 = vadd.f32 0.0, %v10284
      %v10286 = vpop.f32.mrb[0].mxu0
      %v10287 = vpop.f32.mrb[0].mxu0
      %v10288 = vadd.f32 0.0, %v10287
      %v10289 = vpop.f32.mrb[0].mxu0
      %10290 = vmatprep.mubr.bf16.mxu0 0
      %10291 = vmatmul.mubr.bf16.gmra.mrb[0].mxu0 %v10137
      %v10292 = vpop.f32.mrb[0].mxu0
      %v10293 = vadd.f32 0.0, %v10292
      %v10294 = vpop.f32.mrb[0].mxu0
      %v10295 = vpop.f32.mrb[0].mxu0
      %v10296 = vadd.f32 0.0, %v10295
      %v10297 = vpop.f32.mrb[0].mxu0
      %10298 = vdwg.mxu0
      %v10299 = vadd.f32 %v9930, %v10237
      %v10300 = vadd.f32 %v9931, %v10240
      %v10301 = vadd.f32 %v9932, %v10245
      %v10302 = vadd.f32 %v9933, %v10248
      %v10303 = vadd.f32 %v9934, %v10253
      %v10304 = vadd.f32 %v9935, %v10256
      %v10305 = vadd.f32 %v9936, %v10261
      %v10306 = vadd.f32 %v9937, %v10264
      %v10307 = vadd.f32 %v9938, %v10269
      %v10308 = vadd.f32 %v9939, %v10272
      %v10309 = vadd.f32 %v9940, %v10277
      %v10310 = vadd.f32 %v9941, %v10280
      %v10311 = vadd.f32 %v9942, %v10285
      %v10312 = vadd.f32 %v9943, %v10288
      %v10313 = vadd.f32 %v9944, %v10293
      %v10314 = vadd.f32 %v9945, %v10296
      %v10315 = vld [vmem:[%s9] sm:$0x1]
      %v10317 = vlaneseq
      %v10318 = vshrl.u32 %v10317, 7
      %v10319 = vsub.s32 0, %v10318
      %v10320 = vrot.slane %v10315, %v10319
      %v10322 = vadd.f32 %v10299, %v10320
      %v10323 = vadd.f32 %v10300, %v10320
      %v10324 = vadd.f32 %v10301, %v10320
      %v10325 = vadd.f32 %v10302, %v10320
      %v10326 = vadd.f32 %v10303, %v10320
      %v10327 = vadd.f32 %v10304, %v10320
      %v10328 = vadd.f32 %v10305, %v10320
      %v10329 = vadd.f32 %v10306, %v10320
      %v10330 = vadd.f32 %v10307, %v10320
      %v10331 = vadd.f32 %v10308, %v10320
      %v10332 = vadd.f32 %v10309, %v10320
      %v10333 = vadd.f32 %v10310, %v10320
      %v10334 = vadd.f32 %v10311, %v10320
      %v10335 = vadd.f32 %v10312, %v10320
      %v10336 = vadd.f32 %v10313, %v10320
      %v10337 = vadd.f32 %v10314, %v10320
      %v10338 = vxor.u32 %v10322, 2147483648
      %v10339 = vxor.u32 %v10323, 2147483648
      %v10340 = vxor.u32 %v10324, 2147483648
      %v10341 = vxor.u32 %v10325, 2147483648
      %v10342 = vxor.u32 %v10326, 2147483648
      %v10343 = vxor.u32 %v10327, 2147483648
      %v10344 = vxor.u32 %v10328, 2147483648
      %v10345 = vxor.u32 %v10329, 2147483648
      %v10346 = vxor.u32 %v10330, 2147483648
      %v10347 = vxor.u32 %v10331, 2147483648
      %v10348 = vxor.u32 %v10332, 2147483648
      %v10349 = vxor.u32 %v10333, 2147483648
      %v10350 = vxor.u32 %v10334, 2147483648
      %v10351 = vxor.u32 %v10335, 2147483648
      %v10352 = vxor.u32 %v10336, 2147483648
      %v10353 = vxor.u32 %v10337, 2147483648
      %v10354 = vmul.f32 %v10338, 1.442695
      %v10355 = vpow.pop %v10354
      %v10356 = vmul.f32 %v10339, 1.442695
      %v10357 = vpow.pop %v10356
      %v10358 = vmul.f32 %v10340, 1.442695
      %v10359 = vpow.pop %v10358
      %v10360 = vmul.f32 %v10341, 1.442695
      %v10361 = vpow.pop %v10360
      %v10362 = vmul.f32 %v10342, 1.442695
      %v10363 = vpow.pop %v10362
      %v10364 = vmul.f32 %v10343, 1.442695
      %v10365 = vpow.pop %v10364
      %v10366 = vmul.f32 %v10344, 1.442695
      %v10367 = vpow.pop %v10366
      %v10368 = vmul.f32 %v10345, 1.442695
      %v10369 = vpow.pop %v10368
      %v10370 = vmul.f32 %v10346, 1.442695
      %v10371 = vpow.pop %v10370
      %v10372 = vmul.f32 %v10347, 1.442695
      %v10373 = vpow.pop %v10372
      %v10374 = vmul.f32 %v10348, 1.442695
      %v10375 = vpow.pop %v10374
      %v10376 = vmul.f32 %v10349, 1.442695
      %v10377 = vpow.pop %v10376
      %v10378 = vmul.f32 %v10350, 1.442695
      %v10379 = vpow.pop %v10378
      %v10380 = vmul.f32 %v10351, 1.442695
      %v10381 = vpow.pop %v10380
      %v10382 = vmul.f32 %v10352, 1.442695
      %v10383 = vpow.pop %v10382
      %v10384 = vmul.f32 %v10353, 1.442695
      %v10385 = vpow.pop %v10384
      %v10386 = vadd.f32 %v10355, 1.0
      %v10387 = vadd.f32 %v10357, 1.0
      %v10388 = vadd.f32 %v10359, 1.0
      %v10389 = vadd.f32 %v10361, 1.0
      %v10390 = vadd.f32 %v10363, 1.0
      %v10391 = vadd.f32 %v10365, 1.0
      %v10392 = vadd.f32 %v10367, 1.0
      %v10393 = vadd.f32 %v10369, 1.0
      %v10394 = vadd.f32 %v10371, 1.0
      %v10395 = vadd.f32 %v10373, 1.0
      %v10396 = vadd.f32 %v10375, 1.0
      %v10397 = vadd.f32 %v10377, 1.0
      %v10398 = vadd.f32 %v10379, 1.0
      %v10399 = vadd.f32 %v10381, 1.0
      %v10400 = vadd.f32 %v10383, 1.0
      %v10401 = vadd.f32 %v10385, 1.0
      %v10402 = vrcp.pop %v10386
      %v10403 = vmul.f32 1.0, %v10402
      %v10404 = vrcp.pop %v10387
      %v10405 = vmul.f32 1.0, %v10404
      %v10406 = vrcp.pop %v10388
      %v10407 = vmul.f32 1.0, %v10406
      %v10408 = vrcp.pop %v10389
      %v10409 = vmul.f32 1.0, %v10408
      %v10410 = vrcp.pop %v10390
      %v10411 = vmul.f32 1.0, %v10410
      %v10412 = vrcp.pop %v10391
      %v10413 = vmul.f32 1.0, %v10412
      %v10414 = vrcp.pop %v10392
      %v10415 = vmul.f32 1.0, %v10414
      %v10416 = vrcp.pop %v10393
      %v10417 = vmul.f32 1.0, %v10416
      %v10418 = vrcp.pop %v10394
      %v10419 = vmul.f32 1.0, %v10418
      %v10420 = vrcp.pop %v10395
      %v10421 = vmul.f32 1.0, %v10420
      %v10422 = vrcp.pop %v10396
      %v10423 = vmul.f32 1.0, %v10422
      %v10424 = vrcp.pop %v10397
      %v10425 = vmul.f32 1.0, %v10424
      %v10426 = vrcp.pop %v10398
      %v10427 = vmul.f32 1.0, %v10426
      %v10428 = vrcp.pop %v10399
      %v10429 = vmul.f32 1.0, %v10428
      %v10430 = vrcp.pop %v10400
      %v10431 = vmul.f32 1.0, %v10430
      %v10432 = vrcp.pop %v10401
      %v10433 = vmul.f32 1.0, %v10432
      %10434 = vst [vmem:[%s366] sm:$0xff] %v10403
      %10435 = vst [vmem:[%s366 + $0x8] sm:$0xff] %v10405
      %10436 = vst [vmem:[%s366 + $0x10] sm:$0xff] %v10407
      %10437 = vst [vmem:[%s366 + $0x18] sm:$0xff] %v10409
      %10438 = vst [vmem:[%s366 + $0x20] sm:$0xff] %v10411
      %10439 = vst [vmem:[%s366 + $0x28] sm:$0xff] %v10413
      %10440 = vst [vmem:[%s366 + $0x30] sm:$0xff] %v10415
      %10441 = vst [vmem:[%s366 + $0x38] sm:$0xff] %v10417
      %10442 = vst [vmem:[%s366 + $0x40] sm:$0xff] %v10419
      %10443 = vst [vmem:[%s366 + $0x48] sm:$0xff] %v10421
      %10444 = vst [vmem:[%s366 + $0x50] sm:$0xff] %v10423
      %10445 = vst [vmem:[%s366 + $0x58] sm:$0xff] %v10425
      %10446 = vst [vmem:[%s366 + $0x60] sm:$0xff] %v10427
      %10447 = vst [vmem:[%s366 + $0x68] sm:$0xff] %v10429
      %10448 = vst [vmem:[%s366 + $0x70] sm:$0xff] %v10431
      %10449 = vst [vmem:[%s366 + $0x78] sm:$0xff] %v10433
      %s10450 = smul.u32 2, %s21
      %p10451 = scmp.lt.s32.totalorder %s10450, 3
      %s10452 = scalar_select %p10451, %s10450, 3
      %s10453 = smul.addr %s10452, 8
      %s10454 = smul.addr %s10453, 8
      %s10455 = scalar_lea.vmem %s10, %s10454
      // Predicated region
      $region61: #{mask_forward.1} parent=59 // pred_check
        %p10456 = pneg %p254
      $region62: #{mask_forward.1} parent=59 // pred_check_branch
        %10458 = sbr.rel (%p10456) target = $region64
      $region63: #{mask_forward.1} parent=59 // pred_region
        %s10459 = smul.u32 2, %s21
      $region64: #{mask_forward.1} parent=59 // pred_fallthru
        _
    $region60: #{mask_forward.1} parent=5 // pred_fallthru
      _
    %p10460 = scmp.le.s32.totalorder 2, %s16
    // Predicated region
    $region65: #{mask_forward.1} parent=5 // pred_check
      %p10461 = pneg %p10460
    $region66: #{mask_forward.1} parent=5 // pred_check_branch
      %10463 = sbr.rel (%p10461) target = $region68
    $region67: #{mask_forward.1} parent=5 // pred_region
      %s10464 = ssub.s32 %s16, 2
      // Predicated region
      $region69: #{mask_forward.1} parent=67 // pred_check
        %p10465 = pneg %p260
      $region70: #{mask_forward.1} parent=67 // pred_check_branch
        %10467 = sbr.rel (%p10465) target = $region72
      $region71: #{mask_forward.1} parent=67 // pred_region
        %s10468 = smul.u32 2, %s22
        %p10469 = scmp.lt.s32.totalorder %s10468, 3
        %s10470 = scalar_select %p10469, %s10468, 3
        %s10471 = smul.addr %s10470, 8
        %s10472 = smul.addr %s10471, 8
        %s10473 = scalar_lea.vmem %s10, %s10472
      $region72: #{mask_forward.1} parent=67 // pred_fallthru
        _
    $region68: #{mask_forward.1} parent=5 // pred_fallthru
      _
  $region6: #{mask_forward.1} parent=0 // loop_footer
    %s20 = sadd.s32 1, %s16
  $region7: #{mask_forward.1} parent=0 // loop_footer_branch
    %15 = sbr.rel target = $region3
  $region8: #{mask_forward.1} parent=0 // loop_exit
    _

</llo_original>
